<compile_context>
chip_gen: v7x
topology: tpu7x:2x2x1
jax: 0.10.0
libtpu: 0.0.40
codegen_flags: <defaults>
</compile_context>

<pallas_src>
import functools
import math

import jax
import jax.numpy as jnp
from jax.experimental import pallas as pl
from jax.experimental.pallas import tpu as pltpu


# ----------------------------------------------------------------------------
# Hardware-aware VMEM configuration
# ----------------------------------------------------------------------------

@functools.lru_cache(maxsize=1)
def _vmem_config():
    """Per-generation VMEM working-set budget, scoped limit, tile candidates."""
    try:
        cap = int(pltpu.get_tpu_info().vmem_capacity_bytes)
    except Exception:
        cap = 64 * 1024 * 1024  # conservative (v7x-sized) fallback
    if cap <= 64 * 1024 * 1024:
        # v7x-class: 64 MiB per TensorCore -> leave headroom for Mosaic scratch.
        return {
            "budget": 20 * 1024 * 1024,
            "limit": 40 * 1024 * 1024,
            "tn_cands": (256, 128),
            "tk_cands": (512, 256, 128),
        }
    # v5e / v6e: 128 MiB physical VMEM.
    return {
        "budget": 32 * 1024 * 1024,
        "limit": 64 * 1024 * 1024,
        "tn_cands": (512, 256, 128),
        "tk_cands": (512, 256, 128),
    }


# ----------------------------------------------------------------------------
# Pallas kernels
# ----------------------------------------------------------------------------

def _mm_kernel(x_ref, w_ref, shift_ref, o_ref, acc_ref, *, relu):
    # out = relu?( X @ W + shift ), accumulated over the K grid axis.
    @pl.when(pl.program_id(2) == 0)
    def _():
        acc_ref[...] = jnp.zeros_like(acc_ref)

    acc_ref[...] += jnp.dot(x_ref[...], w_ref[...],
                            preferred_element_type=jnp.float32)

    @pl.when(pl.program_id(2) == pl.num_programs(2) - 1)
    def _():
        out = acc_ref[...] + shift_ref[...]
        if relu:
            out = jnp.maximum(out, 0.0)
        o_ref[...] = out.astype(o_ref.dtype)


def _mm_res_kernel(x_ref, w_ref, shift_ref, res_ref, o_ref, acc_ref, *, relu):
    # out = relu?( X @ W + shift + residual ); residual arrives in bf16.
    @pl.when(pl.program_id(2) == 0)
    def _():
        acc_ref[...] = jnp.zeros_like(acc_ref)

    acc_ref[...] += jnp.dot(x_ref[...], w_ref[...],
                            preferred_element_type=jnp.float32)

    @pl.when(pl.program_id(2) == pl.num_programs(2) - 1)
    def _():
        out = acc_ref[...] + shift_ref[...] + res_ref[...].astype(jnp.float32)
        if relu:
            out = jnp.maximum(out, 0.0)
        o_ref[...] = out.astype(o_ref.dtype)


def _attn_kernel(q_ref, k_ref, v_ref, o_ref):
    # All (batch, head) pairs at once.  q has a single query token, so scores
    # are a VPU multiply + lane reduction (no MXU underfill at (1,dh)x(dh,L)).
    q = q_ref[...].astype(jnp.float32)            # (BH, 1, dh); 1/sqrt(dh) folded
    k = k_ref[...].astype(jnp.float32)            # (BH, L, dh)
    v = v_ref[...].astype(jnp.float32)            # (BH, L, dh)
    s = jnp.sum(q * k, axis=-1)                   # (BH, L)
    m = jnp.max(s, axis=-1, keepdims=True)
    p = jnp.exp(s - m)
    p = p * pl.reciprocal(jnp.sum(p, axis=-1, keepdims=True), approx=False)
    o = jnp.sum(p[..., None] * v, axis=1, keepdims=True)   # (BH, 1, dh)
    o_ref[...] = o.astype(o_ref.dtype)


# ----------------------------------------------------------------------------
# Pallas wrappers
# ----------------------------------------------------------------------------

def _round_up(v, m):
    return -(-v // m) * m


def _pick_divisor(dim, candidates, fallback):
    for c in candidates:
        if dim % c == 0:
            return c
    return fallback


def _tile_sizes(M0, K, N, *, has_residual, out_bytes):
    cfg = _vmem_config()
    tn = _pick_divisor(N, cfg["tn_cands"], N)
    tk = _pick_divisor(K, cfg["tk_cands"], K)

    m_cap = _round_up(M0, 8)
    # Allow up to ~25% (or 256-row) M padding so large tiles survive ragged M.
    pad_bound = max(m_cap + 256, int(m_cap * 1.25))
    tm = 8
    for cand in (512, 256, 128, 64, 32, 16, 8):
        if cand > m_cap:
            continue
        if _round_up(M0, cand) > pad_bound:
            continue
        need = (2 * cand * tk * 2            # x (bf16), double-buffered
                + 2 * tk * tn * 2            # w (bf16), double-buffered
                + cand * tn * 4              # f32 accumulator scratch
                + 2 * cand * tn * out_bytes  # output, double-buffered
                + 2 * tn * 4)                # shift
        if has_residual:
            need += 2 * cand * tn * 2        # residual (bf16), double-buffered
        if need <= cfg["budget"]:
            tm = cand
            break
    return min(tm, m_cap), tn, tk


def matmul_affine(x, w, shift, residual=None, relu=False, out_dtype=jnp.bfloat16):
    """out = relu?( x @ w + shift (+ residual) )

    x: (M, K), w: (K, N) (BN scale pre-folded into columns), shift: (N,),
    residual: (M, N) or None.  bf16 MXU inputs / residual / output,
    f32 accumulation and epilogue.
    """
    M0, K = x.shape
    K2, N0 = w.shape
    assert K == K2

    xb = x.astype(jnp.bfloat16)
    wb = w.astype(jnp.bfloat16)
    sh = shift.astype(jnp.float32).reshape(1, N0)
    res = None if residual is None else residual.astype(jnp.bfloat16)

    # Lane-pad N to a multiple of 128 with zero columns so stores are
    # lane-dense (unmasked vst).  K is never padded.
    N = _round_up(N0, 128)
    if N != N0:
        wb = jnp.pad(wb, ((0, 0), (0, N - N0)))
        sh = jnp.pad(sh, ((0, 0), (0, N - N0)))
        if res is not None:
            res = jnp.pad(res, ((0, 0), (0, N - N0)))

    out_bytes = jnp.dtype(out_dtype).itemsize
    tm, tn, tk = _tile_sizes(M0, K, N, has_residual=res is not None,
                             out_bytes=out_bytes)

    M = _round_up(M0, tm)
    if M != M0:
        xb = jnp.pad(xb, ((0, M - M0), (0, 0)))
        if res is not None:
            res = jnp.pad(res, ((0, M - M0), (0, 0)))

    grid = (M // tm, N // tn, K // tk)

    in_specs = [
        pl.BlockSpec((tm, tk), lambda i, j, k: (i, k)),
        pl.BlockSpec((tk, tn), lambda i, j, k: (k, j)),
        pl.BlockSpec((1, tn), lambda i, j, k: (0, j)),
    ]
    inputs = [xb, wb, sh]
    if res is None:
        kern = functools.partial(_mm_kernel, relu=relu)
    else:
        kern = functools.partial(_mm_res_kernel, relu=relu)
        in_specs.append(pl.BlockSpec((tm, tn), lambda i, j, k: (i, j)))
        inputs.append(res)

    cfg = _vmem_config()
    out = pl.pallas_call(
        kern,
        out_shape=jax.ShapeDtypeStruct((M, N), out_dtype),
        grid=grid,
        in_specs=in_specs,
        out_specs=pl.BlockSpec((tm, tn), lambda i, j, k: (i, j)),
        scratch_shapes=[pltpu.VMEM((tm, tn), jnp.float32)],
        compiler_params=pltpu.CompilerParams(
            dimension_semantics=("parallel", "parallel", "arbitrary"),
            vmem_limit_bytes=cfg["limit"],
        ),
    )(*inputs)
    if M != M0 or N != N0:
        out = out[:M0, :N0]
    return out


def attention_core(q, k, v):
    """q: (BH, 1, dh), k/v: (BH, L, dh)  ->  (BH, 1, dh) in bf16."""
    BH, _, dh = q.shape
    L = k.shape[1]
    return pl.pallas_call(
        _attn_kernel,
        out_shape=jax.ShapeDtypeStruct((BH, 1, dh), jnp.bfloat16),
        grid=(1,),
        in_specs=[
            pl.BlockSpec((BH, 1, dh), lambda i: (0, 0, 0)),
            pl.BlockSpec((BH, L, dh), lambda i: (0, 0, 0)),
            pl.BlockSpec((BH, L, dh), lambda i: (0, 0, 0)),
        ],
        out_specs=pl.BlockSpec((BH, 1, dh), lambda i: (0, 0, 0)),
        compiler_params=pltpu.CompilerParams(
            dimension_semantics=("arbitrary",)),
    )(q.astype(jnp.bfloat16), k.astype(jnp.bfloat16), v.astype(jnp.bfloat16))


# ----------------------------------------------------------------------------
# JAX glue: im2col, avgpool, layers
# ----------------------------------------------------------------------------

def im2col(x, kh, kw, stride, pad):
    # x: (B, H, W, C) -> (B, Ho, Wo, kh*kw*C); K ordering is tap-major /
    # channel-minor (no activation transpose; the constant weight is
    # re-ordered host-side to match).
    B, H, W, C = x.shape
    xp = jnp.pad(x, ((0, 0), (pad, pad), (pad, pad), (0, 0)))
    Ho = (H + 2 * pad - kh) // stride + 1
    Wo = (W + 2 * pad - kw) // stride + 1
    cols = [xp[:, i:i + stride * Ho:stride, j:j + stride * Wo:stride, :]
            for i in range(kh) for j in range(kw)]
    return jnp.concatenate(cols, axis=-1)


def conv_bn(x, w, bn, stride=1, pad=0, relu=True, residual=None):
    # w: (O, I, kh, kw) PyTorch layout. bn = (scale, shift) per output channel.
    # BN scale is folded into the weight columns (constant-folds under jit).
    O, I, kh, kw = w.shape
    scale, shift = bn
    if kh == 1 and kw == 1 and stride == 1 and pad == 0:
        patches = x
    else:
        patches = im2col(x, kh, kw, stride, pad)
    B, Ho, Wo, K = patches.shape
    # Tap-major / channel-minor weight flattening to match im2col K ordering.
    w2 = jnp.transpose(w, (2, 3, 1, 0)).reshape(kh * kw * I, O) * scale[None, :]
    xr = patches.reshape(B * Ho * Wo, K)
    res = residual.reshape(B * Ho * Wo, O) if residual is not None else None
    out = matmul_affine(xr, w2, shift, residual=res, relu=relu,
                        out_dtype=jnp.bfloat16)
    return out.reshape(B, Ho, Wo, O)


def avgpool2(x, k):
    if k == 1:
        return x
    B, H, W, C = x.shape
    return x.reshape(B, H // k, k, W // k, k, C).mean(axis=(2, 4))


def bottleneck_forward(p, x):
    out = conv_bn(x, p['conv1'], p['bn1'], stride=1, pad=0, relu=True)
    out = conv_bn(out, p['conv2'], p['bn2'], stride=1, pad=1, relu=True)
    out = avgpool2(out, p['stride'])
    if 'down_conv' in p:
        idn = avgpool2(x, p['stride'])
        idn = conv_bn(idn, p['down_conv'], p['down_bn'], stride=1, pad=0, relu=False)
    else:
        idn = x
    # out = relu( bn3(conv3(out)) + identity ), fused in one Pallas call.
    out = conv_bn(out, p['conv3'], p['bn3'], stride=1, pad=0, relu=True, residual=idn)
    return out


def linear(x2d, w, b, out_dtype=jnp.bfloat16):
    # PyTorch Linear: y = x @ w.T + b ;  w: (out, in)
    return matmul_affine(x2d, w.T, b, relu=False, out_dtype=out_dtype)


def attnpool_forward(p, x_nhwc):
    B, H, W, C = x_nhwc.shape
    nh = p['heads']
    x = jnp.transpose(x_nhwc.reshape(B, H * W, C), (1, 0, 2)).astype(jnp.float32)
    mean = jnp.mean(x, axis=0, keepdims=True)
    x = jnp.concatenate([mean, x], axis=0)                          # (L, B, C)
    x = x + p['pos'][:, None, :]
    L, _, E = x.shape
    dh = E // nh
    scale = 1.0 / math.sqrt(dh)

    # Fold the softmax scale into the q projection (host-side, constant-folds).
    q = linear(x[0], p['q_w'] * scale, p['q_b'] * scale)            # (B, E)
    k = linear(x.reshape(L * B, E), p['k_w'], p['k_b'])             # (L*B, E)
    v = linear(x.reshape(L * B, E), p['v_w'], p['v_b'])

    qh = q.reshape(B * nh, 1, dh)
    kh = k.reshape(L, B, nh, dh).transpose(1, 2, 0, 3).reshape(B * nh, L, dh)
    vh = v.reshape(L, B, nh, dh).transpose(1, 2, 0, 3).reshape(B * nh, L, dh)

    o = attention_core(qh, kh, vh)                                  # (B*nh, 1, dh)
    o = o.reshape(B, E)
    return linear(o, p['c_w'], p['c_b'], out_dtype=jnp.float32)     # (B, output_dim)


def modified_resnet_forward(params, x_nchw):
    x = jnp.transpose(x_nchw, (0, 2, 3, 1)).astype(jnp.bfloat16)    # NCHW -> NHWC, bf16
    s = params['stem']
    x = conv_bn(x, s['conv1'], s['bn1'], stride=2, pad=1, relu=True)
    x = conv_bn(x, s['conv2'], s['bn2'], stride=1, pad=1, relu=True)
    x = conv_bn(x, s['conv3'], s['bn3'], stride=1, pad=1, relu=True)
    x = avgpool2(x, 2)
    for blocks in params['layers']:
        for bp in blocks:
            x = bottleneck_forward(bp, x)
    return attnpool_forward(params['attnpool'], x)


# ----------------------------------------------------------------------------
# Deterministic parameter initialization
# ----------------------------------------------------------------------------

def init_conv(key, cin, cout, k):
    fan_in = cin * k * k
    return (jax.random.normal(key, (cout, cin, k, k), jnp.float32)
            * (1.0 / math.sqrt(fan_in)))


def init_bn(key, c):
    k1, k2, k3, k4 = jax.random.split(key, 4)
    gamma = 1.0 + 0.1 * jax.random.normal(k1, (c,), jnp.float32)
    beta = 0.1 * jax.random.normal(k2, (c,), jnp.float32)
    mean = 0.1 * jax.random.normal(k3, (c,), jnp.float32)
    var = 1.0 + 0.1 * jax.random.uniform(k4, (c,), jnp.float32)
    scale = gamma / jnp.sqrt(var + 1e-5)
    shift = beta - mean * scale
    return (scale, shift)


def make_bottleneck(key, inplanes, planes, stride):
    keys = jax.random.split(key, 8)
    p = {'stride': stride}
    p['conv1'] = init_conv(keys[0], inplanes, planes, 1)
    p['bn1'] = init_bn(keys[1], planes)
    p['conv2'] = init_conv(keys[2], planes, planes, 3)
    p['bn2'] = init_bn(keys[3], planes)
    p['conv3'] = init_conv(keys[4], planes, planes * 4, 1)
    p['bn3'] = init_bn(keys[5], planes * 4)
    if stride > 1 or inplanes != planes * 4:
        p['down_conv'] = init_conv(keys[6], inplanes, planes * 4, 1)
        p['down_bn'] = init_bn(keys[7], planes * 4)
    return p


def init_params(key, layers, output_dim, heads, input_resolution, width):
    keys = iter(jax.random.split(key, 256))

    def nk():
        return next(keys)

    params = {}
    params['stem'] = {
        'conv1': init_conv(nk(), 3, width // 2, 3),
        'bn1': init_bn(nk(), width // 2),
        'conv2': init_conv(nk(), width // 2, width // 2, 3),
        'bn2': init_bn(nk(), width // 2),
        'conv3': init_conv(nk(), width // 2, width, 3),
        'bn3': init_bn(nk(), width),
    }
    inplanes = width
    layer_params = []
    for li, nblocks in enumerate(layers):
        stride = 1 if li == 0 else 2
        planes = width * (2 ** li)
        blocks = [make_bottleneck(nk(), inplanes, planes, stride)]
        inplanes = planes * 4
        for _ in range(1, nblocks):
            blocks.append(make_bottleneck(nk(), inplanes, planes, 1))
        layer_params.append(blocks)
    params['layers'] = layer_params

    embed_dim = width * 32
    S = input_resolution // 32
    params['attnpool'] = {
        'pos': jax.random.normal(nk(), (S * S + 1, embed_dim), jnp.float32)
               / math.sqrt(embed_dim),
        'q_w': 0.02 * jax.random.normal(nk(), (embed_dim, embed_dim), jnp.float32),
        'q_b': 0.02 * jax.random.normal(nk(), (embed_dim,), jnp.float32),
        'k_w': 0.02 * jax.random.normal(nk(), (embed_dim, embed_dim), jnp.float32),
        'k_b': 0.02 * jax.random.normal(nk(), (embed_dim,), jnp.float32),
        'v_w': 0.02 * jax.random.normal(nk(), (embed_dim, embed_dim), jnp.float32),
        'v_b': 0.02 * jax.random.normal(nk(), (embed_dim,), jnp.float32),
        'c_w': 0.02 * jax.random.normal(nk(), (output_dim, embed_dim), jnp.float32),
        'c_b': 0.02 * jax.random.normal(nk(), (output_dim,), jnp.float32),
        'heads': heads,
    }
    return params


# ----------------------------------------------------------------------------

if __name__ == "__main__":
    key = jax.random.PRNGKey(0)
    pkey, xkey = jax.random.split(key)

    # Small ModifiedResNet: layers=(1,1,1,1), width=8 -> embed_dim=256, heads=4
    layers = (1, 1, 1, 1)
    output_dim = 32
    heads = 4
    input_resolution = 32
    width = 8

    params = init_params(pkey, layers, output_dim, heads, input_resolution, width)
    x = jax.random.normal(xkey, (2, 3, input_resolution, input_resolution), jnp.float32)

    # Single jitted entry point (params closed over -> Python ints stay static,
    # weight reshapes / BN-scale folds constant-fold).
    forward = jax.jit(functools.partial(modified_resnet_forward, params))

    out = jax.block_until_ready(forward(x))

    assert out.shape == (2, output_dim), out.shape
    assert bool(jnp.all(jnp.isfinite(out)))
    print("KERNEL_OK")
</pallas_src>

<mosaic_0001>
module attributes {stable_mosaic.version = 11 : i64} {
  func.func @_mm_kernel(%arg0: i32, %arg1: i32, %arg2: i32, %arg3: memref<512x27xbf16, #tpu.memory_space<vmem>>, %arg4: memref<27x128xbf16, #tpu.memory_space<vmem>>, %arg5: memref<1x128xf32, #tpu.memory_space<vmem>>, %arg6: memref<512x128xbf16, #tpu.memory_space<vmem>>, %arg7: memref<512x128xf32, #tpu.memory_space<vmem>>) attributes {dimension_semantics = [#tpu.dimension_semantics<parallel>, #tpu.dimension_semantics<parallel>, #tpu.dimension_semantics<arbitrary>], iteration_bounds = array<i64: 1, 1, 1>, scalar_prefetch = 0 : i64, scratch_operands = 1 : i64, tpu.core_type = #tpu.core_type<tc>, window_params = [{transform_indices = @transform_0, window_bounds = array<i64: 512, 27>}, {transform_indices = @transform_1, window_bounds = array<i64: 27, 128>}, {transform_indices = @transform_2, window_bounds = array<i64: 1, 128>}, {transform_indices = @transform_3, window_bounds = array<i64: 512, 128>}]} {
    %c0_i32 = arith.constant 0 : i32
    %0 = arith.cmpi eq, %arg2, %c0_i32 : i32
    %1 = arith.extui %0 : i1 to i32
    %c0_i32_0 = arith.constant 0 : i32
    %2 = arith.cmpi ne, %1, %c0_i32_0 : i32
    scf.if %2 {
      %cst_10 = arith.constant 0.000000e+00 : f32
      %12 = vector.broadcast %cst_10 : f32 to vector<512x128xf32>
      %c0_11 = arith.constant 0 : index
      %c0_12 = arith.constant 0 : index
      %13 = vector.load %arg7[%c0_11, %c0_12] : memref<512x128xf32, #tpu.memory_space<vmem>>, vector<512x128xf32>
      tpu.vector_store %arg7[%c0_11, %c0_12], %12 {strides = array<i32>} : memref<512x128xf32, #tpu.memory_space<vmem>>, vector<512x128xf32>,
    } else {
    }
    %c0 = arith.constant 0 : index
    %c0_1 = arith.constant 0 : index
    %3 = vector.load %arg7[%c0, %c0_1] : memref<512x128xf32, #tpu.memory_space<vmem>>, vector<512x128xf32>
    %c0_2 = arith.constant 0 : index
    %c0_3 = arith.constant 0 : index
    %4 = vector.load %arg3[%c0_2, %c0_3] : memref<512x27xbf16, #tpu.memory_space<vmem>>, vector<512x27xbf16>
    %c0_4 = arith.constant 0 : index
    %c0_5 = arith.constant 0 : index
    %5 = vector.load %arg4[%c0_4, %c0_5] : memref<27x128xbf16, #tpu.memory_space<vmem>>, vector<27x128xbf16>
    %cst = arith.constant dense<0.000000e+00> : vector<512x128xf32>
    %6 = tpu.matmul %4, %5, %cst {dimension_numbers = #tpu.dot_dimension_numbers<[1], [0], [0], [1], [0, 0, 1, 1], [], []>} : vector<512x27xbf16>, vector<27x128xbf16>, vector<512x128xf32> -> vector<512x128xf32>
    %7 = arith.addf %3, %6 : vector<512x128xf32>
    %c0_6 = arith.constant 0 : index
    %c0_7 = arith.constant 0 : index
    %8 = vector.load %arg7[%c0_6, %c0_7] : memref<512x128xf32, #tpu.memory_space<vmem>>, vector<512x128xf32>
    tpu.vector_store %arg7[%c0_6, %c0_7], %7 {strides = array<i32>} : memref<512x128xf32, #tpu.memory_space<vmem>>, vector<512x128xf32>,
    %c0_i32_8 = arith.constant 0 : i32
    %9 = arith.cmpi eq, %arg2, %c0_i32_8 : i32
    %10 = arith.extui %9 : i1 to i32
    %c0_i32_9 = arith.constant 0 : i32
    %11 = arith.cmpi ne, %10, %c0_i32_9 : i32
    scf.if %11 {
      %c0_10 = arith.constant 0 : index
      %c0_11 = arith.constant 0 : index
      %12 = vector.load %arg7[%c0_10, %c0_11] : memref<512x128xf32, #tpu.memory_space<vmem>>, vector<512x128xf32>
      %c0_12 = arith.constant 0 : index
      %c0_13 = arith.constant 0 : index
      %13 = vector.load %arg5[%c0_12, %c0_13] : memref<1x128xf32, #tpu.memory_space<vmem>>, vector<1x128xf32>
      %14 = vector.broadcast %13 : vector<1x128xf32> to vector<512x128xf32>
      %15 = arith.addf %12, %14 : vector<512x128xf32>
      %cst_14 = arith.constant 0.000000e+00 : f32
      %16 = vector.broadcast %cst_14 : f32 to vector<512x128xf32>
      %17 = arith.maximumf %15, %16 : vector<512x128xf32>
      %18 = arith.truncf %17 : vector<512x128xf32> to vector<512x128xbf16>
      %c0_15 = arith.constant 0 : index
      %c0_16 = arith.constant 0 : index
      %19 = vector.load %arg6[%c0_15, %c0_16] : memref<512x128xbf16, #tpu.memory_space<vmem>>, vector<512x128xbf16>
      tpu.vector_store %arg6[%c0_15, %c0_16], %18 {strides = array<i32>} : memref<512x128xbf16, #tpu.memory_space<vmem>>, vector<512x128xbf16>,
    } else {
    }
    return
  }
  func.func @transform_0(%arg0: i32, %arg1: i32, %arg2: i32) -> (i32, i32) {
    %c0_i32 = arith.constant 0 : i32
    return %arg0, %arg2 : i32, i32
  }
  func.func @transform_1(%arg0: i32, %arg1: i32, %arg2: i32) -> (i32, i32) {
    %c0_i32 = arith.constant 0 : i32
    return %arg2, %arg1 : i32, i32
  }
  func.func @transform_2(%arg0: i32, %arg1: i32, %arg2: i32) -> (i32, i32) {
    %c0_i32 = arith.constant 0 : i32
    %c0_i32_0 = arith.constant 0 : i32
    return %c0_i32, %arg1 : i32, i32
  }
  func.func @transform_3(%arg0: i32, %arg1: i32, %arg2: i32) -> (i32, i32) {
    %c0_i32 = arith.constant 0 : i32
    return %arg0, %arg1 : i32, i32
  }
}

module attributes {stable_mosaic.version = 11 : i64} {
  func.func @_mm_kernel(%arg0: i32, %arg1: i32, %arg2: i32, %arg3: memref<512x36xbf16, #tpu.memory_space<vmem>>, %arg4: memref<36x128xbf16, #tpu.memory_space<vmem>>, %arg5: memref<1x128xf32, #tpu.memory_space<vmem>>, %arg6: memref<512x128xbf16, #tpu.memory_space<vmem>>, %arg7: memref<512x128xf32, #tpu.memory_space<vmem>>) attributes {dimension_semantics = [#tpu.dimension_semantics<parallel>, #tpu.dimension_semantics<parallel>, #tpu.dimension_semantics<arbitrary>], iteration_bounds = array<i64: 1, 1, 1>, scalar_prefetch = 0 : i64, scratch_operands = 1 : i64, tpu.core_type = #tpu.core_type<tc>, window_params = [{transform_indices = @transform_0, window_bounds = array<i64: 512, 36>}, {transform_indices = @transform_1, window_bounds = array<i64: 36, 128>}, {transform_indices = @transform_2, window_bounds = array<i64: 1, 128>}, {transform_indices = @transform_3, window_bounds = array<i64: 512, 128>}]} {
    %c0_i32 = arith.constant 0 : i32
    %0 = arith.cmpi eq, %arg2, %c0_i32 : i32
    %1 = arith.extui %0 : i1 to i32
    %c0_i32_0 = arith.constant 0 : i32
    %2 = arith.cmpi ne, %1, %c0_i32_0 : i32
    scf.if %2 {
      %cst_10 = arith.constant 0.000000e+00 : f32
      %12 = vector.broadcast %cst_10 : f32 to vector<512x128xf32>
      %c0_11 = arith.constant 0 : index
      %c0_12 = arith.constant 0 : index
      %13 = vector.load %arg7[%c0_11, %c0_12] : memref<512x128xf32, #tpu.memory_space<vmem>>, vector<512x128xf32>
      tpu.vector_store %arg7[%c0_11, %c0_12], %12 {strides = array<i32>} : memref<512x128xf32, #tpu.memory_space<vmem>>, vector<512x128xf32>,
    } else {
    }
    %c0 = arith.constant 0 : index
    %c0_1 = arith.constant 0 : index
    %3 = vector.load %arg7[%c0, %c0_1] : memref<512x128xf32, #tpu.memory_space<vmem>>, vector<512x128xf32>
    %c0_2 = arith.constant 0 : index
    %c0_3 = arith.constant 0 : index
    %4 = vector.load %arg3[%c0_2, %c0_3] : memref<512x36xbf16, #tpu.memory_space<vmem>>, vector<512x36xbf16>
    %c0_4 = arith.constant 0 : index
    %c0_5 = arith.constant 0 : index
    %5 = vector.load %arg4[%c0_4, %c0_5] : memref<36x128xbf16, #tpu.memory_space<vmem>>, vector<36x128xbf16>
    %cst = arith.constant dense<0.000000e+00> : vector<512x128xf32>
    %6 = tpu.matmul %4, %5, %cst {dimension_numbers = #tpu.dot_dimension_numbers<[1], [0], [0], [1], [0, 0, 1, 1], [], []>} : vector<512x36xbf16>, vector<36x128xbf16>, vector<512x128xf32> -> vector<512x128xf32>
    %7 = arith.addf %3, %6 : vector<512x128xf32>
    %c0_6 = arith.constant 0 : index
    %c0_7 = arith.constant 0 : index
    %8 = vector.load %arg7[%c0_6, %c0_7] : memref<512x128xf32, #tpu.memory_space<vmem>>, vector<512x128xf32>
    tpu.vector_store %arg7[%c0_6, %c0_7], %7 {strides = array<i32>} : memref<512x128xf32, #tpu.memory_space<vmem>>, vector<512x128xf32>,
    %c0_i32_8 = arith.constant 0 : i32
    %9 = arith.cmpi eq, %arg2, %c0_i32_8 : i32
    %10 = arith.extui %9 : i1 to i32
    %c0_i32_9 = arith.constant 0 : i32
    %11 = arith.cmpi ne, %10, %c0_i32_9 : i32
    scf.if %11 {
      %c0_10 = arith.constant 0 : index
      %c0_11 = arith.constant 0 : index
      %12 = vector.load %arg7[%c0_10, %c0_11] : memref<512x128xf32, #tpu.memory_space<vmem>>, vector<512x128xf32>
      %c0_12 = arith.constant 0 : index
      %c0_13 = arith.constant 0 : index
      %13 = vector.load %arg5[%c0_12, %c0_13] : memref<1x128xf32, #tpu.memory_space<vmem>>, vector<1x128xf32>
      %14 = vector.broadcast %13 : vector<1x128xf32> to vector<512x128xf32>
      %15 = arith.addf %12, %14 : vector<512x128xf32>
      %cst_14 = arith.constant 0.000000e+00 : f32
      %16 = vector.broadcast %cst_14 : f32 to vector<512x128xf32>
      %17 = arith.maximumf %15, %16 : vector<512x128xf32>
      %18 = arith.truncf %17 : vector<512x128xf32> to vector<512x128xbf16>
      %c0_15 = arith.constant 0 : index
      %c0_16 = arith.constant 0 : index
      %19 = vector.load %arg6[%c0_15, %c0_16] : memref<512x128xbf16, #tpu.memory_space<vmem>>, vector<512x128xbf16>
      tpu.vector_store %arg6[%c0_15, %c0_16], %18 {strides = array<i32>} : memref<512x128xbf16, #tpu.memory_space<vmem>>, vector<512x128xbf16>,
    } else {
    }
    return
  }
  func.func @transform_0(%arg0: i32, %arg1: i32, %arg2: i32) -> (i32, i32) {
    %c0_i32 = arith.constant 0 : i32
    return %arg0, %arg2 : i32, i32
  }
  func.func @transform_1(%arg0: i32, %arg1: i32, %arg2: i32) -> (i32, i32) {
    %c0_i32 = arith.constant 0 : i32
    return %arg2, %arg1 : i32, i32
  }
  func.func @transform_2(%arg0: i32, %arg1: i32, %arg2: i32) -> (i32, i32) {
    %c0_i32 = arith.constant 0 : i32
    %c0_i32_0 = arith.constant 0 : i32
    return %c0_i32, %arg1 : i32, i32
  }
  func.func @transform_3(%arg0: i32, %arg1: i32, %arg2: i32) -> (i32, i32) {
    %c0_i32 = arith.constant 0 : i32
    return %arg0, %arg1 : i32, i32
  }
}

module attributes {stable_mosaic.version = 11 : i64} {
  func.func @_mm_kernel(%arg0: i32, %arg1: i32, %arg2: i32, %arg3: memref<128x8xbf16, #tpu.memory_space<vmem>>, %arg4: memref<8x128xbf16, #tpu.memory_space<vmem>>, %arg5: memref<1x128xf32, #tpu.memory_space<vmem>>, %arg6: memref<128x128xbf16, #tpu.memory_space<vmem>>, %arg7: memref<128x128xf32, #tpu.memory_space<vmem>>) attributes {dimension_semantics = [#tpu.dimension_semantics<parallel>, #tpu.dimension_semantics<parallel>, #tpu.dimension_semantics<arbitrary>], iteration_bounds = array<i64: 1, 1, 1>, scalar_prefetch = 0 : i64, scratch_operands = 1 : i64, tpu.core_type = #tpu.core_type<tc>, window_params = [{transform_indices = @transform_0, window_bounds = array<i64: 128, 8>}, {transform_indices = @transform_1, window_bounds = array<i64: 8, 128>}, {transform_indices = @transform_2, window_bounds = array<i64: 1, 128>}, {transform_indices = @transform_3, window_bounds = array<i64: 128, 128>}]} {
    %c0_i32 = arith.constant 0 : i32
    %0 = arith.cmpi eq, %arg2, %c0_i32 : i32
    %1 = arith.extui %0 : i1 to i32
    %c0_i32_0 = arith.constant 0 : i32
    %2 = arith.cmpi ne, %1, %c0_i32_0 : i32
    scf.if %2 {
      %cst_10 = arith.constant 0.000000e+00 : f32
      %12 = vector.broadcast %cst_10 : f32 to vector<128x128xf32>
      %c0_11 = arith.constant 0 : index
      %c0_12 = arith.constant 0 : index
      %13 = vector.load %arg7[%c0_11, %c0_12] : memref<128x128xf32, #tpu.memory_space<vmem>>, vector<128x128xf32>
      tpu.vector_store %arg7[%c0_11, %c0_12], %12 {strides = array<i32>} : memref<128x128xf32, #tpu.memory_space<vmem>>, vector<128x128xf32>,
    } else {
    }
    %c0 = arith.constant 0 : index
    %c0_1 = arith.constant 0 : index
    %3 = vector.load %arg7[%c0, %c0_1] : memref<128x128xf32, #tpu.memory_space<vmem>>, vector<128x128xf32>
    %c0_2 = arith.constant 0 : index
    %c0_3 = arith.constant 0 : index
    %4 = vector.load %arg3[%c0_2, %c0_3] : memref<128x8xbf16, #tpu.memory_space<vmem>>, vector<128x8xbf16>
    %c0_4 = arith.constant 0 : index
    %c0_5 = arith.constant 0 : index
    %5 = vector.load %arg4[%c0_4, %c0_5] : memref<8x128xbf16, #tpu.memory_space<vmem>>, vector<8x128xbf16>
    %cst = arith.constant dense<0.000000e+00> : vector<128x128xf32>
    %6 = tpu.matmul %4, %5, %cst {dimension_numbers = #tpu.dot_dimension_numbers<[1], [0], [0], [1], [0, 0, 1, 1], [], []>} : vector<128x8xbf16>, vector<8x128xbf16>, vector<128x128xf32> -> vector<128x128xf32>
    %7 = arith.addf %3, %6 : vector<128x128xf32>
    %c0_6 = arith.constant 0 : index
    %c0_7 = arith.constant 0 : index
    %8 = vector.load %arg7[%c0_6, %c0_7] : memref<128x128xf32, #tpu.memory_space<vmem>>, vector<128x128xf32>
    tpu.vector_store %arg7[%c0_6, %c0_7], %7 {strides = array<i32>} : memref<128x128xf32, #tpu.memory_space<vmem>>, vector<128x128xf32>,
    %c0_i32_8 = arith.constant 0 : i32
    %9 = arith.cmpi eq, %arg2, %c0_i32_8 : i32
    %10 = arith.extui %9 : i1 to i32
    %c0_i32_9 = arith.constant 0 : i32
    %11 = arith.cmpi ne, %10, %c0_i32_9 : i32
    scf.if %11 {
      %c0_10 = arith.constant 0 : index
      %c0_11 = arith.constant 0 : index
      %12 = vector.load %arg7[%c0_10, %c0_11] : memref<128x128xf32, #tpu.memory_space<vmem>>, vector<128x128xf32>
      %c0_12 = arith.constant 0 : index
      %c0_13 = arith.constant 0 : index
      %13 = vector.load %arg5[%c0_12, %c0_13] : memref<1x128xf32, #tpu.memory_space<vmem>>, vector<1x128xf32>
      %14 = vector.broadcast %13 : vector<1x128xf32> to vector<128x128xf32>
      %15 = arith.addf %12, %14 : vector<128x128xf32>
      %cst_14 = arith.constant 0.000000e+00 : f32
      %16 = vector.broadcast %cst_14 : f32 to vector<128x128xf32>
      %17 = arith.maximumf %15, %16 : vector<128x128xf32>
      %18 = arith.truncf %17 : vector<128x128xf32> to vector<128x128xbf16>
      %c0_15 = arith.constant 0 : index
      %c0_16 = arith.constant 0 : index
      %19 = vector.load %arg6[%c0_15, %c0_16] : memref<128x128xbf16, #tpu.memory_space<vmem>>, vector<128x128xbf16>
      tpu.vector_store %arg6[%c0_15, %c0_16], %18 {strides = array<i32>} : memref<128x128xbf16, #tpu.memory_space<vmem>>, vector<128x128xbf16>,
    } else {
    }
    return
  }
  func.func @transform_0(%arg0: i32, %arg1: i32, %arg2: i32) -> (i32, i32) {
    %c0_i32 = arith.constant 0 : i32
    return %arg0, %arg2 : i32, i32
  }
  func.func @transform_1(%arg0: i32, %arg1: i32, %arg2: i32) -> (i32, i32) {
    %c0_i32 = arith.constant 0 : i32
    return %arg2, %arg1 : i32, i32
  }
  func.func @transform_2(%arg0: i32, %arg1: i32, %arg2: i32) -> (i32, i32) {
    %c0_i32 = arith.constant 0 : i32
    %c0_i32_0 = arith.constant 0 : i32
    return %c0_i32, %arg1 : i32, i32
  }
  func.func @transform_3(%arg0: i32, %arg1: i32, %arg2: i32) -> (i32, i32) {
    %c0_i32 = arith.constant 0 : i32
    return %arg0, %arg1 : i32, i32
  }
}

module attributes {stable_mosaic.version = 11 : i64} {
  func.func @_mm_kernel(%arg0: i32, %arg1: i32, %arg2: i32, %arg3: memref<128x72xbf16, #tpu.memory_space<vmem>>, %arg4: memref<72x128xbf16, #tpu.memory_space<vmem>>, %arg5: memref<1x128xf32, #tpu.memory_space<vmem>>, %arg6: memref<128x128xbf16, #tpu.memory_space<vmem>>, %arg7: memref<128x128xf32, #tpu.memory_space<vmem>>) attributes {dimension_semantics = [#tpu.dimension_semantics<parallel>, #tpu.dimension_semantics<parallel>, #tpu.dimension_semantics<arbitrary>], iteration_bounds = array<i64: 1, 1, 1>, scalar_prefetch = 0 : i64, scratch_operands = 1 : i64, tpu.core_type = #tpu.core_type<tc>, window_params = [{transform_indices = @transform_0, window_bounds = array<i64: 128, 72>}, {transform_indices = @transform_1, window_bounds = array<i64: 72, 128>}, {transform_indices = @transform_2, window_bounds = array<i64: 1, 128>}, {transform_indices = @transform_3, window_bounds = array<i64: 128, 128>}]} {
    %c0_i32 = arith.constant 0 : i32
    %0 = arith.cmpi eq, %arg2, %c0_i32 : i32
    %1 = arith.extui %0 : i1 to i32
    %c0_i32_0 = arith.constant 0 : i32
    %2 = arith.cmpi ne, %1, %c0_i32_0 : i32
    scf.if %2 {
      %cst_10 = arith.constant 0.000000e+00 : f32
      %12 = vector.broadcast %cst_10 : f32 to vector<128x128xf32>
      %c0_11 = arith.constant 0 : index
      %c0_12 = arith.constant 0 : index
      %13 = vector.load %arg7[%c0_11, %c0_12] : memref<128x128xf32, #tpu.memory_space<vmem>>, vector<128x128xf32>
      tpu.vector_store %arg7[%c0_11, %c0_12], %12 {strides = array<i32>} : memref<128x128xf32, #tpu.memory_space<vmem>>, vector<128x128xf32>,
    } else {
    }
    %c0 = arith.constant 0 : index
    %c0_1 = arith.constant 0 : index
    %3 = vector.load %arg7[%c0, %c0_1] : memref<128x128xf32, #tpu.memory_space<vmem>>, vector<128x128xf32>
    %c0_2 = arith.constant 0 : index
    %c0_3 = arith.constant 0 : index
    %4 = vector.load %arg3[%c0_2, %c0_3] : memref<128x72xbf16, #tpu.memory_space<vmem>>, vector<128x72xbf16>
    %c0_4 = arith.constant 0 : index
    %c0_5 = arith.constant 0 : index
    %5 = vector.load %arg4[%c0_4, %c0_5] : memref<72x128xbf16, #tpu.memory_space<vmem>>, vector<72x128xbf16>
    %cst = arith.constant dense<0.000000e+00> : vector<128x128xf32>
    %6 = tpu.matmul %4, %5, %cst {dimension_numbers = #tpu.dot_dimension_numbers<[1], [0], [0], [1], [0, 0, 1, 1], [], []>} : vector<128x72xbf16>, vector<72x128xbf16>, vector<128x128xf32> -> vector<128x128xf32>
    %7 = arith.addf %3, %6 : vector<128x128xf32>
    %c0_6 = arith.constant 0 : index
    %c0_7 = arith.constant 0 : index
    %8 = vector.load %arg7[%c0_6, %c0_7] : memref<128x128xf32, #tpu.memory_space<vmem>>, vector<128x128xf32>
    tpu.vector_store %arg7[%c0_6, %c0_7], %7 {strides = array<i32>} : memref<128x128xf32, #tpu.memory_space<vmem>>, vector<128x128xf32>,
    %c0_i32_8 = arith.constant 0 : i32
    %9 = arith.cmpi eq, %arg2, %c0_i32_8 : i32
    %10 = arith.extui %9 : i1 to i32
    %c0_i32_9 = arith.constant 0 : i32
    %11 = arith.cmpi ne, %10, %c0_i32_9 : i32
    scf.if %11 {
      %c0_10 = arith.constant 0 : index
      %c0_11 = arith.constant 0 : index
      %12 = vector.load %arg7[%c0_10, %c0_11] : memref<128x128xf32, #tpu.memory_space<vmem>>, vector<128x128xf32>
      %c0_12 = arith.constant 0 : index
      %c0_13 = arith.constant 0 : index
      %13 = vector.load %arg5[%c0_12, %c0_13] : memref<1x128xf32, #tpu.memory_space<vmem>>, vector<1x128xf32>
      %14 = vector.broadcast %13 : vector<1x128xf32> to vector<128x128xf32>
      %15 = arith.addf %12, %14 : vector<128x128xf32>
      %cst_14 = arith.constant 0.000000e+00 : f32
      %16 = vector.broadcast %cst_14 : f32 to vector<128x128xf32>
      %17 = arith.maximumf %15, %16 : vector<128x128xf32>
      %18 = arith.truncf %17 : vector<128x128xf32> to vector<128x128xbf16>
      %c0_15 = arith.constant 0 : index
      %c0_16 = arith.constant 0 : index
      %19 = vector.load %arg6[%c0_15, %c0_16] : memref<128x128xbf16, #tpu.memory_space<vmem>>, vector<128x128xbf16>
      tpu.vector_store %arg6[%c0_15, %c0_16], %18 {strides = array<i32>} : memref<128x128xbf16, #tpu.memory_space<vmem>>, vector<128x128xbf16>,
    } else {
    }
    return
  }
  func.func @transform_0(%arg0: i32, %arg1: i32, %arg2: i32) -> (i32, i32) {
    %c0_i32 = arith.constant 0 : i32
    return %arg0, %arg2 : i32, i32
  }
  func.func @transform_1(%arg0: i32, %arg1: i32, %arg2: i32) -> (i32, i32) {
    %c0_i32 = arith.constant 0 : i32
    return %arg2, %arg1 : i32, i32
  }
  func.func @transform_2(%arg0: i32, %arg1: i32, %arg2: i32) -> (i32, i32) {
    %c0_i32 = arith.constant 0 : i32
    %c0_i32_0 = arith.constant 0 : i32
    return %c0_i32, %arg1 : i32, i32
  }
  func.func @transform_3(%arg0: i32, %arg1: i32, %arg2: i32) -> (i32, i32) {
    %c0_i32 = arith.constant 0 : i32
    return %arg0, %arg1 : i32, i32
  }
}

module attributes {stable_mosaic.version = 11 : i64} {
  func.func @_mm_kernel(%arg0: i32, %arg1: i32, %arg2: i32, %arg3: memref<128x8xbf16, #tpu.memory_space<vmem>>, %arg4: memref<8x128xbf16, #tpu.memory_space<vmem>>, %arg5: memref<1x128xf32, #tpu.memory_space<vmem>>, %arg6: memref<128x128xbf16, #tpu.memory_space<vmem>>, %arg7: memref<128x128xf32, #tpu.memory_space<vmem>>) attributes {dimension_semantics = [#tpu.dimension_semantics<parallel>, #tpu.dimension_semantics<parallel>, #tpu.dimension_semantics<arbitrary>], iteration_bounds = array<i64: 1, 1, 1>, scalar_prefetch = 0 : i64, scratch_operands = 1 : i64, tpu.core_type = #tpu.core_type<tc>, window_params = [{transform_indices = @transform_0, window_bounds = array<i64: 128, 8>}, {transform_indices = @transform_1, window_bounds = array<i64: 8, 128>}, {transform_indices = @transform_2, window_bounds = array<i64: 1, 128>}, {transform_indices = @transform_3, window_bounds = array<i64: 128, 128>}]} {
    %c0_i32 = arith.constant 0 : i32
    %0 = arith.cmpi eq, %arg2, %c0_i32 : i32
    %1 = arith.extui %0 : i1 to i32
    %c0_i32_0 = arith.constant 0 : i32
    %2 = arith.cmpi ne, %1, %c0_i32_0 : i32
    scf.if %2 {
      %cst_10 = arith.constant 0.000000e+00 : f32
      %12 = vector.broadcast %cst_10 : f32 to vector<128x128xf32>
      %c0_11 = arith.constant 0 : index
      %c0_12 = arith.constant 0 : index
      %13 = vector.load %arg7[%c0_11, %c0_12] : memref<128x128xf32, #tpu.memory_space<vmem>>, vector<128x128xf32>
      tpu.vector_store %arg7[%c0_11, %c0_12], %12 {strides = array<i32>} : memref<128x128xf32, #tpu.memory_space<vmem>>, vector<128x128xf32>,
    } else {
    }
    %c0 = arith.constant 0 : index
    %c0_1 = arith.constant 0 : index
    %3 = vector.load %arg7[%c0, %c0_1] : memref<128x128xf32, #tpu.memory_space<vmem>>, vector<128x128xf32>
    %c0_2 = arith.constant 0 : index
    %c0_3 = arith.constant 0 : index
    %4 = vector.load %arg3[%c0_2, %c0_3] : memref<128x8xbf16, #tpu.memory_space<vmem>>, vector<128x8xbf16>
    %c0_4 = arith.constant 0 : index
    %c0_5 = arith.constant 0 : index
    %5 = vector.load %arg4[%c0_4, %c0_5] : memref<8x128xbf16, #tpu.memory_space<vmem>>, vector<8x128xbf16>
    %cst = arith.constant dense<0.000000e+00> : vector<128x128xf32>
    %6 = tpu.matmul %4, %5, %cst {dimension_numbers = #tpu.dot_dimension_numbers<[1], [0], [0], [1], [0, 0, 1, 1], [], []>} : vector<128x8xbf16>, vector<8x128xbf16>, vector<128x128xf32> -> vector<128x128xf32>
    %7 = arith.addf %3, %6 : vector<128x128xf32>
    %c0_6 = arith.constant 0 : index
    %c0_7 = arith.constant 0 : index
    %8 = vector.load %arg7[%c0_6, %c0_7] : memref<128x128xf32, #tpu.memory_space<vmem>>, vector<128x128xf32>
    tpu.vector_store %arg7[%c0_6, %c0_7], %7 {strides = array<i32>} : memref<128x128xf32, #tpu.memory_space<vmem>>, vector<128x128xf32>,
    %c0_i32_8 = arith.constant 0 : i32
    %9 = arith.cmpi eq, %arg2, %c0_i32_8 : i32
    %10 = arith.extui %9 : i1 to i32
    %c0_i32_9 = arith.constant 0 : i32
    %11 = arith.cmpi ne, %10, %c0_i32_9 : i32
    scf.if %11 {
      %c0_10 = arith.constant 0 : index
      %c0_11 = arith.constant 0 : index
      %12 = vector.load %arg7[%c0_10, %c0_11] : memref<128x128xf32, #tpu.memory_space<vmem>>, vector<128x128xf32>
      %c0_12 = arith.constant 0 : index
      %c0_13 = arith.constant 0 : index
      %13 = vector.load %arg5[%c0_12, %c0_13] : memref<1x128xf32, #tpu.memory_space<vmem>>, vector<1x128xf32>
      %14 = vector.broadcast %13 : vector<1x128xf32> to vector<128x128xf32>
      %15 = arith.addf %12, %14 : vector<128x128xf32>
      %16 = arith.truncf %15 : vector<128x128xf32> to vector<128x128xbf16>
      %c0_14 = arith.constant 0 : index
      %c0_15 = arith.constant 0 : index
      %17 = vector.load %arg6[%c0_14, %c0_15] : memref<128x128xbf16, #tpu.memory_space<vmem>>, vector<128x128xbf16>
      tpu.vector_store %arg6[%c0_14, %c0_15], %16 {strides = array<i32>} : memref<128x128xbf16, #tpu.memory_space<vmem>>, vector<128x128xbf16>,
    } else {
    }
    return
  }
  func.func @transform_0(%arg0: i32, %arg1: i32, %arg2: i32) -> (i32, i32) {
    %c0_i32 = arith.constant 0 : i32
    return %arg0, %arg2 : i32, i32
  }
  func.func @transform_1(%arg0: i32, %arg1: i32, %arg2: i32) -> (i32, i32) {
    %c0_i32 = arith.constant 0 : i32
    return %arg2, %arg1 : i32, i32
  }
  func.func @transform_2(%arg0: i32, %arg1: i32, %arg2: i32) -> (i32, i32) {
    %c0_i32 = arith.constant 0 : i32
    %c0_i32_0 = arith.constant 0 : i32
    return %c0_i32, %arg1 : i32, i32
  }
  func.func @transform_3(%arg0: i32, %arg1: i32, %arg2: i32) -> (i32, i32) {
    %c0_i32 = arith.constant 0 : i32
    return %arg0, %arg1 : i32, i32
  }
}

module attributes {stable_mosaic.version = 11 : i64} {
  func.func @_mm_res_kernel(%arg0: i32, %arg1: i32, %arg2: i32, %arg3: memref<128x8xbf16, #tpu.memory_space<vmem>>, %arg4: memref<8x128xbf16, #tpu.memory_space<vmem>>, %arg5: memref<1x128xf32, #tpu.memory_space<vmem>>, %arg6: memref<128x128xbf16, #tpu.memory_space<vmem>>, %arg7: memref<128x128xbf16, #tpu.memory_space<vmem>>, %arg8: memref<128x128xf32, #tpu.memory_space<vmem>>) attributes {dimension_semantics = [#tpu.dimension_semantics<parallel>, #tpu.dimension_semantics<parallel>, #tpu.dimension_semantics<arbitrary>], iteration_bounds = array<i64: 1, 1, 1>, scalar_prefetch = 0 : i64, scratch_operands = 1 : i64, tpu.core_type = #tpu.core_type<tc>, window_params = [{transform_indices = @transform_0, window_bounds = array<i64: 128, 8>}, {transform_indices = @transform_1, window_bounds = array<i64: 8, 128>}, {transform_indices = @transform_2, window_bounds = array<i64: 1, 128>}, {transform_indices = @transform_3, window_bounds = array<i64: 128, 128>}, {transform_indices = @transform_4, window_bounds = array<i64: 128, 128>}]} {
    %c0_i32 = arith.constant 0 : i32
    %0 = arith.cmpi eq, %arg2, %c0_i32 : i32
    %1 = arith.extui %0 : i1 to i32
    %c0_i32_0 = arith.constant 0 : i32
    %2 = arith.cmpi ne, %1, %c0_i32_0 : i32
    scf.if %2 {
      %cst_10 = arith.constant 0.000000e+00 : f32
      %12 = vector.broadcast %cst_10 : f32 to vector<128x128xf32>
      %c0_11 = arith.constant 0 : index
      %c0_12 = arith.constant 0 : index
      %13 = vector.load %arg8[%c0_11, %c0_12] : memref<128x128xf32, #tpu.memory_space<vmem>>, vector<128x128xf32>
      tpu.vector_store %arg8[%c0_11, %c0_12], %12 {strides = array<i32>} : memref<128x128xf32, #tpu.memory_space<vmem>>, vector<128x128xf32>,
    } else {
    }
    %c0 = arith.constant 0 : index
    %c0_1 = arith.constant 0 : index
    %3 = vector.load %arg8[%c0, %c0_1] : memref<128x128xf32, #tpu.memory_space<vmem>>, vector<128x128xf32>
    %c0_2 = arith.constant 0 : index
    %c0_3 = arith.constant 0 : index
    %4 = vector.load %arg3[%c0_2, %c0_3] : memref<128x8xbf16, #tpu.memory_space<vmem>>, vector<128x8xbf16>
    %c0_4 = arith.constant 0 : index
    %c0_5 = arith.constant 0 : index
    %5 = vector.load %arg4[%c0_4, %c0_5] : memref<8x128xbf16, #tpu.memory_space<vmem>>, vector<8x128xbf16>
    %cst = arith.constant dense<0.000000e+00> : vector<128x128xf32>
    %6 = tpu.matmul %4, %5, %cst {dimension_numbers = #tpu.dot_dimension_numbers<[1], [0], [0], [1], [0, 0, 1, 1], [], []>} : vector<128x8xbf16>, vector<8x128xbf16>, vector<128x128xf32> -> vector<128x128xf32>
    %7 = arith.addf %3, %6 : vector<128x128xf32>
    %c0_6 = arith.constant 0 : index
    %c0_7 = arith.constant 0 : index
    %8 = vector.load %arg8[%c0_6, %c0_7] : memref<128x128xf32, #tpu.memory_space<vmem>>, vector<128x128xf32>
    tpu.vector_store %arg8[%c0_6, %c0_7], %7 {strides = array<i32>} : memref<128x128xf32, #tpu.memory_space<vmem>>, vector<128x128xf32>,
    %c0_i32_8 = arith.constant 0 : i32
    %9 = arith.cmpi eq, %arg2, %c0_i32_8 : i32
    %10 = arith.extui %9 : i1 to i32
    %c0_i32_9 = arith.constant 0 : i32
    %11 = arith.cmpi ne, %10, %c0_i32_9 : i32
    scf.if %11 {
      %c0_10 = arith.constant 0 : index
      %c0_11 = arith.constant 0 : index
      %12 = vector.load %arg8[%c0_10, %c0_11] : memref<128x128xf32, #tpu.memory_space<vmem>>, vector<128x128xf32>
      %c0_12 = arith.constant 0 : index
      %c0_13 = arith.constant 0 : index
      %13 = vector.load %arg5[%c0_12, %c0_13] : memref<1x128xf32, #tpu.memory_space<vmem>>, vector<1x128xf32>
      %14 = vector.broadcast %13 : vector<1x128xf32> to vector<128x128xf32>
      %15 = arith.addf %12, %14 : vector<128x128xf32>
      %c0_14 = arith.constant 0 : index
      %c0_15 = arith.constant 0 : index
      %16 = vector.load %arg6[%c0_14, %c0_15] : memref<128x128xbf16, #tpu.memory_space<vmem>>, vector<128x128xbf16>
      %17 = arith.extf %16 : vector<128x128xbf16> to vector<128x128xf32>
      %18 = arith.addf %15, %17 : vector<128x128xf32>
      %cst_16 = arith.constant 0.000000e+00 : f32
      %19 = vector.broadcast %cst_16 : f32 to vector<128x128xf32>
      %20 = arith.maximumf %18, %19 : vector<128x128xf32>
      %21 = arith.truncf %20 : vector<128x128xf32> to vector<128x128xbf16>
      %c0_17 = arith.constant 0 : index
      %c0_18 = arith.constant 0 : index
      %22 = vector.load %arg7[%c0_17, %c0_18] : memref<128x128xbf16, #tpu.memory_space<vmem>>, vector<128x128xbf16>
      tpu.vector_store %arg7[%c0_17, %c0_18], %21 {strides = array<i32>} : memref<128x128xbf16, #tpu.memory_space<vmem>>, vector<128x128xbf16>,
    } else {
    }
    return
  }
  func.func @transform_0(%arg0: i32, %arg1: i32, %arg2: i32) -> (i32, i32) {
    %c0_i32 = arith.constant 0 : i32
    return %arg0, %arg2 : i32, i32
  }
  func.func @transform_1(%arg0: i32, %arg1: i32, %arg2: i32) -> (i32, i32) {
    %c0_i32 = arith.constant 0 : i32
    return %arg2, %arg1 : i32, i32
  }
  func.func @transform_2(%arg0: i32, %arg1: i32, %arg2: i32) -> (i32, i32) {
    %c0_i32 = arith.constant 0 : i32
    %c0_i32_0 = arith.constant 0 : i32
    return %c0_i32, %arg1 : i32, i32
  }
  func.func @transform_3(%arg0: i32, %arg1: i32, %arg2: i32) -> (i32, i32) {
    %c0_i32 = arith.constant 0 : i32
    return %arg0, %arg1 : i32, i32
  }
  func.func @transform_4(%arg0: i32, %arg1: i32, %arg2: i32) -> (i32, i32) {
    %c0_i32 = arith.constant 0 : i32
    return %arg0, %arg1 : i32, i32
  }
}

module attributes {stable_mosaic.version = 11 : i64} {
  func.func @_mm_kernel(%arg0: i32, %arg1: i32, %arg2: i32, %arg3: memref<128x32xbf16, #tpu.memory_space<vmem>>, %arg4: memref<32x128xbf16, #tpu.memory_space<vmem>>, %arg5: memref<1x128xf32, #tpu.memory_space<vmem>>, %arg6: memref<128x128xbf16, #tpu.memory_space<vmem>>, %arg7: memref<128x128xf32, #tpu.memory_space<vmem>>) attributes {dimension_semantics = [#tpu.dimension_semantics<parallel>, #tpu.dimension_semantics<parallel>, #tpu.dimension_semantics<arbitrary>], iteration_bounds = array<i64: 1, 1, 1>, scalar_prefetch = 0 : i64, scratch_operands = 1 : i64, tpu.core_type = #tpu.core_type<tc>, window_params = [{transform_indices = @transform_0, window_bounds = array<i64: 128, 32>}, {transform_indices = @transform_1, window_bounds = array<i64: 32, 128>}, {transform_indices = @transform_2, window_bounds = array<i64: 1, 128>}, {transform_indices = @transform_3, window_bounds = array<i64: 128, 128>}]} {
    %c0_i32 = arith.constant 0 : i32
    %0 = arith.cmpi eq, %arg2, %c0_i32 : i32
    %1 = arith.extui %0 : i1 to i32
    %c0_i32_0 = arith.constant 0 : i32
    %2 = arith.cmpi ne, %1, %c0_i32_0 : i32
    scf.if %2 {
      %cst_10 = arith.constant 0.000000e+00 : f32
      %12 = vector.broadcast %cst_10 : f32 to vector<128x128xf32>
      %c0_11 = arith.constant 0 : index
      %c0_12 = arith.constant 0 : index
      %13 = vector.load %arg7[%c0_11, %c0_12] : memref<128x128xf32, #tpu.memory_space<vmem>>, vector<128x128xf32>
      tpu.vector_store %arg7[%c0_11, %c0_12], %12 {strides = array<i32>} : memref<128x128xf32, #tpu.memory_space<vmem>>, vector<128x128xf32>,
    } else {
    }
    %c0 = arith.constant 0 : index
    %c0_1 = arith.constant 0 : index
    %3 = vector.load %arg7[%c0, %c0_1] : memref<128x128xf32, #tpu.memory_space<vmem>>, vector<128x128xf32>
    %c0_2 = arith.constant 0 : index
    %c0_3 = arith.constant 0 : index
    %4 = vector.load %arg3[%c0_2, %c0_3] : memref<128x32xbf16, #tpu.memory_space<vmem>>, vector<128x32xbf16>
    %c0_4 = arith.constant 0 : index
    %c0_5 = arith.constant 0 : index
    %5 = vector.load %arg4[%c0_4, %c0_5] : memref<32x128xbf16, #tpu.memory_space<vmem>>, vector<32x128xbf16>
    %cst = arith.constant dense<0.000000e+00> : vector<128x128xf32>
    %6 = tpu.matmul %4, %5, %cst {dimension_numbers = #tpu.dot_dimension_numbers<[1], [0], [0], [1], [0, 0, 1, 1], [], []>} : vector<128x32xbf16>, vector<32x128xbf16>, vector<128x128xf32> -> vector<128x128xf32>
    %7 = arith.addf %3, %6 : vector<128x128xf32>
    %c0_6 = arith.constant 0 : index
    %c0_7 = arith.constant 0 : index
    %8 = vector.load %arg7[%c0_6, %c0_7] : memref<128x128xf32, #tpu.memory_space<vmem>>, vector<128x128xf32>
    tpu.vector_store %arg7[%c0_6, %c0_7], %7 {strides = array<i32>} : memref<128x128xf32, #tpu.memory_space<vmem>>, vector<128x128xf32>,
    %c0_i32_8 = arith.constant 0 : i32
    %9 = arith.cmpi eq, %arg2, %c0_i32_8 : i32
    %10 = arith.extui %9 : i1 to i32
    %c0_i32_9 = arith.constant 0 : i32
    %11 = arith.cmpi ne, %10, %c0_i32_9 : i32
    scf.if %11 {
      %c0_10 = arith.constant 0 : index
      %c0_11 = arith.constant 0 : index
      %12 = vector.load %arg7[%c0_10, %c0_11] : memref<128x128xf32, #tpu.memory_space<vmem>>, vector<128x128xf32>
      %c0_12 = arith.constant 0 : index
      %c0_13 = arith.constant 0 : index
      %13 = vector.load %arg5[%c0_12, %c0_13] : memref<1x128xf32, #tpu.memory_space<vmem>>, vector<1x128xf32>
      %14 = vector.broadcast %13 : vector<1x128xf32> to vector<128x128xf32>
      %15 = arith.addf %12, %14 : vector<128x128xf32>
      %cst_14 = arith.constant 0.000000e+00 : f32
      %16 = vector.broadcast %cst_14 : f32 to vector<128x128xf32>
      %17 = arith.maximumf %15, %16 : vector<128x128xf32>
      %18 = arith.truncf %17 : vector<128x128xf32> to vector<128x128xbf16>
      %c0_15 = arith.constant 0 : index
      %c0_16 = arith.constant 0 : index
      %19 = vector.load %arg6[%c0_15, %c0_16] : memref<128x128xbf16, #tpu.memory_space<vmem>>, vector<128x128xbf16>
      tpu.vector_store %arg6[%c0_15, %c0_16], %18 {strides = array<i32>} : memref<128x128xbf16, #tpu.memory_space<vmem>>, vector<128x128xbf16>,
    } else {
    }
    return
  }
  func.func @transform_0(%arg0: i32, %arg1: i32, %arg2: i32) -> (i32, i32) {
    %c0_i32 = arith.constant 0 : i32
    return %arg0, %arg2 : i32, i32
  }
  func.func @transform_1(%arg0: i32, %arg1: i32, %arg2: i32) -> (i32, i32) {
    %c0_i32 = arith.constant 0 : i32
    return %arg2, %arg1 : i32, i32
  }
  func.func @transform_2(%arg0: i32, %arg1: i32, %arg2: i32) -> (i32, i32) {
    %c0_i32 = arith.constant 0 : i32
    %c0_i32_0 = arith.constant 0 : i32
    return %c0_i32, %arg1 : i32, i32
  }
  func.func @transform_3(%arg0: i32, %arg1: i32, %arg2: i32) -> (i32, i32) {
    %c0_i32 = arith.constant 0 : i32
    return %arg0, %arg1 : i32, i32
  }
}

module attributes {stable_mosaic.version = 11 : i64} {
  func.func @_mm_kernel(%arg0: i32, %arg1: i32, %arg2: i32, %arg3: memref<128x144xbf16, #tpu.memory_space<vmem>>, %arg4: memref<144x128xbf16, #tpu.memory_space<vmem>>, %arg5: memref<1x128xf32, #tpu.memory_space<vmem>>, %arg6: memref<128x128xbf16, #tpu.memory_space<vmem>>, %arg7: memref<128x128xf32, #tpu.memory_space<vmem>>) attributes {dimension_semantics = [#tpu.dimension_semantics<parallel>, #tpu.dimension_semantics<parallel>, #tpu.dimension_semantics<arbitrary>], iteration_bounds = array<i64: 1, 1, 1>, scalar_prefetch = 0 : i64, scratch_operands = 1 : i64, tpu.core_type = #tpu.core_type<tc>, window_params = [{transform_indices = @transform_0, window_bounds = array<i64: 128, 144>}, {transform_indices = @transform_1, window_bounds = array<i64: 144, 128>}, {transform_indices = @transform_2, window_bounds = array<i64: 1, 128>}, {transform_indices = @transform_3, window_bounds = array<i64: 128, 128>}]} {
    %c0_i32 = arith.constant 0 : i32
    %0 = arith.cmpi eq, %arg2, %c0_i32 : i32
    %1 = arith.extui %0 : i1 to i32
    %c0_i32_0 = arith.constant 0 : i32
    %2 = arith.cmpi ne, %1, %c0_i32_0 : i32
    scf.if %2 {
      %cst_10 = arith.constant 0.000000e+00 : f32
      %12 = vector.broadcast %cst_10 : f32 to vector<128x128xf32>
      %c0_11 = arith.constant 0 : index
      %c0_12 = arith.constant 0 : index
      %13 = vector.load %arg7[%c0_11, %c0_12] : memref<128x128xf32, #tpu.memory_space<vmem>>, vector<128x128xf32>
      tpu.vector_store %arg7[%c0_11, %c0_12], %12 {strides = array<i32>} : memref<128x128xf32, #tpu.memory_space<vmem>>, vector<128x128xf32>,
    } else {
    }
    %c0 = arith.constant 0 : index
    %c0_1 = arith.constant 0 : index
    %3 = vector.load %arg7[%c0, %c0_1] : memref<128x128xf32, #tpu.memory_space<vmem>>, vector<128x128xf32>
    %c0_2 = arith.constant 0 : index
    %c0_3 = arith.constant 0 : index
    %4 = vector.load %arg3[%c0_2, %c0_3] : memref<128x144xbf16, #tpu.memory_space<vmem>>, vector<128x144xbf16>
    %c0_4 = arith.constant 0 : index
    %c0_5 = arith.constant 0 : index
    %5 = vector.load %arg4[%c0_4, %c0_5] : memref<144x128xbf16, #tpu.memory_space<vmem>>, vector<144x128xbf16>
    %cst = arith.constant dense<0.000000e+00> : vector<128x128xf32>
    %6 = tpu.matmul %4, %5, %cst {dimension_numbers = #tpu.dot_dimension_numbers<[1], [0], [0], [1], [0, 0, 1, 1], [], []>} : vector<128x144xbf16>, vector<144x128xbf16>, vector<128x128xf32> -> vector<128x128xf32>
    %7 = arith.addf %3, %6 : vector<128x128xf32>
    %c0_6 = arith.constant 0 : index
    %c0_7 = arith.constant 0 : index
    %8 = vector.load %arg7[%c0_6, %c0_7] : memref<128x128xf32, #tpu.memory_space<vmem>>, vector<128x128xf32>
    tpu.vector_store %arg7[%c0_6, %c0_7], %7 {strides = array<i32>} : memref<128x128xf32, #tpu.memory_space<vmem>>, vector<128x128xf32>,
    %c0_i32_8 = arith.constant 0 : i32
    %9 = arith.cmpi eq, %arg2, %c0_i32_8 : i32
    %10 = arith.extui %9 : i1 to i32
    %c0_i32_9 = arith.constant 0 : i32
    %11 = arith.cmpi ne, %10, %c0_i32_9 : i32
    scf.if %11 {
      %c0_10 = arith.constant 0 : index
      %c0_11 = arith.constant 0 : index
      %12 = vector.load %arg7[%c0_10, %c0_11] : memref<128x128xf32, #tpu.memory_space<vmem>>, vector<128x128xf32>
      %c0_12 = arith.constant 0 : index
      %c0_13 = arith.constant 0 : index
      %13 = vector.load %arg5[%c0_12, %c0_13] : memref<1x128xf32, #tpu.memory_space<vmem>>, vector<1x128xf32>
      %14 = vector.broadcast %13 : vector<1x128xf32> to vector<128x128xf32>
      %15 = arith.addf %12, %14 : vector<128x128xf32>
      %cst_14 = arith.constant 0.000000e+00 : f32
      %16 = vector.broadcast %cst_14 : f32 to vector<128x128xf32>
      %17 = arith.maximumf %15, %16 : vector<128x128xf32>
      %18 = arith.truncf %17 : vector<128x128xf32> to vector<128x128xbf16>
      %c0_15 = arith.constant 0 : index
      %c0_16 = arith.constant 0 : index
      %19 = vector.load %arg6[%c0_15, %c0_16] : memref<128x128xbf16, #tpu.memory_space<vmem>>, vector<128x128xbf16>
      tpu.vector_store %arg6[%c0_15, %c0_16], %18 {strides = array<i32>} : memref<128x128xbf16, #tpu.memory_space<vmem>>, vector<128x128xbf16>,
    } else {
    }
    return
  }
  func.func @transform_0(%arg0: i32, %arg1: i32, %arg2: i32) -> (i32, i32) {
    %c0_i32 = arith.constant 0 : i32
    return %arg0, %arg2 : i32, i32
  }
  func.func @transform_1(%arg0: i32, %arg1: i32, %arg2: i32) -> (i32, i32) {
    %c0_i32 = arith.constant 0 : i32
    return %arg2, %arg1 : i32, i32
  }
  func.func @transform_2(%arg0: i32, %arg1: i32, %arg2: i32) -> (i32, i32) {
    %c0_i32 = arith.constant 0 : i32
    %c0_i32_0 = arith.constant 0 : i32
    return %c0_i32, %arg1 : i32, i32
  }
  func.func @transform_3(%arg0: i32, %arg1: i32, %arg2: i32) -> (i32, i32) {
    %c0_i32 = arith.constant 0 : i32
    return %arg0, %arg1 : i32, i32
  }
}

module attributes {stable_mosaic.version = 11 : i64} {
  func.func @_mm_kernel(%arg0: i32, %arg1: i32, %arg2: i32, %arg3: memref<32x32xbf16, #tpu.memory_space<vmem>>, %arg4: memref<32x128xbf16, #tpu.memory_space<vmem>>, %arg5: memref<1x128xf32, #tpu.memory_space<vmem>>, %arg6: memref<32x128xbf16, #tpu.memory_space<vmem>>, %arg7: memref<32x128xf32, #tpu.memory_space<vmem>>) attributes {dimension_semantics = [#tpu.dimension_semantics<parallel>, #tpu.dimension_semantics<parallel>, #tpu.dimension_semantics<arbitrary>], iteration_bounds = array<i64: 1, 1, 1>, scalar_prefetch = 0 : i64, scratch_operands = 1 : i64, tpu.core_type = #tpu.core_type<tc>, window_params = [{transform_indices = @transform_0, window_bounds = array<i64: 32, 32>}, {transform_indices = @transform_1, window_bounds = array<i64: 32, 128>}, {transform_indices = @transform_2, window_bounds = array<i64: 1, 128>}, {transform_indices = @transform_3, window_bounds = array<i64: 32, 128>}]} {
    %c0_i32 = arith.constant 0 : i32
    %0 = arith.cmpi eq, %arg2, %c0_i32 : i32
    %1 = arith.extui %0 : i1 to i32
    %c0_i32_0 = arith.constant 0 : i32
    %2 = arith.cmpi ne, %1, %c0_i32_0 : i32
    scf.if %2 {
      %cst_10 = arith.constant 0.000000e+00 : f32
      %12 = vector.broadcast %cst_10 : f32 to vector<32x128xf32>
      %c0_11 = arith.constant 0 : index
      %c0_12 = arith.constant 0 : index
      %13 = vector.load %arg7[%c0_11, %c0_12] : memref<32x128xf32, #tpu.memory_space<vmem>>, vector<32x128xf32>
      tpu.vector_store %arg7[%c0_11, %c0_12], %12 {strides = array<i32>} : memref<32x128xf32, #tpu.memory_space<vmem>>, vector<32x128xf32>,
    } else {
    }
    %c0 = arith.constant 0 : index
    %c0_1 = arith.constant 0 : index
    %3 = vector.load %arg7[%c0, %c0_1] : memref<32x128xf32, #tpu.memory_space<vmem>>, vector<32x128xf32>
    %c0_2 = arith.constant 0 : index
    %c0_3 = arith.constant 0 : index
    %4 = vector.load %arg3[%c0_2, %c0_3] : memref<32x32xbf16, #tpu.memory_space<vmem>>, vector<32x32xbf16>
    %c0_4 = arith.constant 0 : index
    %c0_5 = arith.constant 0 : index
    %5 = vector.load %arg4[%c0_4, %c0_5] : memref<32x128xbf16, #tpu.memory_space<vmem>>, vector<32x128xbf16>
    %cst = arith.constant dense<0.000000e+00> : vector<32x128xf32>
    %6 = tpu.matmul %4, %5, %cst {dimension_numbers = #tpu.dot_dimension_numbers<[1], [0], [0], [1], [0, 0, 1, 1], [], []>} : vector<32x32xbf16>, vector<32x128xbf16>, vector<32x128xf32> -> vector<32x128xf32>
    %7 = arith.addf %3, %6 : vector<32x128xf32>
    %c0_6 = arith.constant 0 : index
    %c0_7 = arith.constant 0 : index
    %8 = vector.load %arg7[%c0_6, %c0_7] : memref<32x128xf32, #tpu.memory_space<vmem>>, vector<32x128xf32>
    tpu.vector_store %arg7[%c0_6, %c0_7], %7 {strides = array<i32>} : memref<32x128xf32, #tpu.memory_space<vmem>>, vector<32x128xf32>,
    %c0_i32_8 = arith.constant 0 : i32
    %9 = arith.cmpi eq, %arg2, %c0_i32_8 : i32
    %10 = arith.extui %9 : i1 to i32
    %c0_i32_9 = arith.constant 0 : i32
    %11 = arith.cmpi ne, %10, %c0_i32_9 : i32
    scf.if %11 {
      %c0_10 = arith.constant 0 : index
      %c0_11 = arith.constant 0 : index
      %12 = vector.load %arg7[%c0_10, %c0_11] : memref<32x128xf32, #tpu.memory_space<vmem>>, vector<32x128xf32>
      %c0_12 = arith.constant 0 : index
      %c0_13 = arith.constant 0 : index
      %13 = vector.load %arg5[%c0_12, %c0_13] : memref<1x128xf32, #tpu.memory_space<vmem>>, vector<1x128xf32>
      %14 = vector.broadcast %13 : vector<1x128xf32> to vector<32x128xf32>
      %15 = arith.addf %12, %14 : vector<32x128xf32>
      %16 = arith.truncf %15 : vector<32x128xf32> to vector<32x128xbf16>
      %c0_14 = arith.constant 0 : index
      %c0_15 = arith.constant 0 : index
      %17 = vector.load %arg6[%c0_14, %c0_15] : memref<32x128xbf16, #tpu.memory_space<vmem>>, vector<32x128xbf16>
      tpu.vector_store %arg6[%c0_14, %c0_15], %16 {strides = array<i32>} : memref<32x128xbf16, #tpu.memory_space<vmem>>, vector<32x128xbf16>,
    } else {
    }
    return
  }
  func.func @transform_0(%arg0: i32, %arg1: i32, %arg2: i32) -> (i32, i32) {
    %c0_i32 = arith.constant 0 : i32
    return %arg0, %arg2 : i32, i32
  }
  func.func @transform_1(%arg0: i32, %arg1: i32, %arg2: i32) -> (i32, i32) {
    %c0_i32 = arith.constant 0 : i32
    return %arg2, %arg1 : i32, i32
  }
  func.func @transform_2(%arg0: i32, %arg1: i32, %arg2: i32) -> (i32, i32) {
    %c0_i32 = arith.constant 0 : i32
    %c0_i32_0 = arith.constant 0 : i32
    return %c0_i32, %arg1 : i32, i32
  }
  func.func @transform_3(%arg0: i32, %arg1: i32, %arg2: i32) -> (i32, i32) {
    %c0_i32 = arith.constant 0 : i32
    return %arg0, %arg1 : i32, i32
  }
}

module attributes {stable_mosaic.version = 11 : i64} {
  func.func @_mm_res_kernel(%arg0: i32, %arg1: i32, %arg2: i32, %arg3: memref<32x16xbf16, #tpu.memory_space<vmem>>, %arg4: memref<16x128xbf16, #tpu.memory_space<vmem>>, %arg5: memref<1x128xf32, #tpu.memory_space<vmem>>, %arg6: memref<32x128xbf16, #tpu.memory_space<vmem>>, %arg7: memref<32x128xbf16, #tpu.memory_space<vmem>>, %arg8: memref<32x128xf32, #tpu.memory_space<vmem>>) attributes {dimension_semantics = [#tpu.dimension_semantics<parallel>, #tpu.dimension_semantics<parallel>, #tpu.dimension_semantics<arbitrary>], iteration_bounds = array<i64: 1, 1, 1>, scalar_prefetch = 0 : i64, scratch_operands = 1 : i64, tpu.core_type = #tpu.core_type<tc>, window_params = [{transform_indices = @transform_0, window_bounds = array<i64: 32, 16>}, {transform_indices = @transform_1, window_bounds = array<i64: 16, 128>}, {transform_indices = @transform_2, window_bounds = array<i64: 1, 128>}, {transform_indices = @transform_3, window_bounds = array<i64: 32, 128>}, {transform_indices = @transform_4, window_bounds = array<i64: 32, 128>}]} {
    %c0_i32 = arith.constant 0 : i32
    %0 = arith.cmpi eq, %arg2, %c0_i32 : i32
    %1 = arith.extui %0 : i1 to i32
    %c0_i32_0 = arith.constant 0 : i32
    %2 = arith.cmpi ne, %1, %c0_i32_0 : i32
    scf.if %2 {
      %cst_10 = arith.constant 0.000000e+00 : f32
      %12 = vector.broadcast %cst_10 : f32 to vector<32x128xf32>
      %c0_11 = arith.constant 0 : index
      %c0_12 = arith.constant 0 : index
      %13 = vector.load %arg8[%c0_11, %c0_12] : memref<32x128xf32, #tpu.memory_space<vmem>>, vector<32x128xf32>
      tpu.vector_store %arg8[%c0_11, %c0_12], %12 {strides = array<i32>} : memref<32x128xf32, #tpu.memory_space<vmem>>, vector<32x128xf32>,
    } else {
    }
    %c0 = arith.constant 0 : index
    %c0_1 = arith.constant 0 : index
    %3 = vector.load %arg8[%c0, %c0_1] : memref<32x128xf32, #tpu.memory_space<vmem>>, vector<32x128xf32>
    %c0_2 = arith.constant 0 : index
    %c0_3 = arith.constant 0 : index
    %4 = vector.load %arg3[%c0_2, %c0_3] : memref<32x16xbf16, #tpu.memory_space<vmem>>, vector<32x16xbf16>
    %c0_4 = arith.constant 0 : index
    %c0_5 = arith.constant 0 : index
    %5 = vector.load %arg4[%c0_4, %c0_5] : memref<16x128xbf16, #tpu.memory_space<vmem>>, vector<16x128xbf16>
    %cst = arith.constant dense<0.000000e+00> : vector<32x128xf32>
    %6 = tpu.matmul %4, %5, %cst {dimension_numbers = #tpu.dot_dimension_numbers<[1], [0], [0], [1], [0, 0, 1, 1], [], []>} : vector<32x16xbf16>, vector<16x128xbf16>, vector<32x128xf32> -> vector<32x128xf32>
    %7 = arith.addf %3, %6 : vector<32x128xf32>
    %c0_6 = arith.constant 0 : index
    %c0_7 = arith.constant 0 : index
    %8 = vector.load %arg8[%c0_6, %c0_7] : memref<32x128xf32, #tpu.memory_space<vmem>>, vector<32x128xf32>
    tpu.vector_store %arg8[%c0_6, %c0_7], %7 {strides = array<i32>} : memref<32x128xf32, #tpu.memory_space<vmem>>, vector<32x128xf32>,
    %c0_i32_8 = arith.constant 0 : i32
    %9 = arith.cmpi eq, %arg2, %c0_i32_8 : i32
    %10 = arith.extui %9 : i1 to i32
    %c0_i32_9 = arith.constant 0 : i32
    %11 = arith.cmpi ne, %10, %c0_i32_9 : i32
    scf.if %11 {
      %c0_10 = arith.constant 0 : index
      %c0_11 = arith.constant 0 : index
      %12 = vector.load %arg8[%c0_10, %c0_11] : memref<32x128xf32, #tpu.memory_space<vmem>>, vector<32x128xf32>
      %c0_12 = arith.constant 0 : index
      %c0_13 = arith.constant 0 : index
      %13 = vector.load %arg5[%c0_12, %c0_13] : memref<1x128xf32, #tpu.memory_space<vmem>>, vector<1x128xf32>
      %14 = vector.broadcast %13 : vector<1x128xf32> to vector<32x128xf32>
      %15 = arith.addf %12, %14 : vector<32x128xf32>
      %c0_14 = arith.constant 0 : index
      %c0_15 = arith.constant 0 : index
      %16 = vector.load %arg6[%c0_14, %c0_15] : memref<32x128xbf16, #tpu.memory_space<vmem>>, vector<32x128xbf16>
      %17 = arith.extf %16 : vector<32x128xbf16> to vector<32x128xf32>
      %18 = arith.addf %15, %17 : vector<32x128xf32>
      %cst_16 = arith.constant 0.000000e+00 : f32
      %19 = vector.broadcast %cst_16 : f32 to vector<32x128xf32>
      %20 = arith.maximumf %18, %19 : vector<32x128xf32>
      %21 = arith.truncf %20 : vector<32x128xf32> to vector<32x128xbf16>
      %c0_17 = arith.constant 0 : index
      %c0_18 = arith.constant 0 : index
      %22 = vector.load %arg7[%c0_17, %c0_18] : memref<32x128xbf16, #tpu.memory_space<vmem>>, vector<32x128xbf16>
      tpu.vector_store %arg7[%c0_17, %c0_18], %21 {strides = array<i32>} : memref<32x128xbf16, #tpu.memory_space<vmem>>, vector<32x128xbf16>,
    } else {
    }
    return
  }
  func.func @transform_0(%arg0: i32, %arg1: i32, %arg2: i32) -> (i32, i32) {
    %c0_i32 = arith.constant 0 : i32
    return %arg0, %arg2 : i32, i32
  }
  func.func @transform_1(%arg0: i32, %arg1: i32, %arg2: i32) -> (i32, i32) {
    %c0_i32 = arith.constant 0 : i32
    return %arg2, %arg1 : i32, i32
  }
  func.func @transform_2(%arg0: i32, %arg1: i32, %arg2: i32) -> (i32, i32) {
    %c0_i32 = arith.constant 0 : i32
    %c0_i32_0 = arith.constant 0 : i32
    return %c0_i32, %arg1 : i32, i32
  }
  func.func @transform_3(%arg0: i32, %arg1: i32, %arg2: i32) -> (i32, i32) {
    %c0_i32 = arith.constant 0 : i32
    return %arg0, %arg1 : i32, i32
  }
  func.func @transform_4(%arg0: i32, %arg1: i32, %arg2: i32) -> (i32, i32) {
    %c0_i32 = arith.constant 0 : i32
    return %arg0, %arg1 : i32, i32
  }
}

module attributes {stable_mosaic.version = 11 : i64} {
  func.func @_mm_kernel(%arg0: i32, %arg1: i32, %arg2: i32, %arg3: memref<32x64xbf16, #tpu.memory_space<vmem>>, %arg4: memref<64x128xbf16, #tpu.memory_space<vmem>>, %arg5: memref<1x128xf32, #tpu.memory_space<vmem>>, %arg6: memref<32x128xbf16, #tpu.memory_space<vmem>>, %arg7: memref<32x128xf32, #tpu.memory_space<vmem>>) attributes {dimension_semantics = [#tpu.dimension_semantics<parallel>, #tpu.dimension_semantics<parallel>, #tpu.dimension_semantics<arbitrary>], iteration_bounds = array<i64: 1, 1, 1>, scalar_prefetch = 0 : i64, scratch_operands = 1 : i64, tpu.core_type = #tpu.core_type<tc>, window_params = [{transform_indices = @transform_0, window_bounds = array<i64: 32, 64>}, {transform_indices = @transform_1, window_bounds = array<i64: 64, 128>}, {transform_indices = @transform_2, window_bounds = array<i64: 1, 128>}, {transform_indices = @transform_3, window_bounds = array<i64: 32, 128>}]} {
    %c0_i32 = arith.constant 0 : i32
    %0 = arith.cmpi eq, %arg2, %c0_i32 : i32
    %1 = arith.extui %0 : i1 to i32
    %c0_i32_0 = arith.constant 0 : i32
    %2 = arith.cmpi ne, %1, %c0_i32_0 : i32
    scf.if %2 {
      %cst_10 = arith.constant 0.000000e+00 : f32
      %12 = vector.broadcast %cst_10 : f32 to vector<32x128xf32>
      %c0_11 = arith.constant 0 : index
      %c0_12 = arith.constant 0 : index
      %13 = vector.load %arg7[%c0_11, %c0_12] : memref<32x128xf32, #tpu.memory_space<vmem>>, vector<32x128xf32>
      tpu.vector_store %arg7[%c0_11, %c0_12], %12 {strides = array<i32>} : memref<32x128xf32, #tpu.memory_space<vmem>>, vector<32x128xf32>,
    } else {
    }
    %c0 = arith.constant 0 : index
    %c0_1 = arith.constant 0 : index
    %3 = vector.load %arg7[%c0, %c0_1] : memref<32x128xf32, #tpu.memory_space<vmem>>, vector<32x128xf32>
    %c0_2 = arith.constant 0 : index
    %c0_3 = arith.constant 0 : index
    %4 = vector.load %arg3[%c0_2, %c0_3] : memref<32x64xbf16, #tpu.memory_space<vmem>>, vector<32x64xbf16>
    %c0_4 = arith.constant 0 : index
    %c0_5 = arith.constant 0 : index
    %5 = vector.load %arg4[%c0_4, %c0_5] : memref<64x128xbf16, #tpu.memory_space<vmem>>, vector<64x128xbf16>
    %cst = arith.constant dense<0.000000e+00> : vector<32x128xf32>
    %6 = tpu.matmul %4, %5, %cst {dimension_numbers = #tpu.dot_dimension_numbers<[1], [0], [0], [1], [0, 0, 1, 1], [], []>} : vector<32x64xbf16>, vector<64x128xbf16>, vector<32x128xf32> -> vector<32x128xf32>
    %7 = arith.addf %3, %6 : vector<32x128xf32>
    %c0_6 = arith.constant 0 : index
    %c0_7 = arith.constant 0 : index
    %8 = vector.load %arg7[%c0_6, %c0_7] : memref<32x128xf32, #tpu.memory_space<vmem>>, vector<32x128xf32>
    tpu.vector_store %arg7[%c0_6, %c0_7], %7 {strides = array<i32>} : memref<32x128xf32, #tpu.memory_space<vmem>>, vector<32x128xf32>,
    %c0_i32_8 = arith.constant 0 : i32
    %9 = arith.cmpi eq, %arg2, %c0_i32_8 : i32
    %10 = arith.extui %9 : i1 to i32
    %c0_i32_9 = arith.constant 0 : i32
    %11 = arith.cmpi ne, %10, %c0_i32_9 : i32
    scf.if %11 {
      %c0_10 = arith.constant 0 : index
      %c0_11 = arith.constant 0 : index
      %12 = vector.load %arg7[%c0_10, %c0_11] : memref<32x128xf32, #tpu.memory_space<vmem>>, vector<32x128xf32>
      %c0_12 = arith.constant 0 : index
      %c0_13 = arith.constant 0 : index
      %13 = vector.load %arg5[%c0_12, %c0_13] : memref<1x128xf32, #tpu.memory_space<vmem>>, vector<1x128xf32>
      %14 = vector.broadcast %13 : vector<1x128xf32> to vector<32x128xf32>
      %15 = arith.addf %12, %14 : vector<32x128xf32>
      %cst_14 = arith.constant 0.000000e+00 : f32
      %16 = vector.broadcast %cst_14 : f32 to vector<32x128xf32>
      %17 = arith.maximumf %15, %16 : vector<32x128xf32>
      %18 = arith.truncf %17 : vector<32x128xf32> to vector<32x128xbf16>
      %c0_15 = arith.constant 0 : index
      %c0_16 = arith.constant 0 : index
      %19 = vector.load %arg6[%c0_15, %c0_16] : memref<32x128xbf16, #tpu.memory_space<vmem>>, vector<32x128xbf16>
      tpu.vector_store %arg6[%c0_15, %c0_16], %18 {strides = array<i32>} : memref<32x128xbf16, #tpu.memory_space<vmem>>, vector<32x128xbf16>,
    } else {
    }
    return
  }
  func.func @transform_0(%arg0: i32, %arg1: i32, %arg2: i32) -> (i32, i32) {
    %c0_i32 = arith.constant 0 : i32
    return %arg0, %arg2 : i32, i32
  }
  func.func @transform_1(%arg0: i32, %arg1: i32, %arg2: i32) -> (i32, i32) {
    %c0_i32 = arith.constant 0 : i32
    return %arg2, %arg1 : i32, i32
  }
  func.func @transform_2(%arg0: i32, %arg1: i32, %arg2: i32) -> (i32, i32) {
    %c0_i32 = arith.constant 0 : i32
    %c0_i32_0 = arith.constant 0 : i32
    return %c0_i32, %arg1 : i32, i32
  }
  func.func @transform_3(%arg0: i32, %arg1: i32, %arg2: i32) -> (i32, i32) {
    %c0_i32 = arith.constant 0 : i32
    return %arg0, %arg1 : i32, i32
  }
}

module attributes {stable_mosaic.version = 11 : i64} {
  func.func @_mm_kernel(%arg0: i32, %arg1: i32, %arg2: i32, %arg3: memref<32x288xbf16, #tpu.memory_space<vmem>>, %arg4: memref<288x128xbf16, #tpu.memory_space<vmem>>, %arg5: memref<1x128xf32, #tpu.memory_space<vmem>>, %arg6: memref<32x128xbf16, #tpu.memory_space<vmem>>, %arg7: memref<32x128xf32, #tpu.memory_space<vmem>>) attributes {dimension_semantics = [#tpu.dimension_semantics<parallel>, #tpu.dimension_semantics<parallel>, #tpu.dimension_semantics<arbitrary>], iteration_bounds = array<i64: 1, 1, 1>, scalar_prefetch = 0 : i64, scratch_operands = 1 : i64, tpu.core_type = #tpu.core_type<tc>, window_params = [{transform_indices = @transform_0, window_bounds = array<i64: 32, 288>}, {transform_indices = @transform_1, window_bounds = array<i64: 288, 128>}, {transform_indices = @transform_2, window_bounds = array<i64: 1, 128>}, {transform_indices = @transform_3, window_bounds = array<i64: 32, 128>}]} {
    %c0_i32 = arith.constant 0 : i32
    %0 = arith.cmpi eq, %arg2, %c0_i32 : i32
    %1 = arith.extui %0 : i1 to i32
    %c0_i32_0 = arith.constant 0 : i32
    %2 = arith.cmpi ne, %1, %c0_i32_0 : i32
    scf.if %2 {
      %cst_10 = arith.constant 0.000000e+00 : f32
      %12 = vector.broadcast %cst_10 : f32 to vector<32x128xf32>
      %c0_11 = arith.constant 0 : index
      %c0_12 = arith.constant 0 : index
      %13 = vector.load %arg7[%c0_11, %c0_12] : memref<32x128xf32, #tpu.memory_space<vmem>>, vector<32x128xf32>
      tpu.vector_store %arg7[%c0_11, %c0_12], %12 {strides = array<i32>} : memref<32x128xf32, #tpu.memory_space<vmem>>, vector<32x128xf32>,
    } else {
    }
    %c0 = arith.constant 0 : index
    %c0_1 = arith.constant 0 : index
    %3 = vector.load %arg7[%c0, %c0_1] : memref<32x128xf32, #tpu.memory_space<vmem>>, vector<32x128xf32>
    %c0_2 = arith.constant 0 : index
    %c0_3 = arith.constant 0 : index
    %4 = vector.load %arg3[%c0_2, %c0_3] : memref<32x288xbf16, #tpu.memory_space<vmem>>, vector<32x288xbf16>
    %c0_4 = arith.constant 0 : index
    %c0_5 = arith.constant 0 : index
    %5 = vector.load %arg4[%c0_4, %c0_5] : memref<288x128xbf16, #tpu.memory_space<vmem>>, vector<288x128xbf16>
    %cst = arith.constant dense<0.000000e+00> : vector<32x128xf32>
    %6 = tpu.matmul %4, %5, %cst {dimension_numbers = #tpu.dot_dimension_numbers<[1], [0], [0], [1], [0, 0, 1, 1], [], []>} : vector<32x288xbf16>, vector<288x128xbf16>, vector<32x128xf32> -> vector<32x128xf32>
    %7 = arith.addf %3, %6 : vector<32x128xf32>
    %c0_6 = arith.constant 0 : index
    %c0_7 = arith.constant 0 : index
    %8 = vector.load %arg7[%c0_6, %c0_7] : memref<32x128xf32, #tpu.memory_space<vmem>>, vector<32x128xf32>
    tpu.vector_store %arg7[%c0_6, %c0_7], %7 {strides = array<i32>} : memref<32x128xf32, #tpu.memory_space<vmem>>, vector<32x128xf32>,
    %c0_i32_8 = arith.constant 0 : i32
    %9 = arith.cmpi eq, %arg2, %c0_i32_8 : i32
    %10 = arith.extui %9 : i1 to i32
    %c0_i32_9 = arith.constant 0 : i32
    %11 = arith.cmpi ne, %10, %c0_i32_9 : i32
    scf.if %11 {
      %c0_10 = arith.constant 0 : index
      %c0_11 = arith.constant 0 : index
      %12 = vector.load %arg7[%c0_10, %c0_11] : memref<32x128xf32, #tpu.memory_space<vmem>>, vector<32x128xf32>
      %c0_12 = arith.constant 0 : index
      %c0_13 = arith.constant 0 : index
      %13 = vector.load %arg5[%c0_12, %c0_13] : memref<1x128xf32, #tpu.memory_space<vmem>>, vector<1x128xf32>
      %14 = vector.broadcast %13 : vector<1x128xf32> to vector<32x128xf32>
      %15 = arith.addf %12, %14 : vector<32x128xf32>
      %cst_14 = arith.constant 0.000000e+00 : f32
      %16 = vector.broadcast %cst_14 : f32 to vector<32x128xf32>
      %17 = arith.maximumf %15, %16 : vector<32x128xf32>
      %18 = arith.truncf %17 : vector<32x128xf32> to vector<32x128xbf16>
      %c0_15 = arith.constant 0 : index
      %c0_16 = arith.constant 0 : index
      %19 = vector.load %arg6[%c0_15, %c0_16] : memref<32x128xbf16, #tpu.memory_space<vmem>>, vector<32x128xbf16>
      tpu.vector_store %arg6[%c0_15, %c0_16], %18 {strides = array<i32>} : memref<32x128xbf16, #tpu.memory_space<vmem>>, vector<32x128xbf16>,
    } else {
    }
    return
  }
  func.func @transform_0(%arg0: i32, %arg1: i32, %arg2: i32) -> (i32, i32) {
    %c0_i32 = arith.constant 0 : i32
    return %arg0, %arg2 : i32, i32
  }
  func.func @transform_1(%arg0: i32, %arg1: i32, %arg2: i32) -> (i32, i32) {
    %c0_i32 = arith.constant 0 : i32
    return %arg2, %arg1 : i32, i32
  }
  func.func @transform_2(%arg0: i32, %arg1: i32, %arg2: i32) -> (i32, i32) {
    %c0_i32 = arith.constant 0 : i32
    %c0_i32_0 = arith.constant 0 : i32
    return %c0_i32, %arg1 : i32, i32
  }
  func.func @transform_3(%arg0: i32, %arg1: i32, %arg2: i32) -> (i32, i32) {
    %c0_i32 = arith.constant 0 : i32
    return %arg0, %arg1 : i32, i32
  }
}

module attributes {stable_mosaic.version = 11 : i64} {
  func.func @_mm_res_kernel(%arg0: i32, %arg1: i32, %arg2: i32, %arg3: memref<8x32xbf16, #tpu.memory_space<vmem>>, %arg4: memref<32x128xbf16, #tpu.memory_space<vmem>>, %arg5: memref<1x128xf32, #tpu.memory_space<vmem>>, %arg6: memref<8x128xbf16, #tpu.memory_space<vmem>>, %arg7: memref<8x128xbf16, #tpu.memory_space<vmem>>, %arg8: memref<8x128xf32, #tpu.memory_space<vmem>>) attributes {dimension_semantics = [#tpu.dimension_semantics<parallel>, #tpu.dimension_semantics<parallel>, #tpu.dimension_semantics<arbitrary>], iteration_bounds = array<i64: 1, 1, 1>, scalar_prefetch = 0 : i64, scratch_operands = 1 : i64, tpu.core_type = #tpu.core_type<tc>, window_params = [{transform_indices = @transform_0, window_bounds = array<i64: 8, 32>}, {transform_indices = @transform_1, window_bounds = array<i64: 32, 128>}, {transform_indices = @transform_2, window_bounds = array<i64: 1, 128>}, {transform_indices = @transform_3, window_bounds = array<i64: 8, 128>}, {transform_indices = @transform_4, window_bounds = array<i64: 8, 128>}]} {
    %c0_i32 = arith.constant 0 : i32
    %0 = arith.cmpi eq, %arg2, %c0_i32 : i32
    %1 = arith.extui %0 : i1 to i32
    %c0_i32_0 = arith.constant 0 : i32
    %2 = arith.cmpi ne, %1, %c0_i32_0 : i32
    scf.if %2 {
      %cst_10 = arith.constant 0.000000e+00 : f32
      %12 = vector.broadcast %cst_10 : f32 to vector<8x128xf32>
      %c0_11 = arith.constant 0 : index
      %c0_12 = arith.constant 0 : index
      %13 = vector.load %arg8[%c0_11, %c0_12] : memref<8x128xf32, #tpu.memory_space<vmem>>, vector<8x128xf32>
      tpu.vector_store %arg8[%c0_11, %c0_12], %12 {strides = array<i32>} : memref<8x128xf32, #tpu.memory_space<vmem>>, vector<8x128xf32>,
    } else {
    }
    %c0 = arith.constant 0 : index
    %c0_1 = arith.constant 0 : index
    %3 = vector.load %arg8[%c0, %c0_1] : memref<8x128xf32, #tpu.memory_space<vmem>>, vector<8x128xf32>
    %c0_2 = arith.constant 0 : index
    %c0_3 = arith.constant 0 : index
    %4 = vector.load %arg3[%c0_2, %c0_3] : memref<8x32xbf16, #tpu.memory_space<vmem>>, vector<8x32xbf16>
    %c0_4 = arith.constant 0 : index
    %c0_5 = arith.constant 0 : index
    %5 = vector.load %arg4[%c0_4, %c0_5] : memref<32x128xbf16, #tpu.memory_space<vmem>>, vector<32x128xbf16>
    %cst = arith.constant dense<0.000000e+00> : vector<8x128xf32>
    %6 = tpu.matmul %4, %5, %cst {dimension_numbers = #tpu.dot_dimension_numbers<[1], [0], [0], [1], [0, 0, 1, 1], [], []>} : vector<8x32xbf16>, vector<32x128xbf16>, vector<8x128xf32> -> vector<8x128xf32>
    %7 = arith.addf %3, %6 : vector<8x128xf32>
    %c0_6 = arith.constant 0 : index
    %c0_7 = arith.constant 0 : index
    %8 = vector.load %arg8[%c0_6, %c0_7] : memref<8x128xf32, #tpu.memory_space<vmem>>, vector<8x128xf32>
    tpu.vector_store %arg8[%c0_6, %c0_7], %7 {strides = array<i32>} : memref<8x128xf32, #tpu.memory_space<vmem>>, vector<8x128xf32>,
    %c0_i32_8 = arith.constant 0 : i32
    %9 = arith.cmpi eq, %arg2, %c0_i32_8 : i32
    %10 = arith.extui %9 : i1 to i32
    %c0_i32_9 = arith.constant 0 : i32
    %11 = arith.cmpi ne, %10, %c0_i32_9 : i32
    scf.if %11 {
      %c0_10 = arith.constant 0 : index
      %c0_11 = arith.constant 0 : index
      %12 = vector.load %arg8[%c0_10, %c0_11] : memref<8x128xf32, #tpu.memory_space<vmem>>, vector<8x128xf32>
      %c0_12 = arith.constant 0 : index
      %c0_13 = arith.constant 0 : index
      %13 = vector.load %arg5[%c0_12, %c0_13] : memref<1x128xf32, #tpu.memory_space<vmem>>, vector<1x128xf32>
      %14 = vector.broadcast %13 : vector<1x128xf32> to vector<8x128xf32>
      %15 = arith.addf %12, %14 : vector<8x128xf32>
      %c0_14 = arith.constant 0 : index
      %c0_15 = arith.constant 0 : index
      %16 = vector.load %arg6[%c0_14, %c0_15] : memref<8x128xbf16, #tpu.memory_space<vmem>>, vector<8x128xbf16>
      %17 = arith.extf %16 : vector<8x128xbf16> to vector<8x128xf32>
      %18 = arith.addf %15, %17 : vector<8x128xf32>
      %cst_16 = arith.constant 0.000000e+00 : f32
      %19 = vector.broadcast %cst_16 : f32 to vector<8x128xf32>
      %20 = arith.maximumf %18, %19 : vector<8x128xf32>
      %21 = arith.truncf %20 : vector<8x128xf32> to vector<8x128xbf16>
      %c0_17 = arith.constant 0 : index
      %c0_18 = arith.constant 0 : index
      %22 = vector.load %arg7[%c0_17, %c0_18] : memref<8x128xbf16, #tpu.memory_space<vmem>>, vector<8x128xbf16>
      tpu.vector_store %arg7[%c0_17, %c0_18], %21 {strides = array<i32>} : memref<8x128xbf16, #tpu.memory_space<vmem>>, vector<8x128xbf16>,
    } else {
    }
    return
  }
  func.func @transform_0(%arg0: i32, %arg1: i32, %arg2: i32) -> (i32, i32) {
    %c0_i32 = arith.constant 0 : i32
    return %arg0, %arg2 : i32, i32
  }
  func.func @transform_1(%arg0: i32, %arg1: i32, %arg2: i32) -> (i32, i32) {
    %c0_i32 = arith.constant 0 : i32
    return %arg2, %arg1 : i32, i32
  }
  func.func @transform_2(%arg0: i32, %arg1: i32, %arg2: i32) -> (i32, i32) {
    %c0_i32 = arith.constant 0 : i32
    %c0_i32_0 = arith.constant 0 : i32
    return %c0_i32, %arg1 : i32, i32
  }
  func.func @transform_3(%arg0: i32, %arg1: i32, %arg2: i32) -> (i32, i32) {
    %c0_i32 = arith.constant 0 : i32
    return %arg0, %arg1 : i32, i32
  }
  func.func @transform_4(%arg0: i32, %arg1: i32, %arg2: i32) -> (i32, i32) {
    %c0_i32 = arith.constant 0 : i32
    return %arg0, %arg1 : i32, i32
  }
}

module attributes {stable_mosaic.version = 11 : i64} {
  func.func @_mm_kernel(%arg0: i32, %arg1: i32, %arg2: i32, %arg3: memref<8x64xbf16, #tpu.memory_space<vmem>>, %arg4: memref<64x128xbf16, #tpu.memory_space<vmem>>, %arg5: memref<1x128xf32, #tpu.memory_space<vmem>>, %arg6: memref<8x128xbf16, #tpu.memory_space<vmem>>, %arg7: memref<8x128xf32, #tpu.memory_space<vmem>>) attributes {dimension_semantics = [#tpu.dimension_semantics<parallel>, #tpu.dimension_semantics<parallel>, #tpu.dimension_semantics<arbitrary>], iteration_bounds = array<i64: 1, 1, 1>, scalar_prefetch = 0 : i64, scratch_operands = 1 : i64, tpu.core_type = #tpu.core_type<tc>, window_params = [{transform_indices = @transform_0, window_bounds = array<i64: 8, 64>}, {transform_indices = @transform_1, window_bounds = array<i64: 64, 128>}, {transform_indices = @transform_2, window_bounds = array<i64: 1, 128>}, {transform_indices = @transform_3, window_bounds = array<i64: 8, 128>}]} {
    %c0_i32 = arith.constant 0 : i32
    %0 = arith.cmpi eq, %arg2, %c0_i32 : i32
    %1 = arith.extui %0 : i1 to i32
    %c0_i32_0 = arith.constant 0 : i32
    %2 = arith.cmpi ne, %1, %c0_i32_0 : i32
    scf.if %2 {
      %cst_10 = arith.constant 0.000000e+00 : f32
      %12 = vector.broadcast %cst_10 : f32 to vector<8x128xf32>
      %c0_11 = arith.constant 0 : index
      %c0_12 = arith.constant 0 : index
      %13 = vector.load %arg7[%c0_11, %c0_12] : memref<8x128xf32, #tpu.memory_space<vmem>>, vector<8x128xf32>
      tpu.vector_store %arg7[%c0_11, %c0_12], %12 {strides = array<i32>} : memref<8x128xf32, #tpu.memory_space<vmem>>, vector<8x128xf32>,
    } else {
    }
    %c0 = arith.constant 0 : index
    %c0_1 = arith.constant 0 : index
    %3 = vector.load %arg7[%c0, %c0_1] : memref<8x128xf32, #tpu.memory_space<vmem>>, vector<8x128xf32>
    %c0_2 = arith.constant 0 : index
    %c0_3 = arith.constant 0 : index
    %4 = vector.load %arg3[%c0_2, %c0_3] : memref<8x64xbf16, #tpu.memory_space<vmem>>, vector<8x64xbf16>
    %c0_4 = arith.constant 0 : index
    %c0_5 = arith.constant 0 : index
    %5 = vector.load %arg4[%c0_4, %c0_5] : memref<64x128xbf16, #tpu.memory_space<vmem>>, vector<64x128xbf16>
    %cst = arith.constant dense<0.000000e+00> : vector<8x128xf32>
    %6 = tpu.matmul %4, %5, %cst {dimension_numbers = #tpu.dot_dimension_numbers<[1], [0], [0], [1], [0, 0, 1, 1], [], []>} : vector<8x64xbf16>, vector<64x128xbf16>, vector<8x128xf32> -> vector<8x128xf32>
    %7 = arith.addf %3, %6 : vector<8x128xf32>
    %c0_6 = arith.constant 0 : index
    %c0_7 = arith.constant 0 : index
    %8 = vector.load %arg7[%c0_6, %c0_7] : memref<8x128xf32, #tpu.memory_space<vmem>>, vector<8x128xf32>
    tpu.vector_store %arg7[%c0_6, %c0_7], %7 {strides = array<i32>} : memref<8x128xf32, #tpu.memory_space<vmem>>, vector<8x128xf32>,
    %c0_i32_8 = arith.constant 0 : i32
    %9 = arith.cmpi eq, %arg2, %c0_i32_8 : i32
    %10 = arith.extui %9 : i1 to i32
    %c0_i32_9 = arith.constant 0 : i32
    %11 = arith.cmpi ne, %10, %c0_i32_9 : i32
    scf.if %11 {
      %c0_10 = arith.constant 0 : index
      %c0_11 = arith.constant 0 : index
      %12 = vector.load %arg7[%c0_10, %c0_11] : memref<8x128xf32, #tpu.memory_space<vmem>>, vector<8x128xf32>
      %c0_12 = arith.constant 0 : index
      %c0_13 = arith.constant 0 : index
      %13 = vector.load %arg5[%c0_12, %c0_13] : memref<1x128xf32, #tpu.memory_space<vmem>>, vector<1x128xf32>
      %14 = vector.broadcast %13 : vector<1x128xf32> to vector<8x128xf32>
      %15 = arith.addf %12, %14 : vector<8x128xf32>
      %16 = arith.truncf %15 : vector<8x128xf32> to vector<8x128xbf16>
      %c0_14 = arith.constant 0 : index
      %c0_15 = arith.constant 0 : index
      %17 = vector.load %arg6[%c0_14, %c0_15] : memref<8x128xbf16, #tpu.memory_space<vmem>>, vector<8x128xbf16>
      tpu.vector_store %arg6[%c0_14, %c0_15], %16 {strides = array<i32>} : memref<8x128xbf16, #tpu.memory_space<vmem>>, vector<8x128xbf16>,
    } else {
    }
    return
  }
  func.func @transform_0(%arg0: i32, %arg1: i32, %arg2: i32) -> (i32, i32) {
    %c0_i32 = arith.constant 0 : i32
    return %arg0, %arg2 : i32, i32
  }
  func.func @transform_1(%arg0: i32, %arg1: i32, %arg2: i32) -> (i32, i32) {
    %c0_i32 = arith.constant 0 : i32
    return %arg2, %arg1 : i32, i32
  }
  func.func @transform_2(%arg0: i32, %arg1: i32, %arg2: i32) -> (i32, i32) {
    %c0_i32 = arith.constant 0 : i32
    %c0_i32_0 = arith.constant 0 : i32
    return %c0_i32, %arg1 : i32, i32
  }
  func.func @transform_3(%arg0: i32, %arg1: i32, %arg2: i32) -> (i32, i32) {
    %c0_i32 = arith.constant 0 : i32
    return %arg0, %arg1 : i32, i32
  }
}

module attributes {stable_mosaic.version = 11 : i64} {
  func.func @_mm_kernel(%arg0: i32, %arg1: i32, %arg2: i32, %arg3: memref<8x128xbf16, #tpu.memory_space<vmem>>, %arg4: memref<128x256xbf16, #tpu.memory_space<vmem>>, %arg5: memref<1x256xf32, #tpu.memory_space<vmem>>, %arg6: memref<8x256xbf16, #tpu.memory_space<vmem>>, %arg7: memref<8x256xf32, #tpu.memory_space<vmem>>) attributes {dimension_semantics = [#tpu.dimension_semantics<parallel>, #tpu.dimension_semantics<parallel>, #tpu.dimension_semantics<arbitrary>], iteration_bounds = array<i64: 1, 1, 1>, scalar_prefetch = 0 : i64, scratch_operands = 1 : i64, tpu.core_type = #tpu.core_type<tc>, window_params = [{transform_indices = @transform_0, window_bounds = array<i64: 8, 128>}, {transform_indices = @transform_1, window_bounds = array<i64: 128, 256>}, {transform_indices = @transform_2, window_bounds = array<i64: 1, 256>}, {transform_indices = @transform_3, window_bounds = array<i64: 8, 256>}]} {
    %c0_i32 = arith.constant 0 : i32
    %0 = arith.cmpi eq, %arg2, %c0_i32 : i32
    %1 = arith.extui %0 : i1 to i32
    %c0_i32_0 = arith.constant 0 : i32
    %2 = arith.cmpi ne, %1, %c0_i32_0 : i32
    scf.if %2 {
      %cst_10 = arith.constant 0.000000e+00 : f32
      %12 = vector.broadcast %cst_10 : f32 to vector<8x256xf32>
      %c0_11 = arith.constant 0 : index
      %c0_12 = arith.constant 0 : index
      %13 = vector.load %arg7[%c0_11, %c0_12] : memref<8x256xf32, #tpu.memory_space<vmem>>, vector<8x256xf32>
      tpu.vector_store %arg7[%c0_11, %c0_12], %12 {strides = array<i32>} : memref<8x256xf32, #tpu.memory_space<vmem>>, vector<8x256xf32>,
    } else {
    }
    %c0 = arith.constant 0 : index
    %c0_1 = arith.constant 0 : index
    %3 = vector.load %arg7[%c0, %c0_1] : memref<8x256xf32, #tpu.memory_space<vmem>>, vector<8x256xf32>
    %c0_2 = arith.constant 0 : index
    %c0_3 = arith.constant 0 : index
    %4 = vector.load %arg3[%c0_2, %c0_3] : memref<8x128xbf16, #tpu.memory_space<vmem>>, vector<8x128xbf16>
    %c0_4 = arith.constant 0 : index
    %c0_5 = arith.constant 0 : index
    %5 = vector.load %arg4[%c0_4, %c0_5] : memref<128x256xbf16, #tpu.memory_space<vmem>>, vector<128x256xbf16>
    %cst = arith.constant dense<0.000000e+00> : vector<8x256xf32>
    %6 = tpu.matmul %4, %5, %cst {dimension_numbers = #tpu.dot_dimension_numbers<[1], [0], [0], [1], [0, 0, 1, 1], [], []>} : vector<8x128xbf16>, vector<128x256xbf16>, vector<8x256xf32> -> vector<8x256xf32>
    %7 = arith.addf %3, %6 : vector<8x256xf32>
    %c0_6 = arith.constant 0 : index
    %c0_7 = arith.constant 0 : index
    %8 = vector.load %arg7[%c0_6, %c0_7] : memref<8x256xf32, #tpu.memory_space<vmem>>, vector<8x256xf32>
    tpu.vector_store %arg7[%c0_6, %c0_7], %7 {strides = array<i32>} : memref<8x256xf32, #tpu.memory_space<vmem>>, vector<8x256xf32>,
    %c0_i32_8 = arith.constant 0 : i32
    %9 = arith.cmpi eq, %arg2, %c0_i32_8 : i32
    %10 = arith.extui %9 : i1 to i32
    %c0_i32_9 = arith.constant 0 : i32
    %11 = arith.cmpi ne, %10, %c0_i32_9 : i32
    scf.if %11 {
      %c0_10 = arith.constant 0 : index
      %c0_11 = arith.constant 0 : index
      %12 = vector.load %arg7[%c0_10, %c0_11] : memref<8x256xf32, #tpu.memory_space<vmem>>, vector<8x256xf32>
      %c0_12 = arith.constant 0 : index
      %c0_13 = arith.constant 0 : index
      %13 = vector.load %arg5[%c0_12, %c0_13] : memref<1x256xf32, #tpu.memory_space<vmem>>, vector<1x256xf32>
      %14 = vector.broadcast %13 : vector<1x256xf32> to vector<8x256xf32>
      %15 = arith.addf %12, %14 : vector<8x256xf32>
      %16 = arith.truncf %15 : vector<8x256xf32> to vector<8x256xbf16>
      %c0_14 = arith.constant 0 : index
      %c0_15 = arith.constant 0 : index
      %17 = vector.load %arg6[%c0_14, %c0_15] : memref<8x256xbf16, #tpu.memory_space<vmem>>, vector<8x256xbf16>
      tpu.vector_store %arg6[%c0_14, %c0_15], %16 {strides = array<i32>} : memref<8x256xbf16, #tpu.memory_space<vmem>>, vector<8x256xbf16>,
    } else {
    }
    return
  }
  func.func @transform_0(%arg0: i32, %arg1: i32, %arg2: i32) -> (i32, i32) {
    %c0_i32 = arith.constant 0 : i32
    return %arg0, %arg2 : i32, i32
  }
  func.func @transform_1(%arg0: i32, %arg1: i32, %arg2: i32) -> (i32, i32) {
    %c0_i32 = arith.constant 0 : i32
    return %arg2, %arg1 : i32, i32
  }
  func.func @transform_2(%arg0: i32, %arg1: i32, %arg2: i32) -> (i32, i32) {
    %c0_i32 = arith.constant 0 : i32
    %c0_i32_0 = arith.constant 0 : i32
    return %c0_i32, %arg1 : i32, i32
  }
  func.func @transform_3(%arg0: i32, %arg1: i32, %arg2: i32) -> (i32, i32) {
    %c0_i32 = arith.constant 0 : i32
    return %arg0, %arg1 : i32, i32
  }
}

module attributes {stable_mosaic.version = 11 : i64} {
  func.func @_mm_kernel(%arg0: i32, %arg1: i32, %arg2: i32, %arg3: memref<8x128xbf16, #tpu.memory_space<vmem>>, %arg4: memref<128x128xbf16, #tpu.memory_space<vmem>>, %arg5: memref<1x128xf32, #tpu.memory_space<vmem>>, %arg6: memref<8x128xbf16, #tpu.memory_space<vmem>>, %arg7: memref<8x128xf32, #tpu.memory_space<vmem>>) attributes {dimension_semantics = [#tpu.dimension_semantics<parallel>, #tpu.dimension_semantics<parallel>, #tpu.dimension_semantics<arbitrary>], iteration_bounds = array<i64: 1, 1, 1>, scalar_prefetch = 0 : i64, scratch_operands = 1 : i64, tpu.core_type = #tpu.core_type<tc>, window_params = [{transform_indices = @transform_0, window_bounds = array<i64: 8, 128>}, {transform_indices = @transform_1, window_bounds = array<i64: 128, 128>}, {transform_indices = @transform_2, window_bounds = array<i64: 1, 128>}, {transform_indices = @transform_3, window_bounds = array<i64: 8, 128>}]} {
    %c0_i32 = arith.constant 0 : i32
    %0 = arith.cmpi eq, %arg2, %c0_i32 : i32
    %1 = arith.extui %0 : i1 to i32
    %c0_i32_0 = arith.constant 0 : i32
    %2 = arith.cmpi ne, %1, %c0_i32_0 : i32
    scf.if %2 {
      %cst_10 = arith.constant 0.000000e+00 : f32
      %12 = vector.broadcast %cst_10 : f32 to vector<8x128xf32>
      %c0_11 = arith.constant 0 : index
      %c0_12 = arith.constant 0 : index
      %13 = vector.load %arg7[%c0_11, %c0_12] : memref<8x128xf32, #tpu.memory_space<vmem>>, vector<8x128xf32>
      tpu.vector_store %arg7[%c0_11, %c0_12], %12 {strides = array<i32>} : memref<8x128xf32, #tpu.memory_space<vmem>>, vector<8x128xf32>,
    } else {
    }
    %c0 = arith.constant 0 : index
    %c0_1 = arith.constant 0 : index
    %3 = vector.load %arg7[%c0, %c0_1] : memref<8x128xf32, #tpu.memory_space<vmem>>, vector<8x128xf32>
    %c0_2 = arith.constant 0 : index
    %c0_3 = arith.constant 0 : index
    %4 = vector.load %arg3[%c0_2, %c0_3] : memref<8x128xbf16, #tpu.memory_space<vmem>>, vector<8x128xbf16>
    %c0_4 = arith.constant 0 : index
    %c0_5 = arith.constant 0 : index
    %5 = vector.load %arg4[%c0_4, %c0_5] : memref<128x128xbf16, #tpu.memory_space<vmem>>, vector<128x128xbf16>
    %cst = arith.constant dense<0.000000e+00> : vector<8x128xf32>
    %6 = tpu.matmul %4, %5, %cst {dimension_numbers = #tpu.dot_dimension_numbers<[1], [0], [0], [1], [0, 0, 1, 1], [], []>} : vector<8x128xbf16>, vector<128x128xbf16>, vector<8x128xf32> -> vector<8x128xf32>
    %7 = arith.addf %3, %6 : vector<8x128xf32>
    %c0_6 = arith.constant 0 : index
    %c0_7 = arith.constant 0 : index
    %8 = vector.load %arg7[%c0_6, %c0_7] : memref<8x128xf32, #tpu.memory_space<vmem>>, vector<8x128xf32>
    tpu.vector_store %arg7[%c0_6, %c0_7], %7 {strides = array<i32>} : memref<8x128xf32, #tpu.memory_space<vmem>>, vector<8x128xf32>,
    %c0_i32_8 = arith.constant 0 : i32
    %9 = arith.cmpi eq, %arg2, %c0_i32_8 : i32
    %10 = arith.extui %9 : i1 to i32
    %c0_i32_9 = arith.constant 0 : i32
    %11 = arith.cmpi ne, %10, %c0_i32_9 : i32
    scf.if %11 {
      %c0_10 = arith.constant 0 : index
      %c0_11 = arith.constant 0 : index
      %12 = vector.load %arg7[%c0_10, %c0_11] : memref<8x128xf32, #tpu.memory_space<vmem>>, vector<8x128xf32>
      %c0_12 = arith.constant 0 : index
      %c0_13 = arith.constant 0 : index
      %13 = vector.load %arg5[%c0_12, %c0_13] : memref<1x128xf32, #tpu.memory_space<vmem>>, vector<1x128xf32>
      %14 = vector.broadcast %13 : vector<1x128xf32> to vector<8x128xf32>
      %15 = arith.addf %12, %14 : vector<8x128xf32>
      %cst_14 = arith.constant 0.000000e+00 : f32
      %16 = vector.broadcast %cst_14 : f32 to vector<8x128xf32>
      %17 = arith.maximumf %15, %16 : vector<8x128xf32>
      %18 = arith.truncf %17 : vector<8x128xf32> to vector<8x128xbf16>
      %c0_15 = arith.constant 0 : index
      %c0_16 = arith.constant 0 : index
      %19 = vector.load %arg6[%c0_15, %c0_16] : memref<8x128xbf16, #tpu.memory_space<vmem>>, vector<8x128xbf16>
      tpu.vector_store %arg6[%c0_15, %c0_16], %18 {strides = array<i32>} : memref<8x128xbf16, #tpu.memory_space<vmem>>, vector<8x128xbf16>,
    } else {
    }
    return
  }
  func.func @transform_0(%arg0: i32, %arg1: i32, %arg2: i32) -> (i32, i32) {
    %c0_i32 = arith.constant 0 : i32
    return %arg0, %arg2 : i32, i32
  }
  func.func @transform_1(%arg0: i32, %arg1: i32, %arg2: i32) -> (i32, i32) {
    %c0_i32 = arith.constant 0 : i32
    return %arg2, %arg1 : i32, i32
  }
  func.func @transform_2(%arg0: i32, %arg1: i32, %arg2: i32) -> (i32, i32) {
    %c0_i32 = arith.constant 0 : i32
    %c0_i32_0 = arith.constant 0 : i32
    return %c0_i32, %arg1 : i32, i32
  }
  func.func @transform_3(%arg0: i32, %arg1: i32, %arg2: i32) -> (i32, i32) {
    %c0_i32 = arith.constant 0 : i32
    return %arg0, %arg1 : i32, i32
  }
}

module attributes {stable_mosaic.version = 11 : i64} {
  func.func @_mm_kernel(%arg0: i32, %arg1: i32, %arg2: i32, %arg3: memref<8x576xbf16, #tpu.memory_space<vmem>>, %arg4: memref<576x128xbf16, #tpu.memory_space<vmem>>, %arg5: memref<1x128xf32, #tpu.memory_space<vmem>>, %arg6: memref<8x128xbf16, #tpu.memory_space<vmem>>, %arg7: memref<8x128xf32, #tpu.memory_space<vmem>>) attributes {dimension_semantics = [#tpu.dimension_semantics<parallel>, #tpu.dimension_semantics<parallel>, #tpu.dimension_semantics<arbitrary>], iteration_bounds = array<i64: 1, 1, 1>, scalar_prefetch = 0 : i64, scratch_operands = 1 : i64, tpu.core_type = #tpu.core_type<tc>, window_params = [{transform_indices = @transform_0, window_bounds = array<i64: 8, 576>}, {transform_indices = @transform_1, window_bounds = array<i64: 576, 128>}, {transform_indices = @transform_2, window_bounds = array<i64: 1, 128>}, {transform_indices = @transform_3, window_bounds = array<i64: 8, 128>}]} {
    %c0_i32 = arith.constant 0 : i32
    %0 = arith.cmpi eq, %arg2, %c0_i32 : i32
    %1 = arith.extui %0 : i1 to i32
    %c0_i32_0 = arith.constant 0 : i32
    %2 = arith.cmpi ne, %1, %c0_i32_0 : i32
    scf.if %2 {
      %cst_10 = arith.constant 0.000000e+00 : f32
      %12 = vector.broadcast %cst_10 : f32 to vector<8x128xf32>
      %c0_11 = arith.constant 0 : index
      %c0_12 = arith.constant 0 : index
      %13 = vector.load %arg7[%c0_11, %c0_12] : memref<8x128xf32, #tpu.memory_space<vmem>>, vector<8x128xf32>
      tpu.vector_store %arg7[%c0_11, %c0_12], %12 {strides = array<i32>} : memref<8x128xf32, #tpu.memory_space<vmem>>, vector<8x128xf32>,
    } else {
    }
    %c0 = arith.constant 0 : index
    %c0_1 = arith.constant 0 : index
    %3 = vector.load %arg7[%c0, %c0_1] : memref<8x128xf32, #tpu.memory_space<vmem>>, vector<8x128xf32>
    %c0_2 = arith.constant 0 : index
    %c0_3 = arith.constant 0 : index
    %4 = vector.load %arg3[%c0_2, %c0_3] : memref<8x576xbf16, #tpu.memory_space<vmem>>, vector<8x576xbf16>
    %c0_4 = arith.constant 0 : index
    %c0_5 = arith.constant 0 : index
    %5 = vector.load %arg4[%c0_4, %c0_5] : memref<576x128xbf16, #tpu.memory_space<vmem>>, vector<576x128xbf16>
    %cst = arith.constant dense<0.000000e+00> : vector<8x128xf32>
    %6 = tpu.matmul %4, %5, %cst {dimension_numbers = #tpu.dot_dimension_numbers<[1], [0], [0], [1], [0, 0, 1, 1], [], []>} : vector<8x576xbf16>, vector<576x128xbf16>, vector<8x128xf32> -> vector<8x128xf32>
    %7 = arith.addf %3, %6 : vector<8x128xf32>
    %c0_6 = arith.constant 0 : index
    %c0_7 = arith.constant 0 : index
    %8 = vector.load %arg7[%c0_6, %c0_7] : memref<8x128xf32, #tpu.memory_space<vmem>>, vector<8x128xf32>
    tpu.vector_store %arg7[%c0_6, %c0_7], %7 {strides = array<i32>} : memref<8x128xf32, #tpu.memory_space<vmem>>, vector<8x128xf32>,
    %c0_i32_8 = arith.constant 0 : i32
    %9 = arith.cmpi eq, %arg2, %c0_i32_8 : i32
    %10 = arith.extui %9 : i1 to i32
    %c0_i32_9 = arith.constant 0 : i32
    %11 = arith.cmpi ne, %10, %c0_i32_9 : i32
    scf.if %11 {
      %c0_10 = arith.constant 0 : index
      %c0_11 = arith.constant 0 : index
      %12 = vector.load %arg7[%c0_10, %c0_11] : memref<8x128xf32, #tpu.memory_space<vmem>>, vector<8x128xf32>
      %c0_12 = arith.constant 0 : index
      %c0_13 = arith.constant 0 : index
      %13 = vector.load %arg5[%c0_12, %c0_13] : memref<1x128xf32, #tpu.memory_space<vmem>>, vector<1x128xf32>
      %14 = vector.broadcast %13 : vector<1x128xf32> to vector<8x128xf32>
      %15 = arith.addf %12, %14 : vector<8x128xf32>
      %cst_14 = arith.constant 0.000000e+00 : f32
      %16 = vector.broadcast %cst_14 : f32 to vector<8x128xf32>
      %17 = arith.maximumf %15, %16 : vector<8x128xf32>
      %18 = arith.truncf %17 : vector<8x128xf32> to vector<8x128xbf16>
      %c0_15 = arith.constant 0 : index
      %c0_16 = arith.constant 0 : index
      %19 = vector.load %arg6[%c0_15, %c0_16] : memref<8x128xbf16, #tpu.memory_space<vmem>>, vector<8x128xbf16>
      tpu.vector_store %arg6[%c0_15, %c0_16], %18 {strides = array<i32>} : memref<8x128xbf16, #tpu.memory_space<vmem>>, vector<8x128xbf16>,
    } else {
    }
    return
  }
  func.func @transform_0(%arg0: i32, %arg1: i32, %arg2: i32) -> (i32, i32) {
    %c0_i32 = arith.constant 0 : i32
    return %arg0, %arg2 : i32, i32
  }
  func.func @transform_1(%arg0: i32, %arg1: i32, %arg2: i32) -> (i32, i32) {
    %c0_i32 = arith.constant 0 : i32
    return %arg2, %arg1 : i32, i32
  }
  func.func @transform_2(%arg0: i32, %arg1: i32, %arg2: i32) -> (i32, i32) {
    %c0_i32 = arith.constant 0 : i32
    %c0_i32_0 = arith.constant 0 : i32
    return %c0_i32, %arg1 : i32, i32
  }
  func.func @transform_3(%arg0: i32, %arg1: i32, %arg2: i32) -> (i32, i32) {
    %c0_i32 = arith.constant 0 : i32
    return %arg0, %arg1 : i32, i32
  }
}

module attributes {stable_mosaic.version = 11 : i64} {
  func.func @_mm_res_kernel(%arg0: i32, %arg1: i32, %arg2: i32, %arg3: memref<8x64xbf16, #tpu.memory_space<vmem>>, %arg4: memref<64x256xbf16, #tpu.memory_space<vmem>>, %arg5: memref<1x256xf32, #tpu.memory_space<vmem>>, %arg6: memref<8x256xbf16, #tpu.memory_space<vmem>>, %arg7: memref<8x256xbf16, #tpu.memory_space<vmem>>, %arg8: memref<8x256xf32, #tpu.memory_space<vmem>>) attributes {dimension_semantics = [#tpu.dimension_semantics<parallel>, #tpu.dimension_semantics<parallel>, #tpu.dimension_semantics<arbitrary>], iteration_bounds = array<i64: 1, 1, 1>, scalar_prefetch = 0 : i64, scratch_operands = 1 : i64, tpu.core_type = #tpu.core_type<tc>, window_params = [{transform_indices = @transform_0, window_bounds = array<i64: 8, 64>}, {transform_indices = @transform_1, window_bounds = array<i64: 64, 256>}, {transform_indices = @transform_2, window_bounds = array<i64: 1, 256>}, {transform_indices = @transform_3, window_bounds = array<i64: 8, 256>}, {transform_indices = @transform_4, window_bounds = array<i64: 8, 256>}]} {
    %c0_i32 = arith.constant 0 : i32
    %0 = arith.cmpi eq, %arg2, %c0_i32 : i32
    %1 = arith.extui %0 : i1 to i32
    %c0_i32_0 = arith.constant 0 : i32
    %2 = arith.cmpi ne, %1, %c0_i32_0 : i32
    scf.if %2 {
      %cst_10 = arith.constant 0.000000e+00 : f32
      %12 = vector.broadcast %cst_10 : f32 to vector<8x256xf32>
      %c0_11 = arith.constant 0 : index
      %c0_12 = arith.constant 0 : index
      %13 = vector.load %arg8[%c0_11, %c0_12] : memref<8x256xf32, #tpu.memory_space<vmem>>, vector<8x256xf32>
      tpu.vector_store %arg8[%c0_11, %c0_12], %12 {strides = array<i32>} : memref<8x256xf32, #tpu.memory_space<vmem>>, vector<8x256xf32>,
    } else {
    }
    %c0 = arith.constant 0 : index
    %c0_1 = arith.constant 0 : index
    %3 = vector.load %arg8[%c0, %c0_1] : memref<8x256xf32, #tpu.memory_space<vmem>>, vector<8x256xf32>
    %c0_2 = arith.constant 0 : index
    %c0_3 = arith.constant 0 : index
    %4 = vector.load %arg3[%c0_2, %c0_3] : memref<8x64xbf16, #tpu.memory_space<vmem>>, vector<8x64xbf16>
    %c0_4 = arith.constant 0 : index
    %c0_5 = arith.constant 0 : index
    %5 = vector.load %arg4[%c0_4, %c0_5] : memref<64x256xbf16, #tpu.memory_space<vmem>>, vector<64x256xbf16>
    %cst = arith.constant dense<0.000000e+00> : vector<8x256xf32>
    %6 = tpu.matmul %4, %5, %cst {dimension_numbers = #tpu.dot_dimension_numbers<[1], [0], [0], [1], [0, 0, 1, 1], [], []>} : vector<8x64xbf16>, vector<64x256xbf16>, vector<8x256xf32> -> vector<8x256xf32>
    %7 = arith.addf %3, %6 : vector<8x256xf32>
    %c0_6 = arith.constant 0 : index
    %c0_7 = arith.constant 0 : index
    %8 = vector.load %arg8[%c0_6, %c0_7] : memref<8x256xf32, #tpu.memory_space<vmem>>, vector<8x256xf32>
    tpu.vector_store %arg8[%c0_6, %c0_7], %7 {strides = array<i32>} : memref<8x256xf32, #tpu.memory_space<vmem>>, vector<8x256xf32>,
    %c0_i32_8 = arith.constant 0 : i32
    %9 = arith.cmpi eq, %arg2, %c0_i32_8 : i32
    %10 = arith.extui %9 : i1 to i32
    %c0_i32_9 = arith.constant 0 : i32
    %11 = arith.cmpi ne, %10, %c0_i32_9 : i32
    scf.if %11 {
      %c0_10 = arith.constant 0 : index
      %c0_11 = arith.constant 0 : index
      %12 = vector.load %arg8[%c0_10, %c0_11] : memref<8x256xf32, #tpu.memory_space<vmem>>, vector<8x256xf32>
      %c0_12 = arith.constant 0 : index
      %c0_13 = arith.constant 0 : index
      %13 = vector.load %arg5[%c0_12, %c0_13] : memref<1x256xf32, #tpu.memory_space<vmem>>, vector<1x256xf32>
      %14 = vector.broadcast %13 : vector<1x256xf32> to vector<8x256xf32>
      %15 = arith.addf %12, %14 : vector<8x256xf32>
      %c0_14 = arith.constant 0 : index
      %c0_15 = arith.constant 0 : index
      %16 = vector.load %arg6[%c0_14, %c0_15] : memref<8x256xbf16, #tpu.memory_space<vmem>>, vector<8x256xbf16>
      %17 = arith.extf %16 : vector<8x256xbf16> to vector<8x256xf32>
      %18 = arith.addf %15, %17 : vector<8x256xf32>
      %cst_16 = arith.constant 0.000000e+00 : f32
      %19 = vector.broadcast %cst_16 : f32 to vector<8x256xf32>
      %20 = arith.maximumf %18, %19 : vector<8x256xf32>
      %21 = arith.truncf %20 : vector<8x256xf32> to vector<8x256xbf16>
      %c0_17 = arith.constant 0 : index
      %c0_18 = arith.constant 0 : index
      %22 = vector.load %arg7[%c0_17, %c0_18] : memref<8x256xbf16, #tpu.memory_space<vmem>>, vector<8x256xbf16>
      tpu.vector_store %arg7[%c0_17, %c0_18], %21 {strides = array<i32>} : memref<8x256xbf16, #tpu.memory_space<vmem>>, vector<8x256xbf16>,
    } else {
    }
    return
  }
  func.func @transform_0(%arg0: i32, %arg1: i32, %arg2: i32) -> (i32, i32) {
    %c0_i32 = arith.constant 0 : i32
    return %arg0, %arg2 : i32, i32
  }
  func.func @transform_1(%arg0: i32, %arg1: i32, %arg2: i32) -> (i32, i32) {
    %c0_i32 = arith.constant 0 : i32
    return %arg2, %arg1 : i32, i32
  }
  func.func @transform_2(%arg0: i32, %arg1: i32, %arg2: i32) -> (i32, i32) {
    %c0_i32 = arith.constant 0 : i32
    %c0_i32_0 = arith.constant 0 : i32
    return %c0_i32, %arg1 : i32, i32
  }
  func.func @transform_3(%arg0: i32, %arg1: i32, %arg2: i32) -> (i32, i32) {
    %c0_i32 = arith.constant 0 : i32
    return %arg0, %arg1 : i32, i32
  }
  func.func @transform_4(%arg0: i32, %arg1: i32, %arg2: i32) -> (i32, i32) {
    %c0_i32 = arith.constant 0 : i32
    return %arg0, %arg1 : i32, i32
  }
}

module attributes {stable_mosaic.version = 11 : i64} {
  func.func @_mm_kernel(%arg0: i32, %arg1: i32, %arg2: i32, %arg3: memref<8x256xbf16, #tpu.memory_space<vmem>>, %arg4: memref<256x256xbf16, #tpu.memory_space<vmem>>, %arg5: memref<1x256xf32, #tpu.memory_space<vmem>>, %arg6: memref<8x256xbf16, #tpu.memory_space<vmem>>, %arg7: memref<8x256xf32, #tpu.memory_space<vmem>>) attributes {dimension_semantics = [#tpu.dimension_semantics<parallel>, #tpu.dimension_semantics<parallel>, #tpu.dimension_semantics<arbitrary>], iteration_bounds = array<i64: 1, 1, 1>, scalar_prefetch = 0 : i64, scratch_operands = 1 : i64, tpu.core_type = #tpu.core_type<tc>, window_params = [{transform_indices = @transform_0, window_bounds = array<i64: 8, 256>}, {transform_indices = @transform_1, window_bounds = array<i64: 256, 256>}, {transform_indices = @transform_2, window_bounds = array<i64: 1, 256>}, {transform_indices = @transform_3, window_bounds = array<i64: 8, 256>}]} {
    %c0_i32 = arith.constant 0 : i32
    %0 = arith.cmpi eq, %arg2, %c0_i32 : i32
    %1 = arith.extui %0 : i1 to i32
    %c0_i32_0 = arith.constant 0 : i32
    %2 = arith.cmpi ne, %1, %c0_i32_0 : i32
    scf.if %2 {
      %cst_10 = arith.constant 0.000000e+00 : f32
      %12 = vector.broadcast %cst_10 : f32 to vector<8x256xf32>
      %c0_11 = arith.constant 0 : index
      %c0_12 = arith.constant 0 : index
      %13 = vector.load %arg7[%c0_11, %c0_12] : memref<8x256xf32, #tpu.memory_space<vmem>>, vector<8x256xf32>
      tpu.vector_store %arg7[%c0_11, %c0_12], %12 {strides = array<i32>} : memref<8x256xf32, #tpu.memory_space<vmem>>, vector<8x256xf32>,
    } else {
    }
    %c0 = arith.constant 0 : index
    %c0_1 = arith.constant 0 : index
    %3 = vector.load %arg7[%c0, %c0_1] : memref<8x256xf32, #tpu.memory_space<vmem>>, vector<8x256xf32>
    %c0_2 = arith.constant 0 : index
    %c0_3 = arith.constant 0 : index
    %4 = vector.load %arg3[%c0_2, %c0_3] : memref<8x256xbf16, #tpu.memory_space<vmem>>, vector<8x256xbf16>
    %c0_4 = arith.constant 0 : index
    %c0_5 = arith.constant 0 : index
    %5 = vector.load %arg4[%c0_4, %c0_5] : memref<256x256xbf16, #tpu.memory_space<vmem>>, vector<256x256xbf16>
    %cst = arith.constant dense<0.000000e+00> : vector<8x256xf32>
    %6 = tpu.matmul %4, %5, %cst {dimension_numbers = #tpu.dot_dimension_numbers<[1], [0], [0], [1], [0, 0, 1, 1], [], []>} : vector<8x256xbf16>, vector<256x256xbf16>, vector<8x256xf32> -> vector<8x256xf32>
    %7 = arith.addf %3, %6 : vector<8x256xf32>
    %c0_6 = arith.constant 0 : index
    %c0_7 = arith.constant 0 : index
    %8 = vector.load %arg7[%c0_6, %c0_7] : memref<8x256xf32, #tpu.memory_space<vmem>>, vector<8x256xf32>
    tpu.vector_store %arg7[%c0_6, %c0_7], %7 {strides = array<i32>} : memref<8x256xf32, #tpu.memory_space<vmem>>, vector<8x256xf32>,
    %c0_i32_8 = arith.constant 0 : i32
    %9 = arith.cmpi eq, %arg2, %c0_i32_8 : i32
    %10 = arith.extui %9 : i1 to i32
    %c0_i32_9 = arith.constant 0 : i32
    %11 = arith.cmpi ne, %10, %c0_i32_9 : i32
    scf.if %11 {
      %c0_10 = arith.constant 0 : index
      %c0_11 = arith.constant 0 : index
      %12 = vector.load %arg7[%c0_10, %c0_11] : memref<8x256xf32, #tpu.memory_space<vmem>>, vector<8x256xf32>
      %c0_12 = arith.constant 0 : index
      %c0_13 = arith.constant 0 : index
      %13 = vector.load %arg5[%c0_12, %c0_13] : memref<1x256xf32, #tpu.memory_space<vmem>>, vector<1x256xf32>
      %14 = vector.broadcast %13 : vector<1x256xf32> to vector<8x256xf32>
      %15 = arith.addf %12, %14 : vector<8x256xf32>
      %16 = arith.truncf %15 : vector<8x256xf32> to vector<8x256xbf16>
      %c0_14 = arith.constant 0 : index
      %c0_15 = arith.constant 0 : index
      %17 = vector.load %arg6[%c0_14, %c0_15] : memref<8x256xbf16, #tpu.memory_space<vmem>>, vector<8x256xbf16>
      tpu.vector_store %arg6[%c0_14, %c0_15], %16 {strides = array<i32>} : memref<8x256xbf16, #tpu.memory_space<vmem>>, vector<8x256xbf16>,
    } else {
    }
    return
  }
  func.func @transform_0(%arg0: i32, %arg1: i32, %arg2: i32) -> (i32, i32) {
    %c0_i32 = arith.constant 0 : i32
    return %arg0, %arg2 : i32, i32
  }
  func.func @transform_1(%arg0: i32, %arg1: i32, %arg2: i32) -> (i32, i32) {
    %c0_i32 = arith.constant 0 : i32
    return %arg2, %arg1 : i32, i32
  }
  func.func @transform_2(%arg0: i32, %arg1: i32, %arg2: i32) -> (i32, i32) {
    %c0_i32 = arith.constant 0 : i32
    %c0_i32_0 = arith.constant 0 : i32
    return %c0_i32, %arg1 : i32, i32
  }
  func.func @transform_3(%arg0: i32, %arg1: i32, %arg2: i32) -> (i32, i32) {
    %c0_i32 = arith.constant 0 : i32
    return %arg0, %arg1 : i32, i32
  }
}

module attributes {stable_mosaic.version = 11 : i64} {
  func.func @_attn_kernel(%arg0: i32, %arg1: memref<8x1x64xbf16, #tpu.memory_space<vmem>>, %arg2: memref<8x2x64xbf16, #tpu.memory_space<vmem>>, %arg3: memref<8x2x64xbf16, #tpu.memory_space<vmem>>, %arg4: memref<8x1x64xbf16, #tpu.memory_space<vmem>>) attributes {dimension_semantics = [#tpu.dimension_semantics<arbitrary>], iteration_bounds = array<i64: 1>, scalar_prefetch = 0 : i64, scratch_operands = 0 : i64, tpu.core_type = #tpu.core_type<tc>, window_params = [{pipeline_mode = #tpu.pipeline_mode<synchronous>, transform_indices = @transform_0, window_bounds = array<i64: 8, 1, 64>}, {pipeline_mode = #tpu.pipeline_mode<synchronous>, transform_indices = @transform_1, window_bounds = array<i64: 8, 2, 64>}, {pipeline_mode = #tpu.pipeline_mode<synchronous>, transform_indices = @transform_2, window_bounds = array<i64: 8, 2, 64>}, {pipeline_mode = #tpu.pipeline_mode<synchronous>, transform_indices = @transform_3, window_bounds = array<i64: 8, 1, 64>}]} {
    %c0 = arith.constant 0 : index
    %c0_0 = arith.constant 0 : index
    %c0_1 = arith.constant 0 : index
    %0 = vector.load %arg1[%c0, %c0_0, %c0_1] : memref<8x1x64xbf16, #tpu.memory_space<vmem>>, vector<8x1x64xbf16>
    %1 = arith.extf %0 : vector<8x1x64xbf16> to vector<8x1x64xf32>
    %c0_2 = arith.constant 0 : index
    %c0_3 = arith.constant 0 : index
    %c0_4 = arith.constant 0 : index
    %2 = vector.load %arg2[%c0_2, %c0_3, %c0_4] : memref<8x2x64xbf16, #tpu.memory_space<vmem>>, vector<8x2x64xbf16>
    %3 = arith.extf %2 : vector<8x2x64xbf16> to vector<8x2x64xf32>
    %c0_5 = arith.constant 0 : index
    %c0_6 = arith.constant 0 : index
    %c0_7 = arith.constant 0 : index
    %4 = vector.load %arg3[%c0_5, %c0_6, %c0_7] : memref<8x2x64xbf16, #tpu.memory_space<vmem>>, vector<8x2x64xbf16>
    %5 = arith.extf %4 : vector<8x2x64xbf16> to vector<8x2x64xf32>
    %6 = vector.broadcast %1 : vector<8x1x64xf32> to vector<8x2x64xf32>
    %7 = arith.mulf %6, %3 : vector<8x2x64xf32>
    %cst = arith.constant dense<0.000000e+00> : vector<8x2xf32>
    %8 = vector.multi_reduction <add>, %7, %cst [2] : vector<8x2x64xf32> to vector<8x2xf32>
    %cst_8 = arith.constant dense<0xFF800000> : vector<8xf32>
    %9 = vector.multi_reduction <maximumf>, %8, %cst_8 [1] : vector<8x2xf32> to vector<8xf32>
    %10 = vector.shape_cast %9 : vector<8xf32> to vector<8x1xf32>
    %11 = vector.broadcast %10 : vector<8x1xf32> to vector<8x2xf32>
    %12 = arith.subf %8, %11 : vector<8x2xf32>
    %13 = math.exp %12 : vector<8x2xf32>
    %cst_9 = arith.constant dense<0.000000e+00> : vector<8xf32>
    %14 = vector.multi_reduction <add>, %13, %cst_9 [1] : vector<8x2xf32> to vector<8xf32>
    %15 = vector.shape_cast %14 : vector<8xf32> to vector<8x1xf32>
    %16 = tpu.reciprocal %15 : vector<8x1xf32> -> vector<8x1xf32>
    %17 = vector.broadcast %16 : vector<8x1xf32> to vector<8x2xf32>
    %18 = arith.mulf %13, %17 : vector<8x2xf32>
    %19 = vector.shape_cast %18 : vector<8x2xf32> to vector<8x2x1xf32>
    %20 = vector.broadcast %19 : vector<8x2x1xf32> to vector<8x2x64xf32>
    %21 = arith.mulf %20, %5 : vector<8x2x64xf32>
    %cst_10 = arith.constant dense<0.000000e+00> : vector<8x64xf32>
    %22 = vector.multi_reduction <add>, %21, %cst_10 [1] : vector<8x2x64xf32> to vector<8x64xf32>
    %23 = vector.shape_cast %22 : vector<8x64xf32> to vector<8x1x64xf32>
    %24 = arith.truncf %23 : vector<8x1x64xf32> to vector<8x1x64xbf16>
    %c0_11 = arith.constant 0 : index
    %c0_12 = arith.constant 0 : index
    %c0_13 = arith.constant 0 : index
    %25 = vector.load %arg4[%c0_11, %c0_12, %c0_13] : memref<8x1x64xbf16, #tpu.memory_space<vmem>>, vector<8x1x64xbf16>
    tpu.vector_store %arg4[%c0_11, %c0_12, %c0_13], %24 {strides = array<i32>} : memref<8x1x64xbf16, #tpu.memory_space<vmem>>, vector<8x1x64xbf16>,
    return
  }
  func.func @transform_0(%arg0: i32) -> (i32, i32, i32) {
    %c0_i32 = arith.constant 0 : i32
    %c0_i32_0 = arith.constant 0 : i32
    %c0_i32_1 = arith.constant 0 : i32
    %c0_i32_2 = arith.constant 0 : i32
    return %c0_i32, %c0_i32_0, %c0_i32_1 : i32, i32, i32
  }
  func.func @transform_1(%arg0: i32) -> (i32, i32, i32) {
    %c0_i32 = arith.constant 0 : i32
    %c0_i32_0 = arith.constant 0 : i32
    %c0_i32_1 = arith.constant 0 : i32
    %c0_i32_2 = arith.constant 0 : i32
    return %c0_i32, %c0_i32_0, %c0_i32_1 : i32, i32, i32
  }
  func.func @transform_2(%arg0: i32) -> (i32, i32, i32) {
    %c0_i32 = arith.constant 0 : i32
    %c0_i32_0 = arith.constant 0 : i32
    %c0_i32_1 = arith.constant 0 : i32
    %c0_i32_2 = arith.constant 0 : i32
    return %c0_i32, %c0_i32_0, %c0_i32_1 : i32, i32, i32
  }
  func.func @transform_3(%arg0: i32) -> (i32, i32, i32) {
    %c0_i32 = arith.constant 0 : i32
    %c0_i32_0 = arith.constant 0 : i32
    %c0_i32_1 = arith.constant 0 : i32
    %c0_i32_2 = arith.constant 0 : i32
    return %c0_i32, %c0_i32_0, %c0_i32_1 : i32, i32, i32
  }
}

module attributes {stable_mosaic.version = 11 : i64} {
  func.func @_mm_kernel(%arg0: i32, %arg1: i32, %arg2: i32, %arg3: memref<8x256xbf16, #tpu.memory_space<vmem>>, %arg4: memref<256x128xbf16, #tpu.memory_space<vmem>>, %arg5: memref<1x128xf32, #tpu.memory_space<vmem>>, %arg6: memref<8x128xf32, #tpu.memory_space<vmem>>, %arg7: memref<8x128xf32, #tpu.memory_space<vmem>>) attributes {dimension_semantics = [#tpu.dimension_semantics<parallel>, #tpu.dimension_semantics<parallel>, #tpu.dimension_semantics<arbitrary>], iteration_bounds = array<i64: 1, 1, 1>, scalar_prefetch = 0 : i64, scratch_operands = 1 : i64, tpu.core_type = #tpu.core_type<tc>, window_params = [{transform_indices = @transform_0, window_bounds = array<i64: 8, 256>}, {transform_indices = @transform_1, window_bounds = array<i64: 256, 128>}, {transform_indices = @transform_2, window_bounds = array<i64: 1, 128>}, {transform_indices = @transform_3, window_bounds = array<i64: 8, 128>}]} {
    %c0_i32 = arith.constant 0 : i32
    %0 = arith.cmpi eq, %arg2, %c0_i32 : i32
    %1 = arith.extui %0 : i1 to i32
    %c0_i32_0 = arith.constant 0 : i32
    %2 = arith.cmpi ne, %1, %c0_i32_0 : i32
    scf.if %2 {
      %cst_10 = arith.constant 0.000000e+00 : f32
      %12 = vector.broadcast %cst_10 : f32 to vector<8x128xf32>
      %c0_11 = arith.constant 0 : index
      %c0_12 = arith.constant 0 : index
      %13 = vector.load %arg7[%c0_11, %c0_12] : memref<8x128xf32, #tpu.memory_space<vmem>>, vector<8x128xf32>
      tpu.vector_store %arg7[%c0_11, %c0_12], %12 {strides = array<i32>} : memref<8x128xf32, #tpu.memory_space<vmem>>, vector<8x128xf32>,
    } else {
    }
    %c0 = arith.constant 0 : index
    %c0_1 = arith.constant 0 : index
    %3 = vector.load %arg7[%c0, %c0_1] : memref<8x128xf32, #tpu.memory_space<vmem>>, vector<8x128xf32>
    %c0_2 = arith.constant 0 : index
    %c0_3 = arith.constant 0 : index
    %4 = vector.load %arg3[%c0_2, %c0_3] : memref<8x256xbf16, #tpu.memory_space<vmem>>, vector<8x256xbf16>
    %c0_4 = arith.constant 0 : index
    %c0_5 = arith.constant 0 : index
    %5 = vector.load %arg4[%c0_4, %c0_5] : memref<256x128xbf16, #tpu.memory_space<vmem>>, vector<256x128xbf16>
    %cst = arith.constant dense<0.000000e+00> : vector<8x128xf32>
    %6 = tpu.matmul %4, %5, %cst {dimension_numbers = #tpu.dot_dimension_numbers<[1], [0], [0], [1], [0, 0, 1, 1], [], []>} : vector<8x256xbf16>, vector<256x128xbf16>, vector<8x128xf32> -> vector<8x128xf32>
    %7 = arith.addf %3, %6 : vector<8x128xf32>
    %c0_6 = arith.constant 0 : index
    %c0_7 = arith.constant 0 : index
    %8 = vector.load %arg7[%c0_6, %c0_7] : memref<8x128xf32, #tpu.memory_space<vmem>>, vector<8x128xf32>
    tpu.vector_store %arg7[%c0_6, %c0_7], %7 {strides = array<i32>} : memref<8x128xf32, #tpu.memory_space<vmem>>, vector<8x128xf32>,
    %c0_i32_8 = arith.constant 0 : i32
    %9 = arith.cmpi eq, %arg2, %c0_i32_8 : i32
    %10 = arith.extui %9 : i1 to i32
    %c0_i32_9 = arith.constant 0 : i32
    %11 = arith.cmpi ne, %10, %c0_i32_9 : i32
    scf.if %11 {
      %c0_10 = arith.constant 0 : index
      %c0_11 = arith.constant 0 : index
      %12 = vector.load %arg7[%c0_10, %c0_11] : memref<8x128xf32, #tpu.memory_space<vmem>>, vector<8x128xf32>
      %c0_12 = arith.constant 0 : index
      %c0_13 = arith.constant 0 : index
      %13 = vector.load %arg5[%c0_12, %c0_13] : memref<1x128xf32, #tpu.memory_space<vmem>>, vector<1x128xf32>
      %14 = vector.broadcast %13 : vector<1x128xf32> to vector<8x128xf32>
      %15 = arith.addf %12, %14 : vector<8x128xf32>
      %c0_14 = arith.constant 0 : index
      %c0_15 = arith.constant 0 : index
      %16 = vector.load %arg6[%c0_14, %c0_15] : memref<8x128xf32, #tpu.memory_space<vmem>>, vector<8x128xf32>
      tpu.vector_store %arg6[%c0_14, %c0_15], %15 {strides = array<i32>} : memref<8x128xf32, #tpu.memory_space<vmem>>, vector<8x128xf32>,
    } else {
    }
    return
  }
  func.func @transform_0(%arg0: i32, %arg1: i32, %arg2: i32) -> (i32, i32) {
    %c0_i32 = arith.constant 0 : i32
    return %arg0, %arg2 : i32, i32
  }
  func.func @transform_1(%arg0: i32, %arg1: i32, %arg2: i32) -> (i32, i32) {
    %c0_i32 = arith.constant 0 : i32
    return %arg2, %arg1 : i32, i32
  }
  func.func @transform_2(%arg0: i32, %arg1: i32, %arg2: i32) -> (i32, i32) {
    %c0_i32 = arith.constant 0 : i32
    %c0_i32_0 = arith.constant 0 : i32
    return %c0_i32, %arg1 : i32, i32
  }
  func.func @transform_3(%arg0: i32, %arg1: i32, %arg2: i32) -> (i32, i32) {
    %c0_i32 = arith.constant 0 : i32
    return %arg0, %arg1 : i32, i32
  }
}

</mosaic_0001>

<llo_original>
// kernel: modified_resnet_forward.24
$region0: #{modified_resnet_forward.24}
  #allocation0 [shape = 'u32[]', space=smem, size = 0x4, offset = 0x4, fixed_abs, tag = 'smem constant byte address 0x4 - core index']
  #allocation1 [shape = 'u32[144,128]{1,0:T(1,128)}', space=vmem, size = 0x12000, scoped, tag = 'internal scratch']
  #allocation2 [shape = 'f32[512,128]{1,0:T(8,128)}', space=vmem, size = 0x40000, scoped, tag = 'scratch operand']
  %s0 = inlined_call_operand.vmem [shape: bf16[512,27], index: 0, kind: input, shape index: {}]
  %s1 = inlined_call_operand.vmem [shape: bf16[27,128], index: 1, kind: input, shape index: {}]
  %s2 = inlined_call_operand.vmem [shape: f32[1,128], index: 2, kind: input, shape index: {}]
  %s3 = inlined_call_operand.vmem [shape: bf16[512,128], index: 3, kind: output, shape index: {}]
  %s4 = sld [smem:[#allocation0]]
  $region30: #{modified_resnet_forward.24} parent=0
    _
  %s6 = ssub.s32 1, %s4
  %s7 = scalar_select 0, %s6, %s4
  // Predicated region
  $region2: #{modified_resnet_forward.24} parent=0 // pred_check
    _
  $region3: #{modified_resnet_forward.24} parent=0 // pred_check_branch
    %9 = sbr.rel (0) target = $region5
  $region4: #{modified_resnet_forward.24} parent=0 // pred_region
    _
  $region5: #{modified_resnet_forward.24} parent=0 // pred_fallthru
    _
  // Predicated region
  $region6: #{modified_resnet_forward.24} parent=0 // pred_check
    _
  $region7: #{modified_resnet_forward.24} parent=0 // pred_check_branch
    %11 = sbr.rel (0) target = $region9
  $region8: #{modified_resnet_forward.24} parent=0 // pred_region
    _
  $region9: #{modified_resnet_forward.24} parent=0 // pred_fallthru
    _
  // Predicated region
  $region10: #{modified_resnet_forward.24} parent=0 // pred_check
    _
  $region11: #{modified_resnet_forward.24} parent=0 // pred_check_branch
    %13 = sbr.rel (0) target = $region13
  $region12: #{modified_resnet_forward.24} parent=0 // pred_region
    _
  $region13: #{modified_resnet_forward.24} parent=0 // pred_fallthru
    _
  %p15 = scmp.eq.s32.totalorder 0, 0
  // Predicated region
  $region14: #{modified_resnet_forward.24} parent=0 // pred_check
    %p16 = pneg %p15
  $region15: #{modified_resnet_forward.24} parent=0 // pred_check_branch
    %18 = sbr.rel (%p16) target = $region17
  $region16: #{modified_resnet_forward.24} parent=0 // pred_region
    %19 = vst [vmem:[#allocation2] sm:$0xff] 0.0
    %20 = vst [vmem:[#allocation2 + $0x8] sm:$0xff] 0.0
    %21 = vst [vmem:[#allocation2 + $0x10] sm:$0xff] 0.0
    %22 = vst [vmem:[#allocation2 + $0x18] sm:$0xff] 0.0
    %23 = vst [vmem:[#allocation2 + $0x20] sm:$0xff] 0.0
    %24 = vst [vmem:[#allocation2 + $0x28] sm:$0xff] 0.0
    %25 = vst [vmem:[#allocation2 + $0x30] sm:$0xff] 0.0
    %26 = vst [vmem:[#allocation2 + $0x38] sm:$0xff] 0.0
    %27 = vst [vmem:[#allocation2 + $0x40] sm:$0xff] 0.0
    %28 = vst [vmem:[#allocation2 + $0x48] sm:$0xff] 0.0
    %29 = vst [vmem:[#allocation2 + $0x50] sm:$0xff] 0.0
    %30 = vst [vmem:[#allocation2 + $0x58] sm:$0xff] 0.0
    %31 = vst [vmem:[#allocation2 + $0x60] sm:$0xff] 0.0
    %32 = vst [vmem:[#allocation2 + $0x68] sm:$0xff] 0.0
    %33 = vst [vmem:[#allocation2 + $0x70] sm:$0xff] 0.0
    %34 = vst [vmem:[#allocation2 + $0x78] sm:$0xff] 0.0
    %35 = vst [vmem:[#allocation2 + $0x80] sm:$0xff] 0.0
    %36 = vst [vmem:[#allocation2 + $0x88] sm:$0xff] 0.0
    %37 = vst [vmem:[#allocation2 + $0x90] sm:$0xff] 0.0
    %38 = vst [vmem:[#allocation2 + $0x98] sm:$0xff] 0.0
    %39 = vst [vmem:[#allocation2 + $0xa0] sm:$0xff] 0.0
    %40 = vst [vmem:[#allocation2 + $0xa8] sm:$0xff] 0.0
    %41 = vst [vmem:[#allocation2 + $0xb0] sm:$0xff] 0.0
    %42 = vst [vmem:[#allocation2 + $0xb8] sm:$0xff] 0.0
    %43 = vst [vmem:[#allocation2 + $0xc0] sm:$0xff] 0.0
    %44 = vst [vmem:[#allocation2 + $0xc8] sm:$0xff] 0.0
    %45 = vst [vmem:[#allocation2 + $0xd0] sm:$0xff] 0.0
    %46 = vst [vmem:[#allocation2 + $0xd8] sm:$0xff] 0.0
    %47 = vst [vmem:[#allocation2 + $0xe0] sm:$0xff] 0.0
    %48 = vst [vmem:[#allocation2 + $0xe8] sm:$0xff] 0.0
    %49 = vst [vmem:[#allocation2 + $0xf0] sm:$0xff] 0.0
    %50 = vst [vmem:[#allocation2 + $0xf8] sm:$0xff] 0.0
    %51 = vst [vmem:[#allocation2 + $0x100] sm:$0xff] 0.0
    %52 = vst [vmem:[#allocation2 + $0x108] sm:$0xff] 0.0
    %53 = vst [vmem:[#allocation2 + $0x110] sm:$0xff] 0.0
    %54 = vst [vmem:[#allocation2 + $0x118] sm:$0xff] 0.0
    %55 = vst [vmem:[#allocation2 + $0x120] sm:$0xff] 0.0
    %56 = vst [vmem:[#allocation2 + $0x128] sm:$0xff] 0.0
    %57 = vst [vmem:[#allocation2 + $0x130] sm:$0xff] 0.0
    %58 = vst [vmem:[#allocation2 + $0x138] sm:$0xff] 0.0
    %59 = vst [vmem:[#allocation2 + $0x140] sm:$0xff] 0.0
    %60 = vst [vmem:[#allocation2 + $0x148] sm:$0xff] 0.0
    %61 = vst [vmem:[#allocation2 + $0x150] sm:$0xff] 0.0
    %62 = vst [vmem:[#allocation2 + $0x158] sm:$0xff] 0.0
    %63 = vst [vmem:[#allocation2 + $0x160] sm:$0xff] 0.0
    %64 = vst [vmem:[#allocation2 + $0x168] sm:$0xff] 0.0
    %65 = vst [vmem:[#allocation2 + $0x170] sm:$0xff] 0.0
    %66 = vst [vmem:[#allocation2 + $0x178] sm:$0xff] 0.0
    %67 = vst [vmem:[#allocation2 + $0x180] sm:$0xff] 0.0
    %68 = vst [vmem:[#allocation2 + $0x188] sm:$0xff] 0.0
    %69 = vst [vmem:[#allocation2 + $0x190] sm:$0xff] 0.0
    %70 = vst [vmem:[#allocation2 + $0x198] sm:$0xff] 0.0
    %71 = vst [vmem:[#allocation2 + $0x1a0] sm:$0xff] 0.0
    %72 = vst [vmem:[#allocation2 + $0x1a8] sm:$0xff] 0.0
    %73 = vst [vmem:[#allocation2 + $0x1b0] sm:$0xff] 0.0
    %74 = vst [vmem:[#allocation2 + $0x1b8] sm:$0xff] 0.0
    %75 = vst [vmem:[#allocation2 + $0x1c0] sm:$0xff] 0.0
    %76 = vst [vmem:[#allocation2 + $0x1c8] sm:$0xff] 0.0
    %77 = vst [vmem:[#allocation2 + $0x1d0] sm:$0xff] 0.0
    %78 = vst [vmem:[#allocation2 + $0x1d8] sm:$0xff] 0.0
    %79 = vst [vmem:[#allocation2 + $0x1e0] sm:$0xff] 0.0
    %80 = vst [vmem:[#allocation2 + $0x1e8] sm:$0xff] 0.0
    %81 = vst [vmem:[#allocation2 + $0x1f0] sm:$0xff] 0.0
    %82 = vst [vmem:[#allocation2 + $0x1f8] sm:$0xff] 0.0
  $region17: #{modified_resnet_forward.24} parent=0 // pred_fallthru
    _
  %v83 = vld [vmem:[#allocation2] sm:$0xff]
  %v84 = vld [vmem:[#allocation2 + $0x8] sm:$0xff]
  %v85 = vld [vmem:[#allocation2 + $0x10] sm:$0xff]
  %v86 = vld [vmem:[#allocation2 + $0x18] sm:$0xff]
  %v87 = vld [vmem:[#allocation2 + $0x20] sm:$0xff]
  %v88 = vld [vmem:[#allocation2 + $0x28] sm:$0xff]
  %v89 = vld [vmem:[#allocation2 + $0x30] sm:$0xff]
  %v90 = vld [vmem:[#allocation2 + $0x38] sm:$0xff]
  %v91 = vld [vmem:[#allocation2 + $0x40] sm:$0xff]
  %v92 = vld [vmem:[#allocation2 + $0x48] sm:$0xff]
  %v93 = vld [vmem:[#allocation2 + $0x50] sm:$0xff]
  %v94 = vld [vmem:[#allocation2 + $0x58] sm:$0xff]
  %v95 = vld [vmem:[#allocation2 + $0x60] sm:$0xff]
  %v96 = vld [vmem:[#allocation2 + $0x68] sm:$0xff]
  %v97 = vld [vmem:[#allocation2 + $0x70] sm:$0xff]
  %v98 = vld [vmem:[#allocation2 + $0x78] sm:$0xff]
  %v99 = vld [vmem:[#allocation2 + $0x80] sm:$0xff]
  %v100 = vld [vmem:[#allocation2 + $0x88] sm:$0xff]
  %v101 = vld [vmem:[#allocation2 + $0x90] sm:$0xff]
  %v102 = vld [vmem:[#allocation2 + $0x98] sm:$0xff]
  %v103 = vld [vmem:[#allocation2 + $0xa0] sm:$0xff]
  %v104 = vld [vmem:[#allocation2 + $0xa8] sm:$0xff]
  %v105 = vld [vmem:[#allocation2 + $0xb0] sm:$0xff]
  %v106 = vld [vmem:[#allocation2 + $0xb8] sm:$0xff]
  %v107 = vld [vmem:[#allocation2 + $0xc0] sm:$0xff]
  %v108 = vld [vmem:[#allocation2 + $0xc8] sm:$0xff]
  %v109 = vld [vmem:[#allocation2 + $0xd0] sm:$0xff]
  %v110 = vld [vmem:[#allocation2 + $0xd8] sm:$0xff]
  %v111 = vld [vmem:[#allocation2 + $0xe0] sm:$0xff]
  %v112 = vld [vmem:[#allocation2 + $0xe8] sm:$0xff]
  %v113 = vld [vmem:[#allocation2 + $0xf0] sm:$0xff]
  %v114 = vld [vmem:[#allocation2 + $0xf8] sm:$0xff]
  %v115 = vld [vmem:[#allocation2 + $0x100] sm:$0xff]
  %v116 = vld [vmem:[#allocation2 + $0x108] sm:$0xff]
  %v117 = vld [vmem:[#allocation2 + $0x110] sm:$0xff]
  %v118 = vld [vmem:[#allocation2 + $0x118] sm:$0xff]
  %v119 = vld [vmem:[#allocation2 + $0x120] sm:$0xff]
  %v120 = vld [vmem:[#allocation2 + $0x128] sm:$0xff]
  %v121 = vld [vmem:[#allocation2 + $0x130] sm:$0xff]
  %v122 = vld [vmem:[#allocation2 + $0x138] sm:$0xff]
  %v123 = vld [vmem:[#allocation2 + $0x140] sm:$0xff]
  %v124 = vld [vmem:[#allocation2 + $0x148] sm:$0xff]
  %v125 = vld [vmem:[#allocation2 + $0x150] sm:$0xff]
  %v126 = vld [vmem:[#allocation2 + $0x158] sm:$0xff]
  %v127 = vld [vmem:[#allocation2 + $0x160] sm:$0xff]
  %v128 = vld [vmem:[#allocation2 + $0x168] sm:$0xff]
  %v129 = vld [vmem:[#allocation2 + $0x170] sm:$0xff]
  %v130 = vld [vmem:[#allocation2 + $0x178] sm:$0xff]
  %v131 = vld [vmem:[#allocation2 + $0x180] sm:$0xff]
  %v132 = vld [vmem:[#allocation2 + $0x188] sm:$0xff]
  %v133 = vld [vmem:[#allocation2 + $0x190] sm:$0xff]
  %v134 = vld [vmem:[#allocation2 + $0x198] sm:$0xff]
  %v135 = vld [vmem:[#allocation2 + $0x1a0] sm:$0xff]
  %v136 = vld [vmem:[#allocation2 + $0x1a8] sm:$0xff]
  %v137 = vld [vmem:[#allocation2 + $0x1b0] sm:$0xff]
  %v138 = vld [vmem:[#allocation2 + $0x1b8] sm:$0xff]
  %v139 = vld [vmem:[#allocation2 + $0x1c0] sm:$0xff]
  %v140 = vld [vmem:[#allocation2 + $0x1c8] sm:$0xff]
  %v141 = vld [vmem:[#allocation2 + $0x1d0] sm:$0xff]
  %v142 = vld [vmem:[#allocation2 + $0x1d8] sm:$0xff]
  %v143 = vld [vmem:[#allocation2 + $0x1e0] sm:$0xff]
  %v144 = vld [vmem:[#allocation2 + $0x1e8] sm:$0xff]
  %v145 = vld [vmem:[#allocation2 + $0x1f0] sm:$0xff]
  %v146 = vld [vmem:[#allocation2 + $0x1f8] sm:$0xff]
  %v147 = vld [vmem:[%s0] sm:$0xf]
  %v148 = vld [vmem:[%s0 + $0x4] sm:$0xf]
  %v149 = vld [vmem:[%s0 + $0x8] sm:$0xf]
  %v150 = vld [vmem:[%s0 + $0xc] sm:$0xf]
  %v151 = vld [vmem:[%s0 + $0x10] sm:$0xf]
  %v152 = vld [vmem:[%s0 + $0x14] sm:$0xf]
  %v153 = vld [vmem:[%s0 + $0x18] sm:$0xf]
  %v154 = vld [vmem:[%s0 + $0x1c] sm:$0xf]
  %v155 = vld [vmem:[%s0 + $0x20] sm:$0xf]
  %v156 = vld [vmem:[%s0 + $0x24] sm:$0xf]
  %v157 = vld [vmem:[%s0 + $0x28] sm:$0xf]
  %v158 = vld [vmem:[%s0 + $0x2c] sm:$0xf]
  %v159 = vld [vmem:[%s0 + $0x30] sm:$0xf]
  %v160 = vld [vmem:[%s0 + $0x34] sm:$0xf]
  %v161 = vld [vmem:[%s0 + $0x38] sm:$0xf]
  %v162 = vld [vmem:[%s0 + $0x3c] sm:$0xf]
  %v163 = vld [vmem:[%s0 + $0x40] sm:$0xf]
  %v164 = vld [vmem:[%s0 + $0x44] sm:$0xf]
  %v165 = vld [vmem:[%s0 + $0x48] sm:$0xf]
  %v166 = vld [vmem:[%s0 + $0x4c] sm:$0xf]
  %v167 = vld [vmem:[%s0 + $0x50] sm:$0xf]
  %v168 = vld [vmem:[%s0 + $0x54] sm:$0xf]
  %v169 = vld [vmem:[%s0 + $0x58] sm:$0xf]
  %v170 = vld [vmem:[%s0 + $0x5c] sm:$0xf]
  %v171 = vld [vmem:[%s0 + $0x60] sm:$0xf]
  %v172 = vld [vmem:[%s0 + $0x64] sm:$0xf]
  %v173 = vld [vmem:[%s0 + $0x68] sm:$0xf]
  %v174 = vld [vmem:[%s0 + $0x6c] sm:$0xf]
  %v175 = vld [vmem:[%s0 + $0x70] sm:$0xf]
  %v176 = vld [vmem:[%s0 + $0x74] sm:$0xf]
  %v177 = vld [vmem:[%s0 + $0x78] sm:$0xf]
  %v178 = vld [vmem:[%s0 + $0x7c] sm:$0xf]
  %v179 = vld [vmem:[%s0 + $0x80] sm:$0xf]
  %v180 = vld [vmem:[%s0 + $0x84] sm:$0xf]
  %v181 = vld [vmem:[%s0 + $0x88] sm:$0xf]
  %v182 = vld [vmem:[%s0 + $0x8c] sm:$0xf]
  %v183 = vld [vmem:[%s0 + $0x90] sm:$0xf]
  %v184 = vld [vmem:[%s0 + $0x94] sm:$0xf]
  %v185 = vld [vmem:[%s0 + $0x98] sm:$0xf]
  %v186 = vld [vmem:[%s0 + $0x9c] sm:$0xf]
  %v187 = vld [vmem:[%s0 + $0xa0] sm:$0xf]
  %v188 = vld [vmem:[%s0 + $0xa4] sm:$0xf]
  %v189 = vld [vmem:[%s0 + $0xa8] sm:$0xf]
  %v190 = vld [vmem:[%s0 + $0xac] sm:$0xf]
  %v191 = vld [vmem:[%s0 + $0xb0] sm:$0xf]
  %v192 = vld [vmem:[%s0 + $0xb4] sm:$0xf]
  %v193 = vld [vmem:[%s0 + $0xb8] sm:$0xf]
  %v194 = vld [vmem:[%s0 + $0xbc] sm:$0xf]
  %v195 = vld [vmem:[%s0 + $0xc0] sm:$0xf]
  %v196 = vld [vmem:[%s0 + $0xc4] sm:$0xf]
  %v197 = vld [vmem:[%s0 + $0xc8] sm:$0xf]
  %v198 = vld [vmem:[%s0 + $0xcc] sm:$0xf]
  %v199 = vld [vmem:[%s0 + $0xd0] sm:$0xf]
  %v200 = vld [vmem:[%s0 + $0xd4] sm:$0xf]
  %v201 = vld [vmem:[%s0 + $0xd8] sm:$0xf]
  %v202 = vld [vmem:[%s0 + $0xdc] sm:$0xf]
  %v203 = vld [vmem:[%s0 + $0xe0] sm:$0xf]
  %v204 = vld [vmem:[%s0 + $0xe4] sm:$0xf]
  %v205 = vld [vmem:[%s0 + $0xe8] sm:$0xf]
  %v206 = vld [vmem:[%s0 + $0xec] sm:$0xf]
  %v207 = vld [vmem:[%s0 + $0xf0] sm:$0xf]
  %v208 = vld [vmem:[%s0 + $0xf4] sm:$0xf]
  %v209 = vld [vmem:[%s0 + $0xf8] sm:$0xf]
  %v210 = vld [vmem:[%s0 + $0xfc] sm:$0xf]
  %v211 = vld [vmem:[%s1] sm:$0xf]
  %v212 = vld [vmem:[%s1 + $0x4] sm:$0xf]
  %v213 = vld [vmem:[%s1 + $0x8] sm:$0xf]
  %v214 = vld [vmem:[%s1 + $0xc] sm:$0x3]
  %v279 = vunpack.c.l.b16 %v147
  %v280 = vunpack.c.l.b16 %v148
  %v281 = vunpack.c.l.b16 %v149
  %v282 = vunpack.c.l.b16 %v150
  %v283 = vunpack.c.l.b16 %v151
  %v284 = vunpack.c.l.b16 %v152
  %v285 = vunpack.c.l.b16 %v153
  %v286 = vunpack.c.l.b16 %v154
  %v287 = vunpack.c.l.b16 %v155
  %v288 = vunpack.c.l.b16 %v156
  %v289 = vunpack.c.l.b16 %v157
  %v290 = vunpack.c.l.b16 %v158
  %v291 = vunpack.c.l.b16 %v159
  %v292 = vunpack.c.l.b16 %v160
  %v293 = vunpack.c.l.b16 %v161
  %v294 = vunpack.c.l.b16 %v162
  %v295 = vunpack.c.l.b16 %v163
  %v296 = vunpack.c.l.b16 %v164
  %v297 = vunpack.c.l.b16 %v165
  %v298 = vunpack.c.l.b16 %v166
  %v299 = vunpack.c.l.b16 %v167
  %v300 = vunpack.c.l.b16 %v168
  %v301 = vunpack.c.l.b16 %v169
  %v302 = vunpack.c.l.b16 %v170
  %v303 = vunpack.c.l.b16 %v171
  %v304 = vunpack.c.l.b16 %v172
  %v305 = vunpack.c.l.b16 %v173
  %v306 = vunpack.c.l.b16 %v174
  %v307 = vunpack.c.l.b16 %v175
  %v308 = vunpack.c.l.b16 %v176
  %v309 = vunpack.c.l.b16 %v177
  %v310 = vunpack.c.l.b16 %v178
  %v311 = vunpack.c.l.b16 %v179
  %v312 = vunpack.c.l.b16 %v180
  %v313 = vunpack.c.l.b16 %v181
  %v314 = vunpack.c.l.b16 %v182
  %v315 = vunpack.c.l.b16 %v183
  %v316 = vunpack.c.l.b16 %v184
  %v317 = vunpack.c.l.b16 %v185
  %v318 = vunpack.c.l.b16 %v186
  %v319 = vunpack.c.l.b16 %v187
  %v320 = vunpack.c.l.b16 %v188
  %v321 = vunpack.c.l.b16 %v189
  %v322 = vunpack.c.l.b16 %v190
  %v323 = vunpack.c.l.b16 %v191
  %v324 = vunpack.c.l.b16 %v192
  %v325 = vunpack.c.l.b16 %v193
  %v326 = vunpack.c.l.b16 %v194
  %v327 = vunpack.c.l.b16 %v195
  %v328 = vunpack.c.l.b16 %v196
  %v329 = vunpack.c.l.b16 %v197
  %v330 = vunpack.c.l.b16 %v198
  %v331 = vunpack.c.l.b16 %v199
  %v332 = vunpack.c.l.b16 %v200
  %v333 = vunpack.c.l.b16 %v201
  %v334 = vunpack.c.l.b16 %v202
  %v335 = vunpack.c.l.b16 %v203
  %v336 = vunpack.c.l.b16 %v204
  %v337 = vunpack.c.l.b16 %v205
  %v338 = vunpack.c.l.b16 %v206
  %v339 = vunpack.c.l.b16 %v207
  %v340 = vunpack.c.l.b16 %v208
  %v341 = vunpack.c.l.b16 %v209
  %v342 = vunpack.c.l.b16 %v210
  %v343 = vpack.c.b16 %v280, %v279
  %v344 = vpack.c.b16 %v282, %v281
  %v345 = vpack.c.b16 %v284, %v283
  %v346 = vpack.c.b16 %v286, %v285
  %v347 = vpack.c.b16 %v288, %v287
  %v348 = vpack.c.b16 %v290, %v289
  %v349 = vpack.c.b16 %v292, %v291
  %v350 = vpack.c.b16 %v294, %v293
  %v351 = vpack.c.b16 %v296, %v295
  %v352 = vpack.c.b16 %v298, %v297
  %v353 = vpack.c.b16 %v300, %v299
  %v354 = vpack.c.b16 %v302, %v301
  %v355 = vpack.c.b16 %v304, %v303
  %v356 = vpack.c.b16 %v306, %v305
  %v357 = vpack.c.b16 %v308, %v307
  %v358 = vpack.c.b16 %v310, %v309
  %v359 = vpack.c.b16 %v312, %v311
  %v360 = vpack.c.b16 %v314, %v313
  %v361 = vpack.c.b16 %v316, %v315
  %v362 = vpack.c.b16 %v318, %v317
  %v363 = vpack.c.b16 %v320, %v319
  %v364 = vpack.c.b16 %v322, %v321
  %v365 = vpack.c.b16 %v324, %v323
  %v366 = vpack.c.b16 %v326, %v325
  %v367 = vpack.c.b16 %v328, %v327
  %v368 = vpack.c.b16 %v330, %v329
  %v369 = vpack.c.b16 %v332, %v331
  %v370 = vpack.c.b16 %v334, %v333
  %v371 = vpack.c.b16 %v336, %v335
  %v372 = vpack.c.b16 %v338, %v337
  %v373 = vpack.c.b16 %v340, %v339
  %v374 = vpack.c.b16 %v342, %v341
  %v379 = vunpack.c.l.b16 %v211
  %v380 = vunpack.c.l.b16 %v212
  %v381 = vunpack.c.l.b16 %v213
  %v382 = vunpack.c.l.b16 %v214
  %v383 = vpack.c.b16 %v380, %v379
  %v384 = vpack.c.b16 %v382, %v381
  %vm386 = vcmask 220160
  %v388 = vsel %vm386, %v343, 0
  %v391 = vsel %vm386, %v344, 0
  %v394 = vsel %vm386, %v345, 0
  %v397 = vsel %vm386, %v346, 0
  %v400 = vsel %vm386, %v347, 0
  %v403 = vsel %vm386, %v348, 0
  %v406 = vsel %vm386, %v349, 0
  %v409 = vsel %vm386, %v350, 0
  %v412 = vsel %vm386, %v351, 0
  %v415 = vsel %vm386, %v352, 0
  %v418 = vsel %vm386, %v353, 0
  %v421 = vsel %vm386, %v354, 0
  %v424 = vsel %vm386, %v355, 0
  %v427 = vsel %vm386, %v356, 0
  %v430 = vsel %vm386, %v357, 0
  %v433 = vsel %vm386, %v358, 0
  %v436 = vsel %vm386, %v359, 0
  %v439 = vsel %vm386, %v360, 0
  %v442 = vsel %vm386, %v361, 0
  %v445 = vsel %vm386, %v362, 0
  %v448 = vsel %vm386, %v363, 0
  %v451 = vsel %vm386, %v364, 0
  %v454 = vsel %vm386, %v365, 0
  %v457 = vsel %vm386, %v366, 0
  %v460 = vsel %vm386, %v367, 0
  %v463 = vsel %vm386, %v368, 0
  %v466 = vsel %vm386, %v369, 0
  %v469 = vsel %vm386, %v370, 0
  %v472 = vsel %vm386, %v371, 0
  %v475 = vsel %vm386, %v372, 0
  %v478 = vsel %vm386, %v373, 0
  %v481 = vsel %vm386, %v374, 0
  %vm483 = vcmask 1044480
  %vm484 = vcmask 1045504
  %v485 = vsel %vm483, 4294967295, 65535
  %v486 = vsel %vm484, %v485, 0
  %v488 = vand.u32 %v384, %v486
  %490 = vmatprep.subr.bf16.mxu0 0
  %491 = vmatpush1.bf16.msra.mxu0 %v383
  %492 = vmatprep.subr.bf16.mxu0 0
  %493 = vmatpush1.bf16.msra.mxu0 %v488
  %494 = vmatprep.subr.bf16.mxu0 0
  %495 = vmatpush1.bf16.msra.mxu0 0
  %496 = vmatprep.subr.bf16.mxu0 0
  %497 = vmatpush1.bf16.msra.mxu0 0
  %498 = vmatprep.subr.bf16.mxu0 0
  %499 = vmatpush1.bf16.msra.mxu0 0
  %500 = vmatprep.subr.bf16.mxu0 0
  %501 = vmatpush1.bf16.msra.mxu0 0
  %502 = vmatprep.subr.bf16.mxu0 0
  %503 = vmatpush1.bf16.msra.mxu0 0
  %504 = vmatprep.subr.bf16.mxu0 0
  %505 = vmatpush1.bf16.msra.mxu0 0
  %506 = vmatprep.subr.bf16.mxu0 0
  %507 = vmatpush1.bf16.msra.mxu0 0
  %508 = vmatprep.subr.bf16.mxu0 0
  %509 = vmatpush1.bf16.msra.mxu0 0
  %510 = vmatprep.subr.bf16.mxu0 0
  %511 = vmatpush1.bf16.msra.mxu0 0
  %512 = vmatprep.subr.bf16.mxu0 0
  %513 = vmatpush1.bf16.msra.mxu0 0
  %514 = vmatprep.subr.bf16.mxu0 0
  %515 = vmatpush1.bf16.msra.mxu0 0
  %516 = vmatprep.subr.bf16.mxu0 0
  %517 = vmatpush1.bf16.msra.mxu0 0
  %518 = vmatprep.subr.bf16.mxu0 0
  %519 = vmatpush1.bf16.msra.mxu0 0
  %520 = vmatprep.subr.bf16.mxu0 0
  %521 = vmatpush1.bf16.msra.mxu0 0
  %522 = vmatprep.mubr.bf16.mxu0 0
  %523 = vmatmul.mubr.bf16.gmra.mrb[0].mxu0 %v388
  %v524 = vpop.f32.mrb[0].mxu0
  %v525 = vadd.f32 0.0, %v524
  %v526 = vpop.f32.mrb[0].mxu0
  %v527 = vpop.f32.mrb[0].mxu0
  %v528 = vadd.f32 0.0, %v527
  %v529 = vpop.f32.mrb[0].mxu0
  %530 = vmatprep.mubr.bf16.mxu0 0
  %531 = vmatmul.mubr.bf16.gmra.mrb[0].mxu0 %v391
  %v532 = vpop.f32.mrb[0].mxu0
  %v533 = vadd.f32 0.0, %v532
  %v534 = vpop.f32.mrb[0].mxu0
  %v535 = vpop.f32.mrb[0].mxu0
  %v536 = vadd.f32 0.0, %v535
  %v537 = vpop.f32.mrb[0].mxu0
  %538 = vmatprep.mubr.bf16.mxu0 0
  %539 = vmatmul.mubr.bf16.gmra.mrb[0].mxu0 %v394
  %v540 = vpop.f32.mrb[0].mxu0
  %v541 = vadd.f32 0.0, %v540
  %v542 = vpop.f32.mrb[0].mxu0
  %v543 = vpop.f32.mrb[0].mxu0
  %v544 = vadd.f32 0.0, %v543
  %v545 = vpop.f32.mrb[0].mxu0
  %546 = vmatprep.mubr.bf16.mxu0 0
  %547 = vmatmul.mubr.bf16.gmra.mrb[0].mxu0 %v397
  %v548 = vpop.f32.mrb[0].mxu0
  %v549 = vadd.f32 0.0, %v548
  %v550 = vpop.f32.mrb[0].mxu0
  %v551 = vpop.f32.mrb[0].mxu0
  %v552 = vadd.f32 0.0, %v551
  %v553 = vpop.f32.mrb[0].mxu0
  %554 = vmatprep.mubr.bf16.mxu0 0
  %555 = vmatmul.mubr.bf16.gmra.mrb[0].mxu0 %v400
  %v556 = vpop.f32.mrb[0].mxu0
  %v557 = vadd.f32 0.0, %v556
  %v558 = vpop.f32.mrb[0].mxu0
  %v559 = vpop.f32.mrb[0].mxu0
  %v560 = vadd.f32 0.0, %v559
  %v561 = vpop.f32.mrb[0].mxu0
  %562 = vmatprep.mubr.bf16.mxu0 0
  %563 = vmatmul.mubr.bf16.gmra.mrb[0].mxu0 %v403
  %v564 = vpop.f32.mrb[0].mxu0
  %v565 = vadd.f32 0.0, %v564
  %v566 = vpop.f32.mrb[0].mxu0
  %v567 = vpop.f32.mrb[0].mxu0
  %v568 = vadd.f32 0.0, %v567
  %v569 = vpop.f32.mrb[0].mxu0
  %570 = vmatprep.mubr.bf16.mxu0 0
  %571 = vmatmul.mubr.bf16.gmra.mrb[0].mxu0 %v406
  %v572 = vpop.f32.mrb[0].mxu0
  %v573 = vadd.f32 0.0, %v572
  %v574 = vpop.f32.mrb[0].mxu0
  %v575 = vpop.f32.mrb[0].mxu0
  %v576 = vadd.f32 0.0, %v575
  %v577 = vpop.f32.mrb[0].mxu0
  %578 = vmatprep.mubr.bf16.mxu0 0
  %579 = vmatmul.mubr.bf16.gmra.mrb[0].mxu0 %v409
  %v580 = vpop.f32.mrb[0].mxu0
  %v581 = vadd.f32 0.0, %v580
  %v582 = vpop.f32.mrb[0].mxu0
  %v583 = vpop.f32.mrb[0].mxu0
  %v584 = vadd.f32 0.0, %v583
  %v585 = vpop.f32.mrb[0].mxu0
  %586 = vmatprep.mubr.bf16.mxu0 0
  %587 = vmatmul.mubr.bf16.gmra.mrb[0].mxu0 %v412
  %v588 = vpop.f32.mrb[0].mxu0
  %v589 = vadd.f32 0.0, %v588
  %v590 = vpop.f32.mrb[0].mxu0
  %v591 = vpop.f32.mrb[0].mxu0
  %v592 = vadd.f32 0.0, %v591
  %v593 = vpop.f32.mrb[0].mxu0
  %594 = vmatprep.mubr.bf16.mxu0 0
  %595 = vmatmul.mubr.bf16.gmra.mrb[0].mxu0 %v415
  %v596 = vpop.f32.mrb[0].mxu0
  %v597 = vadd.f32 0.0, %v596
  %v598 = vpop.f32.mrb[0].mxu0
  %v599 = vpop.f32.mrb[0].mxu0
  %v600 = vadd.f32 0.0, %v599
  %v601 = vpop.f32.mrb[0].mxu0
  %602 = vmatprep.mubr.bf16.mxu0 0
  %603 = vmatmul.mubr.bf16.gmra.mrb[0].mxu0 %v418
  %v604 = vpop.f32.mrb[0].mxu0
  %v605 = vadd.f32 0.0, %v604
  %v606 = vpop.f32.mrb[0].mxu0
  %v607 = vpop.f32.mrb[0].mxu0
  %v608 = vadd.f32 0.0, %v607
  %v609 = vpop.f32.mrb[0].mxu0
  %610 = vmatprep.mubr.bf16.mxu0 0
  %611 = vmatmul.mubr.bf16.gmra.mrb[0].mxu0 %v421
  %v612 = vpop.f32.mrb[0].mxu0
  %v613 = vadd.f32 0.0, %v612
  %v614 = vpop.f32.mrb[0].mxu0
  %v615 = vpop.f32.mrb[0].mxu0
  %v616 = vadd.f32 0.0, %v615
  %v617 = vpop.f32.mrb[0].mxu0
  %618 = vmatprep.mubr.bf16.mxu0 0
  %619 = vmatmul.mubr.bf16.gmra.mrb[0].mxu0 %v424
  %v620 = vpop.f32.mrb[0].mxu0
  %v621 = vadd.f32 0.0, %v620
  %v622 = vpop.f32.mrb[0].mxu0
  %v623 = vpop.f32.mrb[0].mxu0
  %v624 = vadd.f32 0.0, %v623
  %v625 = vpop.f32.mrb[0].mxu0
  %626 = vmatprep.mubr.bf16.mxu0 0
  %627 = vmatmul.mubr.bf16.gmra.mrb[0].mxu0 %v427
  %v628 = vpop.f32.mrb[0].mxu0
  %v629 = vadd.f32 0.0, %v628
  %v630 = vpop.f32.mrb[0].mxu0
  %v631 = vpop.f32.mrb[0].mxu0
  %v632 = vadd.f32 0.0, %v631
  %v633 = vpop.f32.mrb[0].mxu0
  %634 = vmatprep.mubr.bf16.mxu0 0
  %635 = vmatmul.mubr.bf16.gmra.mrb[0].mxu0 %v430
  %v636 = vpop.f32.mrb[0].mxu0
  %v637 = vadd.f32 0.0, %v636
  %v638 = vpop.f32.mrb[0].mxu0
  %v639 = vpop.f32.mrb[0].mxu0
  %v640 = vadd.f32 0.0, %v639
  %v641 = vpop.f32.mrb[0].mxu0
  %642 = vmatprep.mubr.bf16.mxu0 0
  %643 = vmatmul.mubr.bf16.gmra.mrb[0].mxu0 %v433
  %v644 = vpop.f32.mrb[0].mxu0
  %v645 = vadd.f32 0.0, %v644
  %v646 = vpop.f32.mrb[0].mxu0
  %v647 = vpop.f32.mrb[0].mxu0
  %v648 = vadd.f32 0.0, %v647
  %v649 = vpop.f32.mrb[0].mxu0
  %650 = vmatprep.mubr.bf16.mxu0 0
  %651 = vmatmul.mubr.bf16.gmra.mrb[0].mxu0 %v436
  %v652 = vpop.f32.mrb[0].mxu0
  %v653 = vadd.f32 0.0, %v652
  %v654 = vpop.f32.mrb[0].mxu0
  %v655 = vpop.f32.mrb[0].mxu0
  %v656 = vadd.f32 0.0, %v655
  %v657 = vpop.f32.mrb[0].mxu0
  %658 = vmatprep.mubr.bf16.mxu0 0
  %659 = vmatmul.mubr.bf16.gmra.mrb[0].mxu0 %v439
  %v660 = vpop.f32.mrb[0].mxu0
  %v661 = vadd.f32 0.0, %v660
  %v662 = vpop.f32.mrb[0].mxu0
  %v663 = vpop.f32.mrb[0].mxu0
  %v664 = vadd.f32 0.0, %v663
  %v665 = vpop.f32.mrb[0].mxu0
  %666 = vmatprep.mubr.bf16.mxu0 0
  %667 = vmatmul.mubr.bf16.gmra.mrb[0].mxu0 %v442
  %v668 = vpop.f32.mrb[0].mxu0
  %v669 = vadd.f32 0.0, %v668
  %v670 = vpop.f32.mrb[0].mxu0
  %v671 = vpop.f32.mrb[0].mxu0
  %v672 = vadd.f32 0.0, %v671
  %v673 = vpop.f32.mrb[0].mxu0
  %674 = vmatprep.mubr.bf16.mxu0 0
  %675 = vmatmul.mubr.bf16.gmra.mrb[0].mxu0 %v445
  %v676 = vpop.f32.mrb[0].mxu0
  %v677 = vadd.f32 0.0, %v676
  %v678 = vpop.f32.mrb[0].mxu0
  %v679 = vpop.f32.mrb[0].mxu0
  %v680 = vadd.f32 0.0, %v679
  %v681 = vpop.f32.mrb[0].mxu0
  %682 = vmatprep.mubr.bf16.mxu0 0
  %683 = vmatmul.mubr.bf16.gmra.mrb[0].mxu0 %v448
  %v684 = vpop.f32.mrb[0].mxu0
  %v685 = vadd.f32 0.0, %v684
  %v686 = vpop.f32.mrb[0].mxu0
  %v687 = vpop.f32.mrb[0].mxu0
  %v688 = vadd.f32 0.0, %v687
  %v689 = vpop.f32.mrb[0].mxu0
  %690 = vmatprep.mubr.bf16.mxu0 0
  %691 = vmatmul.mubr.bf16.gmra.mrb[0].mxu0 %v451
  %v692 = vpop.f32.mrb[0].mxu0
  %v693 = vadd.f32 0.0, %v692
  %v694 = vpop.f32.mrb[0].mxu0
  %v695 = vpop.f32.mrb[0].mxu0
  %v696 = vadd.f32 0.0, %v695
  %v697 = vpop.f32.mrb[0].mxu0
  %698 = vmatprep.mubr.bf16.mxu0 0
  %699 = vmatmul.mubr.bf16.gmra.mrb[0].mxu0 %v454
  %v700 = vpop.f32.mrb[0].mxu0
  %v701 = vadd.f32 0.0, %v700
  %v702 = vpop.f32.mrb[0].mxu0
  %v703 = vpop.f32.mrb[0].mxu0
  %v704 = vadd.f32 0.0, %v703
  %v705 = vpop.f32.mrb[0].mxu0
  %706 = vmatprep.mubr.bf16.mxu0 0
  %707 = vmatmul.mubr.bf16.gmra.mrb[0].mxu0 %v457
  %v708 = vpop.f32.mrb[0].mxu0
  %v709 = vadd.f32 0.0, %v708
  %v710 = vpop.f32.mrb[0].mxu0
  %v711 = vpop.f32.mrb[0].mxu0
  %v712 = vadd.f32 0.0, %v711
  %v713 = vpop.f32.mrb[0].mxu0
  %714 = vmatprep.mubr.bf16.mxu0 0
  %715 = vmatmul.mubr.bf16.gmra.mrb[0].mxu0 %v460
  %v716 = vpop.f32.mrb[0].mxu0
  %v717 = vadd.f32 0.0, %v716
  %v718 = vpop.f32.mrb[0].mxu0
  %v719 = vpop.f32.mrb[0].mxu0
  %v720 = vadd.f32 0.0, %v719
  %v721 = vpop.f32.mrb[0].mxu0
  %722 = vmatprep.mubr.bf16.mxu0 0
  %723 = vmatmul.mubr.bf16.gmra.mrb[0].mxu0 %v463
  %v724 = vpop.f32.mrb[0].mxu0
  %v725 = vadd.f32 0.0, %v724
  %v726 = vpop.f32.mrb[0].mxu0
  %v727 = vpop.f32.mrb[0].mxu0
  %v728 = vadd.f32 0.0, %v727
  %v729 = vpop.f32.mrb[0].mxu0
  %730 = vmatprep.mubr.bf16.mxu0 0
  %731 = vmatmul.mubr.bf16.gmra.mrb[0].mxu0 %v466
  %v732 = vpop.f32.mrb[0].mxu0
  %v733 = vadd.f32 0.0, %v732
  %v734 = vpop.f32.mrb[0].mxu0
  %v735 = vpop.f32.mrb[0].mxu0
  %v736 = vadd.f32 0.0, %v735
  %v737 = vpop.f32.mrb[0].mxu0
  %738 = vmatprep.mubr.bf16.mxu0 0
  %739 = vmatmul.mubr.bf16.gmra.mrb[0].mxu0 %v469
  %v740 = vpop.f32.mrb[0].mxu0
  %v741 = vadd.f32 0.0, %v740
  %v742 = vpop.f32.mrb[0].mxu0
  %v743 = vpop.f32.mrb[0].mxu0
  %v744 = vadd.f32 0.0, %v743
  %v745 = vpop.f32.mrb[0].mxu0
  %746 = vmatprep.mubr.bf16.mxu0 0
  %747 = vmatmul.mubr.bf16.gmra.mrb[0].mxu0 %v472
  %v748 = vpop.f32.mrb[0].mxu0
  %v749 = vadd.f32 0.0, %v748
  %v750 = vpop.f32.mrb[0].mxu0
  %v751 = vpop.f32.mrb[0].mxu0
  %v752 = vadd.f32 0.0, %v751
  %v753 = vpop.f32.mrb[0].mxu0
  %754 = vmatprep.mubr.bf16.mxu0 0
  %755 = vmatmul.mubr.bf16.gmra.mrb[0].mxu0 %v475
  %v756 = vpop.f32.mrb[0].mxu0
  %v757 = vadd.f32 0.0, %v756
  %v758 = vpop.f32.mrb[0].mxu0
  %v759 = vpop.f32.mrb[0].mxu0
  %v760 = vadd.f32 0.0, %v759
  %v761 = vpop.f32.mrb[0].mxu0
  %762 = vmatprep.mubr.bf16.mxu0 0
  %763 = vmatmul.mubr.bf16.gmra.mrb[0].mxu0 %v478
  %v764 = vpop.f32.mrb[0].mxu0
  %v765 = vadd.f32 0.0, %v764
  %v766 = vpop.f32.mrb[0].mxu0
  %v767 = vpop.f32.mrb[0].mxu0
  %v768 = vadd.f32 0.0, %v767
  %v769 = vpop.f32.mrb[0].mxu0
  %770 = vmatprep.mubr.bf16.mxu0 0
  %771 = vmatmul.mubr.bf16.gmra.mrb[0].mxu0 %v481
  %v772 = vpop.f32.mrb[0].mxu0
  %v773 = vadd.f32 0.0, %v772
  %v774 = vpop.f32.mrb[0].mxu0
  %v775 = vpop.f32.mrb[0].mxu0
  %v776 = vadd.f32 0.0, %v775
  %v777 = vpop.f32.mrb[0].mxu0
  %778 = vdwg.mxu0
  %v779 = vadd.f32 %v83, %v525
  %v780 = vadd.f32 %v84, %v528
  %v781 = vadd.f32 %v85, %v533
  %v782 = vadd.f32 %v86, %v536
  %v783 = vadd.f32 %v87, %v541
  %v784 = vadd.f32 %v88, %v544
  %v785 = vadd.f32 %v89, %v549
  %v786 = vadd.f32 %v90, %v552
  %v787 = vadd.f32 %v91, %v557
  %v788 = vadd.f32 %v92, %v560
  %v789 = vadd.f32 %v93, %v565
  %v790 = vadd.f32 %v94, %v568
  %v791 = vadd.f32 %v95, %v573
  %v792 = vadd.f32 %v96, %v576
  %v793 = vadd.f32 %v97, %v581
  %v794 = vadd.f32 %v98, %v584
  %v795 = vadd.f32 %v99, %v589
  %v796 = vadd.f32 %v100, %v592
  %v797 = vadd.f32 %v101, %v597
  %v798 = vadd.f32 %v102, %v600
  %v799 = vadd.f32 %v103, %v605
  %v800 = vadd.f32 %v104, %v608
  %v801 = vadd.f32 %v105, %v613
  %v802 = vadd.f32 %v106, %v616
  %v803 = vadd.f32 %v107, %v621
  %v804 = vadd.f32 %v108, %v624
  %v805 = vadd.f32 %v109, %v629
  %v806 = vadd.f32 %v110, %v632
  %v807 = vadd.f32 %v111, %v637
  %v808 = vadd.f32 %v112, %v640
  %v809 = vadd.f32 %v113, %v645
  %v810 = vadd.f32 %v114, %v648
  %v811 = vadd.f32 %v115, %v653
  %v812 = vadd.f32 %v116, %v656
  %v813 = vadd.f32 %v117, %v661
  %v814 = vadd.f32 %v118, %v664
  %v815 = vadd.f32 %v119, %v669
  %v816 = vadd.f32 %v120, %v672
  %v817 = vadd.f32 %v121, %v677
  %v818 = vadd.f32 %v122, %v680
  %v819 = vadd.f32 %v123, %v685
  %v820 = vadd.f32 %v124, %v688
  %v821 = vadd.f32 %v125, %v693
  %v822 = vadd.f32 %v126, %v696
  %v823 = vadd.f32 %v127, %v701
  %v824 = vadd.f32 %v128, %v704
  %v825 = vadd.f32 %v129, %v709
  %v826 = vadd.f32 %v130, %v712
  %v827 = vadd.f32 %v131, %v717
  %v828 = vadd.f32 %v132, %v720
  %v829 = vadd.f32 %v133, %v725
  %v830 = vadd.f32 %v134, %v728
  %v831 = vadd.f32 %v135, %v733
  %v832 = vadd.f32 %v136, %v736
  %v833 = vadd.f32 %v137, %v741
  %v834 = vadd.f32 %v138, %v744
  %v835 = vadd.f32 %v139, %v749
  %v836 = vadd.f32 %v140, %v752
  %v837 = vadd.f32 %v141, %v757
  %v838 = vadd.f32 %v142, %v760
  %v839 = vadd.f32 %v143, %v765
  %v840 = vadd.f32 %v144, %v768
  %v841 = vadd.f32 %v145, %v773
  %v842 = vadd.f32 %v146, %v776
  %843 = vst [vmem:[#allocation2] sm:$0xff] %v779
  %844 = vst [vmem:[#allocation2 + $0x8] sm:$0xff] %v780
  %845 = vst [vmem:[#allocation2 + $0x10] sm:$0xff] %v781
  %846 = vst [vmem:[#allocation2 + $0x18] sm:$0xff] %v782
  %847 = vst [vmem:[#allocation2 + $0x20] sm:$0xff] %v783
  %848 = vst [vmem:[#allocation2 + $0x28] sm:$0xff] %v784
  %849 = vst [vmem:[#allocation2 + $0x30] sm:$0xff] %v785
  %850 = vst [vmem:[#allocation2 + $0x38] sm:$0xff] %v786
  %851 = vst [vmem:[#allocation2 + $0x40] sm:$0xff] %v787
  %852 = vst [vmem:[#allocation2 + $0x48] sm:$0xff] %v788
  %853 = vst [vmem:[#allocation2 + $0x50] sm:$0xff] %v789
  %854 = vst [vmem:[#allocation2 + $0x58] sm:$0xff] %v790
  %855 = vst [vmem:[#allocation2 + $0x60] sm:$0xff] %v791
  %856 = vst [vmem:[#allocation2 + $0x68] sm:$0xff] %v792
  %857 = vst [vmem:[#allocation2 + $0x70] sm:$0xff] %v793
  %858 = vst [vmem:[#allocation2 + $0x78] sm:$0xff] %v794
  %859 = vst [vmem:[#allocation2 + $0x80] sm:$0xff] %v795
  %860 = vst [vmem:[#allocation2 + $0x88] sm:$0xff] %v796
  %861 = vst [vmem:[#allocation2 + $0x90] sm:$0xff] %v797
  %862 = vst [vmem:[#allocation2 + $0x98] sm:$0xff] %v798
  %863 = vst [vmem:[#allocation2 + $0xa0] sm:$0xff] %v799
  %864 = vst [vmem:[#allocation2 + $0xa8] sm:$0xff] %v800
  %865 = vst [vmem:[#allocation2 + $0xb0] sm:$0xff] %v801
  %866 = vst [vmem:[#allocation2 + $0xb8] sm:$0xff] %v802
  %867 = vst [vmem:[#allocation2 + $0xc0] sm:$0xff] %v803
  %868 = vst [vmem:[#allocation2 + $0xc8] sm:$0xff] %v804
  %869 = vst [vmem:[#allocation2 + $0xd0] sm:$0xff] %v805
  %870 = vst [vmem:[#allocation2 + $0xd8] sm:$0xff] %v806
  %871 = vst [vmem:[#allocation2 + $0xe0] sm:$0xff] %v807
  %872 = vst [vmem:[#allocation2 + $0xe8] sm:$0xff] %v808
  %873 = vst [vmem:[#allocation2 + $0xf0] sm:$0xff] %v809
  %874 = vst [vmem:[#allocation2 + $0xf8] sm:$0xff] %v810
  %875 = vst [vmem:[#allocation2 + $0x100] sm:$0xff] %v811
  %876 = vst [vmem:[#allocation2 + $0x108] sm:$0xff] %v812
  %877 = vst [vmem:[#allocation2 + $0x110] sm:$0xff] %v813
  %878 = vst [vmem:[#allocation2 + $0x118] sm:$0xff] %v814
  %879 = vst [vmem:[#allocation2 + $0x120] sm:$0xff] %v815
  %880 = vst [vmem:[#allocation2 + $0x128] sm:$0xff] %v816
  %881 = vst [vmem:[#allocation2 + $0x130] sm:$0xff] %v817
  %882 = vst [vmem:[#allocation2 + $0x138] sm:$0xff] %v818
  %883 = vst [vmem:[#allocation2 + $0x140] sm:$0xff] %v819
  %884 = vst [vmem:[#allocation2 + $0x148] sm:$0xff] %v820
  %885 = vst [vmem:[#allocation2 + $0x150] sm:$0xff] %v821
  %886 = vst [vmem:[#allocation2 + $0x158] sm:$0xff] %v822
  %887 = vst [vmem:[#allocation2 + $0x160] sm:$0xff] %v823
  %888 = vst [vmem:[#allocation2 + $0x168] sm:$0xff] %v824
  %889 = vst [vmem:[#allocation2 + $0x170] sm:$0xff] %v825
  %890 = vst [vmem:[#allocation2 + $0x178] sm:$0xff] %v826
  %891 = vst [vmem:[#allocation2 + $0x180] sm:$0xff] %v827
  %892 = vst [vmem:[#allocation2 + $0x188] sm:$0xff] %v828
  %893 = vst [vmem:[#allocation2 + $0x190] sm:$0xff] %v829
  %894 = vst [vmem:[#allocation2 + $0x198] sm:$0xff] %v830
  %895 = vst [vmem:[#allocation2 + $0x1a0] sm:$0xff] %v831
  %896 = vst [vmem:[#allocation2 + $0x1a8] sm:$0xff] %v832
  %897 = vst [vmem:[#allocation2 + $0x1b0] sm:$0xff] %v833
  %898 = vst [vmem:[#allocation2 + $0x1b8] sm:$0xff] %v834
  %899 = vst [vmem:[#allocation2 + $0x1c0] sm:$0xff] %v835
  %900 = vst [vmem:[#allocation2 + $0x1c8] sm:$0xff] %v836
  %901 = vst [vmem:[#allocation2 + $0x1d0] sm:$0xff] %v837
  %902 = vst [vmem:[#allocation2 + $0x1d8] sm:$0xff] %v838
  %903 = vst [vmem:[#allocation2 + $0x1e0] sm:$0xff] %v839
  %904 = vst [vmem:[#allocation2 + $0x1e8] sm:$0xff] %v840
  %905 = vst [vmem:[#allocation2 + $0x1f0] sm:$0xff] %v841
  %906 = vst [vmem:[#allocation2 + $0x1f8] sm:$0xff] %v842
  // Predicated region
  $region18: #{modified_resnet_forward.24} parent=0 // pred_check
    %p907 = pneg %p15
  $region19: #{modified_resnet_forward.24} parent=0 // pred_check_branch
    %909 = sbr.rel (%p907) target = $region21
  $region20: #{modified_resnet_forward.24} parent=0 // pred_region
    %v910 = vld [vmem:[#allocation2] sm:$0xff]
    %v911 = vld [vmem:[#allocation2 + $0x8] sm:$0xff]
    %v912 = vld [vmem:[#allocation2 + $0x10] sm:$0xff]
    %v913 = vld [vmem:[#allocation2 + $0x18] sm:$0xff]
    %v914 = vld [vmem:[#allocation2 + $0x20] sm:$0xff]
    %v915 = vld [vmem:[#allocation2 + $0x28] sm:$0xff]
    %v916 = vld [vmem:[#allocation2 + $0x30] sm:$0xff]
    %v917 = vld [vmem:[#allocation2 + $0x38] sm:$0xff]
    %v918 = vld [vmem:[#allocation2 + $0x40] sm:$0xff]
    %v919 = vld [vmem:[#allocation2 + $0x48] sm:$0xff]
    %v920 = vld [vmem:[#allocation2 + $0x50] sm:$0xff]
    %v921 = vld [vmem:[#allocation2 + $0x58] sm:$0xff]
    %v922 = vld [vmem:[#allocation2 + $0x60] sm:$0xff]
    %v923 = vld [vmem:[#allocation2 + $0x68] sm:$0xff]
    %v924 = vld [vmem:[#allocation2 + $0x70] sm:$0xff]
    %v925 = vld [vmem:[#allocation2 + $0x78] sm:$0xff]
    %v926 = vld [vmem:[#allocation2 + $0x80] sm:$0xff]
    %v927 = vld [vmem:[#allocation2 + $0x88] sm:$0xff]
    %v928 = vld [vmem:[#allocation2 + $0x90] sm:$0xff]
    %v929 = vld [vmem:[#allocation2 + $0x98] sm:$0xff]
    %v930 = vld [vmem:[#allocation2 + $0xa0] sm:$0xff]
    %v931 = vld [vmem:[#allocation2 + $0xa8] sm:$0xff]
    %v932 = vld [vmem:[#allocation2 + $0xb0] sm:$0xff]
    %v933 = vld [vmem:[#allocation2 + $0xb8] sm:$0xff]
    %v934 = vld [vmem:[#allocation2 + $0xc0] sm:$0xff]
    %v935 = vld [vmem:[#allocation2 + $0xc8] sm:$0xff]
    %v936 = vld [vmem:[#allocation2 + $0xd0] sm:$0xff]
    %v937 = vld [vmem:[#allocation2 + $0xd8] sm:$0xff]
    %v938 = vld [vmem:[#allocation2 + $0xe0] sm:$0xff]
    %v939 = vld [vmem:[#allocation2 + $0xe8] sm:$0xff]
    %v940 = vld [vmem:[#allocation2 + $0xf0] sm:$0xff]
    %v941 = vld [vmem:[#allocation2 + $0xf8] sm:$0xff]
    %v942 = vld [vmem:[#allocation2 + $0x100] sm:$0xff]
    %v943 = vld [vmem:[#allocation2 + $0x108] sm:$0xff]
    %v944 = vld [vmem:[#allocation2 + $0x110] sm:$0xff]
    %v945 = vld [vmem:[#allocation2 + $0x118] sm:$0xff]
    %v946 = vld [vmem:[#allocation2 + $0x120] sm:$0xff]
    %v947 = vld [vmem:[#allocation2 + $0x128] sm:$0xff]
    %v948 = vld [vmem:[#allocation2 + $0x130] sm:$0xff]
    %v949 = vld [vmem:[#allocation2 + $0x138] sm:$0xff]
    %v950 = vld [vmem:[#allocation2 + $0x140] sm:$0xff]
    %v951 = vld [vmem:[#allocation2 + $0x148] sm:$0xff]
    %v952 = vld [vmem:[#allocation2 + $0x150] sm:$0xff]
    %v953 = vld [vmem:[#allocation2 + $0x158] sm:$0xff]
    %v954 = vld [vmem:[#allocation2 + $0x160] sm:$0xff]
    %v955 = vld [vmem:[#allocation2 + $0x168] sm:$0xff]
    %v956 = vld [vmem:[#allocation2 + $0x170] sm:$0xff]
    %v957 = vld [vmem:[#allocation2 + $0x178] sm:$0xff]
    %v958 = vld [vmem:[#allocation2 + $0x180] sm:$0xff]
    %v959 = vld [vmem:[#allocation2 + $0x188] sm:$0xff]
    %v960 = vld [vmem:[#allocation2 + $0x190] sm:$0xff]
    %v961 = vld [vmem:[#allocation2 + $0x198] sm:$0xff]
    %v962 = vld [vmem:[#allocation2 + $0x1a0] sm:$0xff]
    %v963 = vld [vmem:[#allocation2 + $0x1a8] sm:$0xff]
    %v964 = vld [vmem:[#allocation2 + $0x1b0] sm:$0xff]
    %v965 = vld [vmem:[#allocation2 + $0x1b8] sm:$0xff]
    %v966 = vld [vmem:[#allocation2 + $0x1c0] sm:$0xff]
    %v967 = vld [vmem:[#allocation2 + $0x1c8] sm:$0xff]
    %v968 = vld [vmem:[#allocation2 + $0x1d0] sm:$0xff]
    %v969 = vld [vmem:[#allocation2 + $0x1d8] sm:$0xff]
    %v970 = vld [vmem:[#allocation2 + $0x1e0] sm:$0xff]
    %v971 = vld [vmem:[#allocation2 + $0x1e8] sm:$0xff]
    %v972 = vld [vmem:[#allocation2 + $0x1f0] sm:$0xff]
    %v973 = vld [vmem:[#allocation2 + $0x1f8] sm:$0xff]
    %v974 = vld [vmem:[%s2] sm:$0x1]
    %v976 = vlaneseq
    %v977 = vshrl.u32 %v976, 7
    %v978 = vsub.s32 0, %v977
    %v979 = vrot.slane %v974, %v978
    %v981 = vadd.f32 %v910, %v979
    %v982 = vadd.f32 %v911, %v979
    %v983 = vadd.f32 %v912, %v979
    %v984 = vadd.f32 %v913, %v979
    %v985 = vadd.f32 %v914, %v979
    %v986 = vadd.f32 %v915, %v979
    %v987 = vadd.f32 %v916, %v979
    %v988 = vadd.f32 %v917, %v979
    %v989 = vadd.f32 %v918, %v979
    %v990 = vadd.f32 %v919, %v979
    %v991 = vadd.f32 %v920, %v979
    %v992 = vadd.f32 %v921, %v979
    %v993 = vadd.f32 %v922, %v979
    %v994 = vadd.f32 %v923, %v979
    %v995 = vadd.f32 %v924, %v979
    %v996 = vadd.f32 %v925, %v979
    %v997 = vadd.f32 %v926, %v979
    %v998 = vadd.f32 %v927, %v979
    %v999 = vadd.f32 %v928, %v979
    %v1000 = vadd.f32 %v929, %v979
    %v1001 = vadd.f32 %v930, %v979
    %v1002 = vadd.f32 %v931, %v979
    %v1003 = vadd.f32 %v932, %v979
    %v1004 = vadd.f32 %v933, %v979
    %v1005 = vadd.f32 %v934, %v979
    %v1006 = vadd.f32 %v935, %v979
    %v1007 = vadd.f32 %v936, %v979
    %v1008 = vadd.f32 %v937, %v979
    %v1009 = vadd.f32 %v938, %v979
    %v1010 = vadd.f32 %v939, %v979
    %v1011 = vadd.f32 %v940, %v979
    %v1012 = vadd.f32 %v941, %v979
    %v1013 = vadd.f32 %v942, %v979
    %v1014 = vadd.f32 %v943, %v979
    %v1015 = vadd.f32 %v944, %v979
    %v1016 = vadd.f32 %v945, %v979
    %v1017 = vadd.f32 %v946, %v979
    %v1018 = vadd.f32 %v947, %v979
    %v1019 = vadd.f32 %v948, %v979
    %v1020 = vadd.f32 %v949, %v979
    %v1021 = vadd.f32 %v950, %v979
    %v1022 = vadd.f32 %v951, %v979
    %v1023 = vadd.f32 %v952, %v979
    %v1024 = vadd.f32 %v953, %v979
    %v1025 = vadd.f32 %v954, %v979
    %v1026 = vadd.f32 %v955, %v979
    %v1027 = vadd.f32 %v956, %v979
    %v1028 = vadd.f32 %v957, %v979
    %v1029 = vadd.f32 %v958, %v979
    %v1030 = vadd.f32 %v959, %v979
    %v1031 = vadd.f32 %v960, %v979
    %v1032 = vadd.f32 %v961, %v979
    %v1033 = vadd.f32 %v962, %v979
    %v1034 = vadd.f32 %v963, %v979
    %v1035 = vadd.f32 %v964, %v979
    %v1036 = vadd.f32 %v965, %v979
    %v1037 = vadd.f32 %v966, %v979
    %v1038 = vadd.f32 %v967, %v979
    %v1039 = vadd.f32 %v968, %v979
    %v1040 = vadd.f32 %v969, %v979
    %v1041 = vadd.f32 %v970, %v979
    %v1042 = vadd.f32 %v971, %v979
    %v1043 = vadd.f32 %v972, %v979
    %v1044 = vadd.f32 %v973, %v979
    %v1045 = vmax.f32 %v981, 0.0
    %v1046 = vmax.f32 %v982, 0.0
    %v1047 = vmax.f32 %v983, 0.0
    %v1048 = vmax.f32 %v984, 0.0
    %v1049 = vmax.f32 %v985, 0.0
    %v1050 = vmax.f32 %v986, 0.0
    %v1051 = vmax.f32 %v987, 0.0
    %v1052 = vmax.f32 %v988, 0.0
    %v1053 = vmax.f32 %v989, 0.0
    %v1054 = vmax.f32 %v990, 0.0
    %v1055 = vmax.f32 %v991, 0.0
    %v1056 = vmax.f32 %v992, 0.0
    %v1057 = vmax.f32 %v993, 0.0
    %v1058 = vmax.f32 %v994, 0.0
    %v1059 = vmax.f32 %v995, 0.0
    %v1060 = vmax.f32 %v996, 0.0
    %v1061 = vmax.f32 %v997, 0.0
    %v1062 = vmax.f32 %v998, 0.0
    %v1063 = vmax.f32 %v999, 0.0
    %v1064 = vmax.f32 %v1000, 0.0
    %v1065 = vmax.f32 %v1001, 0.0
    %v1066 = vmax.f32 %v1002, 0.0
    %v1067 = vmax.f32 %v1003, 0.0
    %v1068 = vmax.f32 %v1004, 0.0
    %v1069 = vmax.f32 %v1005, 0.0
    %v1070 = vmax.f32 %v1006, 0.0
    %v1071 = vmax.f32 %v1007, 0.0
    %v1072 = vmax.f32 %v1008, 0.0
    %v1073 = vmax.f32 %v1009, 0.0
    %v1074 = vmax.f32 %v1010, 0.0
    %v1075 = vmax.f32 %v1011, 0.0
    %v1076 = vmax.f32 %v1012, 0.0
    %v1077 = vmax.f32 %v1013, 0.0
    %v1078 = vmax.f32 %v1014, 0.0
    %v1079 = vmax.f32 %v1015, 0.0
    %v1080 = vmax.f32 %v1016, 0.0
    %v1081 = vmax.f32 %v1017, 0.0
    %v1082 = vmax.f32 %v1018, 0.0
    %v1083 = vmax.f32 %v1019, 0.0
    %v1084 = vmax.f32 %v1020, 0.0
    %v1085 = vmax.f32 %v1021, 0.0
    %v1086 = vmax.f32 %v1022, 0.0
    %v1087 = vmax.f32 %v1023, 0.0
    %v1088 = vmax.f32 %v1024, 0.0
    %v1089 = vmax.f32 %v1025, 0.0
    %v1090 = vmax.f32 %v1026, 0.0
    %v1091 = vmax.f32 %v1027, 0.0
    %v1092 = vmax.f32 %v1028, 0.0
    %v1093 = vmax.f32 %v1029, 0.0
    %v1094 = vmax.f32 %v1030, 0.0
    %v1095 = vmax.f32 %v1031, 0.0
    %v1096 = vmax.f32 %v1032, 0.0
    %v1097 = vmax.f32 %v1033, 0.0
    %v1098 = vmax.f32 %v1034, 0.0
    %v1099 = vmax.f32 %v1035, 0.0
    %v1100 = vmax.f32 %v1036, 0.0
    %v1101 = vmax.f32 %v1037, 0.0
    %v1102 = vmax.f32 %v1038, 0.0
    %v1103 = vmax.f32 %v1039, 0.0
    %v1104 = vmax.f32 %v1040, 0.0
    %v1105 = vmax.f32 %v1041, 0.0
    %v1106 = vmax.f32 %v1042, 0.0
    %v1107 = vmax.f32 %v1043, 0.0
    %v1108 = vmax.f32 %v1044, 0.0
    %v1109 = vpack.c.bf16 %v1046, %v1045
    %v1110 = vpack.c.bf16 %v1048, %v1047
    %v1111 = vpack.c.bf16 %v1050, %v1049
    %v1112 = vpack.c.bf16 %v1052, %v1051
    %v1113 = vpack.c.bf16 %v1054, %v1053
    %v1114 = vpack.c.bf16 %v1056, %v1055
    %v1115 = vpack.c.bf16 %v1058, %v1057
    %v1116 = vpack.c.bf16 %v1060, %v1059
    %v1117 = vpack.c.bf16 %v1062, %v1061
    %v1118 = vpack.c.bf16 %v1064, %v1063
    %v1119 = vpack.c.bf16 %v1066, %v1065
    %v1120 = vpack.c.bf16 %v1068, %v1067
    %v1121 = vpack.c.bf16 %v1070, %v1069
    %v1122 = vpack.c.bf16 %v1072, %v1071
    %v1123 = vpack.c.bf16 %v1074, %v1073
    %v1124 = vpack.c.bf16 %v1076, %v1075
    %v1125 = vpack.c.bf16 %v1078, %v1077
    %v1126 = vpack.c.bf16 %v1080, %v1079
    %v1127 = vpack.c.bf16 %v1082, %v1081
    %v1128 = vpack.c.bf16 %v1084, %v1083
    %v1129 = vpack.c.bf16 %v1086, %v1085
    %v1130 = vpack.c.bf16 %v1088, %v1087
    %v1131 = vpack.c.bf16 %v1090, %v1089
    %v1132 = vpack.c.bf16 %v1092, %v1091
    %v1133 = vpack.c.bf16 %v1094, %v1093
    %v1134 = vpack.c.bf16 %v1096, %v1095
    %v1135 = vpack.c.bf16 %v1098, %v1097
    %v1136 = vpack.c.bf16 %v1100, %v1099
    %v1137 = vpack.c.bf16 %v1102, %v1101
    %v1138 = vpack.c.bf16 %v1104, %v1103
    %v1139 = vpack.c.bf16 %v1106, %v1105
    %v1140 = vpack.c.bf16 %v1108, %v1107
    %v1173 = vunpack.c.l.b16 %v1109
    %v1174 = vunpack.c.h.b16 %v1109
    %v1175 = vunpack.c.l.b16 %v1110
    %v1176 = vunpack.c.h.b16 %v1110
    %v1177 = vunpack.c.l.b16 %v1111
    %v1178 = vunpack.c.h.b16 %v1111
    %v1179 = vunpack.c.l.b16 %v1112
    %v1180 = vunpack.c.h.b16 %v1112
    %v1181 = vunpack.c.l.b16 %v1113
    %v1182 = vunpack.c.h.b16 %v1113
    %v1183 = vunpack.c.l.b16 %v1114
    %v1184 = vunpack.c.h.b16 %v1114
    %v1185 = vunpack.c.l.b16 %v1115
    %v1186 = vunpack.c.h.b16 %v1115
    %v1187 = vunpack.c.l.b16 %v1116
    %v1188 = vunpack.c.h.b16 %v1116
    %v1189 = vunpack.c.l.b16 %v1117
    %v1190 = vunpack.c.h.b16 %v1117
    %v1191 = vunpack.c.l.b16 %v1118
    %v1192 = vunpack.c.h.b16 %v1118
    %v1193 = vunpack.c.l.b16 %v1119
    %v1194 = vunpack.c.h.b16 %v1119
    %v1195 = vunpack.c.l.b16 %v1120
    %v1196 = vunpack.c.h.b16 %v1120
    %v1197 = vunpack.c.l.b16 %v1121
    %v1198 = vunpack.c.h.b16 %v1121
    %v1199 = vunpack.c.l.b16 %v1122
    %v1200 = vunpack.c.h.b16 %v1122
    %v1201 = vunpack.c.l.b16 %v1123
    %v1202 = vunpack.c.h.b16 %v1123
    %v1203 = vunpack.c.l.b16 %v1124
    %v1204 = vunpack.c.h.b16 %v1124
    %v1205 = vunpack.c.l.b16 %v1125
    %v1206 = vunpack.c.h.b16 %v1125
    %v1207 = vunpack.c.l.b16 %v1126
    %v1208 = vunpack.c.h.b16 %v1126
    %v1209 = vunpack.c.l.b16 %v1127
    %v1210 = vunpack.c.h.b16 %v1127
    %v1211 = vunpack.c.l.b16 %v1128
    %v1212 = vunpack.c.h.b16 %v1128
    %v1213 = vunpack.c.l.b16 %v1129
    %v1214 = vunpack.c.h.b16 %v1129
    %v1215 = vunpack.c.l.b16 %v1130
    %v1216 = vunpack.c.h.b16 %v1130
    %v1217 = vunpack.c.l.b16 %v1131
    %v1218 = vunpack.c.h.b16 %v1131
    %v1219 = vunpack.c.l.b16 %v1132
    %v1220 = vunpack.c.h.b16 %v1132
    %v1221 = vunpack.c.l.b16 %v1133
    %v1222 = vunpack.c.h.b16 %v1133
    %v1223 = vunpack.c.l.b16 %v1134
    %v1224 = vunpack.c.h.b16 %v1134
    %v1225 = vunpack.c.l.b16 %v1135
    %v1226 = vunpack.c.h.b16 %v1135
    %v1227 = vunpack.c.l.b16 %v1136
    %v1228 = vunpack.c.h.b16 %v1136
    %v1229 = vunpack.c.l.b16 %v1137
    %v1230 = vunpack.c.h.b16 %v1137
    %v1231 = vunpack.c.l.b16 %v1138
    %v1232 = vunpack.c.h.b16 %v1138
    %v1233 = vunpack.c.l.b16 %v1139
    %v1234 = vunpack.c.h.b16 %v1139
    %v1235 = vunpack.c.l.b16 %v1140
    %v1236 = vunpack.c.h.b16 %v1140
    %v1237 = vpack.c.b16 %v1173, %v1173
    %v1238 = vpack.c.b16 %v1174, %v1174
    %v1239 = vpack.c.b16 %v1175, %v1175
    %v1240 = vpack.c.b16 %v1176, %v1176
    %v1241 = vpack.c.b16 %v1177, %v1177
    %v1242 = vpack.c.b16 %v1178, %v1178
    %v1243 = vpack.c.b16 %v1179, %v1179
    %v1244 = vpack.c.b16 %v1180, %v1180
    %v1245 = vpack.c.b16 %v1181, %v1181
    %v1246 = vpack.c.b16 %v1182, %v1182
    %v1247 = vpack.c.b16 %v1183, %v1183
    %v1248 = vpack.c.b16 %v1184, %v1184
    %v1249 = vpack.c.b16 %v1185, %v1185
    %v1250 = vpack.c.b16 %v1186, %v1186
    %v1251 = vpack.c.b16 %v1187, %v1187
    %v1252 = vpack.c.b16 %v1188, %v1188
    %v1253 = vpack.c.b16 %v1189, %v1189
    %v1254 = vpack.c.b16 %v1190, %v1190
    %v1255 = vpack.c.b16 %v1191, %v1191
    %v1256 = vpack.c.b16 %v1192, %v1192
    %v1257 = vpack.c.b16 %v1193, %v1193
    %v1258 = vpack.c.b16 %v1194, %v1194
    %v1259 = vpack.c.b16 %v1195, %v1195
    %v1260 = vpack.c.b16 %v1196, %v1196
    %v1261 = vpack.c.b16 %v1197, %v1197
    %v1262 = vpack.c.b16 %v1198, %v1198
    %v1263 = vpack.c.b16 %v1199, %v1199
    %v1264 = vpack.c.b16 %v1200, %v1200
    %v1265 = vpack.c.b16 %v1201, %v1201
    %v1266 = vpack.c.b16 %v1202, %v1202
    %v1267 = vpack.c.b16 %v1203, %v1203
    %v1268 = vpack.c.b16 %v1204, %v1204
    %v1269 = vpack.c.b16 %v1205, %v1205
    %v1270 = vpack.c.b16 %v1206, %v1206
    %v1271 = vpack.c.b16 %v1207, %v1207
    %v1272 = vpack.c.b16 %v1208, %v1208
    %v1273 = vpack.c.b16 %v1209, %v1209
    %v1274 = vpack.c.b16 %v1210, %v1210
    %v1275 = vpack.c.b16 %v1211, %v1211
    %v1276 = vpack.c.b16 %v1212, %v1212
    %v1277 = vpack.c.b16 %v1213, %v1213
    %v1278 = vpack.c.b16 %v1214, %v1214
    %v1279 = vpack.c.b16 %v1215, %v1215
    %v1280 = vpack.c.b16 %v1216, %v1216
    %v1281 = vpack.c.b16 %v1217, %v1217
    %v1282 = vpack.c.b16 %v1218, %v1218
    %v1283 = vpack.c.b16 %v1219, %v1219
    %v1284 = vpack.c.b16 %v1220, %v1220
    %v1285 = vpack.c.b16 %v1221, %v1221
    %v1286 = vpack.c.b16 %v1222, %v1222
    %v1287 = vpack.c.b16 %v1223, %v1223
    %v1288 = vpack.c.b16 %v1224, %v1224
    %v1289 = vpack.c.b16 %v1225, %v1225
    %v1290 = vpack.c.b16 %v1226, %v1226
    %v1291 = vpack.c.b16 %v1227, %v1227
    %v1292 = vpack.c.b16 %v1228, %v1228
    %v1293 = vpack.c.b16 %v1229, %v1229
    %v1294 = vpack.c.b16 %v1230, %v1230
    %v1295 = vpack.c.b16 %v1231, %v1231
    %v1296 = vpack.c.b16 %v1232, %v1232
    %v1297 = vpack.c.b16 %v1233, %v1233
    %v1298 = vpack.c.b16 %v1234, %v1234
    %v1299 = vpack.c.b16 %v1235, %v1235
    %v1300 = vpack.c.b16 %v1236, %v1236
    %1365 = vst [vmem:[%s3] sm:$0xf] %v1237
    %1366 = vst [vmem:[%s3 + $0x4] sm:$0xf] %v1238
    %1367 = vst [vmem:[%s3 + $0x8] sm:$0xf] %v1239
    %1368 = vst [vmem:[%s3 + $0xc] sm:$0xf] %v1240
    %1369 = vst [vmem:[%s3 + $0x10] sm:$0xf] %v1241
    %1370 = vst [vmem:[%s3 + $0x14] sm:$0xf] %v1242
    %1371 = vst [vmem:[%s3 + $0x18] sm:$0xf] %v1243
    %1372 = vst [vmem:[%s3 + $0x1c] sm:$0xf] %v1244
    %1373 = vst [vmem:[%s3 + $0x20] sm:$0xf] %v1245
    %1374 = vst [vmem:[%s3 + $0x24] sm:$0xf] %v1246
    %1375 = vst [vmem:[%s3 + $0x28] sm:$0xf] %v1247
    %1376 = vst [vmem:[%s3 + $0x2c] sm:$0xf] %v1248
    %1377 = vst [vmem:[%s3 + $0x30] sm:$0xf] %v1249
    %1378 = vst [vmem:[%s3 + $0x34] sm:$0xf] %v1250
    %1379 = vst [vmem:[%s3 + $0x38] sm:$0xf] %v1251
    %1380 = vst [vmem:[%s3 + $0x3c] sm:$0xf] %v1252
    %1381 = vst [vmem:[%s3 + $0x40] sm:$0xf] %v1253
    %1382 = vst [vmem:[%s3 + $0x44] sm:$0xf] %v1254
    %1383 = vst [vmem:[%s3 + $0x48] sm:$0xf] %v1255
    %1384 = vst [vmem:[%s3 + $0x4c] sm:$0xf] %v1256
    %1385 = vst [vmem:[%s3 + $0x50] sm:$0xf] %v1257
    %1386 = vst [vmem:[%s3 + $0x54] sm:$0xf] %v1258
    %1387 = vst [vmem:[%s3 + $0x58] sm:$0xf] %v1259
    %1388 = vst [vmem:[%s3 + $0x5c] sm:$0xf] %v1260
    %1389 = vst [vmem:[%s3 + $0x60] sm:$0xf] %v1261
    %1390 = vst [vmem:[%s3 + $0x64] sm:$0xf] %v1262
    %1391 = vst [vmem:[%s3 + $0x68] sm:$0xf] %v1263
    %1392 = vst [vmem:[%s3 + $0x6c] sm:$0xf] %v1264
    %1393 = vst [vmem:[%s3 + $0x70] sm:$0xf] %v1265
    %1394 = vst [vmem:[%s3 + $0x74] sm:$0xf] %v1266
    %1395 = vst [vmem:[%s3 + $0x78] sm:$0xf] %v1267
    %1396 = vst [vmem:[%s3 + $0x7c] sm:$0xf] %v1268
    %1397 = vst [vmem:[%s3 + $0x80] sm:$0xf] %v1269
    %1398 = vst [vmem:[%s3 + $0x84] sm:$0xf] %v1270
    %1399 = vst [vmem:[%s3 + $0x88] sm:$0xf] %v1271
    %1400 = vst [vmem:[%s3 + $0x8c] sm:$0xf] %v1272
    %1401 = vst [vmem:[%s3 + $0x90] sm:$0xf] %v1273
    %1402 = vst [vmem:[%s3 + $0x94] sm:$0xf] %v1274
    %1403 = vst [vmem:[%s3 + $0x98] sm:$0xf] %v1275
    %1404 = vst [vmem:[%s3 + $0x9c] sm:$0xf] %v1276
    %1405 = vst [vmem:[%s3 + $0xa0] sm:$0xf] %v1277
    %1406 = vst [vmem:[%s3 + $0xa4] sm:$0xf] %v1278
    %1407 = vst [vmem:[%s3 + $0xa8] sm:$0xf] %v1279
    %1408 = vst [vmem:[%s3 + $0xac] sm:$0xf] %v1280
    %1409 = vst [vmem:[%s3 + $0xb0] sm:$0xf] %v1281
    %1410 = vst [vmem:[%s3 + $0xb4] sm:$0xf] %v1282
    %1411 = vst [vmem:[%s3 + $0xb8] sm:$0xf] %v1283
    %1412 = vst [vmem:[%s3 + $0xbc] sm:$0xf] %v1284
    %1413 = vst [vmem:[%s3 + $0xc0] sm:$0xf] %v1285
    %1414 = vst [vmem:[%s3 + $0xc4] sm:$0xf] %v1286
    %1415 = vst [vmem:[%s3 + $0xc8] sm:$0xf] %v1287
    %1416 = vst [vmem:[%s3 + $0xcc] sm:$0xf] %v1288
    %1417 = vst [vmem:[%s3 + $0xd0] sm:$0xf] %v1289
    %1418 = vst [vmem:[%s3 + $0xd4] sm:$0xf] %v1290
    %1419 = vst [vmem:[%s3 + $0xd8] sm:$0xf] %v1291
    %1420 = vst [vmem:[%s3 + $0xdc] sm:$0xf] %v1292
    %1421 = vst [vmem:[%s3 + $0xe0] sm:$0xf] %v1293
    %1422 = vst [vmem:[%s3 + $0xe4] sm:$0xf] %v1294
    %1423 = vst [vmem:[%s3 + $0xe8] sm:$0xf] %v1295
    %1424 = vst [vmem:[%s3 + $0xec] sm:$0xf] %v1296
    %1425 = vst [vmem:[%s3 + $0xf0] sm:$0xf] %v1297
    %1426 = vst [vmem:[%s3 + $0xf4] sm:$0xf] %v1298
    %1427 = vst [vmem:[%s3 + $0xf8] sm:$0xf] %v1299
    %1428 = vst [vmem:[%s3 + $0xfc] sm:$0xf] %v1300
  $region21: #{modified_resnet_forward.24} parent=0 // pred_fallthru
    _
  // Predicated region
  $region22: #{modified_resnet_forward.24} parent=0 // pred_check
    _
  $region23: #{modified_resnet_forward.24} parent=0 // pred_check_branch
    %1430 = sbr.rel (0) target = $region25
  $region24: #{modified_resnet_forward.24} parent=0 // pred_region
    _
  $region25: #{modified_resnet_forward.24} parent=0 // pred_fallthru
    _
  // Predicated region
  $region26: #{modified_resnet_forward.24} parent=0 // pred_check
    _
  $region27: #{modified_resnet_forward.24} parent=0 // pred_check_branch
    %1432 = sbr.rel (0) target = $region29
  $region28: #{modified_resnet_forward.24} parent=0 // pred_region
    _
  $region29: #{modified_resnet_forward.24} parent=0 // pred_fallthru
    _

// kernel: modified_resnet_forward.25
$region0: #{modified_resnet_forward.25}
  #allocation0 [shape = 'u32[]', space=smem, size = 0x4, offset = 0x4, fixed_abs, tag = 'smem constant byte address 0x4 - core index']
  #allocation1 [shape = 'u32[144,128]{1,0:T(1,128)}', space=vmem, size = 0x12000, scoped, tag = 'internal scratch']
  #allocation2 [shape = 'f32[512,128]{1,0:T(8,128)}', space=vmem, size = 0x40000, scoped, tag = 'scratch operand']
  %s0 = inlined_call_operand.vmem [shape: bf16[512,36], index: 0, kind: input, shape index: {}]
  %s1 = inlined_call_operand.vmem [shape: bf16[36,128], index: 1, kind: input, shape index: {}]
  %s2 = inlined_call_operand.vmem [shape: f32[1,128], index: 2, kind: input, shape index: {}]
  %s3 = inlined_call_operand.vmem [shape: bf16[512,128], index: 3, kind: output, shape index: {}]
  %s4 = sld [smem:[#allocation0]]
  $region30: #{modified_resnet_forward.25} parent=0
    _
  %s6 = ssub.s32 1, %s4
  %s7 = scalar_select 0, %s6, %s4
  // Predicated region
  $region2: #{modified_resnet_forward.25} parent=0 // pred_check
    _
  $region3: #{modified_resnet_forward.25} parent=0 // pred_check_branch
    %9 = sbr.rel (0) target = $region5
  $region4: #{modified_resnet_forward.25} parent=0 // pred_region
    _
  $region5: #{modified_resnet_forward.25} parent=0 // pred_fallthru
    _
  // Predicated region
  $region6: #{modified_resnet_forward.25} parent=0 // pred_check
    _
  $region7: #{modified_resnet_forward.25} parent=0 // pred_check_branch
    %11 = sbr.rel (0) target = $region9
  $region8: #{modified_resnet_forward.25} parent=0 // pred_region
    _
  $region9: #{modified_resnet_forward.25} parent=0 // pred_fallthru
    _
  // Predicated region
  $region10: #{modified_resnet_forward.25} parent=0 // pred_check
    _
  $region11: #{modified_resnet_forward.25} parent=0 // pred_check_branch
    %13 = sbr.rel (0) target = $region13
  $region12: #{modified_resnet_forward.25} parent=0 // pred_region
    _
  $region13: #{modified_resnet_forward.25} parent=0 // pred_fallthru
    _
  %p15 = scmp.eq.s32.totalorder 0, 0
  // Predicated region
  $region14: #{modified_resnet_forward.25} parent=0 // pred_check
    %p16 = pneg %p15
  $region15: #{modified_resnet_forward.25} parent=0 // pred_check_branch
    %18 = sbr.rel (%p16) target = $region17
  $region16: #{modified_resnet_forward.25} parent=0 // pred_region
    %19 = vst [vmem:[#allocation2] sm:$0xff] 0.0
    %20 = vst [vmem:[#allocation2 + $0x8] sm:$0xff] 0.0
    %21 = vst [vmem:[#allocation2 + $0x10] sm:$0xff] 0.0
    %22 = vst [vmem:[#allocation2 + $0x18] sm:$0xff] 0.0
    %23 = vst [vmem:[#allocation2 + $0x20] sm:$0xff] 0.0
    %24 = vst [vmem:[#allocation2 + $0x28] sm:$0xff] 0.0
    %25 = vst [vmem:[#allocation2 + $0x30] sm:$0xff] 0.0
    %26 = vst [vmem:[#allocation2 + $0x38] sm:$0xff] 0.0
    %27 = vst [vmem:[#allocation2 + $0x40] sm:$0xff] 0.0
    %28 = vst [vmem:[#allocation2 + $0x48] sm:$0xff] 0.0
    %29 = vst [vmem:[#allocation2 + $0x50] sm:$0xff] 0.0
    %30 = vst [vmem:[#allocation2 + $0x58] sm:$0xff] 0.0
    %31 = vst [vmem:[#allocation2 + $0x60] sm:$0xff] 0.0
    %32 = vst [vmem:[#allocation2 + $0x68] sm:$0xff] 0.0
    %33 = vst [vmem:[#allocation2 + $0x70] sm:$0xff] 0.0
    %34 = vst [vmem:[#allocation2 + $0x78] sm:$0xff] 0.0
    %35 = vst [vmem:[#allocation2 + $0x80] sm:$0xff] 0.0
    %36 = vst [vmem:[#allocation2 + $0x88] sm:$0xff] 0.0
    %37 = vst [vmem:[#allocation2 + $0x90] sm:$0xff] 0.0
    %38 = vst [vmem:[#allocation2 + $0x98] sm:$0xff] 0.0
    %39 = vst [vmem:[#allocation2 + $0xa0] sm:$0xff] 0.0
    %40 = vst [vmem:[#allocation2 + $0xa8] sm:$0xff] 0.0
    %41 = vst [vmem:[#allocation2 + $0xb0] sm:$0xff] 0.0
    %42 = vst [vmem:[#allocation2 + $0xb8] sm:$0xff] 0.0
    %43 = vst [vmem:[#allocation2 + $0xc0] sm:$0xff] 0.0
    %44 = vst [vmem:[#allocation2 + $0xc8] sm:$0xff] 0.0
    %45 = vst [vmem:[#allocation2 + $0xd0] sm:$0xff] 0.0
    %46 = vst [vmem:[#allocation2 + $0xd8] sm:$0xff] 0.0
    %47 = vst [vmem:[#allocation2 + $0xe0] sm:$0xff] 0.0
    %48 = vst [vmem:[#allocation2 + $0xe8] sm:$0xff] 0.0
    %49 = vst [vmem:[#allocation2 + $0xf0] sm:$0xff] 0.0
    %50 = vst [vmem:[#allocation2 + $0xf8] sm:$0xff] 0.0
    %51 = vst [vmem:[#allocation2 + $0x100] sm:$0xff] 0.0
    %52 = vst [vmem:[#allocation2 + $0x108] sm:$0xff] 0.0
    %53 = vst [vmem:[#allocation2 + $0x110] sm:$0xff] 0.0
    %54 = vst [vmem:[#allocation2 + $0x118] sm:$0xff] 0.0
    %55 = vst [vmem:[#allocation2 + $0x120] sm:$0xff] 0.0
    %56 = vst [vmem:[#allocation2 + $0x128] sm:$0xff] 0.0
    %57 = vst [vmem:[#allocation2 + $0x130] sm:$0xff] 0.0
    %58 = vst [vmem:[#allocation2 + $0x138] sm:$0xff] 0.0
    %59 = vst [vmem:[#allocation2 + $0x140] sm:$0xff] 0.0
    %60 = vst [vmem:[#allocation2 + $0x148] sm:$0xff] 0.0
    %61 = vst [vmem:[#allocation2 + $0x150] sm:$0xff] 0.0
    %62 = vst [vmem:[#allocation2 + $0x158] sm:$0xff] 0.0
    %63 = vst [vmem:[#allocation2 + $0x160] sm:$0xff] 0.0
    %64 = vst [vmem:[#allocation2 + $0x168] sm:$0xff] 0.0
    %65 = vst [vmem:[#allocation2 + $0x170] sm:$0xff] 0.0
    %66 = vst [vmem:[#allocation2 + $0x178] sm:$0xff] 0.0
    %67 = vst [vmem:[#allocation2 + $0x180] sm:$0xff] 0.0
    %68 = vst [vmem:[#allocation2 + $0x188] sm:$0xff] 0.0
    %69 = vst [vmem:[#allocation2 + $0x190] sm:$0xff] 0.0
    %70 = vst [vmem:[#allocation2 + $0x198] sm:$0xff] 0.0
    %71 = vst [vmem:[#allocation2 + $0x1a0] sm:$0xff] 0.0
    %72 = vst [vmem:[#allocation2 + $0x1a8] sm:$0xff] 0.0
    %73 = vst [vmem:[#allocation2 + $0x1b0] sm:$0xff] 0.0
    %74 = vst [vmem:[#allocation2 + $0x1b8] sm:$0xff] 0.0
    %75 = vst [vmem:[#allocation2 + $0x1c0] sm:$0xff] 0.0
    %76 = vst [vmem:[#allocation2 + $0x1c8] sm:$0xff] 0.0
    %77 = vst [vmem:[#allocation2 + $0x1d0] sm:$0xff] 0.0
    %78 = vst [vmem:[#allocation2 + $0x1d8] sm:$0xff] 0.0
    %79 = vst [vmem:[#allocation2 + $0x1e0] sm:$0xff] 0.0
    %80 = vst [vmem:[#allocation2 + $0x1e8] sm:$0xff] 0.0
    %81 = vst [vmem:[#allocation2 + $0x1f0] sm:$0xff] 0.0
    %82 = vst [vmem:[#allocation2 + $0x1f8] sm:$0xff] 0.0
  $region17: #{modified_resnet_forward.25} parent=0 // pred_fallthru
    _
  %v83 = vld [vmem:[#allocation2] sm:$0xff]
  %v84 = vld [vmem:[#allocation2 + $0x8] sm:$0xff]
  %v85 = vld [vmem:[#allocation2 + $0x10] sm:$0xff]
  %v86 = vld [vmem:[#allocation2 + $0x18] sm:$0xff]
  %v87 = vld [vmem:[#allocation2 + $0x20] sm:$0xff]
  %v88 = vld [vmem:[#allocation2 + $0x28] sm:$0xff]
  %v89 = vld [vmem:[#allocation2 + $0x30] sm:$0xff]
  %v90 = vld [vmem:[#allocation2 + $0x38] sm:$0xff]
  %v91 = vld [vmem:[#allocation2 + $0x40] sm:$0xff]
  %v92 = vld [vmem:[#allocation2 + $0x48] sm:$0xff]
  %v93 = vld [vmem:[#allocation2 + $0x50] sm:$0xff]
  %v94 = vld [vmem:[#allocation2 + $0x58] sm:$0xff]
  %v95 = vld [vmem:[#allocation2 + $0x60] sm:$0xff]
  %v96 = vld [vmem:[#allocation2 + $0x68] sm:$0xff]
  %v97 = vld [vmem:[#allocation2 + $0x70] sm:$0xff]
  %v98 = vld [vmem:[#allocation2 + $0x78] sm:$0xff]
  %v99 = vld [vmem:[#allocation2 + $0x80] sm:$0xff]
  %v100 = vld [vmem:[#allocation2 + $0x88] sm:$0xff]
  %v101 = vld [vmem:[#allocation2 + $0x90] sm:$0xff]
  %v102 = vld [vmem:[#allocation2 + $0x98] sm:$0xff]
  %v103 = vld [vmem:[#allocation2 + $0xa0] sm:$0xff]
  %v104 = vld [vmem:[#allocation2 + $0xa8] sm:$0xff]
  %v105 = vld [vmem:[#allocation2 + $0xb0] sm:$0xff]
  %v106 = vld [vmem:[#allocation2 + $0xb8] sm:$0xff]
  %v107 = vld [vmem:[#allocation2 + $0xc0] sm:$0xff]
  %v108 = vld [vmem:[#allocation2 + $0xc8] sm:$0xff]
  %v109 = vld [vmem:[#allocation2 + $0xd0] sm:$0xff]
  %v110 = vld [vmem:[#allocation2 + $0xd8] sm:$0xff]
  %v111 = vld [vmem:[#allocation2 + $0xe0] sm:$0xff]
  %v112 = vld [vmem:[#allocation2 + $0xe8] sm:$0xff]
  %v113 = vld [vmem:[#allocation2 + $0xf0] sm:$0xff]
  %v114 = vld [vmem:[#allocation2 + $0xf8] sm:$0xff]
  %v115 = vld [vmem:[#allocation2 + $0x100] sm:$0xff]
  %v116 = vld [vmem:[#allocation2 + $0x108] sm:$0xff]
  %v117 = vld [vmem:[#allocation2 + $0x110] sm:$0xff]
  %v118 = vld [vmem:[#allocation2 + $0x118] sm:$0xff]
  %v119 = vld [vmem:[#allocation2 + $0x120] sm:$0xff]
  %v120 = vld [vmem:[#allocation2 + $0x128] sm:$0xff]
  %v121 = vld [vmem:[#allocation2 + $0x130] sm:$0xff]
  %v122 = vld [vmem:[#allocation2 + $0x138] sm:$0xff]
  %v123 = vld [vmem:[#allocation2 + $0x140] sm:$0xff]
  %v124 = vld [vmem:[#allocation2 + $0x148] sm:$0xff]
  %v125 = vld [vmem:[#allocation2 + $0x150] sm:$0xff]
  %v126 = vld [vmem:[#allocation2 + $0x158] sm:$0xff]
  %v127 = vld [vmem:[#allocation2 + $0x160] sm:$0xff]
  %v128 = vld [vmem:[#allocation2 + $0x168] sm:$0xff]
  %v129 = vld [vmem:[#allocation2 + $0x170] sm:$0xff]
  %v130 = vld [vmem:[#allocation2 + $0x178] sm:$0xff]
  %v131 = vld [vmem:[#allocation2 + $0x180] sm:$0xff]
  %v132 = vld [vmem:[#allocation2 + $0x188] sm:$0xff]
  %v133 = vld [vmem:[#allocation2 + $0x190] sm:$0xff]
  %v134 = vld [vmem:[#allocation2 + $0x198] sm:$0xff]
  %v135 = vld [vmem:[#allocation2 + $0x1a0] sm:$0xff]
  %v136 = vld [vmem:[#allocation2 + $0x1a8] sm:$0xff]
  %v137 = vld [vmem:[#allocation2 + $0x1b0] sm:$0xff]
  %v138 = vld [vmem:[#allocation2 + $0x1b8] sm:$0xff]
  %v139 = vld [vmem:[#allocation2 + $0x1c0] sm:$0xff]
  %v140 = vld [vmem:[#allocation2 + $0x1c8] sm:$0xff]
  %v141 = vld [vmem:[#allocation2 + $0x1d0] sm:$0xff]
  %v142 = vld [vmem:[#allocation2 + $0x1d8] sm:$0xff]
  %v143 = vld [vmem:[#allocation2 + $0x1e0] sm:$0xff]
  %v144 = vld [vmem:[#allocation2 + $0x1e8] sm:$0xff]
  %v145 = vld [vmem:[#allocation2 + $0x1f0] sm:$0xff]
  %v146 = vld [vmem:[#allocation2 + $0x1f8] sm:$0xff]
  %v147 = vld [vmem:[%s0] sm:$0xf]
  %v148 = vld [vmem:[%s0 + $0x4] sm:$0xf]
  %v149 = vld [vmem:[%s0 + $0x8] sm:$0xf]
  %v150 = vld [vmem:[%s0 + $0xc] sm:$0xf]
  %v151 = vld [vmem:[%s0 + $0x10] sm:$0xf]
  %v152 = vld [vmem:[%s0 + $0x14] sm:$0xf]
  %v153 = vld [vmem:[%s0 + $0x18] sm:$0xf]
  %v154 = vld [vmem:[%s0 + $0x1c] sm:$0xf]
  %v155 = vld [vmem:[%s0 + $0x20] sm:$0xf]
  %v156 = vld [vmem:[%s0 + $0x24] sm:$0xf]
  %v157 = vld [vmem:[%s0 + $0x28] sm:$0xf]
  %v158 = vld [vmem:[%s0 + $0x2c] sm:$0xf]
  %v159 = vld [vmem:[%s0 + $0x30] sm:$0xf]
  %v160 = vld [vmem:[%s0 + $0x34] sm:$0xf]
  %v161 = vld [vmem:[%s0 + $0x38] sm:$0xf]
  %v162 = vld [vmem:[%s0 + $0x3c] sm:$0xf]
  %v163 = vld [vmem:[%s0 + $0x40] sm:$0xf]
  %v164 = vld [vmem:[%s0 + $0x44] sm:$0xf]
  %v165 = vld [vmem:[%s0 + $0x48] sm:$0xf]
  %v166 = vld [vmem:[%s0 + $0x4c] sm:$0xf]
  %v167 = vld [vmem:[%s0 + $0x50] sm:$0xf]
  %v168 = vld [vmem:[%s0 + $0x54] sm:$0xf]
  %v169 = vld [vmem:[%s0 + $0x58] sm:$0xf]
  %v170 = vld [vmem:[%s0 + $0x5c] sm:$0xf]
  %v171 = vld [vmem:[%s0 + $0x60] sm:$0xf]
  %v172 = vld [vmem:[%s0 + $0x64] sm:$0xf]
  %v173 = vld [vmem:[%s0 + $0x68] sm:$0xf]
  %v174 = vld [vmem:[%s0 + $0x6c] sm:$0xf]
  %v175 = vld [vmem:[%s0 + $0x70] sm:$0xf]
  %v176 = vld [vmem:[%s0 + $0x74] sm:$0xf]
  %v177 = vld [vmem:[%s0 + $0x78] sm:$0xf]
  %v178 = vld [vmem:[%s0 + $0x7c] sm:$0xf]
  %v179 = vld [vmem:[%s0 + $0x80] sm:$0xf]
  %v180 = vld [vmem:[%s0 + $0x84] sm:$0xf]
  %v181 = vld [vmem:[%s0 + $0x88] sm:$0xf]
  %v182 = vld [vmem:[%s0 + $0x8c] sm:$0xf]
  %v183 = vld [vmem:[%s0 + $0x90] sm:$0xf]
  %v184 = vld [vmem:[%s0 + $0x94] sm:$0xf]
  %v185 = vld [vmem:[%s0 + $0x98] sm:$0xf]
  %v186 = vld [vmem:[%s0 + $0x9c] sm:$0xf]
  %v187 = vld [vmem:[%s0 + $0xa0] sm:$0xf]
  %v188 = vld [vmem:[%s0 + $0xa4] sm:$0xf]
  %v189 = vld [vmem:[%s0 + $0xa8] sm:$0xf]
  %v190 = vld [vmem:[%s0 + $0xac] sm:$0xf]
  %v191 = vld [vmem:[%s0 + $0xb0] sm:$0xf]
  %v192 = vld [vmem:[%s0 + $0xb4] sm:$0xf]
  %v193 = vld [vmem:[%s0 + $0xb8] sm:$0xf]
  %v194 = vld [vmem:[%s0 + $0xbc] sm:$0xf]
  %v195 = vld [vmem:[%s0 + $0xc0] sm:$0xf]
  %v196 = vld [vmem:[%s0 + $0xc4] sm:$0xf]
  %v197 = vld [vmem:[%s0 + $0xc8] sm:$0xf]
  %v198 = vld [vmem:[%s0 + $0xcc] sm:$0xf]
  %v199 = vld [vmem:[%s0 + $0xd0] sm:$0xf]
  %v200 = vld [vmem:[%s0 + $0xd4] sm:$0xf]
  %v201 = vld [vmem:[%s0 + $0xd8] sm:$0xf]
  %v202 = vld [vmem:[%s0 + $0xdc] sm:$0xf]
  %v203 = vld [vmem:[%s0 + $0xe0] sm:$0xf]
  %v204 = vld [vmem:[%s0 + $0xe4] sm:$0xf]
  %v205 = vld [vmem:[%s0 + $0xe8] sm:$0xf]
  %v206 = vld [vmem:[%s0 + $0xec] sm:$0xf]
  %v207 = vld [vmem:[%s0 + $0xf0] sm:$0xf]
  %v208 = vld [vmem:[%s0 + $0xf4] sm:$0xf]
  %v209 = vld [vmem:[%s0 + $0xf8] sm:$0xf]
  %v210 = vld [vmem:[%s0 + $0xfc] sm:$0xf]
  %v211 = vld [vmem:[%s1] sm:$0xf]
  %v212 = vld [vmem:[%s1 + $0x4] sm:$0xf]
  %v213 = vld [vmem:[%s1 + $0x8] sm:$0xf]
  %v214 = vld [vmem:[%s1 + $0xc] sm:$0xf]
  %v215 = vld [vmem:[%s1 + $0x10] sm:$0x3]
  %v280 = vunpack.c.l.b16 %v147
  %v281 = vunpack.c.l.b16 %v148
  %v282 = vunpack.c.l.b16 %v149
  %v283 = vunpack.c.l.b16 %v150
  %v284 = vunpack.c.l.b16 %v151
  %v285 = vunpack.c.l.b16 %v152
  %v286 = vunpack.c.l.b16 %v153
  %v287 = vunpack.c.l.b16 %v154
  %v288 = vunpack.c.l.b16 %v155
  %v289 = vunpack.c.l.b16 %v156
  %v290 = vunpack.c.l.b16 %v157
  %v291 = vunpack.c.l.b16 %v158
  %v292 = vunpack.c.l.b16 %v159
  %v293 = vunpack.c.l.b16 %v160
  %v294 = vunpack.c.l.b16 %v161
  %v295 = vunpack.c.l.b16 %v162
  %v296 = vunpack.c.l.b16 %v163
  %v297 = vunpack.c.l.b16 %v164
  %v298 = vunpack.c.l.b16 %v165
  %v299 = vunpack.c.l.b16 %v166
  %v300 = vunpack.c.l.b16 %v167
  %v301 = vunpack.c.l.b16 %v168
  %v302 = vunpack.c.l.b16 %v169
  %v303 = vunpack.c.l.b16 %v170
  %v304 = vunpack.c.l.b16 %v171
  %v305 = vunpack.c.l.b16 %v172
  %v306 = vunpack.c.l.b16 %v173
  %v307 = vunpack.c.l.b16 %v174
  %v308 = vunpack.c.l.b16 %v175
  %v309 = vunpack.c.l.b16 %v176
  %v310 = vunpack.c.l.b16 %v177
  %v311 = vunpack.c.l.b16 %v178
  %v312 = vunpack.c.l.b16 %v179
  %v313 = vunpack.c.l.b16 %v180
  %v314 = vunpack.c.l.b16 %v181
  %v315 = vunpack.c.l.b16 %v182
  %v316 = vunpack.c.l.b16 %v183
  %v317 = vunpack.c.l.b16 %v184
  %v318 = vunpack.c.l.b16 %v185
  %v319 = vunpack.c.l.b16 %v186
  %v320 = vunpack.c.l.b16 %v187
  %v321 = vunpack.c.l.b16 %v188
  %v322 = vunpack.c.l.b16 %v189
  %v323 = vunpack.c.l.b16 %v190
  %v324 = vunpack.c.l.b16 %v191
  %v325 = vunpack.c.l.b16 %v192
  %v326 = vunpack.c.l.b16 %v193
  %v327 = vunpack.c.l.b16 %v194
  %v328 = vunpack.c.l.b16 %v195
  %v329 = vunpack.c.l.b16 %v196
  %v330 = vunpack.c.l.b16 %v197
  %v331 = vunpack.c.l.b16 %v198
  %v332 = vunpack.c.l.b16 %v199
  %v333 = vunpack.c.l.b16 %v200
  %v334 = vunpack.c.l.b16 %v201
  %v335 = vunpack.c.l.b16 %v202
  %v336 = vunpack.c.l.b16 %v203
  %v337 = vunpack.c.l.b16 %v204
  %v338 = vunpack.c.l.b16 %v205
  %v339 = vunpack.c.l.b16 %v206
  %v340 = vunpack.c.l.b16 %v207
  %v341 = vunpack.c.l.b16 %v208
  %v342 = vunpack.c.l.b16 %v209
  %v343 = vunpack.c.l.b16 %v210
  %v344 = vpack.c.b16 %v281, %v280
  %v345 = vpack.c.b16 %v283, %v282
  %v346 = vpack.c.b16 %v285, %v284
  %v347 = vpack.c.b16 %v287, %v286
  %v348 = vpack.c.b16 %v289, %v288
  %v349 = vpack.c.b16 %v291, %v290
  %v350 = vpack.c.b16 %v293, %v292
  %v351 = vpack.c.b16 %v295, %v294
  %v352 = vpack.c.b16 %v297, %v296
  %v353 = vpack.c.b16 %v299, %v298
  %v354 = vpack.c.b16 %v301, %v300
  %v355 = vpack.c.b16 %v303, %v302
  %v356 = vpack.c.b16 %v305, %v304
  %v357 = vpack.c.b16 %v307, %v306
  %v358 = vpack.c.b16 %v309, %v308
  %v359 = vpack.c.b16 %v311, %v310
  %v360 = vpack.c.b16 %v313, %v312
  %v361 = vpack.c.b16 %v315, %v314
  %v362 = vpack.c.b16 %v317, %v316
  %v363 = vpack.c.b16 %v319, %v318
  %v364 = vpack.c.b16 %v321, %v320
  %v365 = vpack.c.b16 %v323, %v322
  %v366 = vpack.c.b16 %v325, %v324
  %v367 = vpack.c.b16 %v327, %v326
  %v368 = vpack.c.b16 %v329, %v328
  %v369 = vpack.c.b16 %v331, %v330
  %v370 = vpack.c.b16 %v333, %v332
  %v371 = vpack.c.b16 %v335, %v334
  %v372 = vpack.c.b16 %v337, %v336
  %v373 = vpack.c.b16 %v339, %v338
  %v374 = vpack.c.b16 %v341, %v340
  %v375 = vpack.c.b16 %v343, %v342
  %v381 = vunpack.c.l.b16 %v211
  %v382 = vunpack.c.l.b16 %v212
  %v383 = vunpack.c.l.b16 %v213
  %v384 = vunpack.c.l.b16 %v214
  %v385 = vunpack.c.l.b16 %v215
  %v386 = vpack.c.b16 %v382, %v381
  %v387 = vpack.c.b16 %v384, %v383
  %v388 = vpack.c.b16 %v385, %v385
  %vm391 = vcmask 293888
  %v393 = vsel %vm391, %v344, 0
  %v396 = vsel %vm391, %v345, 0
  %v399 = vsel %vm391, %v346, 0
  %v402 = vsel %vm391, %v347, 0
  %v405 = vsel %vm391, %v348, 0
  %v408 = vsel %vm391, %v349, 0
  %v411 = vsel %vm391, %v350, 0
  %v414 = vsel %vm391, %v351, 0
  %v417 = vsel %vm391, %v352, 0
  %v420 = vsel %vm391, %v353, 0
  %v423 = vsel %vm391, %v354, 0
  %v426 = vsel %vm391, %v355, 0
  %v429 = vsel %vm391, %v356, 0
  %v432 = vsel %vm391, %v357, 0
  %v435 = vsel %vm391, %v358, 0
  %v438 = vsel %vm391, %v359, 0
  %v441 = vsel %vm391, %v360, 0
  %v444 = vsel %vm391, %v361, 0
  %v447 = vsel %vm391, %v362, 0
  %v450 = vsel %vm391, %v363, 0
  %v453 = vsel %vm391, %v364, 0
  %v456 = vsel %vm391, %v365, 0
  %v459 = vsel %vm391, %v366, 0
  %v462 = vsel %vm391, %v367, 0
  %v465 = vsel %vm391, %v368, 0
  %v468 = vsel %vm391, %v369, 0
  %v471 = vsel %vm391, %v370, 0
  %v474 = vsel %vm391, %v371, 0
  %v477 = vsel %vm391, %v372, 0
  %v480 = vsel %vm391, %v373, 0
  %v483 = vsel %vm391, %v374, 0
  %v486 = vsel %vm391, %v375, 0
  %vm488 = vcmask 1041408
  %v490 = vsel %vm488, %v388, 0
  %492 = vmatprep.subr.bf16.mxu0 0
  %493 = vmatpush1.bf16.msra.mxu0 %v386
  %494 = vmatprep.subr.bf16.mxu0 0
  %495 = vmatpush1.bf16.msra.mxu0 %v387
  %496 = vmatprep.subr.bf16.mxu0 0
  %497 = vmatpush1.bf16.msra.mxu0 %v490
  %498 = vmatprep.subr.bf16.mxu0 0
  %499 = vmatpush1.bf16.msra.mxu0 0
  %500 = vmatprep.subr.bf16.mxu0 0
  %501 = vmatpush1.bf16.msra.mxu0 0
  %502 = vmatprep.subr.bf16.mxu0 0
  %503 = vmatpush1.bf16.msra.mxu0 0
  %504 = vmatprep.subr.bf16.mxu0 0
  %505 = vmatpush1.bf16.msra.mxu0 0
  %506 = vmatprep.subr.bf16.mxu0 0
  %507 = vmatpush1.bf16.msra.mxu0 0
  %508 = vmatprep.subr.bf16.mxu0 0
  %509 = vmatpush1.bf16.msra.mxu0 0
  %510 = vmatprep.subr.bf16.mxu0 0
  %511 = vmatpush1.bf16.msra.mxu0 0
  %512 = vmatprep.subr.bf16.mxu0 0
  %513 = vmatpush1.bf16.msra.mxu0 0
  %514 = vmatprep.subr.bf16.mxu0 0
  %515 = vmatpush1.bf16.msra.mxu0 0
  %516 = vmatprep.subr.bf16.mxu0 0
  %517 = vmatpush1.bf16.msra.mxu0 0
  %518 = vmatprep.subr.bf16.mxu0 0
  %519 = vmatpush1.bf16.msra.mxu0 0
  %520 = vmatprep.subr.bf16.mxu0 0
  %521 = vmatpush1.bf16.msra.mxu0 0
  %522 = vmatprep.subr.bf16.mxu0 0
  %523 = vmatpush1.bf16.msra.mxu0 0
  %524 = vmatprep.mubr.bf16.mxu0 0
  %525 = vmatmul.mubr.bf16.gmra.mrb[0].mxu0 %v393
  %v526 = vpop.f32.mrb[0].mxu0
  %v527 = vadd.f32 0.0, %v526
  %v528 = vpop.f32.mrb[0].mxu0
  %v529 = vpop.f32.mrb[0].mxu0
  %v530 = vadd.f32 0.0, %v529
  %v531 = vpop.f32.mrb[0].mxu0
  %532 = vmatprep.mubr.bf16.mxu0 0
  %533 = vmatmul.mubr.bf16.gmra.mrb[0].mxu0 %v396
  %v534 = vpop.f32.mrb[0].mxu0
  %v535 = vadd.f32 0.0, %v534
  %v536 = vpop.f32.mrb[0].mxu0
  %v537 = vpop.f32.mrb[0].mxu0
  %v538 = vadd.f32 0.0, %v537
  %v539 = vpop.f32.mrb[0].mxu0
  %540 = vmatprep.mubr.bf16.mxu0 0
  %541 = vmatmul.mubr.bf16.gmra.mrb[0].mxu0 %v399
  %v542 = vpop.f32.mrb[0].mxu0
  %v543 = vadd.f32 0.0, %v542
  %v544 = vpop.f32.mrb[0].mxu0
  %v545 = vpop.f32.mrb[0].mxu0
  %v546 = vadd.f32 0.0, %v545
  %v547 = vpop.f32.mrb[0].mxu0
  %548 = vmatprep.mubr.bf16.mxu0 0
  %549 = vmatmul.mubr.bf16.gmra.mrb[0].mxu0 %v402
  %v550 = vpop.f32.mrb[0].mxu0
  %v551 = vadd.f32 0.0, %v550
  %v552 = vpop.f32.mrb[0].mxu0
  %v553 = vpop.f32.mrb[0].mxu0
  %v554 = vadd.f32 0.0, %v553
  %v555 = vpop.f32.mrb[0].mxu0
  %556 = vmatprep.mubr.bf16.mxu0 0
  %557 = vmatmul.mubr.bf16.gmra.mrb[0].mxu0 %v405
  %v558 = vpop.f32.mrb[0].mxu0
  %v559 = vadd.f32 0.0, %v558
  %v560 = vpop.f32.mrb[0].mxu0
  %v561 = vpop.f32.mrb[0].mxu0
  %v562 = vadd.f32 0.0, %v561
  %v563 = vpop.f32.mrb[0].mxu0
  %564 = vmatprep.mubr.bf16.mxu0 0
  %565 = vmatmul.mubr.bf16.gmra.mrb[0].mxu0 %v408
  %v566 = vpop.f32.mrb[0].mxu0
  %v567 = vadd.f32 0.0, %v566
  %v568 = vpop.f32.mrb[0].mxu0
  %v569 = vpop.f32.mrb[0].mxu0
  %v570 = vadd.f32 0.0, %v569
  %v571 = vpop.f32.mrb[0].mxu0
  %572 = vmatprep.mubr.bf16.mxu0 0
  %573 = vmatmul.mubr.bf16.gmra.mrb[0].mxu0 %v411
  %v574 = vpop.f32.mrb[0].mxu0
  %v575 = vadd.f32 0.0, %v574
  %v576 = vpop.f32.mrb[0].mxu0
  %v577 = vpop.f32.mrb[0].mxu0
  %v578 = vadd.f32 0.0, %v577
  %v579 = vpop.f32.mrb[0].mxu0
  %580 = vmatprep.mubr.bf16.mxu0 0
  %581 = vmatmul.mubr.bf16.gmra.mrb[0].mxu0 %v414
  %v582 = vpop.f32.mrb[0].mxu0
  %v583 = vadd.f32 0.0, %v582
  %v584 = vpop.f32.mrb[0].mxu0
  %v585 = vpop.f32.mrb[0].mxu0
  %v586 = vadd.f32 0.0, %v585
  %v587 = vpop.f32.mrb[0].mxu0
  %588 = vmatprep.mubr.bf16.mxu0 0
  %589 = vmatmul.mubr.bf16.gmra.mrb[0].mxu0 %v417
  %v590 = vpop.f32.mrb[0].mxu0
  %v591 = vadd.f32 0.0, %v590
  %v592 = vpop.f32.mrb[0].mxu0
  %v593 = vpop.f32.mrb[0].mxu0
  %v594 = vadd.f32 0.0, %v593
  %v595 = vpop.f32.mrb[0].mxu0
  %596 = vmatprep.mubr.bf16.mxu0 0
  %597 = vmatmul.mubr.bf16.gmra.mrb[0].mxu0 %v420
  %v598 = vpop.f32.mrb[0].mxu0
  %v599 = vadd.f32 0.0, %v598
  %v600 = vpop.f32.mrb[0].mxu0
  %v601 = vpop.f32.mrb[0].mxu0
  %v602 = vadd.f32 0.0, %v601
  %v603 = vpop.f32.mrb[0].mxu0
  %604 = vmatprep.mubr.bf16.mxu0 0
  %605 = vmatmul.mubr.bf16.gmra.mrb[0].mxu0 %v423
  %v606 = vpop.f32.mrb[0].mxu0
  %v607 = vadd.f32 0.0, %v606
  %v608 = vpop.f32.mrb[0].mxu0
  %v609 = vpop.f32.mrb[0].mxu0
  %v610 = vadd.f32 0.0, %v609
  %v611 = vpop.f32.mrb[0].mxu0
  %612 = vmatprep.mubr.bf16.mxu0 0
  %613 = vmatmul.mubr.bf16.gmra.mrb[0].mxu0 %v426
  %v614 = vpop.f32.mrb[0].mxu0
  %v615 = vadd.f32 0.0, %v614
  %v616 = vpop.f32.mrb[0].mxu0
  %v617 = vpop.f32.mrb[0].mxu0
  %v618 = vadd.f32 0.0, %v617
  %v619 = vpop.f32.mrb[0].mxu0
  %620 = vmatprep.mubr.bf16.mxu0 0
  %621 = vmatmul.mubr.bf16.gmra.mrb[0].mxu0 %v429
  %v622 = vpop.f32.mrb[0].mxu0
  %v623 = vadd.f32 0.0, %v622
  %v624 = vpop.f32.mrb[0].mxu0
  %v625 = vpop.f32.mrb[0].mxu0
  %v626 = vadd.f32 0.0, %v625
  %v627 = vpop.f32.mrb[0].mxu0
  %628 = vmatprep.mubr.bf16.mxu0 0
  %629 = vmatmul.mubr.bf16.gmra.mrb[0].mxu0 %v432
  %v630 = vpop.f32.mrb[0].mxu0
  %v631 = vadd.f32 0.0, %v630
  %v632 = vpop.f32.mrb[0].mxu0
  %v633 = vpop.f32.mrb[0].mxu0
  %v634 = vadd.f32 0.0, %v633
  %v635 = vpop.f32.mrb[0].mxu0
  %636 = vmatprep.mubr.bf16.mxu0 0
  %637 = vmatmul.mubr.bf16.gmra.mrb[0].mxu0 %v435
  %v638 = vpop.f32.mrb[0].mxu0
  %v639 = vadd.f32 0.0, %v638
  %v640 = vpop.f32.mrb[0].mxu0
  %v641 = vpop.f32.mrb[0].mxu0
  %v642 = vadd.f32 0.0, %v641
  %v643 = vpop.f32.mrb[0].mxu0
  %644 = vmatprep.mubr.bf16.mxu0 0
  %645 = vmatmul.mubr.bf16.gmra.mrb[0].mxu0 %v438
  %v646 = vpop.f32.mrb[0].mxu0
  %v647 = vadd.f32 0.0, %v646
  %v648 = vpop.f32.mrb[0].mxu0
  %v649 = vpop.f32.mrb[0].mxu0
  %v650 = vadd.f32 0.0, %v649
  %v651 = vpop.f32.mrb[0].mxu0
  %652 = vmatprep.mubr.bf16.mxu0 0
  %653 = vmatmul.mubr.bf16.gmra.mrb[0].mxu0 %v441
  %v654 = vpop.f32.mrb[0].mxu0
  %v655 = vadd.f32 0.0, %v654
  %v656 = vpop.f32.mrb[0].mxu0
  %v657 = vpop.f32.mrb[0].mxu0
  %v658 = vadd.f32 0.0, %v657
  %v659 = vpop.f32.mrb[0].mxu0
  %660 = vmatprep.mubr.bf16.mxu0 0
  %661 = vmatmul.mubr.bf16.gmra.mrb[0].mxu0 %v444
  %v662 = vpop.f32.mrb[0].mxu0
  %v663 = vadd.f32 0.0, %v662
  %v664 = vpop.f32.mrb[0].mxu0
  %v665 = vpop.f32.mrb[0].mxu0
  %v666 = vadd.f32 0.0, %v665
  %v667 = vpop.f32.mrb[0].mxu0
  %668 = vmatprep.mubr.bf16.mxu0 0
  %669 = vmatmul.mubr.bf16.gmra.mrb[0].mxu0 %v447
  %v670 = vpop.f32.mrb[0].mxu0
  %v671 = vadd.f32 0.0, %v670
  %v672 = vpop.f32.mrb[0].mxu0
  %v673 = vpop.f32.mrb[0].mxu0
  %v674 = vadd.f32 0.0, %v673
  %v675 = vpop.f32.mrb[0].mxu0
  %676 = vmatprep.mubr.bf16.mxu0 0
  %677 = vmatmul.mubr.bf16.gmra.mrb[0].mxu0 %v450
  %v678 = vpop.f32.mrb[0].mxu0
  %v679 = vadd.f32 0.0, %v678
  %v680 = vpop.f32.mrb[0].mxu0
  %v681 = vpop.f32.mrb[0].mxu0
  %v682 = vadd.f32 0.0, %v681
  %v683 = vpop.f32.mrb[0].mxu0
  %684 = vmatprep.mubr.bf16.mxu0 0
  %685 = vmatmul.mubr.bf16.gmra.mrb[0].mxu0 %v453
  %v686 = vpop.f32.mrb[0].mxu0
  %v687 = vadd.f32 0.0, %v686
  %v688 = vpop.f32.mrb[0].mxu0
  %v689 = vpop.f32.mrb[0].mxu0
  %v690 = vadd.f32 0.0, %v689
  %v691 = vpop.f32.mrb[0].mxu0
  %692 = vmatprep.mubr.bf16.mxu0 0
  %693 = vmatmul.mubr.bf16.gmra.mrb[0].mxu0 %v456
  %v694 = vpop.f32.mrb[0].mxu0
  %v695 = vadd.f32 0.0, %v694
  %v696 = vpop.f32.mrb[0].mxu0
  %v697 = vpop.f32.mrb[0].mxu0
  %v698 = vadd.f32 0.0, %v697
  %v699 = vpop.f32.mrb[0].mxu0
  %700 = vmatprep.mubr.bf16.mxu0 0
  %701 = vmatmul.mubr.bf16.gmra.mrb[0].mxu0 %v459
  %v702 = vpop.f32.mrb[0].mxu0
  %v703 = vadd.f32 0.0, %v702
  %v704 = vpop.f32.mrb[0].mxu0
  %v705 = vpop.f32.mrb[0].mxu0
  %v706 = vadd.f32 0.0, %v705
  %v707 = vpop.f32.mrb[0].mxu0
  %708 = vmatprep.mubr.bf16.mxu0 0
  %709 = vmatmul.mubr.bf16.gmra.mrb[0].mxu0 %v462
  %v710 = vpop.f32.mrb[0].mxu0
  %v711 = vadd.f32 0.0, %v710
  %v712 = vpop.f32.mrb[0].mxu0
  %v713 = vpop.f32.mrb[0].mxu0
  %v714 = vadd.f32 0.0, %v713
  %v715 = vpop.f32.mrb[0].mxu0
  %716 = vmatprep.mubr.bf16.mxu0 0
  %717 = vmatmul.mubr.bf16.gmra.mrb[0].mxu0 %v465
  %v718 = vpop.f32.mrb[0].mxu0
  %v719 = vadd.f32 0.0, %v718
  %v720 = vpop.f32.mrb[0].mxu0
  %v721 = vpop.f32.mrb[0].mxu0
  %v722 = vadd.f32 0.0, %v721
  %v723 = vpop.f32.mrb[0].mxu0
  %724 = vmatprep.mubr.bf16.mxu0 0
  %725 = vmatmul.mubr.bf16.gmra.mrb[0].mxu0 %v468
  %v726 = vpop.f32.mrb[0].mxu0
  %v727 = vadd.f32 0.0, %v726
  %v728 = vpop.f32.mrb[0].mxu0
  %v729 = vpop.f32.mrb[0].mxu0
  %v730 = vadd.f32 0.0, %v729
  %v731 = vpop.f32.mrb[0].mxu0
  %732 = vmatprep.mubr.bf16.mxu0 0
  %733 = vmatmul.mubr.bf16.gmra.mrb[0].mxu0 %v471
  %v734 = vpop.f32.mrb[0].mxu0
  %v735 = vadd.f32 0.0, %v734
  %v736 = vpop.f32.mrb[0].mxu0
  %v737 = vpop.f32.mrb[0].mxu0
  %v738 = vadd.f32 0.0, %v737
  %v739 = vpop.f32.mrb[0].mxu0
  %740 = vmatprep.mubr.bf16.mxu0 0
  %741 = vmatmul.mubr.bf16.gmra.mrb[0].mxu0 %v474
  %v742 = vpop.f32.mrb[0].mxu0
  %v743 = vadd.f32 0.0, %v742
  %v744 = vpop.f32.mrb[0].mxu0
  %v745 = vpop.f32.mrb[0].mxu0
  %v746 = vadd.f32 0.0, %v745
  %v747 = vpop.f32.mrb[0].mxu0
  %748 = vmatprep.mubr.bf16.mxu0 0
  %749 = vmatmul.mubr.bf16.gmra.mrb[0].mxu0 %v477
  %v750 = vpop.f32.mrb[0].mxu0
  %v751 = vadd.f32 0.0, %v750
  %v752 = vpop.f32.mrb[0].mxu0
  %v753 = vpop.f32.mrb[0].mxu0
  %v754 = vadd.f32 0.0, %v753
  %v755 = vpop.f32.mrb[0].mxu0
  %756 = vmatprep.mubr.bf16.mxu0 0
  %757 = vmatmul.mubr.bf16.gmra.mrb[0].mxu0 %v480
  %v758 = vpop.f32.mrb[0].mxu0
  %v759 = vadd.f32 0.0, %v758
  %v760 = vpop.f32.mrb[0].mxu0
  %v761 = vpop.f32.mrb[0].mxu0
  %v762 = vadd.f32 0.0, %v761
  %v763 = vpop.f32.mrb[0].mxu0
  %764 = vmatprep.mubr.bf16.mxu0 0
  %765 = vmatmul.mubr.bf16.gmra.mrb[0].mxu0 %v483
  %v766 = vpop.f32.mrb[0].mxu0
  %v767 = vadd.f32 0.0, %v766
  %v768 = vpop.f32.mrb[0].mxu0
  %v769 = vpop.f32.mrb[0].mxu0
  %v770 = vadd.f32 0.0, %v769
  %v771 = vpop.f32.mrb[0].mxu0
  %772 = vmatprep.mubr.bf16.mxu0 0
  %773 = vmatmul.mubr.bf16.gmra.mrb[0].mxu0 %v486
  %v774 = vpop.f32.mrb[0].mxu0
  %v775 = vadd.f32 0.0, %v774
  %v776 = vpop.f32.mrb[0].mxu0
  %v777 = vpop.f32.mrb[0].mxu0
  %v778 = vadd.f32 0.0, %v777
  %v779 = vpop.f32.mrb[0].mxu0
  %780 = vdwg.mxu0
  %v781 = vadd.f32 %v83, %v527
  %v782 = vadd.f32 %v84, %v530
  %v783 = vadd.f32 %v85, %v535
  %v784 = vadd.f32 %v86, %v538
  %v785 = vadd.f32 %v87, %v543
  %v786 = vadd.f32 %v88, %v546
  %v787 = vadd.f32 %v89, %v551
  %v788 = vadd.f32 %v90, %v554
  %v789 = vadd.f32 %v91, %v559
  %v790 = vadd.f32 %v92, %v562
  %v791 = vadd.f32 %v93, %v567
  %v792 = vadd.f32 %v94, %v570
  %v793 = vadd.f32 %v95, %v575
  %v794 = vadd.f32 %v96, %v578
  %v795 = vadd.f32 %v97, %v583
  %v796 = vadd.f32 %v98, %v586
  %v797 = vadd.f32 %v99, %v591
  %v798 = vadd.f32 %v100, %v594
  %v799 = vadd.f32 %v101, %v599
  %v800 = vadd.f32 %v102, %v602
  %v801 = vadd.f32 %v103, %v607
  %v802 = vadd.f32 %v104, %v610
  %v803 = vadd.f32 %v105, %v615
  %v804 = vadd.f32 %v106, %v618
  %v805 = vadd.f32 %v107, %v623
  %v806 = vadd.f32 %v108, %v626
  %v807 = vadd.f32 %v109, %v631
  %v808 = vadd.f32 %v110, %v634
  %v809 = vadd.f32 %v111, %v639
  %v810 = vadd.f32 %v112, %v642
  %v811 = vadd.f32 %v113, %v647
  %v812 = vadd.f32 %v114, %v650
  %v813 = vadd.f32 %v115, %v655
  %v814 = vadd.f32 %v116, %v658
  %v815 = vadd.f32 %v117, %v663
  %v816 = vadd.f32 %v118, %v666
  %v817 = vadd.f32 %v119, %v671
  %v818 = vadd.f32 %v120, %v674
  %v819 = vadd.f32 %v121, %v679
  %v820 = vadd.f32 %v122, %v682
  %v821 = vadd.f32 %v123, %v687
  %v822 = vadd.f32 %v124, %v690
  %v823 = vadd.f32 %v125, %v695
  %v824 = vadd.f32 %v126, %v698
  %v825 = vadd.f32 %v127, %v703
  %v826 = vadd.f32 %v128, %v706
  %v827 = vadd.f32 %v129, %v711
  %v828 = vadd.f32 %v130, %v714
  %v829 = vadd.f32 %v131, %v719
  %v830 = vadd.f32 %v132, %v722
  %v831 = vadd.f32 %v133, %v727
  %v832 = vadd.f32 %v134, %v730
  %v833 = vadd.f32 %v135, %v735
  %v834 = vadd.f32 %v136, %v738
  %v835 = vadd.f32 %v137, %v743
  %v836 = vadd.f32 %v138, %v746
  %v837 = vadd.f32 %v139, %v751
  %v838 = vadd.f32 %v140, %v754
  %v839 = vadd.f32 %v141, %v759
  %v840 = vadd.f32 %v142, %v762
  %v841 = vadd.f32 %v143, %v767
  %v842 = vadd.f32 %v144, %v770
  %v843 = vadd.f32 %v145, %v775
  %v844 = vadd.f32 %v146, %v778
  %845 = vst [vmem:[#allocation2] sm:$0xff] %v781
  %846 = vst [vmem:[#allocation2 + $0x8] sm:$0xff] %v782
  %847 = vst [vmem:[#allocation2 + $0x10] sm:$0xff] %v783
  %848 = vst [vmem:[#allocation2 + $0x18] sm:$0xff] %v784
  %849 = vst [vmem:[#allocation2 + $0x20] sm:$0xff] %v785
  %850 = vst [vmem:[#allocation2 + $0x28] sm:$0xff] %v786
  %851 = vst [vmem:[#allocation2 + $0x30] sm:$0xff] %v787
  %852 = vst [vmem:[#allocation2 + $0x38] sm:$0xff] %v788
  %853 = vst [vmem:[#allocation2 + $0x40] sm:$0xff] %v789
  %854 = vst [vmem:[#allocation2 + $0x48] sm:$0xff] %v790
  %855 = vst [vmem:[#allocation2 + $0x50] sm:$0xff] %v791
  %856 = vst [vmem:[#allocation2 + $0x58] sm:$0xff] %v792
  %857 = vst [vmem:[#allocation2 + $0x60] sm:$0xff] %v793
  %858 = vst [vmem:[#allocation2 + $0x68] sm:$0xff] %v794
  %859 = vst [vmem:[#allocation2 + $0x70] sm:$0xff] %v795
  %860 = vst [vmem:[#allocation2 + $0x78] sm:$0xff] %v796
  %861 = vst [vmem:[#allocation2 + $0x80] sm:$0xff] %v797
  %862 = vst [vmem:[#allocation2 + $0x88] sm:$0xff] %v798
  %863 = vst [vmem:[#allocation2 + $0x90] sm:$0xff] %v799
  %864 = vst [vmem:[#allocation2 + $0x98] sm:$0xff] %v800
  %865 = vst [vmem:[#allocation2 + $0xa0] sm:$0xff] %v801
  %866 = vst [vmem:[#allocation2 + $0xa8] sm:$0xff] %v802
  %867 = vst [vmem:[#allocation2 + $0xb0] sm:$0xff] %v803
  %868 = vst [vmem:[#allocation2 + $0xb8] sm:$0xff] %v804
  %869 = vst [vmem:[#allocation2 + $0xc0] sm:$0xff] %v805
  %870 = vst [vmem:[#allocation2 + $0xc8] sm:$0xff] %v806
  %871 = vst [vmem:[#allocation2 + $0xd0] sm:$0xff] %v807
  %872 = vst [vmem:[#allocation2 + $0xd8] sm:$0xff] %v808
  %873 = vst [vmem:[#allocation2 + $0xe0] sm:$0xff] %v809
  %874 = vst [vmem:[#allocation2 + $0xe8] sm:$0xff] %v810
  %875 = vst [vmem:[#allocation2 + $0xf0] sm:$0xff] %v811
  %876 = vst [vmem:[#allocation2 + $0xf8] sm:$0xff] %v812
  %877 = vst [vmem:[#allocation2 + $0x100] sm:$0xff] %v813
  %878 = vst [vmem:[#allocation2 + $0x108] sm:$0xff] %v814
  %879 = vst [vmem:[#allocation2 + $0x110] sm:$0xff] %v815
  %880 = vst [vmem:[#allocation2 + $0x118] sm:$0xff] %v816
  %881 = vst [vmem:[#allocation2 + $0x120] sm:$0xff] %v817
  %882 = vst [vmem:[#allocation2 + $0x128] sm:$0xff] %v818
  %883 = vst [vmem:[#allocation2 + $0x130] sm:$0xff] %v819
  %884 = vst [vmem:[#allocation2 + $0x138] sm:$0xff] %v820
  %885 = vst [vmem:[#allocation2 + $0x140] sm:$0xff] %v821
  %886 = vst [vmem:[#allocation2 + $0x148] sm:$0xff] %v822
  %887 = vst [vmem:[#allocation2 + $0x150] sm:$0xff] %v823
  %888 = vst [vmem:[#allocation2 + $0x158] sm:$0xff] %v824
  %889 = vst [vmem:[#allocation2 + $0x160] sm:$0xff] %v825
  %890 = vst [vmem:[#allocation2 + $0x168] sm:$0xff] %v826
  %891 = vst [vmem:[#allocation2 + $0x170] sm:$0xff] %v827
  %892 = vst [vmem:[#allocation2 + $0x178] sm:$0xff] %v828
  %893 = vst [vmem:[#allocation2 + $0x180] sm:$0xff] %v829
  %894 = vst [vmem:[#allocation2 + $0x188] sm:$0xff] %v830
  %895 = vst [vmem:[#allocation2 + $0x190] sm:$0xff] %v831
  %896 = vst [vmem:[#allocation2 + $0x198] sm:$0xff] %v832
  %897 = vst [vmem:[#allocation2 + $0x1a0] sm:$0xff] %v833
  %898 = vst [vmem:[#allocation2 + $0x1a8] sm:$0xff] %v834
  %899 = vst [vmem:[#allocation2 + $0x1b0] sm:$0xff] %v835
  %900 = vst [vmem:[#allocation2 + $0x1b8] sm:$0xff] %v836
  %901 = vst [vmem:[#allocation2 + $0x1c0] sm:$0xff] %v837
  %902 = vst [vmem:[#allocation2 + $0x1c8] sm:$0xff] %v838
  %903 = vst [vmem:[#allocation2 + $0x1d0] sm:$0xff] %v839
  %904 = vst [vmem:[#allocation2 + $0x1d8] sm:$0xff] %v840
  %905 = vst [vmem:[#allocation2 + $0x1e0] sm:$0xff] %v841
  %906 = vst [vmem:[#allocation2 + $0x1e8] sm:$0xff] %v842
  %907 = vst [vmem:[#allocation2 + $0x1f0] sm:$0xff] %v843
  %908 = vst [vmem:[#allocation2 + $0x1f8] sm:$0xff] %v844
  // Predicated region
  $region18: #{modified_resnet_forward.25} parent=0 // pred_check
    %p909 = pneg %p15
  $region19: #{modified_resnet_forward.25} parent=0 // pred_check_branch
    %911 = sbr.rel (%p909) target = $region21
  $region20: #{modified_resnet_forward.25} parent=0 // pred_region
    %v912 = vld [vmem:[#allocation2] sm:$0xff]
    %v913 = vld [vmem:[#allocation2 + $0x8] sm:$0xff]
    %v914 = vld [vmem:[#allocation2 + $0x10] sm:$0xff]
    %v915 = vld [vmem:[#allocation2 + $0x18] sm:$0xff]
    %v916 = vld [vmem:[#allocation2 + $0x20] sm:$0xff]
    %v917 = vld [vmem:[#allocation2 + $0x28] sm:$0xff]
    %v918 = vld [vmem:[#allocation2 + $0x30] sm:$0xff]
    %v919 = vld [vmem:[#allocation2 + $0x38] sm:$0xff]
    %v920 = vld [vmem:[#allocation2 + $0x40] sm:$0xff]
    %v921 = vld [vmem:[#allocation2 + $0x48] sm:$0xff]
    %v922 = vld [vmem:[#allocation2 + $0x50] sm:$0xff]
    %v923 = vld [vmem:[#allocation2 + $0x58] sm:$0xff]
    %v924 = vld [vmem:[#allocation2 + $0x60] sm:$0xff]
    %v925 = vld [vmem:[#allocation2 + $0x68] sm:$0xff]
    %v926 = vld [vmem:[#allocation2 + $0x70] sm:$0xff]
    %v927 = vld [vmem:[#allocation2 + $0x78] sm:$0xff]
    %v928 = vld [vmem:[#allocation2 + $0x80] sm:$0xff]
    %v929 = vld [vmem:[#allocation2 + $0x88] sm:$0xff]
    %v930 = vld [vmem:[#allocation2 + $0x90] sm:$0xff]
    %v931 = vld [vmem:[#allocation2 + $0x98] sm:$0xff]
    %v932 = vld [vmem:[#allocation2 + $0xa0] sm:$0xff]
    %v933 = vld [vmem:[#allocation2 + $0xa8] sm:$0xff]
    %v934 = vld [vmem:[#allocation2 + $0xb0] sm:$0xff]
    %v935 = vld [vmem:[#allocation2 + $0xb8] sm:$0xff]
    %v936 = vld [vmem:[#allocation2 + $0xc0] sm:$0xff]
    %v937 = vld [vmem:[#allocation2 + $0xc8] sm:$0xff]
    %v938 = vld [vmem:[#allocation2 + $0xd0] sm:$0xff]
    %v939 = vld [vmem:[#allocation2 + $0xd8] sm:$0xff]
    %v940 = vld [vmem:[#allocation2 + $0xe0] sm:$0xff]
    %v941 = vld [vmem:[#allocation2 + $0xe8] sm:$0xff]
    %v942 = vld [vmem:[#allocation2 + $0xf0] sm:$0xff]
    %v943 = vld [vmem:[#allocation2 + $0xf8] sm:$0xff]
    %v944 = vld [vmem:[#allocation2 + $0x100] sm:$0xff]
    %v945 = vld [vmem:[#allocation2 + $0x108] sm:$0xff]
    %v946 = vld [vmem:[#allocation2 + $0x110] sm:$0xff]
    %v947 = vld [vmem:[#allocation2 + $0x118] sm:$0xff]
    %v948 = vld [vmem:[#allocation2 + $0x120] sm:$0xff]
    %v949 = vld [vmem:[#allocation2 + $0x128] sm:$0xff]
    %v950 = vld [vmem:[#allocation2 + $0x130] sm:$0xff]
    %v951 = vld [vmem:[#allocation2 + $0x138] sm:$0xff]
    %v952 = vld [vmem:[#allocation2 + $0x140] sm:$0xff]
    %v953 = vld [vmem:[#allocation2 + $0x148] sm:$0xff]
    %v954 = vld [vmem:[#allocation2 + $0x150] sm:$0xff]
    %v955 = vld [vmem:[#allocation2 + $0x158] sm:$0xff]
    %v956 = vld [vmem:[#allocation2 + $0x160] sm:$0xff]
    %v957 = vld [vmem:[#allocation2 + $0x168] sm:$0xff]
    %v958 = vld [vmem:[#allocation2 + $0x170] sm:$0xff]
    %v959 = vld [vmem:[#allocation2 + $0x178] sm:$0xff]
    %v960 = vld [vmem:[#allocation2 + $0x180] sm:$0xff]
    %v961 = vld [vmem:[#allocation2 + $0x188] sm:$0xff]
    %v962 = vld [vmem:[#allocation2 + $0x190] sm:$0xff]
    %v963 = vld [vmem:[#allocation2 + $0x198] sm:$0xff]
    %v964 = vld [vmem:[#allocation2 + $0x1a0] sm:$0xff]
    %v965 = vld [vmem:[#allocation2 + $0x1a8] sm:$0xff]
    %v966 = vld [vmem:[#allocation2 + $0x1b0] sm:$0xff]
    %v967 = vld [vmem:[#allocation2 + $0x1b8] sm:$0xff]
    %v968 = vld [vmem:[#allocation2 + $0x1c0] sm:$0xff]
    %v969 = vld [vmem:[#allocation2 + $0x1c8] sm:$0xff]
    %v970 = vld [vmem:[#allocation2 + $0x1d0] sm:$0xff]
    %v971 = vld [vmem:[#allocation2 + $0x1d8] sm:$0xff]
    %v972 = vld [vmem:[#allocation2 + $0x1e0] sm:$0xff]
    %v973 = vld [vmem:[#allocation2 + $0x1e8] sm:$0xff]
    %v974 = vld [vmem:[#allocation2 + $0x1f0] sm:$0xff]
    %v975 = vld [vmem:[#allocation2 + $0x1f8] sm:$0xff]
    %v976 = vld [vmem:[%s2] sm:$0x1]
    %v978 = vlaneseq
    %v979 = vshrl.u32 %v978, 7
    %v980 = vsub.s32 0, %v979
    %v981 = vrot.slane %v976, %v980
    %v983 = vadd.f32 %v912, %v981
    %v984 = vadd.f32 %v913, %v981
    %v985 = vadd.f32 %v914, %v981
    %v986 = vadd.f32 %v915, %v981
    %v987 = vadd.f32 %v916, %v981
    %v988 = vadd.f32 %v917, %v981
    %v989 = vadd.f32 %v918, %v981
    %v990 = vadd.f32 %v919, %v981
    %v991 = vadd.f32 %v920, %v981
    %v992 = vadd.f32 %v921, %v981
    %v993 = vadd.f32 %v922, %v981
    %v994 = vadd.f32 %v923, %v981
    %v995 = vadd.f32 %v924, %v981
    %v996 = vadd.f32 %v925, %v981
    %v997 = vadd.f32 %v926, %v981
    %v998 = vadd.f32 %v927, %v981
    %v999 = vadd.f32 %v928, %v981
    %v1000 = vadd.f32 %v929, %v981
    %v1001 = vadd.f32 %v930, %v981
    %v1002 = vadd.f32 %v931, %v981
    %v1003 = vadd.f32 %v932, %v981
    %v1004 = vadd.f32 %v933, %v981
    %v1005 = vadd.f32 %v934, %v981
    %v1006 = vadd.f32 %v935, %v981
    %v1007 = vadd.f32 %v936, %v981
    %v1008 = vadd.f32 %v937, %v981
    %v1009 = vadd.f32 %v938, %v981
    %v1010 = vadd.f32 %v939, %v981
    %v1011 = vadd.f32 %v940, %v981
    %v1012 = vadd.f32 %v941, %v981
    %v1013 = vadd.f32 %v942, %v981
    %v1014 = vadd.f32 %v943, %v981
    %v1015 = vadd.f32 %v944, %v981
    %v1016 = vadd.f32 %v945, %v981
    %v1017 = vadd.f32 %v946, %v981
    %v1018 = vadd.f32 %v947, %v981
    %v1019 = vadd.f32 %v948, %v981
    %v1020 = vadd.f32 %v949, %v981
    %v1021 = vadd.f32 %v950, %v981
    %v1022 = vadd.f32 %v951, %v981
    %v1023 = vadd.f32 %v952, %v981
    %v1024 = vadd.f32 %v953, %v981
    %v1025 = vadd.f32 %v954, %v981
    %v1026 = vadd.f32 %v955, %v981
    %v1027 = vadd.f32 %v956, %v981
    %v1028 = vadd.f32 %v957, %v981
    %v1029 = vadd.f32 %v958, %v981
    %v1030 = vadd.f32 %v959, %v981
    %v1031 = vadd.f32 %v960, %v981
    %v1032 = vadd.f32 %v961, %v981
    %v1033 = vadd.f32 %v962, %v981
    %v1034 = vadd.f32 %v963, %v981
    %v1035 = vadd.f32 %v964, %v981
    %v1036 = vadd.f32 %v965, %v981
    %v1037 = vadd.f32 %v966, %v981
    %v1038 = vadd.f32 %v967, %v981
    %v1039 = vadd.f32 %v968, %v981
    %v1040 = vadd.f32 %v969, %v981
    %v1041 = vadd.f32 %v970, %v981
    %v1042 = vadd.f32 %v971, %v981
    %v1043 = vadd.f32 %v972, %v981
    %v1044 = vadd.f32 %v973, %v981
    %v1045 = vadd.f32 %v974, %v981
    %v1046 = vadd.f32 %v975, %v981
    %v1047 = vmax.f32 %v983, 0.0
    %v1048 = vmax.f32 %v984, 0.0
    %v1049 = vmax.f32 %v985, 0.0
    %v1050 = vmax.f32 %v986, 0.0
    %v1051 = vmax.f32 %v987, 0.0
    %v1052 = vmax.f32 %v988, 0.0
    %v1053 = vmax.f32 %v989, 0.0
    %v1054 = vmax.f32 %v990, 0.0
    %v1055 = vmax.f32 %v991, 0.0
    %v1056 = vmax.f32 %v992, 0.0
    %v1057 = vmax.f32 %v993, 0.0
    %v1058 = vmax.f32 %v994, 0.0
    %v1059 = vmax.f32 %v995, 0.0
    %v1060 = vmax.f32 %v996, 0.0
    %v1061 = vmax.f32 %v997, 0.0
    %v1062 = vmax.f32 %v998, 0.0
    %v1063 = vmax.f32 %v999, 0.0
    %v1064 = vmax.f32 %v1000, 0.0
    %v1065 = vmax.f32 %v1001, 0.0
    %v1066 = vmax.f32 %v1002, 0.0
    %v1067 = vmax.f32 %v1003, 0.0
    %v1068 = vmax.f32 %v1004, 0.0
    %v1069 = vmax.f32 %v1005, 0.0
    %v1070 = vmax.f32 %v1006, 0.0
    %v1071 = vmax.f32 %v1007, 0.0
    %v1072 = vmax.f32 %v1008, 0.0
    %v1073 = vmax.f32 %v1009, 0.0
    %v1074 = vmax.f32 %v1010, 0.0
    %v1075 = vmax.f32 %v1011, 0.0
    %v1076 = vmax.f32 %v1012, 0.0
    %v1077 = vmax.f32 %v1013, 0.0
    %v1078 = vmax.f32 %v1014, 0.0
    %v1079 = vmax.f32 %v1015, 0.0
    %v1080 = vmax.f32 %v1016, 0.0
    %v1081 = vmax.f32 %v1017, 0.0
    %v1082 = vmax.f32 %v1018, 0.0
    %v1083 = vmax.f32 %v1019, 0.0
    %v1084 = vmax.f32 %v1020, 0.0
    %v1085 = vmax.f32 %v1021, 0.0
    %v1086 = vmax.f32 %v1022, 0.0
    %v1087 = vmax.f32 %v1023, 0.0
    %v1088 = vmax.f32 %v1024, 0.0
    %v1089 = vmax.f32 %v1025, 0.0
    %v1090 = vmax.f32 %v1026, 0.0
    %v1091 = vmax.f32 %v1027, 0.0
    %v1092 = vmax.f32 %v1028, 0.0
    %v1093 = vmax.f32 %v1029, 0.0
    %v1094 = vmax.f32 %v1030, 0.0
    %v1095 = vmax.f32 %v1031, 0.0
    %v1096 = vmax.f32 %v1032, 0.0
    %v1097 = vmax.f32 %v1033, 0.0
    %v1098 = vmax.f32 %v1034, 0.0
    %v1099 = vmax.f32 %v1035, 0.0
    %v1100 = vmax.f32 %v1036, 0.0
    %v1101 = vmax.f32 %v1037, 0.0
    %v1102 = vmax.f32 %v1038, 0.0
    %v1103 = vmax.f32 %v1039, 0.0
    %v1104 = vmax.f32 %v1040, 0.0
    %v1105 = vmax.f32 %v1041, 0.0
    %v1106 = vmax.f32 %v1042, 0.0
    %v1107 = vmax.f32 %v1043, 0.0
    %v1108 = vmax.f32 %v1044, 0.0
    %v1109 = vmax.f32 %v1045, 0.0
    %v1110 = vmax.f32 %v1046, 0.0
    %v1111 = vpack.c.bf16 %v1048, %v1047
    %v1112 = vpack.c.bf16 %v1050, %v1049
    %v1113 = vpack.c.bf16 %v1052, %v1051
    %v1114 = vpack.c.bf16 %v1054, %v1053
    %v1115 = vpack.c.bf16 %v1056, %v1055
    %v1116 = vpack.c.bf16 %v1058, %v1057
    %v1117 = vpack.c.bf16 %v1060, %v1059
    %v1118 = vpack.c.bf16 %v1062, %v1061
    %v1119 = vpack.c.bf16 %v1064, %v1063
    %v1120 = vpack.c.bf16 %v1066, %v1065
    %v1121 = vpack.c.bf16 %v1068, %v1067
    %v1122 = vpack.c.bf16 %v1070, %v1069
    %v1123 = vpack.c.bf16 %v1072, %v1071
    %v1124 = vpack.c.bf16 %v1074, %v1073
    %v1125 = vpack.c.bf16 %v1076, %v1075
    %v1126 = vpack.c.bf16 %v1078, %v1077
    %v1127 = vpack.c.bf16 %v1080, %v1079
    %v1128 = vpack.c.bf16 %v1082, %v1081
    %v1129 = vpack.c.bf16 %v1084, %v1083
    %v1130 = vpack.c.bf16 %v1086, %v1085
    %v1131 = vpack.c.bf16 %v1088, %v1087
    %v1132 = vpack.c.bf16 %v1090, %v1089
    %v1133 = vpack.c.bf16 %v1092, %v1091
    %v1134 = vpack.c.bf16 %v1094, %v1093
    %v1135 = vpack.c.bf16 %v1096, %v1095
    %v1136 = vpack.c.bf16 %v1098, %v1097
    %v1137 = vpack.c.bf16 %v1100, %v1099
    %v1138 = vpack.c.bf16 %v1102, %v1101
    %v1139 = vpack.c.bf16 %v1104, %v1103
    %v1140 = vpack.c.bf16 %v1106, %v1105
    %v1141 = vpack.c.bf16 %v1108, %v1107
    %v1142 = vpack.c.bf16 %v1110, %v1109
    %v1175 = vunpack.c.l.b16 %v1111
    %v1176 = vunpack.c.h.b16 %v1111
    %v1177 = vunpack.c.l.b16 %v1112
    %v1178 = vunpack.c.h.b16 %v1112
    %v1179 = vunpack.c.l.b16 %v1113
    %v1180 = vunpack.c.h.b16 %v1113
    %v1181 = vunpack.c.l.b16 %v1114
    %v1182 = vunpack.c.h.b16 %v1114
    %v1183 = vunpack.c.l.b16 %v1115
    %v1184 = vunpack.c.h.b16 %v1115
    %v1185 = vunpack.c.l.b16 %v1116
    %v1186 = vunpack.c.h.b16 %v1116
    %v1187 = vunpack.c.l.b16 %v1117
    %v1188 = vunpack.c.h.b16 %v1117
    %v1189 = vunpack.c.l.b16 %v1118
    %v1190 = vunpack.c.h.b16 %v1118
    %v1191 = vunpack.c.l.b16 %v1119
    %v1192 = vunpack.c.h.b16 %v1119
    %v1193 = vunpack.c.l.b16 %v1120
    %v1194 = vunpack.c.h.b16 %v1120
    %v1195 = vunpack.c.l.b16 %v1121
    %v1196 = vunpack.c.h.b16 %v1121
    %v1197 = vunpack.c.l.b16 %v1122
    %v1198 = vunpack.c.h.b16 %v1122
    %v1199 = vunpack.c.l.b16 %v1123
    %v1200 = vunpack.c.h.b16 %v1123
    %v1201 = vunpack.c.l.b16 %v1124
    %v1202 = vunpack.c.h.b16 %v1124
    %v1203 = vunpack.c.l.b16 %v1125
    %v1204 = vunpack.c.h.b16 %v1125
    %v1205 = vunpack.c.l.b16 %v1126
    %v1206 = vunpack.c.h.b16 %v1126
    %v1207 = vunpack.c.l.b16 %v1127
    %v1208 = vunpack.c.h.b16 %v1127
    %v1209 = vunpack.c.l.b16 %v1128
    %v1210 = vunpack.c.h.b16 %v1128
    %v1211 = vunpack.c.l.b16 %v1129
    %v1212 = vunpack.c.h.b16 %v1129
    %v1213 = vunpack.c.l.b16 %v1130
    %v1214 = vunpack.c.h.b16 %v1130
    %v1215 = vunpack.c.l.b16 %v1131
    %v1216 = vunpack.c.h.b16 %v1131
    %v1217 = vunpack.c.l.b16 %v1132
    %v1218 = vunpack.c.h.b16 %v1132
    %v1219 = vunpack.c.l.b16 %v1133
    %v1220 = vunpack.c.h.b16 %v1133
    %v1221 = vunpack.c.l.b16 %v1134
    %v1222 = vunpack.c.h.b16 %v1134
    %v1223 = vunpack.c.l.b16 %v1135
    %v1224 = vunpack.c.h.b16 %v1135
    %v1225 = vunpack.c.l.b16 %v1136
    %v1226 = vunpack.c.h.b16 %v1136
    %v1227 = vunpack.c.l.b16 %v1137
    %v1228 = vunpack.c.h.b16 %v1137
    %v1229 = vunpack.c.l.b16 %v1138
    %v1230 = vunpack.c.h.b16 %v1138
    %v1231 = vunpack.c.l.b16 %v1139
    %v1232 = vunpack.c.h.b16 %v1139
    %v1233 = vunpack.c.l.b16 %v1140
    %v1234 = vunpack.c.h.b16 %v1140
    %v1235 = vunpack.c.l.b16 %v1141
    %v1236 = vunpack.c.h.b16 %v1141
    %v1237 = vunpack.c.l.b16 %v1142
    %v1238 = vunpack.c.h.b16 %v1142
    %v1239 = vpack.c.b16 %v1175, %v1175
    %v1240 = vpack.c.b16 %v1176, %v1176
    %v1241 = vpack.c.b16 %v1177, %v1177
    %v1242 = vpack.c.b16 %v1178, %v1178
    %v1243 = vpack.c.b16 %v1179, %v1179
    %v1244 = vpack.c.b16 %v1180, %v1180
    %v1245 = vpack.c.b16 %v1181, %v1181
    %v1246 = vpack.c.b16 %v1182, %v1182
    %v1247 = vpack.c.b16 %v1183, %v1183
    %v1248 = vpack.c.b16 %v1184, %v1184
    %v1249 = vpack.c.b16 %v1185, %v1185
    %v1250 = vpack.c.b16 %v1186, %v1186
    %v1251 = vpack.c.b16 %v1187, %v1187
    %v1252 = vpack.c.b16 %v1188, %v1188
    %v1253 = vpack.c.b16 %v1189, %v1189
    %v1254 = vpack.c.b16 %v1190, %v1190
    %v1255 = vpack.c.b16 %v1191, %v1191
    %v1256 = vpack.c.b16 %v1192, %v1192
    %v1257 = vpack.c.b16 %v1193, %v1193
    %v1258 = vpack.c.b16 %v1194, %v1194
    %v1259 = vpack.c.b16 %v1195, %v1195
    %v1260 = vpack.c.b16 %v1196, %v1196
    %v1261 = vpack.c.b16 %v1197, %v1197
    %v1262 = vpack.c.b16 %v1198, %v1198
    %v1263 = vpack.c.b16 %v1199, %v1199
    %v1264 = vpack.c.b16 %v1200, %v1200
    %v1265 = vpack.c.b16 %v1201, %v1201
    %v1266 = vpack.c.b16 %v1202, %v1202
    %v1267 = vpack.c.b16 %v1203, %v1203
    %v1268 = vpack.c.b16 %v1204, %v1204
    %v1269 = vpack.c.b16 %v1205, %v1205
    %v1270 = vpack.c.b16 %v1206, %v1206
    %v1271 = vpack.c.b16 %v1207, %v1207
    %v1272 = vpack.c.b16 %v1208, %v1208
    %v1273 = vpack.c.b16 %v1209, %v1209
    %v1274 = vpack.c.b16 %v1210, %v1210
    %v1275 = vpack.c.b16 %v1211, %v1211
    %v1276 = vpack.c.b16 %v1212, %v1212
    %v1277 = vpack.c.b16 %v1213, %v1213
    %v1278 = vpack.c.b16 %v1214, %v1214
    %v1279 = vpack.c.b16 %v1215, %v1215
    %v1280 = vpack.c.b16 %v1216, %v1216
    %v1281 = vpack.c.b16 %v1217, %v1217
    %v1282 = vpack.c.b16 %v1218, %v1218
    %v1283 = vpack.c.b16 %v1219, %v1219
    %v1284 = vpack.c.b16 %v1220, %v1220
    %v1285 = vpack.c.b16 %v1221, %v1221
    %v1286 = vpack.c.b16 %v1222, %v1222
    %v1287 = vpack.c.b16 %v1223, %v1223
    %v1288 = vpack.c.b16 %v1224, %v1224
    %v1289 = vpack.c.b16 %v1225, %v1225
    %v1290 = vpack.c.b16 %v1226, %v1226
    %v1291 = vpack.c.b16 %v1227, %v1227
    %v1292 = vpack.c.b16 %v1228, %v1228
    %v1293 = vpack.c.b16 %v1229, %v1229
    %v1294 = vpack.c.b16 %v1230, %v1230
    %v1295 = vpack.c.b16 %v1231, %v1231
    %v1296 = vpack.c.b16 %v1232, %v1232
    %v1297 = vpack.c.b16 %v1233, %v1233
    %v1298 = vpack.c.b16 %v1234, %v1234
    %v1299 = vpack.c.b16 %v1235, %v1235
    %v1300 = vpack.c.b16 %v1236, %v1236
    %v1301 = vpack.c.b16 %v1237, %v1237
    %v1302 = vpack.c.b16 %v1238, %v1238
    %1367 = vst [vmem:[%s3] sm:$0xf] %v1239
    %1368 = vst [vmem:[%s3 + $0x4] sm:$0xf] %v1240
    %1369 = vst [vmem:[%s3 + $0x8] sm:$0xf] %v1241
    %1370 = vst [vmem:[%s3 + $0xc] sm:$0xf] %v1242
    %1371 = vst [vmem:[%s3 + $0x10] sm:$0xf] %v1243
    %1372 = vst [vmem:[%s3 + $0x14] sm:$0xf] %v1244
    %1373 = vst [vmem:[%s3 + $0x18] sm:$0xf] %v1245
    %1374 = vst [vmem:[%s3 + $0x1c] sm:$0xf] %v1246
    %1375 = vst [vmem:[%s3 + $0x20] sm:$0xf] %v1247
    %1376 = vst [vmem:[%s3 + $0x24] sm:$0xf] %v1248
    %1377 = vst [vmem:[%s3 + $0x28] sm:$0xf] %v1249
    %1378 = vst [vmem:[%s3 + $0x2c] sm:$0xf] %v1250
    %1379 = vst [vmem:[%s3 + $0x30] sm:$0xf] %v1251
    %1380 = vst [vmem:[%s3 + $0x34] sm:$0xf] %v1252
    %1381 = vst [vmem:[%s3 + $0x38] sm:$0xf] %v1253
    %1382 = vst [vmem:[%s3 + $0x3c] sm:$0xf] %v1254
    %1383 = vst [vmem:[%s3 + $0x40] sm:$0xf] %v1255
    %1384 = vst [vmem:[%s3 + $0x44] sm:$0xf] %v1256
    %1385 = vst [vmem:[%s3 + $0x48] sm:$0xf] %v1257
    %1386 = vst [vmem:[%s3 + $0x4c] sm:$0xf] %v1258
    %1387 = vst [vmem:[%s3 + $0x50] sm:$0xf] %v1259
    %1388 = vst [vmem:[%s3 + $0x54] sm:$0xf] %v1260
    %1389 = vst [vmem:[%s3 + $0x58] sm:$0xf] %v1261
    %1390 = vst [vmem:[%s3 + $0x5c] sm:$0xf] %v1262
    %1391 = vst [vmem:[%s3 + $0x60] sm:$0xf] %v1263
    %1392 = vst [vmem:[%s3 + $0x64] sm:$0xf] %v1264
    %1393 = vst [vmem:[%s3 + $0x68] sm:$0xf] %v1265
    %1394 = vst [vmem:[%s3 + $0x6c] sm:$0xf] %v1266
    %1395 = vst [vmem:[%s3 + $0x70] sm:$0xf] %v1267
    %1396 = vst [vmem:[%s3 + $0x74] sm:$0xf] %v1268
    %1397 = vst [vmem:[%s3 + $0x78] sm:$0xf] %v1269
    %1398 = vst [vmem:[%s3 + $0x7c] sm:$0xf] %v1270
    %1399 = vst [vmem:[%s3 + $0x80] sm:$0xf] %v1271
    %1400 = vst [vmem:[%s3 + $0x84] sm:$0xf] %v1272
    %1401 = vst [vmem:[%s3 + $0x88] sm:$0xf] %v1273
    %1402 = vst [vmem:[%s3 + $0x8c] sm:$0xf] %v1274
    %1403 = vst [vmem:[%s3 + $0x90] sm:$0xf] %v1275
    %1404 = vst [vmem:[%s3 + $0x94] sm:$0xf] %v1276
    %1405 = vst [vmem:[%s3 + $0x98] sm:$0xf] %v1277
    %1406 = vst [vmem:[%s3 + $0x9c] sm:$0xf] %v1278
    %1407 = vst [vmem:[%s3 + $0xa0] sm:$0xf] %v1279
    %1408 = vst [vmem:[%s3 + $0xa4] sm:$0xf] %v1280
    %1409 = vst [vmem:[%s3 + $0xa8] sm:$0xf] %v1281
    %1410 = vst [vmem:[%s3 + $0xac] sm:$0xf] %v1282
    %1411 = vst [vmem:[%s3 + $0xb0] sm:$0xf] %v1283
    %1412 = vst [vmem:[%s3 + $0xb4] sm:$0xf] %v1284
    %1413 = vst [vmem:[%s3 + $0xb8] sm:$0xf] %v1285
    %1414 = vst [vmem:[%s3 + $0xbc] sm:$0xf] %v1286
    %1415 = vst [vmem:[%s3 + $0xc0] sm:$0xf] %v1287
    %1416 = vst [vmem:[%s3 + $0xc4] sm:$0xf] %v1288
    %1417 = vst [vmem:[%s3 + $0xc8] sm:$0xf] %v1289
    %1418 = vst [vmem:[%s3 + $0xcc] sm:$0xf] %v1290
    %1419 = vst [vmem:[%s3 + $0xd0] sm:$0xf] %v1291
    %1420 = vst [vmem:[%s3 + $0xd4] sm:$0xf] %v1292
    %1421 = vst [vmem:[%s3 + $0xd8] sm:$0xf] %v1293
    %1422 = vst [vmem:[%s3 + $0xdc] sm:$0xf] %v1294
    %1423 = vst [vmem:[%s3 + $0xe0] sm:$0xf] %v1295
    %1424 = vst [vmem:[%s3 + $0xe4] sm:$0xf] %v1296
    %1425 = vst [vmem:[%s3 + $0xe8] sm:$0xf] %v1297
    %1426 = vst [vmem:[%s3 + $0xec] sm:$0xf] %v1298
    %1427 = vst [vmem:[%s3 + $0xf0] sm:$0xf] %v1299
    %1428 = vst [vmem:[%s3 + $0xf4] sm:$0xf] %v1300
    %1429 = vst [vmem:[%s3 + $0xf8] sm:$0xf] %v1301
    %1430 = vst [vmem:[%s3 + $0xfc] sm:$0xf] %v1302
  $region21: #{modified_resnet_forward.25} parent=0 // pred_fallthru
    _
  // Predicated region
  $region22: #{modified_resnet_forward.25} parent=0 // pred_check
    _
  $region23: #{modified_resnet_forward.25} parent=0 // pred_check_branch
    %1432 = sbr.rel (0) target = $region25
  $region24: #{modified_resnet_forward.25} parent=0 // pred_region
    _
  $region25: #{modified_resnet_forward.25} parent=0 // pred_fallthru
    _
  // Predicated region
  $region26: #{modified_resnet_forward.25} parent=0 // pred_check
    _
  $region27: #{modified_resnet_forward.25} parent=0 // pred_check_branch
    %1434 = sbr.rel (0) target = $region29
  $region28: #{modified_resnet_forward.25} parent=0 // pred_region
    _
  $region29: #{modified_resnet_forward.25} parent=0 // pred_fallthru
    _

// kernel: modified_resnet_forward.27
$region0: #{modified_resnet_forward.27}
  #allocation0 [shape = 'u32[]', space=smem, size = 0x4, offset = 0x4, fixed_abs, tag = 'smem constant byte address 0x4 - core index']
  #allocation1 [shape = 'u32[144,128]{1,0:T(1,128)}', space=vmem, size = 0x12000, scoped, tag = 'internal scratch']
  #allocation2 [shape = 'f32[128,128]{1,0:T(8,128)}', space=vmem, size = 0x10000, scoped, tag = 'scratch operand']
  %s0 = inlined_call_operand.vmem [shape: bf16[128,8], index: 0, kind: input, shape index: {}]
  %s1 = inlined_call_operand.vmem [shape: bf16[8,128], index: 1, kind: input, shape index: {}]
  %s2 = inlined_call_operand.vmem [shape: f32[1,128], index: 2, kind: input, shape index: {}]
  %s3 = inlined_call_operand.vmem [shape: bf16[128,128], index: 3, kind: output, shape index: {}]
  %s4 = sld [smem:[#allocation0]]
  $region30: #{modified_resnet_forward.27} parent=0
    _
  %s6 = ssub.s32 1, %s4
  %s7 = scalar_select 0, %s6, %s4
  // Predicated region
  $region2: #{modified_resnet_forward.27} parent=0 // pred_check
    _
  $region3: #{modified_resnet_forward.27} parent=0 // pred_check_branch
    %9 = sbr.rel (0) target = $region5
  $region4: #{modified_resnet_forward.27} parent=0 // pred_region
    _
  $region5: #{modified_resnet_forward.27} parent=0 // pred_fallthru
    _
  // Predicated region
  $region6: #{modified_resnet_forward.27} parent=0 // pred_check
    _
  $region7: #{modified_resnet_forward.27} parent=0 // pred_check_branch
    %11 = sbr.rel (0) target = $region9
  $region8: #{modified_resnet_forward.27} parent=0 // pred_region
    _
  $region9: #{modified_resnet_forward.27} parent=0 // pred_fallthru
    _
  // Predicated region
  $region10: #{modified_resnet_forward.27} parent=0 // pred_check
    _
  $region11: #{modified_resnet_forward.27} parent=0 // pred_check_branch
    %13 = sbr.rel (0) target = $region13
  $region12: #{modified_resnet_forward.27} parent=0 // pred_region
    _
  $region13: #{modified_resnet_forward.27} parent=0 // pred_fallthru
    _
  %p15 = scmp.eq.s32.totalorder 0, 0
  // Predicated region
  $region14: #{modified_resnet_forward.27} parent=0 // pred_check
    %p16 = pneg %p15
  $region15: #{modified_resnet_forward.27} parent=0 // pred_check_branch
    %18 = sbr.rel (%p16) target = $region17
  $region16: #{modified_resnet_forward.27} parent=0 // pred_region
    %19 = vst [vmem:[#allocation2] sm:$0xff] 0.0
    %20 = vst [vmem:[#allocation2 + $0x8] sm:$0xff] 0.0
    %21 = vst [vmem:[#allocation2 + $0x10] sm:$0xff] 0.0
    %22 = vst [vmem:[#allocation2 + $0x18] sm:$0xff] 0.0
    %23 = vst [vmem:[#allocation2 + $0x20] sm:$0xff] 0.0
    %24 = vst [vmem:[#allocation2 + $0x28] sm:$0xff] 0.0
    %25 = vst [vmem:[#allocation2 + $0x30] sm:$0xff] 0.0
    %26 = vst [vmem:[#allocation2 + $0x38] sm:$0xff] 0.0
    %27 = vst [vmem:[#allocation2 + $0x40] sm:$0xff] 0.0
    %28 = vst [vmem:[#allocation2 + $0x48] sm:$0xff] 0.0
    %29 = vst [vmem:[#allocation2 + $0x50] sm:$0xff] 0.0
    %30 = vst [vmem:[#allocation2 + $0x58] sm:$0xff] 0.0
    %31 = vst [vmem:[#allocation2 + $0x60] sm:$0xff] 0.0
    %32 = vst [vmem:[#allocation2 + $0x68] sm:$0xff] 0.0
    %33 = vst [vmem:[#allocation2 + $0x70] sm:$0xff] 0.0
    %34 = vst [vmem:[#allocation2 + $0x78] sm:$0xff] 0.0
  $region17: #{modified_resnet_forward.27} parent=0 // pred_fallthru
    _
  %v35 = vld [vmem:[#allocation2] sm:$0xff]
  %v36 = vld [vmem:[#allocation2 + $0x8] sm:$0xff]
  %v37 = vld [vmem:[#allocation2 + $0x10] sm:$0xff]
  %v38 = vld [vmem:[#allocation2 + $0x18] sm:$0xff]
  %v39 = vld [vmem:[#allocation2 + $0x20] sm:$0xff]
  %v40 = vld [vmem:[#allocation2 + $0x28] sm:$0xff]
  %v41 = vld [vmem:[#allocation2 + $0x30] sm:$0xff]
  %v42 = vld [vmem:[#allocation2 + $0x38] sm:$0xff]
  %v43 = vld [vmem:[#allocation2 + $0x40] sm:$0xff]
  %v44 = vld [vmem:[#allocation2 + $0x48] sm:$0xff]
  %v45 = vld [vmem:[#allocation2 + $0x50] sm:$0xff]
  %v46 = vld [vmem:[#allocation2 + $0x58] sm:$0xff]
  %v47 = vld [vmem:[#allocation2 + $0x60] sm:$0xff]
  %v48 = vld [vmem:[#allocation2 + $0x68] sm:$0xff]
  %v49 = vld [vmem:[#allocation2 + $0x70] sm:$0xff]
  %v50 = vld [vmem:[#allocation2 + $0x78] sm:$0xff]
  %v51 = vld [vmem:[%s0] sm:$0xf]
  %v52 = vld [vmem:[%s0 + $0x4] sm:$0xf]
  %v53 = vld [vmem:[%s0 + $0x8] sm:$0xf]
  %v54 = vld [vmem:[%s0 + $0xc] sm:$0xf]
  %v55 = vld [vmem:[%s0 + $0x10] sm:$0xf]
  %v56 = vld [vmem:[%s0 + $0x14] sm:$0xf]
  %v57 = vld [vmem:[%s0 + $0x18] sm:$0xf]
  %v58 = vld [vmem:[%s0 + $0x1c] sm:$0xf]
  %v59 = vld [vmem:[%s0 + $0x20] sm:$0xf]
  %v60 = vld [vmem:[%s0 + $0x24] sm:$0xf]
  %v61 = vld [vmem:[%s0 + $0x28] sm:$0xf]
  %v62 = vld [vmem:[%s0 + $0x2c] sm:$0xf]
  %v63 = vld [vmem:[%s0 + $0x30] sm:$0xf]
  %v64 = vld [vmem:[%s0 + $0x34] sm:$0xf]
  %v65 = vld [vmem:[%s0 + $0x38] sm:$0xf]
  %v66 = vld [vmem:[%s0 + $0x3c] sm:$0xf]
  %v67 = vld [vmem:[%s1] sm:$0xf]
  %v84 = vunpack.c.l.b16 %v51
  %v85 = vunpack.c.l.b16 %v52
  %v86 = vunpack.c.l.b16 %v53
  %v87 = vunpack.c.l.b16 %v54
  %v88 = vunpack.c.l.b16 %v55
  %v89 = vunpack.c.l.b16 %v56
  %v90 = vunpack.c.l.b16 %v57
  %v91 = vunpack.c.l.b16 %v58
  %v92 = vunpack.c.l.b16 %v59
  %v93 = vunpack.c.l.b16 %v60
  %v94 = vunpack.c.l.b16 %v61
  %v95 = vunpack.c.l.b16 %v62
  %v96 = vunpack.c.l.b16 %v63
  %v97 = vunpack.c.l.b16 %v64
  %v98 = vunpack.c.l.b16 %v65
  %v99 = vunpack.c.l.b16 %v66
  %v100 = vpack.c.b16 %v85, %v84
  %v101 = vpack.c.b16 %v87, %v86
  %v102 = vpack.c.b16 %v89, %v88
  %v103 = vpack.c.b16 %v91, %v90
  %v104 = vpack.c.b16 %v93, %v92
  %v105 = vpack.c.b16 %v95, %v94
  %v106 = vpack.c.b16 %v97, %v96
  %v107 = vpack.c.b16 %v99, %v98
  %vm108 = vcmask 64512
  %v110 = vsel %vm108, %v100, 0
  %v113 = vsel %vm108, %v101, 0
  %v116 = vsel %vm108, %v102, 0
  %v119 = vsel %vm108, %v103, 0
  %v122 = vsel %vm108, %v104, 0
  %v125 = vsel %vm108, %v105, 0
  %v128 = vsel %vm108, %v106, 0
  %v131 = vsel %vm108, %v107, 0
  %vm133 = vcmask 1043456
  %v135 = vsel %vm133, %v67, 0
  %137 = vmatprep.subr.bf16.mxu0 0
  %138 = vmatpush1.bf16.msra.mxu0 %v135
  %139 = vmatprep.subr.bf16.mxu0 0
  %140 = vmatpush1.bf16.msra.mxu0 0
  %141 = vmatprep.subr.bf16.mxu0 0
  %142 = vmatpush1.bf16.msra.mxu0 0
  %143 = vmatprep.subr.bf16.mxu0 0
  %144 = vmatpush1.bf16.msra.mxu0 0
  %145 = vmatprep.subr.bf16.mxu0 0
  %146 = vmatpush1.bf16.msra.mxu0 0
  %147 = vmatprep.subr.bf16.mxu0 0
  %148 = vmatpush1.bf16.msra.mxu0 0
  %149 = vmatprep.subr.bf16.mxu0 0
  %150 = vmatpush1.bf16.msra.mxu0 0
  %151 = vmatprep.subr.bf16.mxu0 0
  %152 = vmatpush1.bf16.msra.mxu0 0
  %153 = vmatprep.subr.bf16.mxu0 0
  %154 = vmatpush1.bf16.msra.mxu0 0
  %155 = vmatprep.subr.bf16.mxu0 0
  %156 = vmatpush1.bf16.msra.mxu0 0
  %157 = vmatprep.subr.bf16.mxu0 0
  %158 = vmatpush1.bf16.msra.mxu0 0
  %159 = vmatprep.subr.bf16.mxu0 0
  %160 = vmatpush1.bf16.msra.mxu0 0
  %161 = vmatprep.subr.bf16.mxu0 0
  %162 = vmatpush1.bf16.msra.mxu0 0
  %163 = vmatprep.subr.bf16.mxu0 0
  %164 = vmatpush1.bf16.msra.mxu0 0
  %165 = vmatprep.subr.bf16.mxu0 0
  %166 = vmatpush1.bf16.msra.mxu0 0
  %167 = vmatprep.subr.bf16.mxu0 0
  %168 = vmatpush1.bf16.msra.mxu0 0
  %169 = vmatprep.mubr.bf16.mxu0 0
  %170 = vmatmul.mubr.bf16.gmra.mrb[0].mxu0 %v110
  %v171 = vpop.f32.mrb[0].mxu0
  %v172 = vadd.f32 0.0, %v171
  %v173 = vpop.f32.mrb[0].mxu0
  %v174 = vpop.f32.mrb[0].mxu0
  %v175 = vadd.f32 0.0, %v174
  %v176 = vpop.f32.mrb[0].mxu0
  %177 = vmatprep.mubr.bf16.mxu0 0
  %178 = vmatmul.mubr.bf16.gmra.mrb[0].mxu0 %v113
  %v179 = vpop.f32.mrb[0].mxu0
  %v180 = vadd.f32 0.0, %v179
  %v181 = vpop.f32.mrb[0].mxu0
  %v182 = vpop.f32.mrb[0].mxu0
  %v183 = vadd.f32 0.0, %v182
  %v184 = vpop.f32.mrb[0].mxu0
  %185 = vmatprep.mubr.bf16.mxu0 0
  %186 = vmatmul.mubr.bf16.gmra.mrb[0].mxu0 %v116
  %v187 = vpop.f32.mrb[0].mxu0
  %v188 = vadd.f32 0.0, %v187
  %v189 = vpop.f32.mrb[0].mxu0
  %v190 = vpop.f32.mrb[0].mxu0
  %v191 = vadd.f32 0.0, %v190
  %v192 = vpop.f32.mrb[0].mxu0
  %193 = vmatprep.mubr.bf16.mxu0 0
  %194 = vmatmul.mubr.bf16.gmra.mrb[0].mxu0 %v119
  %v195 = vpop.f32.mrb[0].mxu0
  %v196 = vadd.f32 0.0, %v195
  %v197 = vpop.f32.mrb[0].mxu0
  %v198 = vpop.f32.mrb[0].mxu0
  %v199 = vadd.f32 0.0, %v198
  %v200 = vpop.f32.mrb[0].mxu0
  %201 = vmatprep.mubr.bf16.mxu0 0
  %202 = vmatmul.mubr.bf16.gmra.mrb[0].mxu0 %v122
  %v203 = vpop.f32.mrb[0].mxu0
  %v204 = vadd.f32 0.0, %v203
  %v205 = vpop.f32.mrb[0].mxu0
  %v206 = vpop.f32.mrb[0].mxu0
  %v207 = vadd.f32 0.0, %v206
  %v208 = vpop.f32.mrb[0].mxu0
  %209 = vmatprep.mubr.bf16.mxu0 0
  %210 = vmatmul.mubr.bf16.gmra.mrb[0].mxu0 %v125
  %v211 = vpop.f32.mrb[0].mxu0
  %v212 = vadd.f32 0.0, %v211
  %v213 = vpop.f32.mrb[0].mxu0
  %v214 = vpop.f32.mrb[0].mxu0
  %v215 = vadd.f32 0.0, %v214
  %v216 = vpop.f32.mrb[0].mxu0
  %217 = vmatprep.mubr.bf16.mxu0 0
  %218 = vmatmul.mubr.bf16.gmra.mrb[0].mxu0 %v128
  %v219 = vpop.f32.mrb[0].mxu0
  %v220 = vadd.f32 0.0, %v219
  %v221 = vpop.f32.mrb[0].mxu0
  %v222 = vpop.f32.mrb[0].mxu0
  %v223 = vadd.f32 0.0, %v222
  %v224 = vpop.f32.mrb[0].mxu0
  %225 = vmatprep.mubr.bf16.mxu0 0
  %226 = vmatmul.mubr.bf16.gmra.mrb[0].mxu0 %v131
  %v227 = vpop.f32.mrb[0].mxu0
  %v228 = vadd.f32 0.0, %v227
  %v229 = vpop.f32.mrb[0].mxu0
  %v230 = vpop.f32.mrb[0].mxu0
  %v231 = vadd.f32 0.0, %v230
  %v232 = vpop.f32.mrb[0].mxu0
  %233 = vdwg.mxu0
  %v234 = vadd.f32 %v35, %v172
  %v235 = vadd.f32 %v36, %v175
  %v236 = vadd.f32 %v37, %v180
  %v237 = vadd.f32 %v38, %v183
  %v238 = vadd.f32 %v39, %v188
  %v239 = vadd.f32 %v40, %v191
  %v240 = vadd.f32 %v41, %v196
  %v241 = vadd.f32 %v42, %v199
  %v242 = vadd.f32 %v43, %v204
  %v243 = vadd.f32 %v44, %v207
  %v244 = vadd.f32 %v45, %v212
  %v245 = vadd.f32 %v46, %v215
  %v246 = vadd.f32 %v47, %v220
  %v247 = vadd.f32 %v48, %v223
  %v248 = vadd.f32 %v49, %v228
  %v249 = vadd.f32 %v50, %v231
  %250 = vst [vmem:[#allocation2] sm:$0xff] %v234
  %251 = vst [vmem:[#allocation2 + $0x8] sm:$0xff] %v235
  %252 = vst [vmem:[#allocation2 + $0x10] sm:$0xff] %v236
  %253 = vst [vmem:[#allocation2 + $0x18] sm:$0xff] %v237
  %254 = vst [vmem:[#allocation2 + $0x20] sm:$0xff] %v238
  %255 = vst [vmem:[#allocation2 + $0x28] sm:$0xff] %v239
  %256 = vst [vmem:[#allocation2 + $0x30] sm:$0xff] %v240
  %257 = vst [vmem:[#allocation2 + $0x38] sm:$0xff] %v241
  %258 = vst [vmem:[#allocation2 + $0x40] sm:$0xff] %v242
  %259 = vst [vmem:[#allocation2 + $0x48] sm:$0xff] %v243
  %260 = vst [vmem:[#allocation2 + $0x50] sm:$0xff] %v244
  %261 = vst [vmem:[#allocation2 + $0x58] sm:$0xff] %v245
  %262 = vst [vmem:[#allocation2 + $0x60] sm:$0xff] %v246
  %263 = vst [vmem:[#allocation2 + $0x68] sm:$0xff] %v247
  %264 = vst [vmem:[#allocation2 + $0x70] sm:$0xff] %v248
  %265 = vst [vmem:[#allocation2 + $0x78] sm:$0xff] %v249
  // Predicated region
  $region18: #{modified_resnet_forward.27} parent=0 // pred_check
    %p266 = pneg %p15
  $region19: #{modified_resnet_forward.27} parent=0 // pred_check_branch
    %268 = sbr.rel (%p266) target = $region21
  $region20: #{modified_resnet_forward.27} parent=0 // pred_region
    %v269 = vld [vmem:[#allocation2] sm:$0xff]
    %v270 = vld [vmem:[#allocation2 + $0x8] sm:$0xff]
    %v271 = vld [vmem:[#allocation2 + $0x10] sm:$0xff]
    %v272 = vld [vmem:[#allocation2 + $0x18] sm:$0xff]
    %v273 = vld [vmem:[#allocation2 + $0x20] sm:$0xff]
    %v274 = vld [vmem:[#allocation2 + $0x28] sm:$0xff]
    %v275 = vld [vmem:[#allocation2 + $0x30] sm:$0xff]
    %v276 = vld [vmem:[#allocation2 + $0x38] sm:$0xff]
    %v277 = vld [vmem:[#allocation2 + $0x40] sm:$0xff]
    %v278 = vld [vmem:[#allocation2 + $0x48] sm:$0xff]
    %v279 = vld [vmem:[#allocation2 + $0x50] sm:$0xff]
    %v280 = vld [vmem:[#allocation2 + $0x58] sm:$0xff]
    %v281 = vld [vmem:[#allocation2 + $0x60] sm:$0xff]
    %v282 = vld [vmem:[#allocation2 + $0x68] sm:$0xff]
    %v283 = vld [vmem:[#allocation2 + $0x70] sm:$0xff]
    %v284 = vld [vmem:[#allocation2 + $0x78] sm:$0xff]
    %v285 = vld [vmem:[%s2] sm:$0x1]
    %v287 = vlaneseq
    %v288 = vshrl.u32 %v287, 7
    %v289 = vsub.s32 0, %v288
    %v290 = vrot.slane %v285, %v289
    %v292 = vadd.f32 %v269, %v290
    %v293 = vadd.f32 %v270, %v290
    %v294 = vadd.f32 %v271, %v290
    %v295 = vadd.f32 %v272, %v290
    %v296 = vadd.f32 %v273, %v290
    %v297 = vadd.f32 %v274, %v290
    %v298 = vadd.f32 %v275, %v290
    %v299 = vadd.f32 %v276, %v290
    %v300 = vadd.f32 %v277, %v290
    %v301 = vadd.f32 %v278, %v290
    %v302 = vadd.f32 %v279, %v290
    %v303 = vadd.f32 %v280, %v290
    %v304 = vadd.f32 %v281, %v290
    %v305 = vadd.f32 %v282, %v290
    %v306 = vadd.f32 %v283, %v290
    %v307 = vadd.f32 %v284, %v290
    %v308 = vmax.f32 %v292, 0.0
    %v309 = vmax.f32 %v293, 0.0
    %v310 = vmax.f32 %v294, 0.0
    %v311 = vmax.f32 %v295, 0.0
    %v312 = vmax.f32 %v296, 0.0
    %v313 = vmax.f32 %v297, 0.0
    %v314 = vmax.f32 %v298, 0.0
    %v315 = vmax.f32 %v299, 0.0
    %v316 = vmax.f32 %v300, 0.0
    %v317 = vmax.f32 %v301, 0.0
    %v318 = vmax.f32 %v302, 0.0
    %v319 = vmax.f32 %v303, 0.0
    %v320 = vmax.f32 %v304, 0.0
    %v321 = vmax.f32 %v305, 0.0
    %v322 = vmax.f32 %v306, 0.0
    %v323 = vmax.f32 %v307, 0.0
    %v324 = vpack.c.bf16 %v309, %v308
    %v325 = vpack.c.bf16 %v311, %v310
    %v326 = vpack.c.bf16 %v313, %v312
    %v327 = vpack.c.bf16 %v315, %v314
    %v328 = vpack.c.bf16 %v317, %v316
    %v329 = vpack.c.bf16 %v319, %v318
    %v330 = vpack.c.bf16 %v321, %v320
    %v331 = vpack.c.bf16 %v323, %v322
    %v340 = vunpack.c.l.b16 %v324
    %v341 = vunpack.c.h.b16 %v324
    %v342 = vunpack.c.l.b16 %v325
    %v343 = vunpack.c.h.b16 %v325
    %v344 = vunpack.c.l.b16 %v326
    %v345 = vunpack.c.h.b16 %v326
    %v346 = vunpack.c.l.b16 %v327
    %v347 = vunpack.c.h.b16 %v327
    %v348 = vunpack.c.l.b16 %v328
    %v349 = vunpack.c.h.b16 %v328
    %v350 = vunpack.c.l.b16 %v329
    %v351 = vunpack.c.h.b16 %v329
    %v352 = vunpack.c.l.b16 %v330
    %v353 = vunpack.c.h.b16 %v330
    %v354 = vunpack.c.l.b16 %v331
    %v355 = vunpack.c.h.b16 %v331
    %v356 = vpack.c.b16 %v340, %v340
    %v357 = vpack.c.b16 %v341, %v341
    %v358 = vpack.c.b16 %v342, %v342
    %v359 = vpack.c.b16 %v343, %v343
    %v360 = vpack.c.b16 %v344, %v344
    %v361 = vpack.c.b16 %v345, %v345
    %v362 = vpack.c.b16 %v346, %v346
    %v363 = vpack.c.b16 %v347, %v347
    %v364 = vpack.c.b16 %v348, %v348
    %v365 = vpack.c.b16 %v349, %v349
    %v366 = vpack.c.b16 %v350, %v350
    %v367 = vpack.c.b16 %v351, %v351
    %v368 = vpack.c.b16 %v352, %v352
    %v369 = vpack.c.b16 %v353, %v353
    %v370 = vpack.c.b16 %v354, %v354
    %v371 = vpack.c.b16 %v355, %v355
    %388 = vst [vmem:[%s3] sm:$0xf] %v356
    %389 = vst [vmem:[%s3 + $0x4] sm:$0xf] %v357
    %390 = vst [vmem:[%s3 + $0x8] sm:$0xf] %v358
    %391 = vst [vmem:[%s3 + $0xc] sm:$0xf] %v359
    %392 = vst [vmem:[%s3 + $0x10] sm:$0xf] %v360
    %393 = vst [vmem:[%s3 + $0x14] sm:$0xf] %v361
    %394 = vst [vmem:[%s3 + $0x18] sm:$0xf] %v362
    %395 = vst [vmem:[%s3 + $0x1c] sm:$0xf] %v363
    %396 = vst [vmem:[%s3 + $0x20] sm:$0xf] %v364
    %397 = vst [vmem:[%s3 + $0x24] sm:$0xf] %v365
    %398 = vst [vmem:[%s3 + $0x28] sm:$0xf] %v366
    %399 = vst [vmem:[%s3 + $0x2c] sm:$0xf] %v367
    %400 = vst [vmem:[%s3 + $0x30] sm:$0xf] %v368
    %401 = vst [vmem:[%s3 + $0x34] sm:$0xf] %v369
    %402 = vst [vmem:[%s3 + $0x38] sm:$0xf] %v370
    %403 = vst [vmem:[%s3 + $0x3c] sm:$0xf] %v371
  $region21: #{modified_resnet_forward.27} parent=0 // pred_fallthru
    _
  // Predicated region
  $region22: #{modified_resnet_forward.27} parent=0 // pred_check
    _
  $region23: #{modified_resnet_forward.27} parent=0 // pred_check_branch
    %405 = sbr.rel (0) target = $region25
  $region24: #{modified_resnet_forward.27} parent=0 // pred_region
    _
  $region25: #{modified_resnet_forward.27} parent=0 // pred_fallthru
    _
  // Predicated region
  $region26: #{modified_resnet_forward.27} parent=0 // pred_check
    _
  $region27: #{modified_resnet_forward.27} parent=0 // pred_check_branch
    %407 = sbr.rel (0) target = $region29
  $region28: #{modified_resnet_forward.27} parent=0 // pred_region
    _
  $region29: #{modified_resnet_forward.27} parent=0 // pred_fallthru
    _

// kernel: modified_resnet_forward.28
$region0: #{modified_resnet_forward.28}
  #allocation0 [shape = 'u32[]', space=smem, size = 0x4, offset = 0x4, fixed_abs, tag = 'smem constant byte address 0x4 - core index']
  #allocation1 [shape = 'u32[144,128]{1,0:T(1,128)}', space=vmem, size = 0x12000, scoped, tag = 'internal scratch']
  #allocation2 [shape = 'f32[128,128]{1,0:T(8,128)}', space=vmem, size = 0x10000, scoped, tag = 'scratch operand']
  %s0 = inlined_call_operand.vmem [shape: bf16[128,72], index: 0, kind: input, shape index: {}]
  %s1 = inlined_call_operand.vmem [shape: bf16[72,128], index: 1, kind: input, shape index: {}]
  %s2 = inlined_call_operand.vmem [shape: f32[1,128], index: 2, kind: input, shape index: {}]
  %s3 = inlined_call_operand.vmem [shape: bf16[128,128], index: 3, kind: output, shape index: {}]
  %s4 = sld [smem:[#allocation0]]
  $region30: #{modified_resnet_forward.28} parent=0
    _
  %s6 = ssub.s32 1, %s4
  %s7 = scalar_select 0, %s6, %s4
  // Predicated region
  $region2: #{modified_resnet_forward.28} parent=0 // pred_check
    _
  $region3: #{modified_resnet_forward.28} parent=0 // pred_check_branch
    %9 = sbr.rel (0) target = $region5
  $region4: #{modified_resnet_forward.28} parent=0 // pred_region
    _
  $region5: #{modified_resnet_forward.28} parent=0 // pred_fallthru
    _
  // Predicated region
  $region6: #{modified_resnet_forward.28} parent=0 // pred_check
    _
  $region7: #{modified_resnet_forward.28} parent=0 // pred_check_branch
    %11 = sbr.rel (0) target = $region9
  $region8: #{modified_resnet_forward.28} parent=0 // pred_region
    _
  $region9: #{modified_resnet_forward.28} parent=0 // pred_fallthru
    _
  // Predicated region
  $region10: #{modified_resnet_forward.28} parent=0 // pred_check
    _
  $region11: #{modified_resnet_forward.28} parent=0 // pred_check_branch
    %13 = sbr.rel (0) target = $region13
  $region12: #{modified_resnet_forward.28} parent=0 // pred_region
    _
  $region13: #{modified_resnet_forward.28} parent=0 // pred_fallthru
    _
  %p15 = scmp.eq.s32.totalorder 0, 0
  // Predicated region
  $region14: #{modified_resnet_forward.28} parent=0 // pred_check
    %p16 = pneg %p15
  $region15: #{modified_resnet_forward.28} parent=0 // pred_check_branch
    %18 = sbr.rel (%p16) target = $region17
  $region16: #{modified_resnet_forward.28} parent=0 // pred_region
    %19 = vst [vmem:[#allocation2] sm:$0xff] 0.0
    %20 = vst [vmem:[#allocation2 + $0x8] sm:$0xff] 0.0
    %21 = vst [vmem:[#allocation2 + $0x10] sm:$0xff] 0.0
    %22 = vst [vmem:[#allocation2 + $0x18] sm:$0xff] 0.0
    %23 = vst [vmem:[#allocation2 + $0x20] sm:$0xff] 0.0
    %24 = vst [vmem:[#allocation2 + $0x28] sm:$0xff] 0.0
    %25 = vst [vmem:[#allocation2 + $0x30] sm:$0xff] 0.0
    %26 = vst [vmem:[#allocation2 + $0x38] sm:$0xff] 0.0
    %27 = vst [vmem:[#allocation2 + $0x40] sm:$0xff] 0.0
    %28 = vst [vmem:[#allocation2 + $0x48] sm:$0xff] 0.0
    %29 = vst [vmem:[#allocation2 + $0x50] sm:$0xff] 0.0
    %30 = vst [vmem:[#allocation2 + $0x58] sm:$0xff] 0.0
    %31 = vst [vmem:[#allocation2 + $0x60] sm:$0xff] 0.0
    %32 = vst [vmem:[#allocation2 + $0x68] sm:$0xff] 0.0
    %33 = vst [vmem:[#allocation2 + $0x70] sm:$0xff] 0.0
    %34 = vst [vmem:[#allocation2 + $0x78] sm:$0xff] 0.0
  $region17: #{modified_resnet_forward.28} parent=0 // pred_fallthru
    _
  %v35 = vld [vmem:[#allocation2] sm:$0xff]
  %v36 = vld [vmem:[#allocation2 + $0x8] sm:$0xff]
  %v37 = vld [vmem:[#allocation2 + $0x10] sm:$0xff]
  %v38 = vld [vmem:[#allocation2 + $0x18] sm:$0xff]
  %v39 = vld [vmem:[#allocation2 + $0x20] sm:$0xff]
  %v40 = vld [vmem:[#allocation2 + $0x28] sm:$0xff]
  %v41 = vld [vmem:[#allocation2 + $0x30] sm:$0xff]
  %v42 = vld [vmem:[#allocation2 + $0x38] sm:$0xff]
  %v43 = vld [vmem:[#allocation2 + $0x40] sm:$0xff]
  %v44 = vld [vmem:[#allocation2 + $0x48] sm:$0xff]
  %v45 = vld [vmem:[#allocation2 + $0x50] sm:$0xff]
  %v46 = vld [vmem:[#allocation2 + $0x58] sm:$0xff]
  %v47 = vld [vmem:[#allocation2 + $0x60] sm:$0xff]
  %v48 = vld [vmem:[#allocation2 + $0x68] sm:$0xff]
  %v49 = vld [vmem:[#allocation2 + $0x70] sm:$0xff]
  %v50 = vld [vmem:[#allocation2 + $0x78] sm:$0xff]
  %v51 = vld [vmem:[%s0] sm:$0xf]
  %v52 = vld [vmem:[%s0 + $0x4] sm:$0xf]
  %v53 = vld [vmem:[%s0 + $0x8] sm:$0xf]
  %v54 = vld [vmem:[%s0 + $0xc] sm:$0xf]
  %v55 = vld [vmem:[%s0 + $0x10] sm:$0xf]
  %v56 = vld [vmem:[%s0 + $0x14] sm:$0xf]
  %v57 = vld [vmem:[%s0 + $0x18] sm:$0xf]
  %v58 = vld [vmem:[%s0 + $0x1c] sm:$0xf]
  %v59 = vld [vmem:[%s0 + $0x20] sm:$0xf]
  %v60 = vld [vmem:[%s0 + $0x24] sm:$0xf]
  %v61 = vld [vmem:[%s0 + $0x28] sm:$0xf]
  %v62 = vld [vmem:[%s0 + $0x2c] sm:$0xf]
  %v63 = vld [vmem:[%s0 + $0x30] sm:$0xf]
  %v64 = vld [vmem:[%s0 + $0x34] sm:$0xf]
  %v65 = vld [vmem:[%s0 + $0x38] sm:$0xf]
  %v66 = vld [vmem:[%s0 + $0x3c] sm:$0xf]
  %v67 = vld [vmem:[%s1] sm:$0xf]
  %v68 = vld [vmem:[%s1 + $0x4] sm:$0xf]
  %v69 = vld [vmem:[%s1 + $0x8] sm:$0xf]
  %v70 = vld [vmem:[%s1 + $0xc] sm:$0xf]
  %v71 = vld [vmem:[%s1 + $0x10] sm:$0xf]
  %v72 = vld [vmem:[%s1 + $0x14] sm:$0xf]
  %v73 = vld [vmem:[%s1 + $0x18] sm:$0xf]
  %v74 = vld [vmem:[%s1 + $0x1c] sm:$0xf]
  %v75 = vld [vmem:[%s1 + $0x20] sm:$0xf]
  %v92 = vunpack.c.l.b16 %v51
  %v93 = vunpack.c.l.b16 %v52
  %v94 = vunpack.c.l.b16 %v53
  %v95 = vunpack.c.l.b16 %v54
  %v96 = vunpack.c.l.b16 %v55
  %v97 = vunpack.c.l.b16 %v56
  %v98 = vunpack.c.l.b16 %v57
  %v99 = vunpack.c.l.b16 %v58
  %v100 = vunpack.c.l.b16 %v59
  %v101 = vunpack.c.l.b16 %v60
  %v102 = vunpack.c.l.b16 %v61
  %v103 = vunpack.c.l.b16 %v62
  %v104 = vunpack.c.l.b16 %v63
  %v105 = vunpack.c.l.b16 %v64
  %v106 = vunpack.c.l.b16 %v65
  %v107 = vunpack.c.l.b16 %v66
  %v108 = vpack.c.b16 %v93, %v92
  %v109 = vpack.c.b16 %v95, %v94
  %v110 = vpack.c.b16 %v97, %v96
  %v111 = vpack.c.b16 %v99, %v98
  %v112 = vpack.c.b16 %v101, %v100
  %v113 = vpack.c.b16 %v103, %v102
  %v114 = vpack.c.b16 %v105, %v104
  %v115 = vpack.c.b16 %v107, %v106
  %v125 = vunpack.c.l.b16 %v67
  %v126 = vunpack.c.l.b16 %v68
  %v127 = vunpack.c.l.b16 %v69
  %v128 = vunpack.c.l.b16 %v70
  %v129 = vunpack.c.l.b16 %v71
  %v130 = vunpack.c.l.b16 %v72
  %v131 = vunpack.c.l.b16 %v73
  %v132 = vunpack.c.l.b16 %v74
  %v133 = vunpack.c.l.b16 %v75
  %v134 = vpack.c.b16 %v126, %v125
  %v135 = vpack.c.b16 %v128, %v127
  %v136 = vpack.c.b16 %v130, %v129
  %v137 = vpack.c.b16 %v132, %v131
  %v138 = vpack.c.b16 %v133, %v133
  %vm143 = vcmask 588800
  %v145 = vsel %vm143, %v108, 0
  %v148 = vsel %vm143, %v109, 0
  %v151 = vsel %vm143, %v110, 0
  %v154 = vsel %vm143, %v111, 0
  %v157 = vsel %vm143, %v112, 0
  %v160 = vsel %vm143, %v113, 0
  %v163 = vsel %vm143, %v114, 0
  %v166 = vsel %vm143, %v115, 0
  %vm168 = vcmask 1043456
  %v170 = vsel %vm168, %v138, 0
  %172 = vmatprep.subr.bf16.mxu0 0
  %173 = vmatpush1.bf16.msra.mxu0 %v134
  %174 = vmatprep.subr.bf16.mxu0 0
  %175 = vmatpush1.bf16.msra.mxu0 %v135
  %176 = vmatprep.subr.bf16.mxu0 0
  %177 = vmatpush1.bf16.msra.mxu0 %v136
  %178 = vmatprep.subr.bf16.mxu0 0
  %179 = vmatpush1.bf16.msra.mxu0 %v137
  %180 = vmatprep.subr.bf16.mxu0 0
  %181 = vmatpush1.bf16.msra.mxu0 %v170
  %182 = vmatprep.subr.bf16.mxu0 0
  %183 = vmatpush1.bf16.msra.mxu0 0
  %184 = vmatprep.subr.bf16.mxu0 0
  %185 = vmatpush1.bf16.msra.mxu0 0
  %186 = vmatprep.subr.bf16.mxu0 0
  %187 = vmatpush1.bf16.msra.mxu0 0
  %188 = vmatprep.subr.bf16.mxu0 0
  %189 = vmatpush1.bf16.msra.mxu0 0
  %190 = vmatprep.subr.bf16.mxu0 0
  %191 = vmatpush1.bf16.msra.mxu0 0
  %192 = vmatprep.subr.bf16.mxu0 0
  %193 = vmatpush1.bf16.msra.mxu0 0
  %194 = vmatprep.subr.bf16.mxu0 0
  %195 = vmatpush1.bf16.msra.mxu0 0
  %196 = vmatprep.subr.bf16.mxu0 0
  %197 = vmatpush1.bf16.msra.mxu0 0
  %198 = vmatprep.subr.bf16.mxu0 0
  %199 = vmatpush1.bf16.msra.mxu0 0
  %200 = vmatprep.subr.bf16.mxu0 0
  %201 = vmatpush1.bf16.msra.mxu0 0
  %202 = vmatprep.subr.bf16.mxu0 0
  %203 = vmatpush1.bf16.msra.mxu0 0
  %204 = vmatprep.mubr.bf16.mxu0 0
  %205 = vmatmul.mubr.bf16.gmra.mrb[0].mxu0 %v145
  %v206 = vpop.f32.mrb[0].mxu0
  %v207 = vadd.f32 0.0, %v206
  %v208 = vpop.f32.mrb[0].mxu0
  %v209 = vpop.f32.mrb[0].mxu0
  %v210 = vadd.f32 0.0, %v209
  %v211 = vpop.f32.mrb[0].mxu0
  %212 = vmatprep.mubr.bf16.mxu0 0
  %213 = vmatmul.mubr.bf16.gmra.mrb[0].mxu0 %v148
  %v214 = vpop.f32.mrb[0].mxu0
  %v215 = vadd.f32 0.0, %v214
  %v216 = vpop.f32.mrb[0].mxu0
  %v217 = vpop.f32.mrb[0].mxu0
  %v218 = vadd.f32 0.0, %v217
  %v219 = vpop.f32.mrb[0].mxu0
  %220 = vmatprep.mubr.bf16.mxu0 0
  %221 = vmatmul.mubr.bf16.gmra.mrb[0].mxu0 %v151
  %v222 = vpop.f32.mrb[0].mxu0
  %v223 = vadd.f32 0.0, %v222
  %v224 = vpop.f32.mrb[0].mxu0
  %v225 = vpop.f32.mrb[0].mxu0
  %v226 = vadd.f32 0.0, %v225
  %v227 = vpop.f32.mrb[0].mxu0
  %228 = vmatprep.mubr.bf16.mxu0 0
  %229 = vmatmul.mubr.bf16.gmra.mrb[0].mxu0 %v154
  %v230 = vpop.f32.mrb[0].mxu0
  %v231 = vadd.f32 0.0, %v230
  %v232 = vpop.f32.mrb[0].mxu0
  %v233 = vpop.f32.mrb[0].mxu0
  %v234 = vadd.f32 0.0, %v233
  %v235 = vpop.f32.mrb[0].mxu0
  %236 = vmatprep.mubr.bf16.mxu0 0
  %237 = vmatmul.mubr.bf16.gmra.mrb[0].mxu0 %v157
  %v238 = vpop.f32.mrb[0].mxu0
  %v239 = vadd.f32 0.0, %v238
  %v240 = vpop.f32.mrb[0].mxu0
  %v241 = vpop.f32.mrb[0].mxu0
  %v242 = vadd.f32 0.0, %v241
  %v243 = vpop.f32.mrb[0].mxu0
  %244 = vmatprep.mubr.bf16.mxu0 0
  %245 = vmatmul.mubr.bf16.gmra.mrb[0].mxu0 %v160
  %v246 = vpop.f32.mrb[0].mxu0
  %v247 = vadd.f32 0.0, %v246
  %v248 = vpop.f32.mrb[0].mxu0
  %v249 = vpop.f32.mrb[0].mxu0
  %v250 = vadd.f32 0.0, %v249
  %v251 = vpop.f32.mrb[0].mxu0
  %252 = vmatprep.mubr.bf16.mxu0 0
  %253 = vmatmul.mubr.bf16.gmra.mrb[0].mxu0 %v163
  %v254 = vpop.f32.mrb[0].mxu0
  %v255 = vadd.f32 0.0, %v254
  %v256 = vpop.f32.mrb[0].mxu0
  %v257 = vpop.f32.mrb[0].mxu0
  %v258 = vadd.f32 0.0, %v257
  %v259 = vpop.f32.mrb[0].mxu0
  %260 = vmatprep.mubr.bf16.mxu0 0
  %261 = vmatmul.mubr.bf16.gmra.mrb[0].mxu0 %v166
  %v262 = vpop.f32.mrb[0].mxu0
  %v263 = vadd.f32 0.0, %v262
  %v264 = vpop.f32.mrb[0].mxu0
  %v265 = vpop.f32.mrb[0].mxu0
  %v266 = vadd.f32 0.0, %v265
  %v267 = vpop.f32.mrb[0].mxu0
  %268 = vdwg.mxu0
  %v269 = vadd.f32 %v35, %v207
  %v270 = vadd.f32 %v36, %v210
  %v271 = vadd.f32 %v37, %v215
  %v272 = vadd.f32 %v38, %v218
  %v273 = vadd.f32 %v39, %v223
  %v274 = vadd.f32 %v40, %v226
  %v275 = vadd.f32 %v41, %v231
  %v276 = vadd.f32 %v42, %v234
  %v277 = vadd.f32 %v43, %v239
  %v278 = vadd.f32 %v44, %v242
  %v279 = vadd.f32 %v45, %v247
  %v280 = vadd.f32 %v46, %v250
  %v281 = vadd.f32 %v47, %v255
  %v282 = vadd.f32 %v48, %v258
  %v283 = vadd.f32 %v49, %v263
  %v284 = vadd.f32 %v50, %v266
  %285 = vst [vmem:[#allocation2] sm:$0xff] %v269
  %286 = vst [vmem:[#allocation2 + $0x8] sm:$0xff] %v270
  %287 = vst [vmem:[#allocation2 + $0x10] sm:$0xff] %v271
  %288 = vst [vmem:[#allocation2 + $0x18] sm:$0xff] %v272
  %289 = vst [vmem:[#allocation2 + $0x20] sm:$0xff] %v273
  %290 = vst [vmem:[#allocation2 + $0x28] sm:$0xff] %v274
  %291 = vst [vmem:[#allocation2 + $0x30] sm:$0xff] %v275
  %292 = vst [vmem:[#allocation2 + $0x38] sm:$0xff] %v276
  %293 = vst [vmem:[#allocation2 + $0x40] sm:$0xff] %v277
  %294 = vst [vmem:[#allocation2 + $0x48] sm:$0xff] %v278
  %295 = vst [vmem:[#allocation2 + $0x50] sm:$0xff] %v279
  %296 = vst [vmem:[#allocation2 + $0x58] sm:$0xff] %v280
  %297 = vst [vmem:[#allocation2 + $0x60] sm:$0xff] %v281
  %298 = vst [vmem:[#allocation2 + $0x68] sm:$0xff] %v282
  %299 = vst [vmem:[#allocation2 + $0x70] sm:$0xff] %v283
  %300 = vst [vmem:[#allocation2 + $0x78] sm:$0xff] %v284
  // Predicated region
  $region18: #{modified_resnet_forward.28} parent=0 // pred_check
    %p301 = pneg %p15
  $region19: #{modified_resnet_forward.28} parent=0 // pred_check_branch
    %303 = sbr.rel (%p301) target = $region21
  $region20: #{modified_resnet_forward.28} parent=0 // pred_region
    %v304 = vld [vmem:[#allocation2] sm:$0xff]
    %v305 = vld [vmem:[#allocation2 + $0x8] sm:$0xff]
    %v306 = vld [vmem:[#allocation2 + $0x10] sm:$0xff]
    %v307 = vld [vmem:[#allocation2 + $0x18] sm:$0xff]
    %v308 = vld [vmem:[#allocation2 + $0x20] sm:$0xff]
    %v309 = vld [vmem:[#allocation2 + $0x28] sm:$0xff]
    %v310 = vld [vmem:[#allocation2 + $0x30] sm:$0xff]
    %v311 = vld [vmem:[#allocation2 + $0x38] sm:$0xff]
    %v312 = vld [vmem:[#allocation2 + $0x40] sm:$0xff]
    %v313 = vld [vmem:[#allocation2 + $0x48] sm:$0xff]
    %v314 = vld [vmem:[#allocation2 + $0x50] sm:$0xff]
    %v315 = vld [vmem:[#allocation2 + $0x58] sm:$0xff]
    %v316 = vld [vmem:[#allocation2 + $0x60] sm:$0xff]
    %v317 = vld [vmem:[#allocation2 + $0x68] sm:$0xff]
    %v318 = vld [vmem:[#allocation2 + $0x70] sm:$0xff]
    %v319 = vld [vmem:[#allocation2 + $0x78] sm:$0xff]
    %v320 = vld [vmem:[%s2] sm:$0x1]
    %v322 = vlaneseq
    %v323 = vshrl.u32 %v322, 7
    %v324 = vsub.s32 0, %v323
    %v325 = vrot.slane %v320, %v324
    %v327 = vadd.f32 %v304, %v325
    %v328 = vadd.f32 %v305, %v325
    %v329 = vadd.f32 %v306, %v325
    %v330 = vadd.f32 %v307, %v325
    %v331 = vadd.f32 %v308, %v325
    %v332 = vadd.f32 %v309, %v325
    %v333 = vadd.f32 %v310, %v325
    %v334 = vadd.f32 %v311, %v325
    %v335 = vadd.f32 %v312, %v325
    %v336 = vadd.f32 %v313, %v325
    %v337 = vadd.f32 %v314, %v325
    %v338 = vadd.f32 %v315, %v325
    %v339 = vadd.f32 %v316, %v325
    %v340 = vadd.f32 %v317, %v325
    %v341 = vadd.f32 %v318, %v325
    %v342 = vadd.f32 %v319, %v325
    %v343 = vmax.f32 %v327, 0.0
    %v344 = vmax.f32 %v328, 0.0
    %v345 = vmax.f32 %v329, 0.0
    %v346 = vmax.f32 %v330, 0.0
    %v347 = vmax.f32 %v331, 0.0
    %v348 = vmax.f32 %v332, 0.0
    %v349 = vmax.f32 %v333, 0.0
    %v350 = vmax.f32 %v334, 0.0
    %v351 = vmax.f32 %v335, 0.0
    %v352 = vmax.f32 %v336, 0.0
    %v353 = vmax.f32 %v337, 0.0
    %v354 = vmax.f32 %v338, 0.0
    %v355 = vmax.f32 %v339, 0.0
    %v356 = vmax.f32 %v340, 0.0
    %v357 = vmax.f32 %v341, 0.0
    %v358 = vmax.f32 %v342, 0.0
    %v359 = vpack.c.bf16 %v344, %v343
    %v360 = vpack.c.bf16 %v346, %v345
    %v361 = vpack.c.bf16 %v348, %v347
    %v362 = vpack.c.bf16 %v350, %v349
    %v363 = vpack.c.bf16 %v352, %v351
    %v364 = vpack.c.bf16 %v354, %v353
    %v365 = vpack.c.bf16 %v356, %v355
    %v366 = vpack.c.bf16 %v358, %v357
    %v375 = vunpack.c.l.b16 %v359
    %v376 = vunpack.c.h.b16 %v359
    %v377 = vunpack.c.l.b16 %v360
    %v378 = vunpack.c.h.b16 %v360
    %v379 = vunpack.c.l.b16 %v361
    %v380 = vunpack.c.h.b16 %v361
    %v381 = vunpack.c.l.b16 %v362
    %v382 = vunpack.c.h.b16 %v362
    %v383 = vunpack.c.l.b16 %v363
    %v384 = vunpack.c.h.b16 %v363
    %v385 = vunpack.c.l.b16 %v364
    %v386 = vunpack.c.h.b16 %v364
    %v387 = vunpack.c.l.b16 %v365
    %v388 = vunpack.c.h.b16 %v365
    %v389 = vunpack.c.l.b16 %v366
    %v390 = vunpack.c.h.b16 %v366
    %v391 = vpack.c.b16 %v375, %v375
    %v392 = vpack.c.b16 %v376, %v376
    %v393 = vpack.c.b16 %v377, %v377
    %v394 = vpack.c.b16 %v378, %v378
    %v395 = vpack.c.b16 %v379, %v379
    %v396 = vpack.c.b16 %v380, %v380
    %v397 = vpack.c.b16 %v381, %v381
    %v398 = vpack.c.b16 %v382, %v382
    %v399 = vpack.c.b16 %v383, %v383
    %v400 = vpack.c.b16 %v384, %v384
    %v401 = vpack.c.b16 %v385, %v385
    %v402 = vpack.c.b16 %v386, %v386
    %v403 = vpack.c.b16 %v387, %v387
    %v404 = vpack.c.b16 %v388, %v388
    %v405 = vpack.c.b16 %v389, %v389
    %v406 = vpack.c.b16 %v390, %v390
    %423 = vst [vmem:[%s3] sm:$0xf] %v391
    %424 = vst [vmem:[%s3 + $0x4] sm:$0xf] %v392
    %425 = vst [vmem:[%s3 + $0x8] sm:$0xf] %v393
    %426 = vst [vmem:[%s3 + $0xc] sm:$0xf] %v394
    %427 = vst [vmem:[%s3 + $0x10] sm:$0xf] %v395
    %428 = vst [vmem:[%s3 + $0x14] sm:$0xf] %v396
    %429 = vst [vmem:[%s3 + $0x18] sm:$0xf] %v397
    %430 = vst [vmem:[%s3 + $0x1c] sm:$0xf] %v398
    %431 = vst [vmem:[%s3 + $0x20] sm:$0xf] %v399
    %432 = vst [vmem:[%s3 + $0x24] sm:$0xf] %v400
    %433 = vst [vmem:[%s3 + $0x28] sm:$0xf] %v401
    %434 = vst [vmem:[%s3 + $0x2c] sm:$0xf] %v402
    %435 = vst [vmem:[%s3 + $0x30] sm:$0xf] %v403
    %436 = vst [vmem:[%s3 + $0x34] sm:$0xf] %v404
    %437 = vst [vmem:[%s3 + $0x38] sm:$0xf] %v405
    %438 = vst [vmem:[%s3 + $0x3c] sm:$0xf] %v406
  $region21: #{modified_resnet_forward.28} parent=0 // pred_fallthru
    _
  // Predicated region
  $region22: #{modified_resnet_forward.28} parent=0 // pred_check
    _
  $region23: #{modified_resnet_forward.28} parent=0 // pred_check_branch
    %440 = sbr.rel (0) target = $region25
  $region24: #{modified_resnet_forward.28} parent=0 // pred_region
    _
  $region25: #{modified_resnet_forward.28} parent=0 // pred_fallthru
    _
  // Predicated region
  $region26: #{modified_resnet_forward.28} parent=0 // pred_check
    _
  $region27: #{modified_resnet_forward.28} parent=0 // pred_check_branch
    %442 = sbr.rel (0) target = $region29
  $region28: #{modified_resnet_forward.28} parent=0 // pred_region
    _
  $region29: #{modified_resnet_forward.28} parent=0 // pred_fallthru
    _

// kernel: modified_resnet_forward.29
$region0: #{modified_resnet_forward.29}
  #allocation0 [shape = 'u32[]', space=smem, size = 0x4, offset = 0x4, fixed_abs, tag = 'smem constant byte address 0x4 - core index']
  #allocation1 [shape = 'u32[144,128]{1,0:T(1,128)}', space=vmem, size = 0x12000, scoped, tag = 'internal scratch']
  #allocation2 [shape = 'f32[128,128]{1,0:T(8,128)}', space=vmem, size = 0x10000, scoped, tag = 'scratch operand']
  %s0 = inlined_call_operand.vmem [shape: bf16[128,8], index: 0, kind: input, shape index: {}]
  %s1 = inlined_call_operand.vmem [shape: bf16[8,128], index: 1, kind: input, shape index: {}]
  %s2 = inlined_call_operand.vmem [shape: f32[1,128], index: 2, kind: input, shape index: {}]
  %s3 = inlined_call_operand.vmem [shape: bf16[128,128], index: 3, kind: output, shape index: {}]
  %s4 = sld [smem:[#allocation0]]
  $region30: #{modified_resnet_forward.29} parent=0
    _
  %s6 = ssub.s32 1, %s4
  %s7 = scalar_select 0, %s6, %s4
  // Predicated region
  $region2: #{modified_resnet_forward.29} parent=0 // pred_check
    _
  $region3: #{modified_resnet_forward.29} parent=0 // pred_check_branch
    %9 = sbr.rel (0) target = $region5
  $region4: #{modified_resnet_forward.29} parent=0 // pred_region
    _
  $region5: #{modified_resnet_forward.29} parent=0 // pred_fallthru
    _
  // Predicated region
  $region6: #{modified_resnet_forward.29} parent=0 // pred_check
    _
  $region7: #{modified_resnet_forward.29} parent=0 // pred_check_branch
    %11 = sbr.rel (0) target = $region9
  $region8: #{modified_resnet_forward.29} parent=0 // pred_region
    _
  $region9: #{modified_resnet_forward.29} parent=0 // pred_fallthru
    _
  // Predicated region
  $region10: #{modified_resnet_forward.29} parent=0 // pred_check
    _
  $region11: #{modified_resnet_forward.29} parent=0 // pred_check_branch
    %13 = sbr.rel (0) target = $region13
  $region12: #{modified_resnet_forward.29} parent=0 // pred_region
    _
  $region13: #{modified_resnet_forward.29} parent=0 // pred_fallthru
    _
  %p15 = scmp.eq.s32.totalorder 0, 0
  // Predicated region
  $region14: #{modified_resnet_forward.29} parent=0 // pred_check
    %p16 = pneg %p15
  $region15: #{modified_resnet_forward.29} parent=0 // pred_check_branch
    %18 = sbr.rel (%p16) target = $region17
  $region16: #{modified_resnet_forward.29} parent=0 // pred_region
    %19 = vst [vmem:[#allocation2] sm:$0xff] 0.0
    %20 = vst [vmem:[#allocation2 + $0x8] sm:$0xff] 0.0
    %21 = vst [vmem:[#allocation2 + $0x10] sm:$0xff] 0.0
    %22 = vst [vmem:[#allocation2 + $0x18] sm:$0xff] 0.0
    %23 = vst [vmem:[#allocation2 + $0x20] sm:$0xff] 0.0
    %24 = vst [vmem:[#allocation2 + $0x28] sm:$0xff] 0.0
    %25 = vst [vmem:[#allocation2 + $0x30] sm:$0xff] 0.0
    %26 = vst [vmem:[#allocation2 + $0x38] sm:$0xff] 0.0
    %27 = vst [vmem:[#allocation2 + $0x40] sm:$0xff] 0.0
    %28 = vst [vmem:[#allocation2 + $0x48] sm:$0xff] 0.0
    %29 = vst [vmem:[#allocation2 + $0x50] sm:$0xff] 0.0
    %30 = vst [vmem:[#allocation2 + $0x58] sm:$0xff] 0.0
    %31 = vst [vmem:[#allocation2 + $0x60] sm:$0xff] 0.0
    %32 = vst [vmem:[#allocation2 + $0x68] sm:$0xff] 0.0
    %33 = vst [vmem:[#allocation2 + $0x70] sm:$0xff] 0.0
    %34 = vst [vmem:[#allocation2 + $0x78] sm:$0xff] 0.0
  $region17: #{modified_resnet_forward.29} parent=0 // pred_fallthru
    _
  %v35 = vld [vmem:[#allocation2] sm:$0xff]
  %v36 = vld [vmem:[#allocation2 + $0x8] sm:$0xff]
  %v37 = vld [vmem:[#allocation2 + $0x10] sm:$0xff]
  %v38 = vld [vmem:[#allocation2 + $0x18] sm:$0xff]
  %v39 = vld [vmem:[#allocation2 + $0x20] sm:$0xff]
  %v40 = vld [vmem:[#allocation2 + $0x28] sm:$0xff]
  %v41 = vld [vmem:[#allocation2 + $0x30] sm:$0xff]
  %v42 = vld [vmem:[#allocation2 + $0x38] sm:$0xff]
  %v43 = vld [vmem:[#allocation2 + $0x40] sm:$0xff]
  %v44 = vld [vmem:[#allocation2 + $0x48] sm:$0xff]
  %v45 = vld [vmem:[#allocation2 + $0x50] sm:$0xff]
  %v46 = vld [vmem:[#allocation2 + $0x58] sm:$0xff]
  %v47 = vld [vmem:[#allocation2 + $0x60] sm:$0xff]
  %v48 = vld [vmem:[#allocation2 + $0x68] sm:$0xff]
  %v49 = vld [vmem:[#allocation2 + $0x70] sm:$0xff]
  %v50 = vld [vmem:[#allocation2 + $0x78] sm:$0xff]
  %v51 = vld [vmem:[%s0] sm:$0xf]
  %v52 = vld [vmem:[%s0 + $0x4] sm:$0xf]
  %v53 = vld [vmem:[%s0 + $0x8] sm:$0xf]
  %v54 = vld [vmem:[%s0 + $0xc] sm:$0xf]
  %v55 = vld [vmem:[%s0 + $0x10] sm:$0xf]
  %v56 = vld [vmem:[%s0 + $0x14] sm:$0xf]
  %v57 = vld [vmem:[%s0 + $0x18] sm:$0xf]
  %v58 = vld [vmem:[%s0 + $0x1c] sm:$0xf]
  %v59 = vld [vmem:[%s0 + $0x20] sm:$0xf]
  %v60 = vld [vmem:[%s0 + $0x24] sm:$0xf]
  %v61 = vld [vmem:[%s0 + $0x28] sm:$0xf]
  %v62 = vld [vmem:[%s0 + $0x2c] sm:$0xf]
  %v63 = vld [vmem:[%s0 + $0x30] sm:$0xf]
  %v64 = vld [vmem:[%s0 + $0x34] sm:$0xf]
  %v65 = vld [vmem:[%s0 + $0x38] sm:$0xf]
  %v66 = vld [vmem:[%s0 + $0x3c] sm:$0xf]
  %v67 = vld [vmem:[%s1] sm:$0xf]
  %v84 = vunpack.c.l.b16 %v51
  %v85 = vunpack.c.l.b16 %v52
  %v86 = vunpack.c.l.b16 %v53
  %v87 = vunpack.c.l.b16 %v54
  %v88 = vunpack.c.l.b16 %v55
  %v89 = vunpack.c.l.b16 %v56
  %v90 = vunpack.c.l.b16 %v57
  %v91 = vunpack.c.l.b16 %v58
  %v92 = vunpack.c.l.b16 %v59
  %v93 = vunpack.c.l.b16 %v60
  %v94 = vunpack.c.l.b16 %v61
  %v95 = vunpack.c.l.b16 %v62
  %v96 = vunpack.c.l.b16 %v63
  %v97 = vunpack.c.l.b16 %v64
  %v98 = vunpack.c.l.b16 %v65
  %v99 = vunpack.c.l.b16 %v66
  %v100 = vpack.c.b16 %v85, %v84
  %v101 = vpack.c.b16 %v87, %v86
  %v102 = vpack.c.b16 %v89, %v88
  %v103 = vpack.c.b16 %v91, %v90
  %v104 = vpack.c.b16 %v93, %v92
  %v105 = vpack.c.b16 %v95, %v94
  %v106 = vpack.c.b16 %v97, %v96
  %v107 = vpack.c.b16 %v99, %v98
  %vm108 = vcmask 64512
  %v110 = vsel %vm108, %v100, 0
  %v113 = vsel %vm108, %v101, 0
  %v116 = vsel %vm108, %v102, 0
  %v119 = vsel %vm108, %v103, 0
  %v122 = vsel %vm108, %v104, 0
  %v125 = vsel %vm108, %v105, 0
  %v128 = vsel %vm108, %v106, 0
  %v131 = vsel %vm108, %v107, 0
  %vm133 = vcmask 1043456
  %v135 = vsel %vm133, %v67, 0
  %137 = vmatprep.subr.bf16.mxu0 0
  %138 = vmatpush1.bf16.msra.mxu0 %v135
  %139 = vmatprep.subr.bf16.mxu0 0
  %140 = vmatpush1.bf16.msra.mxu0 0
  %141 = vmatprep.subr.bf16.mxu0 0
  %142 = vmatpush1.bf16.msra.mxu0 0
  %143 = vmatprep.subr.bf16.mxu0 0
  %144 = vmatpush1.bf16.msra.mxu0 0
  %145 = vmatprep.subr.bf16.mxu0 0
  %146 = vmatpush1.bf16.msra.mxu0 0
  %147 = vmatprep.subr.bf16.mxu0 0
  %148 = vmatpush1.bf16.msra.mxu0 0
  %149 = vmatprep.subr.bf16.mxu0 0
  %150 = vmatpush1.bf16.msra.mxu0 0
  %151 = vmatprep.subr.bf16.mxu0 0
  %152 = vmatpush1.bf16.msra.mxu0 0
  %153 = vmatprep.subr.bf16.mxu0 0
  %154 = vmatpush1.bf16.msra.mxu0 0
  %155 = vmatprep.subr.bf16.mxu0 0
  %156 = vmatpush1.bf16.msra.mxu0 0
  %157 = vmatprep.subr.bf16.mxu0 0
  %158 = vmatpush1.bf16.msra.mxu0 0
  %159 = vmatprep.subr.bf16.mxu0 0
  %160 = vmatpush1.bf16.msra.mxu0 0
  %161 = vmatprep.subr.bf16.mxu0 0
  %162 = vmatpush1.bf16.msra.mxu0 0
  %163 = vmatprep.subr.bf16.mxu0 0
  %164 = vmatpush1.bf16.msra.mxu0 0
  %165 = vmatprep.subr.bf16.mxu0 0
  %166 = vmatpush1.bf16.msra.mxu0 0
  %167 = vmatprep.subr.bf16.mxu0 0
  %168 = vmatpush1.bf16.msra.mxu0 0
  %169 = vmatprep.mubr.bf16.mxu0 0
  %170 = vmatmul.mubr.bf16.gmra.mrb[0].mxu0 %v110
  %v171 = vpop.f32.mrb[0].mxu0
  %v172 = vadd.f32 0.0, %v171
  %v173 = vpop.f32.mrb[0].mxu0
  %v174 = vpop.f32.mrb[0].mxu0
  %v175 = vadd.f32 0.0, %v174
  %v176 = vpop.f32.mrb[0].mxu0
  %177 = vmatprep.mubr.bf16.mxu0 0
  %178 = vmatmul.mubr.bf16.gmra.mrb[0].mxu0 %v113
  %v179 = vpop.f32.mrb[0].mxu0
  %v180 = vadd.f32 0.0, %v179
  %v181 = vpop.f32.mrb[0].mxu0
  %v182 = vpop.f32.mrb[0].mxu0
  %v183 = vadd.f32 0.0, %v182
  %v184 = vpop.f32.mrb[0].mxu0
  %185 = vmatprep.mubr.bf16.mxu0 0
  %186 = vmatmul.mubr.bf16.gmra.mrb[0].mxu0 %v116
  %v187 = vpop.f32.mrb[0].mxu0
  %v188 = vadd.f32 0.0, %v187
  %v189 = vpop.f32.mrb[0].mxu0
  %v190 = vpop.f32.mrb[0].mxu0
  %v191 = vadd.f32 0.0, %v190
  %v192 = vpop.f32.mrb[0].mxu0
  %193 = vmatprep.mubr.bf16.mxu0 0
  %194 = vmatmul.mubr.bf16.gmra.mrb[0].mxu0 %v119
  %v195 = vpop.f32.mrb[0].mxu0
  %v196 = vadd.f32 0.0, %v195
  %v197 = vpop.f32.mrb[0].mxu0
  %v198 = vpop.f32.mrb[0].mxu0
  %v199 = vadd.f32 0.0, %v198
  %v200 = vpop.f32.mrb[0].mxu0
  %201 = vmatprep.mubr.bf16.mxu0 0
  %202 = vmatmul.mubr.bf16.gmra.mrb[0].mxu0 %v122
  %v203 = vpop.f32.mrb[0].mxu0
  %v204 = vadd.f32 0.0, %v203
  %v205 = vpop.f32.mrb[0].mxu0
  %v206 = vpop.f32.mrb[0].mxu0
  %v207 = vadd.f32 0.0, %v206
  %v208 = vpop.f32.mrb[0].mxu0
  %209 = vmatprep.mubr.bf16.mxu0 0
  %210 = vmatmul.mubr.bf16.gmra.mrb[0].mxu0 %v125
  %v211 = vpop.f32.mrb[0].mxu0
  %v212 = vadd.f32 0.0, %v211
  %v213 = vpop.f32.mrb[0].mxu0
  %v214 = vpop.f32.mrb[0].mxu0
  %v215 = vadd.f32 0.0, %v214
  %v216 = vpop.f32.mrb[0].mxu0
  %217 = vmatprep.mubr.bf16.mxu0 0
  %218 = vmatmul.mubr.bf16.gmra.mrb[0].mxu0 %v128
  %v219 = vpop.f32.mrb[0].mxu0
  %v220 = vadd.f32 0.0, %v219
  %v221 = vpop.f32.mrb[0].mxu0
  %v222 = vpop.f32.mrb[0].mxu0
  %v223 = vadd.f32 0.0, %v222
  %v224 = vpop.f32.mrb[0].mxu0
  %225 = vmatprep.mubr.bf16.mxu0 0
  %226 = vmatmul.mubr.bf16.gmra.mrb[0].mxu0 %v131
  %v227 = vpop.f32.mrb[0].mxu0
  %v228 = vadd.f32 0.0, %v227
  %v229 = vpop.f32.mrb[0].mxu0
  %v230 = vpop.f32.mrb[0].mxu0
  %v231 = vadd.f32 0.0, %v230
  %v232 = vpop.f32.mrb[0].mxu0
  %233 = vdwg.mxu0
  %v234 = vadd.f32 %v35, %v172
  %v235 = vadd.f32 %v36, %v175
  %v236 = vadd.f32 %v37, %v180
  %v237 = vadd.f32 %v38, %v183
  %v238 = vadd.f32 %v39, %v188
  %v239 = vadd.f32 %v40, %v191
  %v240 = vadd.f32 %v41, %v196
  %v241 = vadd.f32 %v42, %v199
  %v242 = vadd.f32 %v43, %v204
  %v243 = vadd.f32 %v44, %v207
  %v244 = vadd.f32 %v45, %v212
  %v245 = vadd.f32 %v46, %v215
  %v246 = vadd.f32 %v47, %v220
  %v247 = vadd.f32 %v48, %v223
  %v248 = vadd.f32 %v49, %v228
  %v249 = vadd.f32 %v50, %v231
  %250 = vst [vmem:[#allocation2] sm:$0xff] %v234
  %251 = vst [vmem:[#allocation2 + $0x8] sm:$0xff] %v235
  %252 = vst [vmem:[#allocation2 + $0x10] sm:$0xff] %v236
  %253 = vst [vmem:[#allocation2 + $0x18] sm:$0xff] %v237
  %254 = vst [vmem:[#allocation2 + $0x20] sm:$0xff] %v238
  %255 = vst [vmem:[#allocation2 + $0x28] sm:$0xff] %v239
  %256 = vst [vmem:[#allocation2 + $0x30] sm:$0xff] %v240
  %257 = vst [vmem:[#allocation2 + $0x38] sm:$0xff] %v241
  %258 = vst [vmem:[#allocation2 + $0x40] sm:$0xff] %v242
  %259 = vst [vmem:[#allocation2 + $0x48] sm:$0xff] %v243
  %260 = vst [vmem:[#allocation2 + $0x50] sm:$0xff] %v244
  %261 = vst [vmem:[#allocation2 + $0x58] sm:$0xff] %v245
  %262 = vst [vmem:[#allocation2 + $0x60] sm:$0xff] %v246
  %263 = vst [vmem:[#allocation2 + $0x68] sm:$0xff] %v247
  %264 = vst [vmem:[#allocation2 + $0x70] sm:$0xff] %v248
  %265 = vst [vmem:[#allocation2 + $0x78] sm:$0xff] %v249
  // Predicated region
  $region18: #{modified_resnet_forward.29} parent=0 // pred_check
    %p266 = pneg %p15
  $region19: #{modified_resnet_forward.29} parent=0 // pred_check_branch
    %268 = sbr.rel (%p266) target = $region21
  $region20: #{modified_resnet_forward.29} parent=0 // pred_region
    %v269 = vld [vmem:[#allocation2] sm:$0xff]
    %v270 = vld [vmem:[#allocation2 + $0x8] sm:$0xff]
    %v271 = vld [vmem:[#allocation2 + $0x10] sm:$0xff]
    %v272 = vld [vmem:[#allocation2 + $0x18] sm:$0xff]
    %v273 = vld [vmem:[#allocation2 + $0x20] sm:$0xff]
    %v274 = vld [vmem:[#allocation2 + $0x28] sm:$0xff]
    %v275 = vld [vmem:[#allocation2 + $0x30] sm:$0xff]
    %v276 = vld [vmem:[#allocation2 + $0x38] sm:$0xff]
    %v277 = vld [vmem:[#allocation2 + $0x40] sm:$0xff]
    %v278 = vld [vmem:[#allocation2 + $0x48] sm:$0xff]
    %v279 = vld [vmem:[#allocation2 + $0x50] sm:$0xff]
    %v280 = vld [vmem:[#allocation2 + $0x58] sm:$0xff]
    %v281 = vld [vmem:[#allocation2 + $0x60] sm:$0xff]
    %v282 = vld [vmem:[#allocation2 + $0x68] sm:$0xff]
    %v283 = vld [vmem:[#allocation2 + $0x70] sm:$0xff]
    %v284 = vld [vmem:[#allocation2 + $0x78] sm:$0xff]
    %v285 = vld [vmem:[%s2] sm:$0x1]
    %v287 = vlaneseq
    %v288 = vshrl.u32 %v287, 7
    %v289 = vsub.s32 0, %v288
    %v290 = vrot.slane %v285, %v289
    %v292 = vadd.f32 %v269, %v290
    %v293 = vadd.f32 %v270, %v290
    %v294 = vadd.f32 %v271, %v290
    %v295 = vadd.f32 %v272, %v290
    %v296 = vadd.f32 %v273, %v290
    %v297 = vadd.f32 %v274, %v290
    %v298 = vadd.f32 %v275, %v290
    %v299 = vadd.f32 %v276, %v290
    %v300 = vadd.f32 %v277, %v290
    %v301 = vadd.f32 %v278, %v290
    %v302 = vadd.f32 %v279, %v290
    %v303 = vadd.f32 %v280, %v290
    %v304 = vadd.f32 %v281, %v290
    %v305 = vadd.f32 %v282, %v290
    %v306 = vadd.f32 %v283, %v290
    %v307 = vadd.f32 %v284, %v290
    %v308 = vpack.c.bf16 %v293, %v292
    %v309 = vpack.c.bf16 %v295, %v294
    %v310 = vpack.c.bf16 %v297, %v296
    %v311 = vpack.c.bf16 %v299, %v298
    %v312 = vpack.c.bf16 %v301, %v300
    %v313 = vpack.c.bf16 %v303, %v302
    %v314 = vpack.c.bf16 %v305, %v304
    %v315 = vpack.c.bf16 %v307, %v306
    %v324 = vunpack.c.l.b16 %v308
    %v325 = vunpack.c.h.b16 %v308
    %v326 = vunpack.c.l.b16 %v309
    %v327 = vunpack.c.h.b16 %v309
    %v328 = vunpack.c.l.b16 %v310
    %v329 = vunpack.c.h.b16 %v310
    %v330 = vunpack.c.l.b16 %v311
    %v331 = vunpack.c.h.b16 %v311
    %v332 = vunpack.c.l.b16 %v312
    %v333 = vunpack.c.h.b16 %v312
    %v334 = vunpack.c.l.b16 %v313
    %v335 = vunpack.c.h.b16 %v313
    %v336 = vunpack.c.l.b16 %v314
    %v337 = vunpack.c.h.b16 %v314
    %v338 = vunpack.c.l.b16 %v315
    %v339 = vunpack.c.h.b16 %v315
    %v340 = vpack.c.b16 %v324, %v324
    %v341 = vpack.c.b16 %v325, %v325
    %v342 = vpack.c.b16 %v326, %v326
    %v343 = vpack.c.b16 %v327, %v327
    %v344 = vpack.c.b16 %v328, %v328
    %v345 = vpack.c.b16 %v329, %v329
    %v346 = vpack.c.b16 %v330, %v330
    %v347 = vpack.c.b16 %v331, %v331
    %v348 = vpack.c.b16 %v332, %v332
    %v349 = vpack.c.b16 %v333, %v333
    %v350 = vpack.c.b16 %v334, %v334
    %v351 = vpack.c.b16 %v335, %v335
    %v352 = vpack.c.b16 %v336, %v336
    %v353 = vpack.c.b16 %v337, %v337
    %v354 = vpack.c.b16 %v338, %v338
    %v355 = vpack.c.b16 %v339, %v339
    %372 = vst [vmem:[%s3] sm:$0xf] %v340
    %373 = vst [vmem:[%s3 + $0x4] sm:$0xf] %v341
    %374 = vst [vmem:[%s3 + $0x8] sm:$0xf] %v342
    %375 = vst [vmem:[%s3 + $0xc] sm:$0xf] %v343
    %376 = vst [vmem:[%s3 + $0x10] sm:$0xf] %v344
    %377 = vst [vmem:[%s3 + $0x14] sm:$0xf] %v345
    %378 = vst [vmem:[%s3 + $0x18] sm:$0xf] %v346
    %379 = vst [vmem:[%s3 + $0x1c] sm:$0xf] %v347
    %380 = vst [vmem:[%s3 + $0x20] sm:$0xf] %v348
    %381 = vst [vmem:[%s3 + $0x24] sm:$0xf] %v349
    %382 = vst [vmem:[%s3 + $0x28] sm:$0xf] %v350
    %383 = vst [vmem:[%s3 + $0x2c] sm:$0xf] %v351
    %384 = vst [vmem:[%s3 + $0x30] sm:$0xf] %v352
    %385 = vst [vmem:[%s3 + $0x34] sm:$0xf] %v353
    %386 = vst [vmem:[%s3 + $0x38] sm:$0xf] %v354
    %387 = vst [vmem:[%s3 + $0x3c] sm:$0xf] %v355
  $region21: #{modified_resnet_forward.29} parent=0 // pred_fallthru
    _
  // Predicated region
  $region22: #{modified_resnet_forward.29} parent=0 // pred_check
    _
  $region23: #{modified_resnet_forward.29} parent=0 // pred_check_branch
    %389 = sbr.rel (0) target = $region25
  $region24: #{modified_resnet_forward.29} parent=0 // pred_region
    _
  $region25: #{modified_resnet_forward.29} parent=0 // pred_fallthru
    _
  // Predicated region
  $region26: #{modified_resnet_forward.29} parent=0 // pred_check
    _
  $region27: #{modified_resnet_forward.29} parent=0 // pred_check_branch
    %391 = sbr.rel (0) target = $region29
  $region28: #{modified_resnet_forward.29} parent=0 // pred_region
    _
  $region29: #{modified_resnet_forward.29} parent=0 // pred_fallthru
    _

// kernel: modified_resnet_forward.30
$region0: #{modified_resnet_forward.30}
  #allocation0 [shape = 'u32[]', space=smem, size = 0x4, offset = 0x4, fixed_abs, tag = 'smem constant byte address 0x4 - core index']
  #allocation1 [shape = 'u32[144,128]{1,0:T(1,128)}', space=vmem, size = 0x12000, scoped, tag = 'internal scratch']
  #allocation2 [shape = 'f32[128,128]{1,0:T(8,128)}', space=vmem, size = 0x10000, scoped, tag = 'scratch operand']
  %s0 = inlined_call_operand.vmem [shape: bf16[128,8], index: 0, kind: input, shape index: {}]
  %s1 = inlined_call_operand.vmem [shape: bf16[8,128], index: 1, kind: input, shape index: {}]
  %s2 = inlined_call_operand.vmem [shape: f32[1,128], index: 2, kind: input, shape index: {}]
  %s3 = inlined_call_operand.vmem [shape: bf16[128,128], index: 3, kind: input, shape index: {}]
  %s4 = inlined_call_operand.vmem [shape: bf16[128,128], index: 4, kind: output, shape index: {}]
  %s5 = sld [smem:[#allocation0]]
  $region34: #{modified_resnet_forward.30} parent=0
    _
  %s7 = ssub.s32 1, %s5
  %s8 = scalar_select 0, %s7, %s5
  // Predicated region
  $region2: #{modified_resnet_forward.30} parent=0 // pred_check
    _
  $region3: #{modified_resnet_forward.30} parent=0 // pred_check_branch
    %10 = sbr.rel (0) target = $region5
  $region4: #{modified_resnet_forward.30} parent=0 // pred_region
    _
  $region5: #{modified_resnet_forward.30} parent=0 // pred_fallthru
    _
  // Predicated region
  $region6: #{modified_resnet_forward.30} parent=0 // pred_check
    _
  $region7: #{modified_resnet_forward.30} parent=0 // pred_check_branch
    %12 = sbr.rel (0) target = $region9
  $region8: #{modified_resnet_forward.30} parent=0 // pred_region
    _
  $region9: #{modified_resnet_forward.30} parent=0 // pred_fallthru
    _
  // Predicated region
  $region10: #{modified_resnet_forward.30} parent=0 // pred_check
    _
  $region11: #{modified_resnet_forward.30} parent=0 // pred_check_branch
    %14 = sbr.rel (0) target = $region13
  $region12: #{modified_resnet_forward.30} parent=0 // pred_region
    _
  $region13: #{modified_resnet_forward.30} parent=0 // pred_fallthru
    _
  // Predicated region
  $region14: #{modified_resnet_forward.30} parent=0 // pred_check
    _
  $region15: #{modified_resnet_forward.30} parent=0 // pred_check_branch
    %16 = sbr.rel (0) target = $region17
  $region16: #{modified_resnet_forward.30} parent=0 // pred_region
    _
  $region17: #{modified_resnet_forward.30} parent=0 // pred_fallthru
    _
  %p18 = scmp.eq.s32.totalorder 0, 0
  // Predicated region
  $region18: #{modified_resnet_forward.30} parent=0 // pred_check
    %p19 = pneg %p18
  $region19: #{modified_resnet_forward.30} parent=0 // pred_check_branch
    %21 = sbr.rel (%p19) target = $region21
  $region20: #{modified_resnet_forward.30} parent=0 // pred_region
    %22 = vst [vmem:[#allocation2] sm:$0xff] 0.0
    %23 = vst [vmem:[#allocation2 + $0x8] sm:$0xff] 0.0
    %24 = vst [vmem:[#allocation2 + $0x10] sm:$0xff] 0.0
    %25 = vst [vmem:[#allocation2 + $0x18] sm:$0xff] 0.0
    %26 = vst [vmem:[#allocation2 + $0x20] sm:$0xff] 0.0
    %27 = vst [vmem:[#allocation2 + $0x28] sm:$0xff] 0.0
    %28 = vst [vmem:[#allocation2 + $0x30] sm:$0xff] 0.0
    %29 = vst [vmem:[#allocation2 + $0x38] sm:$0xff] 0.0
    %30 = vst [vmem:[#allocation2 + $0x40] sm:$0xff] 0.0
    %31 = vst [vmem:[#allocation2 + $0x48] sm:$0xff] 0.0
    %32 = vst [vmem:[#allocation2 + $0x50] sm:$0xff] 0.0
    %33 = vst [vmem:[#allocation2 + $0x58] sm:$0xff] 0.0
    %34 = vst [vmem:[#allocation2 + $0x60] sm:$0xff] 0.0
    %35 = vst [vmem:[#allocation2 + $0x68] sm:$0xff] 0.0
    %36 = vst [vmem:[#allocation2 + $0x70] sm:$0xff] 0.0
    %37 = vst [vmem:[#allocation2 + $0x78] sm:$0xff] 0.0
  $region21: #{modified_resnet_forward.30} parent=0 // pred_fallthru
    _
  %v38 = vld [vmem:[#allocation2] sm:$0xff]
  %v39 = vld [vmem:[#allocation2 + $0x8] sm:$0xff]
  %v40 = vld [vmem:[#allocation2 + $0x10] sm:$0xff]
  %v41 = vld [vmem:[#allocation2 + $0x18] sm:$0xff]
  %v42 = vld [vmem:[#allocation2 + $0x20] sm:$0xff]
  %v43 = vld [vmem:[#allocation2 + $0x28] sm:$0xff]
  %v44 = vld [vmem:[#allocation2 + $0x30] sm:$0xff]
  %v45 = vld [vmem:[#allocation2 + $0x38] sm:$0xff]
  %v46 = vld [vmem:[#allocation2 + $0x40] sm:$0xff]
  %v47 = vld [vmem:[#allocation2 + $0x48] sm:$0xff]
  %v48 = vld [vmem:[#allocation2 + $0x50] sm:$0xff]
  %v49 = vld [vmem:[#allocation2 + $0x58] sm:$0xff]
  %v50 = vld [vmem:[#allocation2 + $0x60] sm:$0xff]
  %v51 = vld [vmem:[#allocation2 + $0x68] sm:$0xff]
  %v52 = vld [vmem:[#allocation2 + $0x70] sm:$0xff]
  %v53 = vld [vmem:[#allocation2 + $0x78] sm:$0xff]
  %v54 = vld [vmem:[%s0] sm:$0xf]
  %v55 = vld [vmem:[%s0 + $0x4] sm:$0xf]
  %v56 = vld [vmem:[%s0 + $0x8] sm:$0xf]
  %v57 = vld [vmem:[%s0 + $0xc] sm:$0xf]
  %v58 = vld [vmem:[%s0 + $0x10] sm:$0xf]
  %v59 = vld [vmem:[%s0 + $0x14] sm:$0xf]
  %v60 = vld [vmem:[%s0 + $0x18] sm:$0xf]
  %v61 = vld [vmem:[%s0 + $0x1c] sm:$0xf]
  %v62 = vld [vmem:[%s0 + $0x20] sm:$0xf]
  %v63 = vld [vmem:[%s0 + $0x24] sm:$0xf]
  %v64 = vld [vmem:[%s0 + $0x28] sm:$0xf]
  %v65 = vld [vmem:[%s0 + $0x2c] sm:$0xf]
  %v66 = vld [vmem:[%s0 + $0x30] sm:$0xf]
  %v67 = vld [vmem:[%s0 + $0x34] sm:$0xf]
  %v68 = vld [vmem:[%s0 + $0x38] sm:$0xf]
  %v69 = vld [vmem:[%s0 + $0x3c] sm:$0xf]
  %v70 = vld [vmem:[%s1] sm:$0xf]
  %v87 = vunpack.c.l.b16 %v54
  %v88 = vunpack.c.l.b16 %v55
  %v89 = vunpack.c.l.b16 %v56
  %v90 = vunpack.c.l.b16 %v57
  %v91 = vunpack.c.l.b16 %v58
  %v92 = vunpack.c.l.b16 %v59
  %v93 = vunpack.c.l.b16 %v60
  %v94 = vunpack.c.l.b16 %v61
  %v95 = vunpack.c.l.b16 %v62
  %v96 = vunpack.c.l.b16 %v63
  %v97 = vunpack.c.l.b16 %v64
  %v98 = vunpack.c.l.b16 %v65
  %v99 = vunpack.c.l.b16 %v66
  %v100 = vunpack.c.l.b16 %v67
  %v101 = vunpack.c.l.b16 %v68
  %v102 = vunpack.c.l.b16 %v69
  %v103 = vpack.c.b16 %v88, %v87
  %v104 = vpack.c.b16 %v90, %v89
  %v105 = vpack.c.b16 %v92, %v91
  %v106 = vpack.c.b16 %v94, %v93
  %v107 = vpack.c.b16 %v96, %v95
  %v108 = vpack.c.b16 %v98, %v97
  %v109 = vpack.c.b16 %v100, %v99
  %v110 = vpack.c.b16 %v102, %v101
  %vm111 = vcmask 64512
  %v113 = vsel %vm111, %v103, 0
  %v116 = vsel %vm111, %v104, 0
  %v119 = vsel %vm111, %v105, 0
  %v122 = vsel %vm111, %v106, 0
  %v125 = vsel %vm111, %v107, 0
  %v128 = vsel %vm111, %v108, 0
  %v131 = vsel %vm111, %v109, 0
  %v134 = vsel %vm111, %v110, 0
  %vm136 = vcmask 1043456
  %v138 = vsel %vm136, %v70, 0
  %140 = vmatprep.subr.bf16.mxu0 0
  %141 = vmatpush1.bf16.msra.mxu0 %v138
  %142 = vmatprep.subr.bf16.mxu0 0
  %143 = vmatpush1.bf16.msra.mxu0 0
  %144 = vmatprep.subr.bf16.mxu0 0
  %145 = vmatpush1.bf16.msra.mxu0 0
  %146 = vmatprep.subr.bf16.mxu0 0
  %147 = vmatpush1.bf16.msra.mxu0 0
  %148 = vmatprep.subr.bf16.mxu0 0
  %149 = vmatpush1.bf16.msra.mxu0 0
  %150 = vmatprep.subr.bf16.mxu0 0
  %151 = vmatpush1.bf16.msra.mxu0 0
  %152 = vmatprep.subr.bf16.mxu0 0
  %153 = vmatpush1.bf16.msra.mxu0 0
  %154 = vmatprep.subr.bf16.mxu0 0
  %155 = vmatpush1.bf16.msra.mxu0 0
  %156 = vmatprep.subr.bf16.mxu0 0
  %157 = vmatpush1.bf16.msra.mxu0 0
  %158 = vmatprep.subr.bf16.mxu0 0
  %159 = vmatpush1.bf16.msra.mxu0 0
  %160 = vmatprep.subr.bf16.mxu0 0
  %161 = vmatpush1.bf16.msra.mxu0 0
  %162 = vmatprep.subr.bf16.mxu0 0
  %163 = vmatpush1.bf16.msra.mxu0 0
  %164 = vmatprep.subr.bf16.mxu0 0
  %165 = vmatpush1.bf16.msra.mxu0 0
  %166 = vmatprep.subr.bf16.mxu0 0
  %167 = vmatpush1.bf16.msra.mxu0 0
  %168 = vmatprep.subr.bf16.mxu0 0
  %169 = vmatpush1.bf16.msra.mxu0 0
  %170 = vmatprep.subr.bf16.mxu0 0
  %171 = vmatpush1.bf16.msra.mxu0 0
  %172 = vmatprep.mubr.bf16.mxu0 0
  %173 = vmatmul.mubr.bf16.gmra.mrb[0].mxu0 %v113
  %v174 = vpop.f32.mrb[0].mxu0
  %v175 = vadd.f32 0.0, %v174
  %v176 = vpop.f32.mrb[0].mxu0
  %v177 = vpop.f32.mrb[0].mxu0
  %v178 = vadd.f32 0.0, %v177
  %v179 = vpop.f32.mrb[0].mxu0
  %180 = vmatprep.mubr.bf16.mxu0 0
  %181 = vmatmul.mubr.bf16.gmra.mrb[0].mxu0 %v116
  %v182 = vpop.f32.mrb[0].mxu0
  %v183 = vadd.f32 0.0, %v182
  %v184 = vpop.f32.mrb[0].mxu0
  %v185 = vpop.f32.mrb[0].mxu0
  %v186 = vadd.f32 0.0, %v185
  %v187 = vpop.f32.mrb[0].mxu0
  %188 = vmatprep.mubr.bf16.mxu0 0
  %189 = vmatmul.mubr.bf16.gmra.mrb[0].mxu0 %v119
  %v190 = vpop.f32.mrb[0].mxu0
  %v191 = vadd.f32 0.0, %v190
  %v192 = vpop.f32.mrb[0].mxu0
  %v193 = vpop.f32.mrb[0].mxu0
  %v194 = vadd.f32 0.0, %v193
  %v195 = vpop.f32.mrb[0].mxu0
  %196 = vmatprep.mubr.bf16.mxu0 0
  %197 = vmatmul.mubr.bf16.gmra.mrb[0].mxu0 %v122
  %v198 = vpop.f32.mrb[0].mxu0
  %v199 = vadd.f32 0.0, %v198
  %v200 = vpop.f32.mrb[0].mxu0
  %v201 = vpop.f32.mrb[0].mxu0
  %v202 = vadd.f32 0.0, %v201
  %v203 = vpop.f32.mrb[0].mxu0
  %204 = vmatprep.mubr.bf16.mxu0 0
  %205 = vmatmul.mubr.bf16.gmra.mrb[0].mxu0 %v125
  %v206 = vpop.f32.mrb[0].mxu0
  %v207 = vadd.f32 0.0, %v206
  %v208 = vpop.f32.mrb[0].mxu0
  %v209 = vpop.f32.mrb[0].mxu0
  %v210 = vadd.f32 0.0, %v209
  %v211 = vpop.f32.mrb[0].mxu0
  %212 = vmatprep.mubr.bf16.mxu0 0
  %213 = vmatmul.mubr.bf16.gmra.mrb[0].mxu0 %v128
  %v214 = vpop.f32.mrb[0].mxu0
  %v215 = vadd.f32 0.0, %v214
  %v216 = vpop.f32.mrb[0].mxu0
  %v217 = vpop.f32.mrb[0].mxu0
  %v218 = vadd.f32 0.0, %v217
  %v219 = vpop.f32.mrb[0].mxu0
  %220 = vmatprep.mubr.bf16.mxu0 0
  %221 = vmatmul.mubr.bf16.gmra.mrb[0].mxu0 %v131
  %v222 = vpop.f32.mrb[0].mxu0
  %v223 = vadd.f32 0.0, %v222
  %v224 = vpop.f32.mrb[0].mxu0
  %v225 = vpop.f32.mrb[0].mxu0
  %v226 = vadd.f32 0.0, %v225
  %v227 = vpop.f32.mrb[0].mxu0
  %228 = vmatprep.mubr.bf16.mxu0 0
  %229 = vmatmul.mubr.bf16.gmra.mrb[0].mxu0 %v134
  %v230 = vpop.f32.mrb[0].mxu0
  %v231 = vadd.f32 0.0, %v230
  %v232 = vpop.f32.mrb[0].mxu0
  %v233 = vpop.f32.mrb[0].mxu0
  %v234 = vadd.f32 0.0, %v233
  %v235 = vpop.f32.mrb[0].mxu0
  %236 = vdwg.mxu0
  %v237 = vadd.f32 %v38, %v175
  %v238 = vadd.f32 %v39, %v178
  %v239 = vadd.f32 %v40, %v183
  %v240 = vadd.f32 %v41, %v186
  %v241 = vadd.f32 %v42, %v191
  %v242 = vadd.f32 %v43, %v194
  %v243 = vadd.f32 %v44, %v199
  %v244 = vadd.f32 %v45, %v202
  %v245 = vadd.f32 %v46, %v207
  %v246 = vadd.f32 %v47, %v210
  %v247 = vadd.f32 %v48, %v215
  %v248 = vadd.f32 %v49, %v218
  %v249 = vadd.f32 %v50, %v223
  %v250 = vadd.f32 %v51, %v226
  %v251 = vadd.f32 %v52, %v231
  %v252 = vadd.f32 %v53, %v234
  %253 = vst [vmem:[#allocation2] sm:$0xff] %v237
  %254 = vst [vmem:[#allocation2 + $0x8] sm:$0xff] %v238
  %255 = vst [vmem:[#allocation2 + $0x10] sm:$0xff] %v239
  %256 = vst [vmem:[#allocation2 + $0x18] sm:$0xff] %v240
  %257 = vst [vmem:[#allocation2 + $0x20] sm:$0xff] %v241
  %258 = vst [vmem:[#allocation2 + $0x28] sm:$0xff] %v242
  %259 = vst [vmem:[#allocation2 + $0x30] sm:$0xff] %v243
  %260 = vst [vmem:[#allocation2 + $0x38] sm:$0xff] %v244
  %261 = vst [vmem:[#allocation2 + $0x40] sm:$0xff] %v245
  %262 = vst [vmem:[#allocation2 + $0x48] sm:$0xff] %v246
  %263 = vst [vmem:[#allocation2 + $0x50] sm:$0xff] %v247
  %264 = vst [vmem:[#allocation2 + $0x58] sm:$0xff] %v248
  %265 = vst [vmem:[#allocation2 + $0x60] sm:$0xff] %v249
  %266 = vst [vmem:[#allocation2 + $0x68] sm:$0xff] %v250
  %267 = vst [vmem:[#allocation2 + $0x70] sm:$0xff] %v251
  %268 = vst [vmem:[#allocation2 + $0x78] sm:$0xff] %v252
  // Predicated region
  $region22: #{modified_resnet_forward.30} parent=0 // pred_check
    %p269 = pneg %p18
  $region23: #{modified_resnet_forward.30} parent=0 // pred_check_branch
    %271 = sbr.rel (%p269) target = $region25
  $region24: #{modified_resnet_forward.30} parent=0 // pred_region
    %v272 = vld [vmem:[#allocation2] sm:$0xff]
    %v273 = vld [vmem:[#allocation2 + $0x8] sm:$0xff]
    %v274 = vld [vmem:[#allocation2 + $0x10] sm:$0xff]
    %v275 = vld [vmem:[#allocation2 + $0x18] sm:$0xff]
    %v276 = vld [vmem:[#allocation2 + $0x20] sm:$0xff]
    %v277 = vld [vmem:[#allocation2 + $0x28] sm:$0xff]
    %v278 = vld [vmem:[#allocation2 + $0x30] sm:$0xff]
    %v279 = vld [vmem:[#allocation2 + $0x38] sm:$0xff]
    %v280 = vld [vmem:[#allocation2 + $0x40] sm:$0xff]
    %v281 = vld [vmem:[#allocation2 + $0x48] sm:$0xff]
    %v282 = vld [vmem:[#allocation2 + $0x50] sm:$0xff]
    %v283 = vld [vmem:[#allocation2 + $0x58] sm:$0xff]
    %v284 = vld [vmem:[#allocation2 + $0x60] sm:$0xff]
    %v285 = vld [vmem:[#allocation2 + $0x68] sm:$0xff]
    %v286 = vld [vmem:[#allocation2 + $0x70] sm:$0xff]
    %v287 = vld [vmem:[#allocation2 + $0x78] sm:$0xff]
    %v288 = vld [vmem:[%s2] sm:$0x1]
    %v290 = vlaneseq
    %v291 = vshrl.u32 %v290, 7
    %v292 = vsub.s32 0, %v291
    %v293 = vrot.slane %v288, %v292
    %v295 = vadd.f32 %v272, %v293
    %v296 = vadd.f32 %v273, %v293
    %v297 = vadd.f32 %v274, %v293
    %v298 = vadd.f32 %v275, %v293
    %v299 = vadd.f32 %v276, %v293
    %v300 = vadd.f32 %v277, %v293
    %v301 = vadd.f32 %v278, %v293
    %v302 = vadd.f32 %v279, %v293
    %v303 = vadd.f32 %v280, %v293
    %v304 = vadd.f32 %v281, %v293
    %v305 = vadd.f32 %v282, %v293
    %v306 = vadd.f32 %v283, %v293
    %v307 = vadd.f32 %v284, %v293
    %v308 = vadd.f32 %v285, %v293
    %v309 = vadd.f32 %v286, %v293
    %v310 = vadd.f32 %v287, %v293
    %v311 = vld [vmem:[%s3] sm:$0xf]
    %v312 = vld [vmem:[%s3 + $0x4] sm:$0xf]
    %v313 = vld [vmem:[%s3 + $0x8] sm:$0xf]
    %v314 = vld [vmem:[%s3 + $0xc] sm:$0xf]
    %v315 = vld [vmem:[%s3 + $0x10] sm:$0xf]
    %v316 = vld [vmem:[%s3 + $0x14] sm:$0xf]
    %v317 = vld [vmem:[%s3 + $0x18] sm:$0xf]
    %v318 = vld [vmem:[%s3 + $0x1c] sm:$0xf]
    %v319 = vld [vmem:[%s3 + $0x20] sm:$0xf]
    %v320 = vld [vmem:[%s3 + $0x24] sm:$0xf]
    %v321 = vld [vmem:[%s3 + $0x28] sm:$0xf]
    %v322 = vld [vmem:[%s3 + $0x2c] sm:$0xf]
    %v323 = vld [vmem:[%s3 + $0x30] sm:$0xf]
    %v324 = vld [vmem:[%s3 + $0x34] sm:$0xf]
    %v325 = vld [vmem:[%s3 + $0x38] sm:$0xf]
    %v326 = vld [vmem:[%s3 + $0x3c] sm:$0xf]
    %v327 = vunpack.c.l.bf16 %v311
    %v328 = vunpack.c.l.bf16 %v312
    %v329 = vunpack.c.l.bf16 %v313
    %v330 = vunpack.c.l.bf16 %v314
    %v331 = vunpack.c.l.bf16 %v315
    %v332 = vunpack.c.l.bf16 %v316
    %v333 = vunpack.c.l.bf16 %v317
    %v334 = vunpack.c.l.bf16 %v318
    %v335 = vunpack.c.l.bf16 %v319
    %v336 = vunpack.c.l.bf16 %v320
    %v337 = vunpack.c.l.bf16 %v321
    %v338 = vunpack.c.l.bf16 %v322
    %v339 = vunpack.c.l.bf16 %v323
    %v340 = vunpack.c.l.bf16 %v324
    %v341 = vunpack.c.l.bf16 %v325
    %v342 = vunpack.c.l.bf16 %v326
    %v343 = vadd.f32 %v295, %v327
    %v344 = vadd.f32 %v296, %v328
    %v345 = vadd.f32 %v297, %v329
    %v346 = vadd.f32 %v298, %v330
    %v347 = vadd.f32 %v299, %v331
    %v348 = vadd.f32 %v300, %v332
    %v349 = vadd.f32 %v301, %v333
    %v350 = vadd.f32 %v302, %v334
    %v351 = vadd.f32 %v303, %v335
    %v352 = vadd.f32 %v304, %v336
    %v353 = vadd.f32 %v305, %v337
    %v354 = vadd.f32 %v306, %v338
    %v355 = vadd.f32 %v307, %v339
    %v356 = vadd.f32 %v308, %v340
    %v357 = vadd.f32 %v309, %v341
    %v358 = vadd.f32 %v310, %v342
    %v359 = vmax.f32 %v343, 0.0
    %v360 = vmax.f32 %v344, 0.0
    %v361 = vmax.f32 %v345, 0.0
    %v362 = vmax.f32 %v346, 0.0
    %v363 = vmax.f32 %v347, 0.0
    %v364 = vmax.f32 %v348, 0.0
    %v365 = vmax.f32 %v349, 0.0
    %v366 = vmax.f32 %v350, 0.0
    %v367 = vmax.f32 %v351, 0.0
    %v368 = vmax.f32 %v352, 0.0
    %v369 = vmax.f32 %v353, 0.0
    %v370 = vmax.f32 %v354, 0.0
    %v371 = vmax.f32 %v355, 0.0
    %v372 = vmax.f32 %v356, 0.0
    %v373 = vmax.f32 %v357, 0.0
    %v374 = vmax.f32 %v358, 0.0
    %v375 = vpack.c.bf16 %v360, %v359
    %v376 = vpack.c.bf16 %v362, %v361
    %v377 = vpack.c.bf16 %v364, %v363
    %v378 = vpack.c.bf16 %v366, %v365
    %v379 = vpack.c.bf16 %v368, %v367
    %v380 = vpack.c.bf16 %v370, %v369
    %v381 = vpack.c.bf16 %v372, %v371
    %v382 = vpack.c.bf16 %v374, %v373
    %v391 = vunpack.c.l.b16 %v375
    %v392 = vunpack.c.h.b16 %v375
    %v393 = vunpack.c.l.b16 %v376
    %v394 = vunpack.c.h.b16 %v376
    %v395 = vunpack.c.l.b16 %v377
    %v396 = vunpack.c.h.b16 %v377
    %v397 = vunpack.c.l.b16 %v378
    %v398 = vunpack.c.h.b16 %v378
    %v399 = vunpack.c.l.b16 %v379
    %v400 = vunpack.c.h.b16 %v379
    %v401 = vunpack.c.l.b16 %v380
    %v402 = vunpack.c.h.b16 %v380
    %v403 = vunpack.c.l.b16 %v381
    %v404 = vunpack.c.h.b16 %v381
    %v405 = vunpack.c.l.b16 %v382
    %v406 = vunpack.c.h.b16 %v382
    %v407 = vpack.c.b16 %v391, %v391
    %v408 = vpack.c.b16 %v392, %v392
    %v409 = vpack.c.b16 %v393, %v393
    %v410 = vpack.c.b16 %v394, %v394
    %v411 = vpack.c.b16 %v395, %v395
    %v412 = vpack.c.b16 %v396, %v396
    %v413 = vpack.c.b16 %v397, %v397
    %v414 = vpack.c.b16 %v398, %v398
    %v415 = vpack.c.b16 %v399, %v399
    %v416 = vpack.c.b16 %v400, %v400
    %v417 = vpack.c.b16 %v401, %v401
    %v418 = vpack.c.b16 %v402, %v402
    %v419 = vpack.c.b16 %v403, %v403
    %v420 = vpack.c.b16 %v404, %v404
    %v421 = vpack.c.b16 %v405, %v405
    %v422 = vpack.c.b16 %v406, %v406
    %439 = vst [vmem:[%s4] sm:$0xf] %v407
    %440 = vst [vmem:[%s4 + $0x4] sm:$0xf] %v408
    %441 = vst [vmem:[%s4 + $0x8] sm:$0xf] %v409
    %442 = vst [vmem:[%s4 + $0xc] sm:$0xf] %v410
    %443 = vst [vmem:[%s4 + $0x10] sm:$0xf] %v411
    %444 = vst [vmem:[%s4 + $0x14] sm:$0xf] %v412
    %445 = vst [vmem:[%s4 + $0x18] sm:$0xf] %v413
    %446 = vst [vmem:[%s4 + $0x1c] sm:$0xf] %v414
    %447 = vst [vmem:[%s4 + $0x20] sm:$0xf] %v415
    %448 = vst [vmem:[%s4 + $0x24] sm:$0xf] %v416
    %449 = vst [vmem:[%s4 + $0x28] sm:$0xf] %v417
    %450 = vst [vmem:[%s4 + $0x2c] sm:$0xf] %v418
    %451 = vst [vmem:[%s4 + $0x30] sm:$0xf] %v419
    %452 = vst [vmem:[%s4 + $0x34] sm:$0xf] %v420
    %453 = vst [vmem:[%s4 + $0x38] sm:$0xf] %v421
    %454 = vst [vmem:[%s4 + $0x3c] sm:$0xf] %v422
  $region25: #{modified_resnet_forward.30} parent=0 // pred_fallthru
    _
  // Predicated region
  $region26: #{modified_resnet_forward.30} parent=0 // pred_check
    _
  $region27: #{modified_resnet_forward.30} parent=0 // pred_check_branch
    %456 = sbr.rel (0) target = $region29
  $region28: #{modified_resnet_forward.30} parent=0 // pred_region
    _
  $region29: #{modified_resnet_forward.30} parent=0 // pred_fallthru
    _
  // Predicated region
  $region30: #{modified_resnet_forward.30} parent=0 // pred_check
    _
  $region31: #{modified_resnet_forward.30} parent=0 // pred_check_branch
    %458 = sbr.rel (0) target = $region33
  $region32: #{modified_resnet_forward.30} parent=0 // pred_region
    _
  $region33: #{modified_resnet_forward.30} parent=0 // pred_fallthru
    _

// kernel: modified_resnet_forward.31
$region0: #{modified_resnet_forward.31}
  #allocation0 [shape = 'u32[]', space=smem, size = 0x4, offset = 0x4, fixed_abs, tag = 'smem constant byte address 0x4 - core index']
  #allocation1 [shape = 'u32[144,128]{1,0:T(1,128)}', space=vmem, size = 0x12000, scoped, tag = 'internal scratch']
  #allocation2 [shape = 'f32[128,128]{1,0:T(8,128)}', space=vmem, size = 0x10000, scoped, tag = 'scratch operand']
  %s0 = inlined_call_operand.vmem [shape: bf16[128,32], index: 0, kind: input, shape index: {}]
  %s1 = inlined_call_operand.vmem [shape: bf16[32,128], index: 1, kind: input, shape index: {}]
  %s2 = inlined_call_operand.vmem [shape: f32[1,128], index: 2, kind: input, shape index: {}]
  %s3 = inlined_call_operand.vmem [shape: bf16[128,128], index: 3, kind: output, shape index: {}]
  %s4 = sld [smem:[#allocation0]]
  $region30: #{modified_resnet_forward.31} parent=0
    _
  %s6 = ssub.s32 1, %s4
  %s7 = scalar_select 0, %s6, %s4
  // Predicated region
  $region2: #{modified_resnet_forward.31} parent=0 // pred_check
    _
  $region3: #{modified_resnet_forward.31} parent=0 // pred_check_branch
    %9 = sbr.rel (0) target = $region5
  $region4: #{modified_resnet_forward.31} parent=0 // pred_region
    _
  $region5: #{modified_resnet_forward.31} parent=0 // pred_fallthru
    _
  // Predicated region
  $region6: #{modified_resnet_forward.31} parent=0 // pred_check
    _
  $region7: #{modified_resnet_forward.31} parent=0 // pred_check_branch
    %11 = sbr.rel (0) target = $region9
  $region8: #{modified_resnet_forward.31} parent=0 // pred_region
    _
  $region9: #{modified_resnet_forward.31} parent=0 // pred_fallthru
    _
  // Predicated region
  $region10: #{modified_resnet_forward.31} parent=0 // pred_check
    _
  $region11: #{modified_resnet_forward.31} parent=0 // pred_check_branch
    %13 = sbr.rel (0) target = $region13
  $region12: #{modified_resnet_forward.31} parent=0 // pred_region
    _
  $region13: #{modified_resnet_forward.31} parent=0 // pred_fallthru
    _
  %p15 = scmp.eq.s32.totalorder 0, 0
  // Predicated region
  $region14: #{modified_resnet_forward.31} parent=0 // pred_check
    %p16 = pneg %p15
  $region15: #{modified_resnet_forward.31} parent=0 // pred_check_branch
    %18 = sbr.rel (%p16) target = $region17
  $region16: #{modified_resnet_forward.31} parent=0 // pred_region
    %19 = vst [vmem:[#allocation2] sm:$0xff] 0.0
    %20 = vst [vmem:[#allocation2 + $0x8] sm:$0xff] 0.0
    %21 = vst [vmem:[#allocation2 + $0x10] sm:$0xff] 0.0
    %22 = vst [vmem:[#allocation2 + $0x18] sm:$0xff] 0.0
    %23 = vst [vmem:[#allocation2 + $0x20] sm:$0xff] 0.0
    %24 = vst [vmem:[#allocation2 + $0x28] sm:$0xff] 0.0
    %25 = vst [vmem:[#allocation2 + $0x30] sm:$0xff] 0.0
    %26 = vst [vmem:[#allocation2 + $0x38] sm:$0xff] 0.0
    %27 = vst [vmem:[#allocation2 + $0x40] sm:$0xff] 0.0
    %28 = vst [vmem:[#allocation2 + $0x48] sm:$0xff] 0.0
    %29 = vst [vmem:[#allocation2 + $0x50] sm:$0xff] 0.0
    %30 = vst [vmem:[#allocation2 + $0x58] sm:$0xff] 0.0
    %31 = vst [vmem:[#allocation2 + $0x60] sm:$0xff] 0.0
    %32 = vst [vmem:[#allocation2 + $0x68] sm:$0xff] 0.0
    %33 = vst [vmem:[#allocation2 + $0x70] sm:$0xff] 0.0
    %34 = vst [vmem:[#allocation2 + $0x78] sm:$0xff] 0.0
  $region17: #{modified_resnet_forward.31} parent=0 // pred_fallthru
    _
  %v35 = vld [vmem:[#allocation2] sm:$0xff]
  %v36 = vld [vmem:[#allocation2 + $0x8] sm:$0xff]
  %v37 = vld [vmem:[#allocation2 + $0x10] sm:$0xff]
  %v38 = vld [vmem:[#allocation2 + $0x18] sm:$0xff]
  %v39 = vld [vmem:[#allocation2 + $0x20] sm:$0xff]
  %v40 = vld [vmem:[#allocation2 + $0x28] sm:$0xff]
  %v41 = vld [vmem:[#allocation2 + $0x30] sm:$0xff]
  %v42 = vld [vmem:[#allocation2 + $0x38] sm:$0xff]
  %v43 = vld [vmem:[#allocation2 + $0x40] sm:$0xff]
  %v44 = vld [vmem:[#allocation2 + $0x48] sm:$0xff]
  %v45 = vld [vmem:[#allocation2 + $0x50] sm:$0xff]
  %v46 = vld [vmem:[#allocation2 + $0x58] sm:$0xff]
  %v47 = vld [vmem:[#allocation2 + $0x60] sm:$0xff]
  %v48 = vld [vmem:[#allocation2 + $0x68] sm:$0xff]
  %v49 = vld [vmem:[#allocation2 + $0x70] sm:$0xff]
  %v50 = vld [vmem:[#allocation2 + $0x78] sm:$0xff]
  %v51 = vld [vmem:[%s0] sm:$0xf]
  %v52 = vld [vmem:[%s0 + $0x4] sm:$0xf]
  %v53 = vld [vmem:[%s0 + $0x8] sm:$0xf]
  %v54 = vld [vmem:[%s0 + $0xc] sm:$0xf]
  %v55 = vld [vmem:[%s0 + $0x10] sm:$0xf]
  %v56 = vld [vmem:[%s0 + $0x14] sm:$0xf]
  %v57 = vld [vmem:[%s0 + $0x18] sm:$0xf]
  %v58 = vld [vmem:[%s0 + $0x1c] sm:$0xf]
  %v59 = vld [vmem:[%s0 + $0x20] sm:$0xf]
  %v60 = vld [vmem:[%s0 + $0x24] sm:$0xf]
  %v61 = vld [vmem:[%s0 + $0x28] sm:$0xf]
  %v62 = vld [vmem:[%s0 + $0x2c] sm:$0xf]
  %v63 = vld [vmem:[%s0 + $0x30] sm:$0xf]
  %v64 = vld [vmem:[%s0 + $0x34] sm:$0xf]
  %v65 = vld [vmem:[%s0 + $0x38] sm:$0xf]
  %v66 = vld [vmem:[%s0 + $0x3c] sm:$0xf]
  %v67 = vld [vmem:[%s1] sm:$0xf]
  %v68 = vld [vmem:[%s1 + $0x4] sm:$0xf]
  %v69 = vld [vmem:[%s1 + $0x8] sm:$0xf]
  %v70 = vld [vmem:[%s1 + $0xc] sm:$0xf]
  %v87 = vunpack.c.l.b16 %v51
  %v88 = vunpack.c.l.b16 %v52
  %v89 = vunpack.c.l.b16 %v53
  %v90 = vunpack.c.l.b16 %v54
  %v91 = vunpack.c.l.b16 %v55
  %v92 = vunpack.c.l.b16 %v56
  %v93 = vunpack.c.l.b16 %v57
  %v94 = vunpack.c.l.b16 %v58
  %v95 = vunpack.c.l.b16 %v59
  %v96 = vunpack.c.l.b16 %v60
  %v97 = vunpack.c.l.b16 %v61
  %v98 = vunpack.c.l.b16 %v62
  %v99 = vunpack.c.l.b16 %v63
  %v100 = vunpack.c.l.b16 %v64
  %v101 = vunpack.c.l.b16 %v65
  %v102 = vunpack.c.l.b16 %v66
  %v103 = vpack.c.b16 %v88, %v87
  %v104 = vpack.c.b16 %v90, %v89
  %v105 = vpack.c.b16 %v92, %v91
  %v106 = vpack.c.b16 %v94, %v93
  %v107 = vpack.c.b16 %v96, %v95
  %v108 = vpack.c.b16 %v98, %v97
  %v109 = vpack.c.b16 %v100, %v99
  %v110 = vpack.c.b16 %v102, %v101
  %v115 = vunpack.c.l.b16 %v67
  %v116 = vunpack.c.l.b16 %v68
  %v117 = vunpack.c.l.b16 %v69
  %v118 = vunpack.c.l.b16 %v70
  %v119 = vpack.c.b16 %v116, %v115
  %v120 = vpack.c.b16 %v118, %v117
  %vm123 = vcmask 261120
  %v125 = vsel %vm123, %v103, 0
  %v128 = vsel %vm123, %v104, 0
  %v131 = vsel %vm123, %v105, 0
  %v134 = vsel %vm123, %v106, 0
  %v137 = vsel %vm123, %v107, 0
  %v140 = vsel %vm123, %v108, 0
  %v143 = vsel %vm123, %v109, 0
  %v146 = vsel %vm123, %v110, 0
  %148 = vmatprep.subr.bf16.mxu0 0
  %149 = vmatpush1.bf16.msra.mxu0 %v119
  %150 = vmatprep.subr.bf16.mxu0 0
  %151 = vmatpush1.bf16.msra.mxu0 %v120
  %152 = vmatprep.subr.bf16.mxu0 0
  %153 = vmatpush1.bf16.msra.mxu0 0
  %154 = vmatprep.subr.bf16.mxu0 0
  %155 = vmatpush1.bf16.msra.mxu0 0
  %156 = vmatprep.subr.bf16.mxu0 0
  %157 = vmatpush1.bf16.msra.mxu0 0
  %158 = vmatprep.subr.bf16.mxu0 0
  %159 = vmatpush1.bf16.msra.mxu0 0
  %160 = vmatprep.subr.bf16.mxu0 0
  %161 = vmatpush1.bf16.msra.mxu0 0
  %162 = vmatprep.subr.bf16.mxu0 0
  %163 = vmatpush1.bf16.msra.mxu0 0
  %164 = vmatprep.subr.bf16.mxu0 0
  %165 = vmatpush1.bf16.msra.mxu0 0
  %166 = vmatprep.subr.bf16.mxu0 0
  %167 = vmatpush1.bf16.msra.mxu0 0
  %168 = vmatprep.subr.bf16.mxu0 0
  %169 = vmatpush1.bf16.msra.mxu0 0
  %170 = vmatprep.subr.bf16.mxu0 0
  %171 = vmatpush1.bf16.msra.mxu0 0
  %172 = vmatprep.subr.bf16.mxu0 0
  %173 = vmatpush1.bf16.msra.mxu0 0
  %174 = vmatprep.subr.bf16.mxu0 0
  %175 = vmatpush1.bf16.msra.mxu0 0
  %176 = vmatprep.subr.bf16.mxu0 0
  %177 = vmatpush1.bf16.msra.mxu0 0
  %178 = vmatprep.subr.bf16.mxu0 0
  %179 = vmatpush1.bf16.msra.mxu0 0
  %180 = vmatprep.mubr.bf16.mxu0 0
  %181 = vmatmul.mubr.bf16.gmra.mrb[0].mxu0 %v125
  %v182 = vpop.f32.mrb[0].mxu0
  %v183 = vadd.f32 0.0, %v182
  %v184 = vpop.f32.mrb[0].mxu0
  %v185 = vpop.f32.mrb[0].mxu0
  %v186 = vadd.f32 0.0, %v185
  %v187 = vpop.f32.mrb[0].mxu0
  %188 = vmatprep.mubr.bf16.mxu0 0
  %189 = vmatmul.mubr.bf16.gmra.mrb[0].mxu0 %v128
  %v190 = vpop.f32.mrb[0].mxu0
  %v191 = vadd.f32 0.0, %v190
  %v192 = vpop.f32.mrb[0].mxu0
  %v193 = vpop.f32.mrb[0].mxu0
  %v194 = vadd.f32 0.0, %v193
  %v195 = vpop.f32.mrb[0].mxu0
  %196 = vmatprep.mubr.bf16.mxu0 0
  %197 = vmatmul.mubr.bf16.gmra.mrb[0].mxu0 %v131
  %v198 = vpop.f32.mrb[0].mxu0
  %v199 = vadd.f32 0.0, %v198
  %v200 = vpop.f32.mrb[0].mxu0
  %v201 = vpop.f32.mrb[0].mxu0
  %v202 = vadd.f32 0.0, %v201
  %v203 = vpop.f32.mrb[0].mxu0
  %204 = vmatprep.mubr.bf16.mxu0 0
  %205 = vmatmul.mubr.bf16.gmra.mrb[0].mxu0 %v134
  %v206 = vpop.f32.mrb[0].mxu0
  %v207 = vadd.f32 0.0, %v206
  %v208 = vpop.f32.mrb[0].mxu0
  %v209 = vpop.f32.mrb[0].mxu0
  %v210 = vadd.f32 0.0, %v209
  %v211 = vpop.f32.mrb[0].mxu0
  %212 = vmatprep.mubr.bf16.mxu0 0
  %213 = vmatmul.mubr.bf16.gmra.mrb[0].mxu0 %v137
  %v214 = vpop.f32.mrb[0].mxu0
  %v215 = vadd.f32 0.0, %v214
  %v216 = vpop.f32.mrb[0].mxu0
  %v217 = vpop.f32.mrb[0].mxu0
  %v218 = vadd.f32 0.0, %v217
  %v219 = vpop.f32.mrb[0].mxu0
  %220 = vmatprep.mubr.bf16.mxu0 0
  %221 = vmatmul.mubr.bf16.gmra.mrb[0].mxu0 %v140
  %v222 = vpop.f32.mrb[0].mxu0
  %v223 = vadd.f32 0.0, %v222
  %v224 = vpop.f32.mrb[0].mxu0
  %v225 = vpop.f32.mrb[0].mxu0
  %v226 = vadd.f32 0.0, %v225
  %v227 = vpop.f32.mrb[0].mxu0
  %228 = vmatprep.mubr.bf16.mxu0 0
  %229 = vmatmul.mubr.bf16.gmra.mrb[0].mxu0 %v143
  %v230 = vpop.f32.mrb[0].mxu0
  %v231 = vadd.f32 0.0, %v230
  %v232 = vpop.f32.mrb[0].mxu0
  %v233 = vpop.f32.mrb[0].mxu0
  %v234 = vadd.f32 0.0, %v233
  %v235 = vpop.f32.mrb[0].mxu0
  %236 = vmatprep.mubr.bf16.mxu0 0
  %237 = vmatmul.mubr.bf16.gmra.mrb[0].mxu0 %v146
  %v238 = vpop.f32.mrb[0].mxu0
  %v239 = vadd.f32 0.0, %v238
  %v240 = vpop.f32.mrb[0].mxu0
  %v241 = vpop.f32.mrb[0].mxu0
  %v242 = vadd.f32 0.0, %v241
  %v243 = vpop.f32.mrb[0].mxu0
  %244 = vdwg.mxu0
  %v245 = vadd.f32 %v35, %v183
  %v246 = vadd.f32 %v36, %v186
  %v247 = vadd.f32 %v37, %v191
  %v248 = vadd.f32 %v38, %v194
  %v249 = vadd.f32 %v39, %v199
  %v250 = vadd.f32 %v40, %v202
  %v251 = vadd.f32 %v41, %v207
  %v252 = vadd.f32 %v42, %v210
  %v253 = vadd.f32 %v43, %v215
  %v254 = vadd.f32 %v44, %v218
  %v255 = vadd.f32 %v45, %v223
  %v256 = vadd.f32 %v46, %v226
  %v257 = vadd.f32 %v47, %v231
  %v258 = vadd.f32 %v48, %v234
  %v259 = vadd.f32 %v49, %v239
  %v260 = vadd.f32 %v50, %v242
  %261 = vst [vmem:[#allocation2] sm:$0xff] %v245
  %262 = vst [vmem:[#allocation2 + $0x8] sm:$0xff] %v246
  %263 = vst [vmem:[#allocation2 + $0x10] sm:$0xff] %v247
  %264 = vst [vmem:[#allocation2 + $0x18] sm:$0xff] %v248
  %265 = vst [vmem:[#allocation2 + $0x20] sm:$0xff] %v249
  %266 = vst [vmem:[#allocation2 + $0x28] sm:$0xff] %v250
  %267 = vst [vmem:[#allocation2 + $0x30] sm:$0xff] %v251
  %268 = vst [vmem:[#allocation2 + $0x38] sm:$0xff] %v252
  %269 = vst [vmem:[#allocation2 + $0x40] sm:$0xff] %v253
  %270 = vst [vmem:[#allocation2 + $0x48] sm:$0xff] %v254
  %271 = vst [vmem:[#allocation2 + $0x50] sm:$0xff] %v255
  %272 = vst [vmem:[#allocation2 + $0x58] sm:$0xff] %v256
  %273 = vst [vmem:[#allocation2 + $0x60] sm:$0xff] %v257
  %274 = vst [vmem:[#allocation2 + $0x68] sm:$0xff] %v258
  %275 = vst [vmem:[#allocation2 + $0x70] sm:$0xff] %v259
  %276 = vst [vmem:[#allocation2 + $0x78] sm:$0xff] %v260
  // Predicated region
  $region18: #{modified_resnet_forward.31} parent=0 // pred_check
    %p277 = pneg %p15
  $region19: #{modified_resnet_forward.31} parent=0 // pred_check_branch
    %279 = sbr.rel (%p277) target = $region21
  $region20: #{modified_resnet_forward.31} parent=0 // pred_region
    %v280 = vld [vmem:[#allocation2] sm:$0xff]
    %v281 = vld [vmem:[#allocation2 + $0x8] sm:$0xff]
    %v282 = vld [vmem:[#allocation2 + $0x10] sm:$0xff]
    %v283 = vld [vmem:[#allocation2 + $0x18] sm:$0xff]
    %v284 = vld [vmem:[#allocation2 + $0x20] sm:$0xff]
    %v285 = vld [vmem:[#allocation2 + $0x28] sm:$0xff]
    %v286 = vld [vmem:[#allocation2 + $0x30] sm:$0xff]
    %v287 = vld [vmem:[#allocation2 + $0x38] sm:$0xff]
    %v288 = vld [vmem:[#allocation2 + $0x40] sm:$0xff]
    %v289 = vld [vmem:[#allocation2 + $0x48] sm:$0xff]
    %v290 = vld [vmem:[#allocation2 + $0x50] sm:$0xff]
    %v291 = vld [vmem:[#allocation2 + $0x58] sm:$0xff]
    %v292 = vld [vmem:[#allocation2 + $0x60] sm:$0xff]
    %v293 = vld [vmem:[#allocation2 + $0x68] sm:$0xff]
    %v294 = vld [vmem:[#allocation2 + $0x70] sm:$0xff]
    %v295 = vld [vmem:[#allocation2 + $0x78] sm:$0xff]
    %v296 = vld [vmem:[%s2] sm:$0x1]
    %v298 = vlaneseq
    %v299 = vshrl.u32 %v298, 7
    %v300 = vsub.s32 0, %v299
    %v301 = vrot.slane %v296, %v300
    %v303 = vadd.f32 %v280, %v301
    %v304 = vadd.f32 %v281, %v301
    %v305 = vadd.f32 %v282, %v301
    %v306 = vadd.f32 %v283, %v301
    %v307 = vadd.f32 %v284, %v301
    %v308 = vadd.f32 %v285, %v301
    %v309 = vadd.f32 %v286, %v301
    %v310 = vadd.f32 %v287, %v301
    %v311 = vadd.f32 %v288, %v301
    %v312 = vadd.f32 %v289, %v301
    %v313 = vadd.f32 %v290, %v301
    %v314 = vadd.f32 %v291, %v301
    %v315 = vadd.f32 %v292, %v301
    %v316 = vadd.f32 %v293, %v301
    %v317 = vadd.f32 %v294, %v301
    %v318 = vadd.f32 %v295, %v301
    %v319 = vmax.f32 %v303, 0.0
    %v320 = vmax.f32 %v304, 0.0
    %v321 = vmax.f32 %v305, 0.0
    %v322 = vmax.f32 %v306, 0.0
    %v323 = vmax.f32 %v307, 0.0
    %v324 = vmax.f32 %v308, 0.0
    %v325 = vmax.f32 %v309, 0.0
    %v326 = vmax.f32 %v310, 0.0
    %v327 = vmax.f32 %v311, 0.0
    %v328 = vmax.f32 %v312, 0.0
    %v329 = vmax.f32 %v313, 0.0
    %v330 = vmax.f32 %v314, 0.0
    %v331 = vmax.f32 %v315, 0.0
    %v332 = vmax.f32 %v316, 0.0
    %v333 = vmax.f32 %v317, 0.0
    %v334 = vmax.f32 %v318, 0.0
    %v335 = vpack.c.bf16 %v320, %v319
    %v336 = vpack.c.bf16 %v322, %v321
    %v337 = vpack.c.bf16 %v324, %v323
    %v338 = vpack.c.bf16 %v326, %v325
    %v339 = vpack.c.bf16 %v328, %v327
    %v340 = vpack.c.bf16 %v330, %v329
    %v341 = vpack.c.bf16 %v332, %v331
    %v342 = vpack.c.bf16 %v334, %v333
    %v351 = vunpack.c.l.b16 %v335
    %v352 = vunpack.c.h.b16 %v335
    %v353 = vunpack.c.l.b16 %v336
    %v354 = vunpack.c.h.b16 %v336
    %v355 = vunpack.c.l.b16 %v337
    %v356 = vunpack.c.h.b16 %v337
    %v357 = vunpack.c.l.b16 %v338
    %v358 = vunpack.c.h.b16 %v338
    %v359 = vunpack.c.l.b16 %v339
    %v360 = vunpack.c.h.b16 %v339
    %v361 = vunpack.c.l.b16 %v340
    %v362 = vunpack.c.h.b16 %v340
    %v363 = vunpack.c.l.b16 %v341
    %v364 = vunpack.c.h.b16 %v341
    %v365 = vunpack.c.l.b16 %v342
    %v366 = vunpack.c.h.b16 %v342
    %v367 = vpack.c.b16 %v351, %v351
    %v368 = vpack.c.b16 %v352, %v352
    %v369 = vpack.c.b16 %v353, %v353
    %v370 = vpack.c.b16 %v354, %v354
    %v371 = vpack.c.b16 %v355, %v355
    %v372 = vpack.c.b16 %v356, %v356
    %v373 = vpack.c.b16 %v357, %v357
    %v374 = vpack.c.b16 %v358, %v358
    %v375 = vpack.c.b16 %v359, %v359
    %v376 = vpack.c.b16 %v360, %v360
    %v377 = vpack.c.b16 %v361, %v361
    %v378 = vpack.c.b16 %v362, %v362
    %v379 = vpack.c.b16 %v363, %v363
    %v380 = vpack.c.b16 %v364, %v364
    %v381 = vpack.c.b16 %v365, %v365
    %v382 = vpack.c.b16 %v366, %v366
    %399 = vst [vmem:[%s3] sm:$0xf] %v367
    %400 = vst [vmem:[%s3 + $0x4] sm:$0xf] %v368
    %401 = vst [vmem:[%s3 + $0x8] sm:$0xf] %v369
    %402 = vst [vmem:[%s3 + $0xc] sm:$0xf] %v370
    %403 = vst [vmem:[%s3 + $0x10] sm:$0xf] %v371
    %404 = vst [vmem:[%s3 + $0x14] sm:$0xf] %v372
    %405 = vst [vmem:[%s3 + $0x18] sm:$0xf] %v373
    %406 = vst [vmem:[%s3 + $0x1c] sm:$0xf] %v374
    %407 = vst [vmem:[%s3 + $0x20] sm:$0xf] %v375
    %408 = vst [vmem:[%s3 + $0x24] sm:$0xf] %v376
    %409 = vst [vmem:[%s3 + $0x28] sm:$0xf] %v377
    %410 = vst [vmem:[%s3 + $0x2c] sm:$0xf] %v378
    %411 = vst [vmem:[%s3 + $0x30] sm:$0xf] %v379
    %412 = vst [vmem:[%s3 + $0x34] sm:$0xf] %v380
    %413 = vst [vmem:[%s3 + $0x38] sm:$0xf] %v381
    %414 = vst [vmem:[%s3 + $0x3c] sm:$0xf] %v382
  $region21: #{modified_resnet_forward.31} parent=0 // pred_fallthru
    _
  // Predicated region
  $region22: #{modified_resnet_forward.31} parent=0 // pred_check
    _
  $region23: #{modified_resnet_forward.31} parent=0 // pred_check_branch
    %416 = sbr.rel (0) target = $region25
  $region24: #{modified_resnet_forward.31} parent=0 // pred_region
    _
  $region25: #{modified_resnet_forward.31} parent=0 // pred_fallthru
    _
  // Predicated region
  $region26: #{modified_resnet_forward.31} parent=0 // pred_check
    _
  $region27: #{modified_resnet_forward.31} parent=0 // pred_check_branch
    %418 = sbr.rel (0) target = $region29
  $region28: #{modified_resnet_forward.31} parent=0 // pred_region
    _
  $region29: #{modified_resnet_forward.31} parent=0 // pred_fallthru
    _

// kernel: modified_resnet_forward.32
$region0: #{modified_resnet_forward.32}
  #allocation0 [shape = 'u32[]', space=smem, size = 0x4, offset = 0x4, fixed_abs, tag = 'smem constant byte address 0x4 - core index']
  #allocation1 [shape = 'u32[144,128]{1,0:T(1,128)}', space=vmem, size = 0x12000, scoped, tag = 'internal scratch']
  #allocation2 [shape = 'f32[128,128]{1,0:T(8,128)}', space=vmem, size = 0x10000, scoped, tag = 'scratch operand']
  %s0 = inlined_call_operand.vmem [shape: bf16[128,144], index: 0, kind: input, shape index: {}]
  %s1 = inlined_call_operand.vmem [shape: bf16[144,128], index: 1, kind: input, shape index: {}]
  %s2 = inlined_call_operand.vmem [shape: f32[1,128], index: 2, kind: input, shape index: {}]
  %s3 = inlined_call_operand.vmem [shape: bf16[128,128], index: 3, kind: output, shape index: {}]
  %s4 = sld [smem:[#allocation0]]
  $region30: #{modified_resnet_forward.32} parent=0
    _
  %s6 = ssub.s32 1, %s4
  %s7 = scalar_select 0, %s6, %s4
  // Predicated region
  $region2: #{modified_resnet_forward.32} parent=0 // pred_check
    _
  $region3: #{modified_resnet_forward.32} parent=0 // pred_check_branch
    %9 = sbr.rel (0) target = $region5
  $region4: #{modified_resnet_forward.32} parent=0 // pred_region
    _
  $region5: #{modified_resnet_forward.32} parent=0 // pred_fallthru
    _
  // Predicated region
  $region6: #{modified_resnet_forward.32} parent=0 // pred_check
    _
  $region7: #{modified_resnet_forward.32} parent=0 // pred_check_branch
    %11 = sbr.rel (0) target = $region9
  $region8: #{modified_resnet_forward.32} parent=0 // pred_region
    _
  $region9: #{modified_resnet_forward.32} parent=0 // pred_fallthru
    _
  // Predicated region
  $region10: #{modified_resnet_forward.32} parent=0 // pred_check
    _
  $region11: #{modified_resnet_forward.32} parent=0 // pred_check_branch
    %13 = sbr.rel (0) target = $region13
  $region12: #{modified_resnet_forward.32} parent=0 // pred_region
    _
  $region13: #{modified_resnet_forward.32} parent=0 // pred_fallthru
    _
  %p15 = scmp.eq.s32.totalorder 0, 0
  // Predicated region
  $region14: #{modified_resnet_forward.32} parent=0 // pred_check
    %p16 = pneg %p15
  $region15: #{modified_resnet_forward.32} parent=0 // pred_check_branch
    %18 = sbr.rel (%p16) target = $region17
  $region16: #{modified_resnet_forward.32} parent=0 // pred_region
    %19 = vst [vmem:[#allocation2] sm:$0xff] 0.0
    %20 = vst [vmem:[#allocation2 + $0x8] sm:$0xff] 0.0
    %21 = vst [vmem:[#allocation2 + $0x10] sm:$0xff] 0.0
    %22 = vst [vmem:[#allocation2 + $0x18] sm:$0xff] 0.0
    %23 = vst [vmem:[#allocation2 + $0x20] sm:$0xff] 0.0
    %24 = vst [vmem:[#allocation2 + $0x28] sm:$0xff] 0.0
    %25 = vst [vmem:[#allocation2 + $0x30] sm:$0xff] 0.0
    %26 = vst [vmem:[#allocation2 + $0x38] sm:$0xff] 0.0
    %27 = vst [vmem:[#allocation2 + $0x40] sm:$0xff] 0.0
    %28 = vst [vmem:[#allocation2 + $0x48] sm:$0xff] 0.0
    %29 = vst [vmem:[#allocation2 + $0x50] sm:$0xff] 0.0
    %30 = vst [vmem:[#allocation2 + $0x58] sm:$0xff] 0.0
    %31 = vst [vmem:[#allocation2 + $0x60] sm:$0xff] 0.0
    %32 = vst [vmem:[#allocation2 + $0x68] sm:$0xff] 0.0
    %33 = vst [vmem:[#allocation2 + $0x70] sm:$0xff] 0.0
    %34 = vst [vmem:[#allocation2 + $0x78] sm:$0xff] 0.0
  $region17: #{modified_resnet_forward.32} parent=0 // pred_fallthru
    _
  %v35 = vld [vmem:[#allocation2] sm:$0xff]
  %v36 = vld [vmem:[#allocation2 + $0x8] sm:$0xff]
  %v37 = vld [vmem:[#allocation2 + $0x10] sm:$0xff]
  %v38 = vld [vmem:[#allocation2 + $0x18] sm:$0xff]
  %v39 = vld [vmem:[#allocation2 + $0x20] sm:$0xff]
  %v40 = vld [vmem:[#allocation2 + $0x28] sm:$0xff]
  %v41 = vld [vmem:[#allocation2 + $0x30] sm:$0xff]
  %v42 = vld [vmem:[#allocation2 + $0x38] sm:$0xff]
  %v43 = vld [vmem:[#allocation2 + $0x40] sm:$0xff]
  %v44 = vld [vmem:[#allocation2 + $0x48] sm:$0xff]
  %v45 = vld [vmem:[#allocation2 + $0x50] sm:$0xff]
  %v46 = vld [vmem:[#allocation2 + $0x58] sm:$0xff]
  %v47 = vld [vmem:[#allocation2 + $0x60] sm:$0xff]
  %v48 = vld [vmem:[#allocation2 + $0x68] sm:$0xff]
  %v49 = vld [vmem:[#allocation2 + $0x70] sm:$0xff]
  %v50 = vld [vmem:[#allocation2 + $0x78] sm:$0xff]
  %v51 = vld [vmem:[%s0] sm:$0xff]
  %v52 = vld [vmem:[%s0 + $0x8] sm:$0xff]
  %v53 = vld [vmem:[%s0 + $0x10] sm:$0xff]
  %v54 = vld [vmem:[%s0 + $0x18] sm:$0xff]
  %v55 = vld [vmem:[%s0 + $0x20] sm:$0xff]
  %v56 = vld [vmem:[%s0 + $0x28] sm:$0xff]
  %v57 = vld [vmem:[%s0 + $0x30] sm:$0xff]
  %v58 = vld [vmem:[%s0 + $0x38] sm:$0xff]
  %v59 = vld [vmem:[%s0 + $0x40] sm:$0xff]
  %v60 = vld [vmem:[%s0 + $0x48] sm:$0xff]
  %v61 = vld [vmem:[%s0 + $0x50] sm:$0xff]
  %v62 = vld [vmem:[%s0 + $0x58] sm:$0xff]
  %v63 = vld [vmem:[%s0 + $0x60] sm:$0xff]
  %v64 = vld [vmem:[%s0 + $0x68] sm:$0xff]
  %v65 = vld [vmem:[%s0 + $0x70] sm:$0xff]
  %v66 = vld [vmem:[%s0 + $0x78] sm:$0xff]
  %v67 = vld [vmem:[%s1] sm:$0xf]
  %v68 = vld [vmem:[%s1 + $0x4] sm:$0xf]
  %v69 = vld [vmem:[%s1 + $0x8] sm:$0xf]
  %v70 = vld [vmem:[%s1 + $0xc] sm:$0xf]
  %v71 = vld [vmem:[%s1 + $0x10] sm:$0xf]
  %v72 = vld [vmem:[%s1 + $0x14] sm:$0xf]
  %v73 = vld [vmem:[%s1 + $0x18] sm:$0xf]
  %v74 = vld [vmem:[%s1 + $0x1c] sm:$0xf]
  %v75 = vld [vmem:[%s1 + $0x20] sm:$0xf]
  %v76 = vld [vmem:[%s1 + $0x24] sm:$0xf]
  %v77 = vld [vmem:[%s1 + $0x28] sm:$0xf]
  %v78 = vld [vmem:[%s1 + $0x2c] sm:$0xf]
  %v79 = vld [vmem:[%s1 + $0x30] sm:$0xf]
  %v80 = vld [vmem:[%s1 + $0x34] sm:$0xf]
  %v81 = vld [vmem:[%s1 + $0x38] sm:$0xf]
  %v82 = vld [vmem:[%s1 + $0x3c] sm:$0xf]
  %v83 = vld [vmem:[%s1 + $0x40] sm:$0xf]
  %v84 = vld [vmem:[%s1 + $0x44] sm:$0xf]
  %v101 = vunpack.c.l.b16 %v51
  %v102 = vunpack.c.h.b16 %v51
  %v103 = vunpack.c.l.b16 %v52
  %v104 = vunpack.c.h.b16 %v52
  %v105 = vunpack.c.l.b16 %v53
  %v106 = vunpack.c.h.b16 %v53
  %v107 = vunpack.c.l.b16 %v54
  %v108 = vunpack.c.h.b16 %v54
  %v109 = vunpack.c.l.b16 %v55
  %v110 = vunpack.c.h.b16 %v55
  %v111 = vunpack.c.l.b16 %v56
  %v112 = vunpack.c.h.b16 %v56
  %v113 = vunpack.c.l.b16 %v57
  %v114 = vunpack.c.h.b16 %v57
  %v115 = vunpack.c.l.b16 %v58
  %v116 = vunpack.c.h.b16 %v58
  %v117 = vunpack.c.l.b16 %v59
  %v118 = vunpack.c.h.b16 %v59
  %v119 = vunpack.c.l.b16 %v60
  %v120 = vunpack.c.h.b16 %v60
  %v121 = vunpack.c.l.b16 %v61
  %v122 = vunpack.c.h.b16 %v61
  %v123 = vunpack.c.l.b16 %v62
  %v124 = vunpack.c.h.b16 %v62
  %v125 = vunpack.c.l.b16 %v63
  %v126 = vunpack.c.h.b16 %v63
  %v127 = vunpack.c.l.b16 %v64
  %v128 = vunpack.c.h.b16 %v64
  %v129 = vunpack.c.l.b16 %v65
  %v130 = vunpack.c.h.b16 %v65
  %v131 = vunpack.c.l.b16 %v66
  %v132 = vunpack.c.h.b16 %v66
  %v133 = vpack.c.b16 %v103, %v101
  %v134 = vpack.c.b16 %v104, %v102
  %v135 = vpack.c.b16 %v107, %v105
  %v136 = vpack.c.b16 %v108, %v106
  %v137 = vpack.c.b16 %v111, %v109
  %v138 = vpack.c.b16 %v112, %v110
  %v139 = vpack.c.b16 %v115, %v113
  %v140 = vpack.c.b16 %v116, %v114
  %v141 = vpack.c.b16 %v119, %v117
  %v142 = vpack.c.b16 %v120, %v118
  %v143 = vpack.c.b16 %v123, %v121
  %v144 = vpack.c.b16 %v124, %v122
  %v145 = vpack.c.b16 %v127, %v125
  %v146 = vpack.c.b16 %v128, %v126
  %v147 = vpack.c.b16 %v131, %v129
  %v148 = vpack.c.b16 %v132, %v130
  %v175 = vunpack.c.l.b16 %v67
  %v176 = vunpack.c.l.b16 %v68
  %v177 = vunpack.c.l.b16 %v69
  %v178 = vunpack.c.l.b16 %v70
  %v179 = vunpack.c.l.b16 %v71
  %v180 = vunpack.c.l.b16 %v72
  %v181 = vunpack.c.l.b16 %v73
  %v182 = vunpack.c.l.b16 %v74
  %v183 = vunpack.c.l.b16 %v75
  %v184 = vunpack.c.l.b16 %v76
  %v185 = vunpack.c.l.b16 %v77
  %v186 = vunpack.c.l.b16 %v78
  %v187 = vunpack.c.l.b16 %v79
  %v188 = vunpack.c.l.b16 %v80
  %v189 = vunpack.c.l.b16 %v81
  %v190 = vunpack.c.l.b16 %v82
  %v191 = vunpack.c.l.b16 %v83
  %v192 = vunpack.c.l.b16 %v84
  %v193 = vpack.c.b16 %v176, %v175
  %v194 = vpack.c.b16 %v178, %v177
  %v195 = vpack.c.b16 %v180, %v179
  %v196 = vpack.c.b16 %v182, %v181
  %v197 = vpack.c.b16 %v184, %v183
  %v198 = vpack.c.b16 %v186, %v185
  %v199 = vpack.c.b16 %v188, %v187
  %v200 = vpack.c.b16 %v190, %v189
  %v201 = vpack.c.b16 %v192, %v191
  %vm211 = vcmask 130048
  %v213 = vsel %vm211, %v134, 0
  %v216 = vsel %vm211, %v136, 0
  %v219 = vsel %vm211, %v138, 0
  %v222 = vsel %vm211, %v140, 0
  %v225 = vsel %vm211, %v142, 0
  %v228 = vsel %vm211, %v144, 0
  %v231 = vsel %vm211, %v146, 0
  %v234 = vsel %vm211, %v148, 0
  %236 = vmatprep.subr.bf16.mxu0 0
  %237 = vmatpush1.bf16.msra.mxu0 %v193
  %238 = vmatprep.subr.bf16.mxu0 0
  %239 = vmatpush1.bf16.msra.mxu0 %v194
  %240 = vmatprep.subr.bf16.mxu0 0
  %241 = vmatpush1.bf16.msra.mxu0 %v195
  %242 = vmatprep.subr.bf16.mxu0 0
  %243 = vmatpush1.bf16.msra.mxu0 %v196
  %244 = vmatprep.subr.bf16.mxu0 0
  %245 = vmatpush1.bf16.msra.mxu0 %v197
  %246 = vmatprep.subr.bf16.mxu0 0
  %247 = vmatpush1.bf16.msra.mxu0 %v198
  %248 = vmatprep.subr.bf16.mxu0 0
  %249 = vmatpush1.bf16.msra.mxu0 %v199
  %250 = vmatprep.subr.bf16.mxu0 0
  %251 = vmatpush1.bf16.msra.mxu0 %v200
  %252 = vmatprep.subr.bf16.mxu0 0
  %253 = vmatpush1.bf16.msra.mxu0 %v201
  %254 = vmatprep.subr.bf16.mxu0 0
  %255 = vmatpush1.bf16.msra.mxu0 0
  %256 = vmatprep.subr.bf16.mxu0 0
  %257 = vmatpush1.bf16.msra.mxu0 0
  %258 = vmatprep.subr.bf16.mxu0 0
  %259 = vmatpush1.bf16.msra.mxu0 0
  %260 = vmatprep.subr.bf16.mxu0 0
  %261 = vmatpush1.bf16.msra.mxu0 0
  %262 = vmatprep.subr.bf16.mxu0 0
  %263 = vmatpush1.bf16.msra.mxu0 0
  %264 = vmatprep.subr.bf16.mxu0 0
  %265 = vmatpush1.bf16.msra.mxu0 0
  %266 = vmatprep.subr.bf16.mxu0 0
  %267 = vmatpush1.bf16.msra.mxu0 0
  %268 = vmatprep.mubr.bf16.mxu0 %v213
  %269 = vmatmul.mubr.bf16.gmra.mrb[0].mxu0 %v133
  %v270 = vpop.f32.mrb[0].mxu0
  %v271 = vadd.f32 0.0, %v270
  %v272 = vpop.f32.mrb[0].mxu0
  %v273 = vpop.f32.mrb[0].mxu0
  %v274 = vadd.f32 0.0, %v273
  %v275 = vpop.f32.mrb[0].mxu0
  %276 = vmatprep.mubr.bf16.mxu0 %v216
  %277 = vmatmul.mubr.bf16.gmra.mrb[0].mxu0 %v135
  %v278 = vpop.f32.mrb[0].mxu0
  %v279 = vadd.f32 0.0, %v278
  %v280 = vpop.f32.mrb[0].mxu0
  %v281 = vpop.f32.mrb[0].mxu0
  %v282 = vadd.f32 0.0, %v281
  %v283 = vpop.f32.mrb[0].mxu0
  %284 = vmatprep.mubr.bf16.mxu0 %v219
  %285 = vmatmul.mubr.bf16.gmra.mrb[0].mxu0 %v137
  %v286 = vpop.f32.mrb[0].mxu0
  %v287 = vadd.f32 0.0, %v286
  %v288 = vpop.f32.mrb[0].mxu0
  %v289 = vpop.f32.mrb[0].mxu0
  %v290 = vadd.f32 0.0, %v289
  %v291 = vpop.f32.mrb[0].mxu0
  %292 = vmatprep.mubr.bf16.mxu0 %v222
  %293 = vmatmul.mubr.bf16.gmra.mrb[0].mxu0 %v139
  %v294 = vpop.f32.mrb[0].mxu0
  %v295 = vadd.f32 0.0, %v294
  %v296 = vpop.f32.mrb[0].mxu0
  %v297 = vpop.f32.mrb[0].mxu0
  %v298 = vadd.f32 0.0, %v297
  %v299 = vpop.f32.mrb[0].mxu0
  %300 = vmatprep.mubr.bf16.mxu0 %v225
  %301 = vmatmul.mubr.bf16.gmra.mrb[0].mxu0 %v141
  %v302 = vpop.f32.mrb[0].mxu0
  %v303 = vadd.f32 0.0, %v302
  %v304 = vpop.f32.mrb[0].mxu0
  %v305 = vpop.f32.mrb[0].mxu0
  %v306 = vadd.f32 0.0, %v305
  %v307 = vpop.f32.mrb[0].mxu0
  %308 = vmatprep.mubr.bf16.mxu0 %v228
  %309 = vmatmul.mubr.bf16.gmra.mrb[0].mxu0 %v143
  %v310 = vpop.f32.mrb[0].mxu0
  %v311 = vadd.f32 0.0, %v310
  %v312 = vpop.f32.mrb[0].mxu0
  %v313 = vpop.f32.mrb[0].mxu0
  %v314 = vadd.f32 0.0, %v313
  %v315 = vpop.f32.mrb[0].mxu0
  %316 = vmatprep.mubr.bf16.mxu0 %v231
  %317 = vmatmul.mubr.bf16.gmra.mrb[0].mxu0 %v145
  %v318 = vpop.f32.mrb[0].mxu0
  %v319 = vadd.f32 0.0, %v318
  %v320 = vpop.f32.mrb[0].mxu0
  %v321 = vpop.f32.mrb[0].mxu0
  %v322 = vadd.f32 0.0, %v321
  %v323 = vpop.f32.mrb[0].mxu0
  %324 = vmatprep.mubr.bf16.mxu0 %v234
  %325 = vmatmul.mubr.bf16.gmra.mrb[0].mxu0 %v147
  %v326 = vpop.f32.mrb[0].mxu0
  %v327 = vadd.f32 0.0, %v326
  %v328 = vpop.f32.mrb[0].mxu0
  %v329 = vpop.f32.mrb[0].mxu0
  %v330 = vadd.f32 0.0, %v329
  %v331 = vpop.f32.mrb[0].mxu0
  %332 = vdwg.mxu0
  %v333 = vadd.f32 %v35, %v271
  %v334 = vadd.f32 %v36, %v274
  %v335 = vadd.f32 %v37, %v279
  %v336 = vadd.f32 %v38, %v282
  %v337 = vadd.f32 %v39, %v287
  %v338 = vadd.f32 %v40, %v290
  %v339 = vadd.f32 %v41, %v295
  %v340 = vadd.f32 %v42, %v298
  %v341 = vadd.f32 %v43, %v303
  %v342 = vadd.f32 %v44, %v306
  %v343 = vadd.f32 %v45, %v311
  %v344 = vadd.f32 %v46, %v314
  %v345 = vadd.f32 %v47, %v319
  %v346 = vadd.f32 %v48, %v322
  %v347 = vadd.f32 %v49, %v327
  %v348 = vadd.f32 %v50, %v330
  %349 = vst [vmem:[#allocation2] sm:$0xff] %v333
  %350 = vst [vmem:[#allocation2 + $0x8] sm:$0xff] %v334
  %351 = vst [vmem:[#allocation2 + $0x10] sm:$0xff] %v335
  %352 = vst [vmem:[#allocation2 + $0x18] sm:$0xff] %v336
  %353 = vst [vmem:[#allocation2 + $0x20] sm:$0xff] %v337
  %354 = vst [vmem:[#allocation2 + $0x28] sm:$0xff] %v338
  %355 = vst [vmem:[#allocation2 + $0x30] sm:$0xff] %v339
  %356 = vst [vmem:[#allocation2 + $0x38] sm:$0xff] %v340
  %357 = vst [vmem:[#allocation2 + $0x40] sm:$0xff] %v341
  %358 = vst [vmem:[#allocation2 + $0x48] sm:$0xff] %v342
  %359 = vst [vmem:[#allocation2 + $0x50] sm:$0xff] %v343
  %360 = vst [vmem:[#allocation2 + $0x58] sm:$0xff] %v344
  %361 = vst [vmem:[#allocation2 + $0x60] sm:$0xff] %v345
  %362 = vst [vmem:[#allocation2 + $0x68] sm:$0xff] %v346
  %363 = vst [vmem:[#allocation2 + $0x70] sm:$0xff] %v347
  %364 = vst [vmem:[#allocation2 + $0x78] sm:$0xff] %v348
  // Predicated region
  $region18: #{modified_resnet_forward.32} parent=0 // pred_check
    %p365 = pneg %p15
  $region19: #{modified_resnet_forward.32} parent=0 // pred_check_branch
    %367 = sbr.rel (%p365) target = $region21
  $region20: #{modified_resnet_forward.32} parent=0 // pred_region
    %v368 = vld [vmem:[#allocation2] sm:$0xff]
    %v369 = vld [vmem:[#allocation2 + $0x8] sm:$0xff]
    %v370 = vld [vmem:[#allocation2 + $0x10] sm:$0xff]
    %v371 = vld [vmem:[#allocation2 + $0x18] sm:$0xff]
    %v372 = vld [vmem:[#allocation2 + $0x20] sm:$0xff]
    %v373 = vld [vmem:[#allocation2 + $0x28] sm:$0xff]
    %v374 = vld [vmem:[#allocation2 + $0x30] sm:$0xff]
    %v375 = vld [vmem:[#allocation2 + $0x38] sm:$0xff]
    %v376 = vld [vmem:[#allocation2 + $0x40] sm:$0xff]
    %v377 = vld [vmem:[#allocation2 + $0x48] sm:$0xff]
    %v378 = vld [vmem:[#allocation2 + $0x50] sm:$0xff]
    %v379 = vld [vmem:[#allocation2 + $0x58] sm:$0xff]
    %v380 = vld [vmem:[#allocation2 + $0x60] sm:$0xff]
    %v381 = vld [vmem:[#allocation2 + $0x68] sm:$0xff]
    %v382 = vld [vmem:[#allocation2 + $0x70] sm:$0xff]
    %v383 = vld [vmem:[#allocation2 + $0x78] sm:$0xff]
    %v384 = vld [vmem:[%s2] sm:$0x1]
    %v386 = vlaneseq
    %v387 = vshrl.u32 %v386, 7
    %v388 = vsub.s32 0, %v387
    %v389 = vrot.slane %v384, %v388
    %v391 = vadd.f32 %v368, %v389
    %v392 = vadd.f32 %v369, %v389
    %v393 = vadd.f32 %v370, %v389
    %v394 = vadd.f32 %v371, %v389
    %v395 = vadd.f32 %v372, %v389
    %v396 = vadd.f32 %v373, %v389
    %v397 = vadd.f32 %v374, %v389
    %v398 = vadd.f32 %v375, %v389
    %v399 = vadd.f32 %v376, %v389
    %v400 = vadd.f32 %v377, %v389
    %v401 = vadd.f32 %v378, %v389
    %v402 = vadd.f32 %v379, %v389
    %v403 = vadd.f32 %v380, %v389
    %v404 = vadd.f32 %v381, %v389
    %v405 = vadd.f32 %v382, %v389
    %v406 = vadd.f32 %v383, %v389
    %v407 = vmax.f32 %v391, 0.0
    %v408 = vmax.f32 %v392, 0.0
    %v409 = vmax.f32 %v393, 0.0
    %v410 = vmax.f32 %v394, 0.0
    %v411 = vmax.f32 %v395, 0.0
    %v412 = vmax.f32 %v396, 0.0
    %v413 = vmax.f32 %v397, 0.0
    %v414 = vmax.f32 %v398, 0.0
    %v415 = vmax.f32 %v399, 0.0
    %v416 = vmax.f32 %v400, 0.0
    %v417 = vmax.f32 %v401, 0.0
    %v418 = vmax.f32 %v402, 0.0
    %v419 = vmax.f32 %v403, 0.0
    %v420 = vmax.f32 %v404, 0.0
    %v421 = vmax.f32 %v405, 0.0
    %v422 = vmax.f32 %v406, 0.0
    %v423 = vpack.c.bf16 %v408, %v407
    %v424 = vpack.c.bf16 %v410, %v409
    %v425 = vpack.c.bf16 %v412, %v411
    %v426 = vpack.c.bf16 %v414, %v413
    %v427 = vpack.c.bf16 %v416, %v415
    %v428 = vpack.c.bf16 %v418, %v417
    %v429 = vpack.c.bf16 %v420, %v419
    %v430 = vpack.c.bf16 %v422, %v421
    %v439 = vunpack.c.l.b16 %v423
    %v440 = vunpack.c.h.b16 %v423
    %v441 = vunpack.c.l.b16 %v424
    %v442 = vunpack.c.h.b16 %v424
    %v443 = vunpack.c.l.b16 %v425
    %v444 = vunpack.c.h.b16 %v425
    %v445 = vunpack.c.l.b16 %v426
    %v446 = vunpack.c.h.b16 %v426
    %v447 = vunpack.c.l.b16 %v427
    %v448 = vunpack.c.h.b16 %v427
    %v449 = vunpack.c.l.b16 %v428
    %v450 = vunpack.c.h.b16 %v428
    %v451 = vunpack.c.l.b16 %v429
    %v452 = vunpack.c.h.b16 %v429
    %v453 = vunpack.c.l.b16 %v430
    %v454 = vunpack.c.h.b16 %v430
    %v455 = vpack.c.b16 %v439, %v439
    %v456 = vpack.c.b16 %v440, %v440
    %v457 = vpack.c.b16 %v441, %v441
    %v458 = vpack.c.b16 %v442, %v442
    %v459 = vpack.c.b16 %v443, %v443
    %v460 = vpack.c.b16 %v444, %v444
    %v461 = vpack.c.b16 %v445, %v445
    %v462 = vpack.c.b16 %v446, %v446
    %v463 = vpack.c.b16 %v447, %v447
    %v464 = vpack.c.b16 %v448, %v448
    %v465 = vpack.c.b16 %v449, %v449
    %v466 = vpack.c.b16 %v450, %v450
    %v467 = vpack.c.b16 %v451, %v451
    %v468 = vpack.c.b16 %v452, %v452
    %v469 = vpack.c.b16 %v453, %v453
    %v470 = vpack.c.b16 %v454, %v454
    %487 = vst [vmem:[%s3] sm:$0xf] %v455
    %488 = vst [vmem:[%s3 + $0x4] sm:$0xf] %v456
    %489 = vst [vmem:[%s3 + $0x8] sm:$0xf] %v457
    %490 = vst [vmem:[%s3 + $0xc] sm:$0xf] %v458
    %491 = vst [vmem:[%s3 + $0x10] sm:$0xf] %v459
    %492 = vst [vmem:[%s3 + $0x14] sm:$0xf] %v460
    %493 = vst [vmem:[%s3 + $0x18] sm:$0xf] %v461
    %494 = vst [vmem:[%s3 + $0x1c] sm:$0xf] %v462
    %495 = vst [vmem:[%s3 + $0x20] sm:$0xf] %v463
    %496 = vst [vmem:[%s3 + $0x24] sm:$0xf] %v464
    %497 = vst [vmem:[%s3 + $0x28] sm:$0xf] %v465
    %498 = vst [vmem:[%s3 + $0x2c] sm:$0xf] %v466
    %499 = vst [vmem:[%s3 + $0x30] sm:$0xf] %v467
    %500 = vst [vmem:[%s3 + $0x34] sm:$0xf] %v468
    %501 = vst [vmem:[%s3 + $0x38] sm:$0xf] %v469
    %502 = vst [vmem:[%s3 + $0x3c] sm:$0xf] %v470
  $region21: #{modified_resnet_forward.32} parent=0 // pred_fallthru
    _
  // Predicated region
  $region22: #{modified_resnet_forward.32} parent=0 // pred_check
    _
  $region23: #{modified_resnet_forward.32} parent=0 // pred_check_branch
    %504 = sbr.rel (0) target = $region25
  $region24: #{modified_resnet_forward.32} parent=0 // pred_region
    _
  $region25: #{modified_resnet_forward.32} parent=0 // pred_fallthru
    _
  // Predicated region
  $region26: #{modified_resnet_forward.32} parent=0 // pred_check
    _
  $region27: #{modified_resnet_forward.32} parent=0 // pred_check_branch
    %506 = sbr.rel (0) target = $region29
  $region28: #{modified_resnet_forward.32} parent=0 // pred_region
    _
  $region29: #{modified_resnet_forward.32} parent=0 // pred_fallthru
    _

// kernel: modified_resnet_forward.34
$region0: #{modified_resnet_forward.34}
  #allocation0 [shape = 'u32[]', space=smem, size = 0x4, offset = 0x4, fixed_abs, tag = 'smem constant byte address 0x4 - core index']
  #allocation1 [shape = 'u32[144,128]{1,0:T(1,128)}', space=vmem, size = 0x12000, scoped, tag = 'internal scratch']
  #allocation2 [shape = 'f32[32,128]{1,0:T(8,128)}', space=vmem, size = 0x4000, scoped, tag = 'scratch operand']
  %s0 = inlined_call_operand.vmem [shape: bf16[32,16], index: 0, kind: input, shape index: {}]
  %s1 = inlined_call_operand.vmem [shape: bf16[16,128], index: 1, kind: input, shape index: {}]
  %s2 = inlined_call_operand.vmem [shape: f32[1,128], index: 2, kind: input, shape index: {}]
  %s3 = inlined_call_operand.vmem [shape: bf16[32,128], index: 3, kind: input, shape index: {}]
  %s4 = inlined_call_operand.vmem [shape: bf16[32,128], index: 4, kind: output, shape index: {}]
  %s5 = sld [smem:[#allocation0]]
  $region34: #{modified_resnet_forward.34} parent=0
    _
  %s7 = ssub.s32 1, %s5
  %s8 = scalar_select 0, %s7, %s5
  // Predicated region
  $region2: #{modified_resnet_forward.34} parent=0 // pred_check
    _
  $region3: #{modified_resnet_forward.34} parent=0 // pred_check_branch
    %10 = sbr.rel (0) target = $region5
  $region4: #{modified_resnet_forward.34} parent=0 // pred_region
    _
  $region5: #{modified_resnet_forward.34} parent=0 // pred_fallthru
    _
  // Predicated region
  $region6: #{modified_resnet_forward.34} parent=0 // pred_check
    _
  $region7: #{modified_resnet_forward.34} parent=0 // pred_check_branch
    %12 = sbr.rel (0) target = $region9
  $region8: #{modified_resnet_forward.34} parent=0 // pred_region
    _
  $region9: #{modified_resnet_forward.34} parent=0 // pred_fallthru
    _
  // Predicated region
  $region10: #{modified_resnet_forward.34} parent=0 // pred_check
    _
  $region11: #{modified_resnet_forward.34} parent=0 // pred_check_branch
    %14 = sbr.rel (0) target = $region13
  $region12: #{modified_resnet_forward.34} parent=0 // pred_region
    _
  $region13: #{modified_resnet_forward.34} parent=0 // pred_fallthru
    _
  // Predicated region
  $region14: #{modified_resnet_forward.34} parent=0 // pred_check
    _
  $region15: #{modified_resnet_forward.34} parent=0 // pred_check_branch
    %16 = sbr.rel (0) target = $region17
  $region16: #{modified_resnet_forward.34} parent=0 // pred_region
    _
  $region17: #{modified_resnet_forward.34} parent=0 // pred_fallthru
    _
  %p18 = scmp.eq.s32.totalorder 0, 0
  // Predicated region
  $region18: #{modified_resnet_forward.34} parent=0 // pred_check
    %p19 = pneg %p18
  $region19: #{modified_resnet_forward.34} parent=0 // pred_check_branch
    %21 = sbr.rel (%p19) target = $region21
  $region20: #{modified_resnet_forward.34} parent=0 // pred_region
    %22 = vst [vmem:[#allocation2] sm:$0xff] 0.0
    %23 = vst [vmem:[#allocation2 + $0x8] sm:$0xff] 0.0
    %24 = vst [vmem:[#allocation2 + $0x10] sm:$0xff] 0.0
    %25 = vst [vmem:[#allocation2 + $0x18] sm:$0xff] 0.0
  $region21: #{modified_resnet_forward.34} parent=0 // pred_fallthru
    _
  %v26 = vld [vmem:[#allocation2] sm:$0xff]
  %v27 = vld [vmem:[#allocation2 + $0x8] sm:$0xff]
  %v28 = vld [vmem:[#allocation2 + $0x10] sm:$0xff]
  %v29 = vld [vmem:[#allocation2 + $0x18] sm:$0xff]
  %v30 = vld [vmem:[%s0] sm:$0xf]
  %v31 = vld [vmem:[%s0 + $0x4] sm:$0xf]
  %v32 = vld [vmem:[%s0 + $0x8] sm:$0xf]
  %v33 = vld [vmem:[%s0 + $0xc] sm:$0xf]
  %v34 = vld [vmem:[%s1] sm:$0xf]
  %v35 = vld [vmem:[%s1 + $0x4] sm:$0xf]
  %v40 = vunpack.c.l.b16 %v30
  %v41 = vunpack.c.l.b16 %v31
  %v42 = vunpack.c.l.b16 %v32
  %v43 = vunpack.c.l.b16 %v33
  %v44 = vpack.c.b16 %v41, %v40
  %v45 = vpack.c.b16 %v43, %v42
  %v48 = vunpack.c.l.b16 %v34
  %v49 = vunpack.c.l.b16 %v35
  %v50 = vpack.c.b16 %v49, %v48
  %vm52 = vcmask 130048
  %v54 = vsel %vm52, %v44, 0
  %v57 = vsel %vm52, %v45, 0
  %59 = vmatprep.subr.bf16.mxu0 0
  %60 = vmatpush1.bf16.msra.mxu0 %v50
  %61 = vmatprep.subr.bf16.mxu0 0
  %62 = vmatpush1.bf16.msra.mxu0 0
  %63 = vmatprep.subr.bf16.mxu0 0
  %64 = vmatpush1.bf16.msra.mxu0 0
  %65 = vmatprep.subr.bf16.mxu0 0
  %66 = vmatpush1.bf16.msra.mxu0 0
  %67 = vmatprep.subr.bf16.mxu0 0
  %68 = vmatpush1.bf16.msra.mxu0 0
  %69 = vmatprep.subr.bf16.mxu0 0
  %70 = vmatpush1.bf16.msra.mxu0 0
  %71 = vmatprep.subr.bf16.mxu0 0
  %72 = vmatpush1.bf16.msra.mxu0 0
  %73 = vmatprep.subr.bf16.mxu0 0
  %74 = vmatpush1.bf16.msra.mxu0 0
  %75 = vmatprep.subr.bf16.mxu0 0
  %76 = vmatpush1.bf16.msra.mxu0 0
  %77 = vmatprep.subr.bf16.mxu0 0
  %78 = vmatpush1.bf16.msra.mxu0 0
  %79 = vmatprep.subr.bf16.mxu0 0
  %80 = vmatpush1.bf16.msra.mxu0 0
  %81 = vmatprep.subr.bf16.mxu0 0
  %82 = vmatpush1.bf16.msra.mxu0 0
  %83 = vmatprep.subr.bf16.mxu0 0
  %84 = vmatpush1.bf16.msra.mxu0 0
  %85 = vmatprep.subr.bf16.mxu0 0
  %86 = vmatpush1.bf16.msra.mxu0 0
  %87 = vmatprep.subr.bf16.mxu0 0
  %88 = vmatpush1.bf16.msra.mxu0 0
  %89 = vmatprep.subr.bf16.mxu0 0
  %90 = vmatpush1.bf16.msra.mxu0 0
  %91 = vmatprep.mubr.bf16.mxu0 0
  %92 = vmatmul.mubr.bf16.gmra.mrb[0].mxu0 %v54
  %v93 = vpop.f32.mrb[0].mxu0
  %v94 = vadd.f32 0.0, %v93
  %v95 = vpop.f32.mrb[0].mxu0
  %v96 = vpop.f32.mrb[0].mxu0
  %v97 = vadd.f32 0.0, %v96
  %v98 = vpop.f32.mrb[0].mxu0
  %99 = vmatprep.mubr.bf16.mxu0 0
  %100 = vmatmul.mubr.bf16.gmra.mrb[0].mxu0 %v57
  %v101 = vpop.f32.mrb[0].mxu0
  %v102 = vadd.f32 0.0, %v101
  %v103 = vpop.f32.mrb[0].mxu0
  %v104 = vpop.f32.mrb[0].mxu0
  %v105 = vadd.f32 0.0, %v104
  %v106 = vpop.f32.mrb[0].mxu0
  %107 = vdwg.mxu0
  %v108 = vadd.f32 %v26, %v94
  %v109 = vadd.f32 %v27, %v97
  %v110 = vadd.f32 %v28, %v102
  %v111 = vadd.f32 %v29, %v105
  %112 = vst [vmem:[#allocation2] sm:$0xff] %v108
  %113 = vst [vmem:[#allocation2 + $0x8] sm:$0xff] %v109
  %114 = vst [vmem:[#allocation2 + $0x10] sm:$0xff] %v110
  %115 = vst [vmem:[#allocation2 + $0x18] sm:$0xff] %v111
  // Predicated region
  $region22: #{modified_resnet_forward.34} parent=0 // pred_check
    %p116 = pneg %p18
  $region23: #{modified_resnet_forward.34} parent=0 // pred_check_branch
    %118 = sbr.rel (%p116) target = $region25
  $region24: #{modified_resnet_forward.34} parent=0 // pred_region
    %v119 = vld [vmem:[#allocation2] sm:$0xff]
    %v120 = vld [vmem:[#allocation2 + $0x8] sm:$0xff]
    %v121 = vld [vmem:[#allocation2 + $0x10] sm:$0xff]
    %v122 = vld [vmem:[#allocation2 + $0x18] sm:$0xff]
    %v123 = vld [vmem:[%s2] sm:$0x1]
    %v125 = vlaneseq
    %v126 = vshrl.u32 %v125, 7
    %v127 = vsub.s32 0, %v126
    %v128 = vrot.slane %v123, %v127
    %v130 = vadd.f32 %v119, %v128
    %v131 = vadd.f32 %v120, %v128
    %v132 = vadd.f32 %v121, %v128
    %v133 = vadd.f32 %v122, %v128
    %v134 = vld [vmem:[%s3] sm:$0xf]
    %v135 = vld [vmem:[%s3 + $0x4] sm:$0xf]
    %v136 = vld [vmem:[%s3 + $0x8] sm:$0xf]
    %v137 = vld [vmem:[%s3 + $0xc] sm:$0xf]
    %v138 = vunpack.c.l.bf16 %v134
    %v139 = vunpack.c.l.bf16 %v135
    %v140 = vunpack.c.l.bf16 %v136
    %v141 = vunpack.c.l.bf16 %v137
    %v142 = vadd.f32 %v130, %v138
    %v143 = vadd.f32 %v131, %v139
    %v144 = vadd.f32 %v132, %v140
    %v145 = vadd.f32 %v133, %v141
    %v146 = vmax.f32 %v142, 0.0
    %v147 = vmax.f32 %v143, 0.0
    %v148 = vmax.f32 %v144, 0.0
    %v149 = vmax.f32 %v145, 0.0
    %v150 = vpack.c.bf16 %v147, %v146
    %v151 = vpack.c.bf16 %v149, %v148
    %v154 = vunpack.c.l.b16 %v150
    %v155 = vunpack.c.h.b16 %v150
    %v156 = vunpack.c.l.b16 %v151
    %v157 = vunpack.c.h.b16 %v151
    %v158 = vpack.c.b16 %v154, %v154
    %v159 = vpack.c.b16 %v155, %v155
    %v160 = vpack.c.b16 %v156, %v156
    %v161 = vpack.c.b16 %v157, %v157
    %166 = vst [vmem:[%s4] sm:$0xf] %v158
    %167 = vst [vmem:[%s4 + $0x4] sm:$0xf] %v159
    %168 = vst [vmem:[%s4 + $0x8] sm:$0xf] %v160
    %169 = vst [vmem:[%s4 + $0xc] sm:$0xf] %v161
  $region25: #{modified_resnet_forward.34} parent=0 // pred_fallthru
    _
  // Predicated region
  $region26: #{modified_resnet_forward.34} parent=0 // pred_check
    _
  $region27: #{modified_resnet_forward.34} parent=0 // pred_check_branch
    %171 = sbr.rel (0) target = $region29
  $region28: #{modified_resnet_forward.34} parent=0 // pred_region
    _
  $region29: #{modified_resnet_forward.34} parent=0 // pred_fallthru
    _
  // Predicated region
  $region30: #{modified_resnet_forward.34} parent=0 // pred_check
    _
  $region31: #{modified_resnet_forward.34} parent=0 // pred_check_branch
    %173 = sbr.rel (0) target = $region33
  $region32: #{modified_resnet_forward.34} parent=0 // pred_region
    _
  $region33: #{modified_resnet_forward.34} parent=0 // pred_fallthru
    _

// kernel: modified_resnet_forward.35
$region0: #{modified_resnet_forward.35}
  #allocation0 [shape = 'u32[]', space=smem, size = 0x4, offset = 0x4, fixed_abs, tag = 'smem constant byte address 0x4 - core index']
  #allocation1 [shape = 'u32[144,128]{1,0:T(1,128)}', space=vmem, size = 0x12000, scoped, tag = 'internal scratch']
  #allocation2 [shape = 'f32[32,128]{1,0:T(8,128)}', space=vmem, size = 0x4000, scoped, tag = 'scratch operand']
  %s0 = inlined_call_operand.vmem [shape: bf16[32,64], index: 0, kind: input, shape index: {}]
  %s1 = inlined_call_operand.vmem [shape: bf16[64,128], index: 1, kind: input, shape index: {}]
  %s2 = inlined_call_operand.vmem [shape: f32[1,128], index: 2, kind: input, shape index: {}]
  %s3 = inlined_call_operand.vmem [shape: bf16[32,128], index: 3, kind: output, shape index: {}]
  %s4 = sld [smem:[#allocation0]]
  $region30: #{modified_resnet_forward.35} parent=0
    _
  %s6 = ssub.s32 1, %s4
  %s7 = scalar_select 0, %s6, %s4
  // Predicated region
  $region2: #{modified_resnet_forward.35} parent=0 // pred_check
    _
  $region3: #{modified_resnet_forward.35} parent=0 // pred_check_branch
    %9 = sbr.rel (0) target = $region5
  $region4: #{modified_resnet_forward.35} parent=0 // pred_region
    _
  $region5: #{modified_resnet_forward.35} parent=0 // pred_fallthru
    _
  // Predicated region
  $region6: #{modified_resnet_forward.35} parent=0 // pred_check
    _
  $region7: #{modified_resnet_forward.35} parent=0 // pred_check_branch
    %11 = sbr.rel (0) target = $region9
  $region8: #{modified_resnet_forward.35} parent=0 // pred_region
    _
  $region9: #{modified_resnet_forward.35} parent=0 // pred_fallthru
    _
  // Predicated region
  $region10: #{modified_resnet_forward.35} parent=0 // pred_check
    _
  $region11: #{modified_resnet_forward.35} parent=0 // pred_check_branch
    %13 = sbr.rel (0) target = $region13
  $region12: #{modified_resnet_forward.35} parent=0 // pred_region
    _
  $region13: #{modified_resnet_forward.35} parent=0 // pred_fallthru
    _
  %p15 = scmp.eq.s32.totalorder 0, 0
  // Predicated region
  $region14: #{modified_resnet_forward.35} parent=0 // pred_check
    %p16 = pneg %p15
  $region15: #{modified_resnet_forward.35} parent=0 // pred_check_branch
    %18 = sbr.rel (%p16) target = $region17
  $region16: #{modified_resnet_forward.35} parent=0 // pred_region
    %19 = vst [vmem:[#allocation2] sm:$0xff] 0.0
    %20 = vst [vmem:[#allocation2 + $0x8] sm:$0xff] 0.0
    %21 = vst [vmem:[#allocation2 + $0x10] sm:$0xff] 0.0
    %22 = vst [vmem:[#allocation2 + $0x18] sm:$0xff] 0.0
  $region17: #{modified_resnet_forward.35} parent=0 // pred_fallthru
    _
  %v23 = vld [vmem:[#allocation2] sm:$0xff]
  %v24 = vld [vmem:[#allocation2 + $0x8] sm:$0xff]
  %v25 = vld [vmem:[#allocation2 + $0x10] sm:$0xff]
  %v26 = vld [vmem:[#allocation2 + $0x18] sm:$0xff]
  %v27 = vld [vmem:[%s0] sm:$0xf]
  %v28 = vld [vmem:[%s0 + $0x4] sm:$0xf]
  %v29 = vld [vmem:[%s0 + $0x8] sm:$0xf]
  %v30 = vld [vmem:[%s0 + $0xc] sm:$0xf]
  %v31 = vld [vmem:[%s1] sm:$0xf]
  %v32 = vld [vmem:[%s1 + $0x4] sm:$0xf]
  %v33 = vld [vmem:[%s1 + $0x8] sm:$0xf]
  %v34 = vld [vmem:[%s1 + $0xc] sm:$0xf]
  %v35 = vld [vmem:[%s1 + $0x10] sm:$0xf]
  %v36 = vld [vmem:[%s1 + $0x14] sm:$0xf]
  %v37 = vld [vmem:[%s1 + $0x18] sm:$0xf]
  %v38 = vld [vmem:[%s1 + $0x1c] sm:$0xf]
  %v43 = vunpack.c.l.b16 %v27
  %v44 = vunpack.c.l.b16 %v28
  %v45 = vunpack.c.l.b16 %v29
  %v46 = vunpack.c.l.b16 %v30
  %v47 = vpack.c.b16 %v44, %v43
  %v48 = vpack.c.b16 %v46, %v45
  %v57 = vunpack.c.l.b16 %v31
  %v58 = vunpack.c.l.b16 %v32
  %v59 = vunpack.c.l.b16 %v33
  %v60 = vunpack.c.l.b16 %v34
  %v61 = vunpack.c.l.b16 %v35
  %v62 = vunpack.c.l.b16 %v36
  %v63 = vunpack.c.l.b16 %v37
  %v64 = vunpack.c.l.b16 %v38
  %v65 = vpack.c.b16 %v58, %v57
  %v66 = vpack.c.b16 %v60, %v59
  %v67 = vpack.c.b16 %v62, %v61
  %v68 = vpack.c.b16 %v64, %v63
  %vm73 = vcmask 523264
  %v75 = vsel %vm73, %v47, 0
  %v78 = vsel %vm73, %v48, 0
  %80 = vmatprep.subr.bf16.mxu0 0
  %81 = vmatpush1.bf16.msra.mxu0 %v65
  %82 = vmatprep.subr.bf16.mxu0 0
  %83 = vmatpush1.bf16.msra.mxu0 %v66
  %84 = vmatprep.subr.bf16.mxu0 0
  %85 = vmatpush1.bf16.msra.mxu0 %v67
  %86 = vmatprep.subr.bf16.mxu0 0
  %87 = vmatpush1.bf16.msra.mxu0 %v68
  %88 = vmatprep.subr.bf16.mxu0 0
  %89 = vmatpush1.bf16.msra.mxu0 0
  %90 = vmatprep.subr.bf16.mxu0 0
  %91 = vmatpush1.bf16.msra.mxu0 0
  %92 = vmatprep.subr.bf16.mxu0 0
  %93 = vmatpush1.bf16.msra.mxu0 0
  %94 = vmatprep.subr.bf16.mxu0 0
  %95 = vmatpush1.bf16.msra.mxu0 0
  %96 = vmatprep.subr.bf16.mxu0 0
  %97 = vmatpush1.bf16.msra.mxu0 0
  %98 = vmatprep.subr.bf16.mxu0 0
  %99 = vmatpush1.bf16.msra.mxu0 0
  %100 = vmatprep.subr.bf16.mxu0 0
  %101 = vmatpush1.bf16.msra.mxu0 0
  %102 = vmatprep.subr.bf16.mxu0 0
  %103 = vmatpush1.bf16.msra.mxu0 0
  %104 = vmatprep.subr.bf16.mxu0 0
  %105 = vmatpush1.bf16.msra.mxu0 0
  %106 = vmatprep.subr.bf16.mxu0 0
  %107 = vmatpush1.bf16.msra.mxu0 0
  %108 = vmatprep.subr.bf16.mxu0 0
  %109 = vmatpush1.bf16.msra.mxu0 0
  %110 = vmatprep.subr.bf16.mxu0 0
  %111 = vmatpush1.bf16.msra.mxu0 0
  %112 = vmatprep.mubr.bf16.mxu0 0
  %113 = vmatmul.mubr.bf16.gmra.mrb[0].mxu0 %v75
  %v114 = vpop.f32.mrb[0].mxu0
  %v115 = vadd.f32 0.0, %v114
  %v116 = vpop.f32.mrb[0].mxu0
  %v117 = vpop.f32.mrb[0].mxu0
  %v118 = vadd.f32 0.0, %v117
  %v119 = vpop.f32.mrb[0].mxu0
  %120 = vmatprep.mubr.bf16.mxu0 0
  %121 = vmatmul.mubr.bf16.gmra.mrb[0].mxu0 %v78
  %v122 = vpop.f32.mrb[0].mxu0
  %v123 = vadd.f32 0.0, %v122
  %v124 = vpop.f32.mrb[0].mxu0
  %v125 = vpop.f32.mrb[0].mxu0
  %v126 = vadd.f32 0.0, %v125
  %v127 = vpop.f32.mrb[0].mxu0
  %128 = vdwg.mxu0
  %v129 = vadd.f32 %v23, %v115
  %v130 = vadd.f32 %v24, %v118
  %v131 = vadd.f32 %v25, %v123
  %v132 = vadd.f32 %v26, %v126
  %133 = vst [vmem:[#allocation2] sm:$0xff] %v129
  %134 = vst [vmem:[#allocation2 + $0x8] sm:$0xff] %v130
  %135 = vst [vmem:[#allocation2 + $0x10] sm:$0xff] %v131
  %136 = vst [vmem:[#allocation2 + $0x18] sm:$0xff] %v132
  // Predicated region
  $region18: #{modified_resnet_forward.35} parent=0 // pred_check
    %p137 = pneg %p15
  $region19: #{modified_resnet_forward.35} parent=0 // pred_check_branch
    %139 = sbr.rel (%p137) target = $region21
  $region20: #{modified_resnet_forward.35} parent=0 // pred_region
    %v140 = vld [vmem:[#allocation2] sm:$0xff]
    %v141 = vld [vmem:[#allocation2 + $0x8] sm:$0xff]
    %v142 = vld [vmem:[#allocation2 + $0x10] sm:$0xff]
    %v143 = vld [vmem:[#allocation2 + $0x18] sm:$0xff]
    %v144 = vld [vmem:[%s2] sm:$0x1]
    %v146 = vlaneseq
    %v147 = vshrl.u32 %v146, 7
    %v148 = vsub.s32 0, %v147
    %v149 = vrot.slane %v144, %v148
    %v151 = vadd.f32 %v140, %v149
    %v152 = vadd.f32 %v141, %v149
    %v153 = vadd.f32 %v142, %v149
    %v154 = vadd.f32 %v143, %v149
    %v155 = vmax.f32 %v151, 0.0
    %v156 = vmax.f32 %v152, 0.0
    %v157 = vmax.f32 %v153, 0.0
    %v158 = vmax.f32 %v154, 0.0
    %v159 = vpack.c.bf16 %v156, %v155
    %v160 = vpack.c.bf16 %v158, %v157
    %v163 = vunpack.c.l.b16 %v159
    %v164 = vunpack.c.h.b16 %v159
    %v165 = vunpack.c.l.b16 %v160
    %v166 = vunpack.c.h.b16 %v160
    %v167 = vpack.c.b16 %v163, %v163
    %v168 = vpack.c.b16 %v164, %v164
    %v169 = vpack.c.b16 %v165, %v165
    %v170 = vpack.c.b16 %v166, %v166
    %175 = vst [vmem:[%s3] sm:$0xf] %v167
    %176 = vst [vmem:[%s3 + $0x4] sm:$0xf] %v168
    %177 = vst [vmem:[%s3 + $0x8] sm:$0xf] %v169
    %178 = vst [vmem:[%s3 + $0xc] sm:$0xf] %v170
  $region21: #{modified_resnet_forward.35} parent=0 // pred_fallthru
    _
  // Predicated region
  $region22: #{modified_resnet_forward.35} parent=0 // pred_check
    _
  $region23: #{modified_resnet_forward.35} parent=0 // pred_check_branch
    %180 = sbr.rel (0) target = $region25
  $region24: #{modified_resnet_forward.35} parent=0 // pred_region
    _
  $region25: #{modified_resnet_forward.35} parent=0 // pred_fallthru
    _
  // Predicated region
  $region26: #{modified_resnet_forward.35} parent=0 // pred_check
    _
  $region27: #{modified_resnet_forward.35} parent=0 // pred_check_branch
    %182 = sbr.rel (0) target = $region29
  $region28: #{modified_resnet_forward.35} parent=0 // pred_region
    _
  $region29: #{modified_resnet_forward.35} parent=0 // pred_fallthru
    _

// kernel: modified_resnet_forward.33
$region0: #{modified_resnet_forward.33}
  #allocation0 [shape = 'u32[]', space=smem, size = 0x4, offset = 0x4, fixed_abs, tag = 'smem constant byte address 0x4 - core index']
  #allocation1 [shape = 'u32[144,128]{1,0:T(1,128)}', space=vmem, size = 0x12000, scoped, tag = 'internal scratch']
  #allocation2 [shape = 'f32[32,128]{1,0:T(8,128)}', space=vmem, size = 0x4000, scoped, tag = 'scratch operand']
  %s0 = inlined_call_operand.vmem [shape: bf16[32,32], index: 0, kind: input, shape index: {}]
  %s1 = inlined_call_operand.vmem [shape: bf16[32,128], index: 1, kind: input, shape index: {}]
  %s2 = inlined_call_operand.vmem [shape: f32[1,128], index: 2, kind: input, shape index: {}]
  %s3 = inlined_call_operand.vmem [shape: bf16[32,128], index: 3, kind: output, shape index: {}]
  %s4 = sld [smem:[#allocation0]]
  $region30: #{modified_resnet_forward.33} parent=0
    _
  %s6 = ssub.s32 1, %s4
  %s7 = scalar_select 0, %s6, %s4
  // Predicated region
  $region2: #{modified_resnet_forward.33} parent=0 // pred_check
    _
  $region3: #{modified_resnet_forward.33} parent=0 // pred_check_branch
    %9 = sbr.rel (0) target = $region5
  $region4: #{modified_resnet_forward.33} parent=0 // pred_region
    _
  $region5: #{modified_resnet_forward.33} parent=0 // pred_fallthru
    _
  // Predicated region
  $region6: #{modified_resnet_forward.33} parent=0 // pred_check
    _
  $region7: #{modified_resnet_forward.33} parent=0 // pred_check_branch
    %11 = sbr.rel (0) target = $region9
  $region8: #{modified_resnet_forward.33} parent=0 // pred_region
    _
  $region9: #{modified_resnet_forward.33} parent=0 // pred_fallthru
    _
  // Predicated region
  $region10: #{modified_resnet_forward.33} parent=0 // pred_check
    _
  $region11: #{modified_resnet_forward.33} parent=0 // pred_check_branch
    %13 = sbr.rel (0) target = $region13
  $region12: #{modified_resnet_forward.33} parent=0 // pred_region
    _
  $region13: #{modified_resnet_forward.33} parent=0 // pred_fallthru
    _
  %p15 = scmp.eq.s32.totalorder 0, 0
  // Predicated region
  $region14: #{modified_resnet_forward.33} parent=0 // pred_check
    %p16 = pneg %p15
  $region15: #{modified_resnet_forward.33} parent=0 // pred_check_branch
    %18 = sbr.rel (%p16) target = $region17
  $region16: #{modified_resnet_forward.33} parent=0 // pred_region
    %19 = vst [vmem:[#allocation2] sm:$0xff] 0.0
    %20 = vst [vmem:[#allocation2 + $0x8] sm:$0xff] 0.0
    %21 = vst [vmem:[#allocation2 + $0x10] sm:$0xff] 0.0
    %22 = vst [vmem:[#allocation2 + $0x18] sm:$0xff] 0.0
  $region17: #{modified_resnet_forward.33} parent=0 // pred_fallthru
    _
  %v23 = vld [vmem:[#allocation2] sm:$0xff]
  %v24 = vld [vmem:[#allocation2 + $0x8] sm:$0xff]
  %v25 = vld [vmem:[#allocation2 + $0x10] sm:$0xff]
  %v26 = vld [vmem:[#allocation2 + $0x18] sm:$0xff]
  %v27 = vld [vmem:[%s0] sm:$0xf]
  %v28 = vld [vmem:[%s0 + $0x4] sm:$0xf]
  %v29 = vld [vmem:[%s0 + $0x8] sm:$0xf]
  %v30 = vld [vmem:[%s0 + $0xc] sm:$0xf]
  %v31 = vld [vmem:[%s1] sm:$0xf]
  %v32 = vld [vmem:[%s1 + $0x4] sm:$0xf]
  %v33 = vld [vmem:[%s1 + $0x8] sm:$0xf]
  %v34 = vld [vmem:[%s1 + $0xc] sm:$0xf]
  %v39 = vunpack.c.l.b16 %v27
  %v40 = vunpack.c.l.b16 %v28
  %v41 = vunpack.c.l.b16 %v29
  %v42 = vunpack.c.l.b16 %v30
  %v43 = vpack.c.b16 %v40, %v39
  %v44 = vpack.c.b16 %v42, %v41
  %v49 = vunpack.c.l.b16 %v31
  %v50 = vunpack.c.l.b16 %v32
  %v51 = vunpack.c.l.b16 %v33
  %v52 = vunpack.c.l.b16 %v34
  %v53 = vpack.c.b16 %v50, %v49
  %v54 = vpack.c.b16 %v52, %v51
  %vm57 = vcmask 261120
  %v59 = vsel %vm57, %v43, 0
  %v62 = vsel %vm57, %v44, 0
  %64 = vmatprep.subr.bf16.mxu0 0
  %65 = vmatpush1.bf16.msra.mxu0 %v53
  %66 = vmatprep.subr.bf16.mxu0 0
  %67 = vmatpush1.bf16.msra.mxu0 %v54
  %68 = vmatprep.subr.bf16.mxu0 0
  %69 = vmatpush1.bf16.msra.mxu0 0
  %70 = vmatprep.subr.bf16.mxu0 0
  %71 = vmatpush1.bf16.msra.mxu0 0
  %72 = vmatprep.subr.bf16.mxu0 0
  %73 = vmatpush1.bf16.msra.mxu0 0
  %74 = vmatprep.subr.bf16.mxu0 0
  %75 = vmatpush1.bf16.msra.mxu0 0
  %76 = vmatprep.subr.bf16.mxu0 0
  %77 = vmatpush1.bf16.msra.mxu0 0
  %78 = vmatprep.subr.bf16.mxu0 0
  %79 = vmatpush1.bf16.msra.mxu0 0
  %80 = vmatprep.subr.bf16.mxu0 0
  %81 = vmatpush1.bf16.msra.mxu0 0
  %82 = vmatprep.subr.bf16.mxu0 0
  %83 = vmatpush1.bf16.msra.mxu0 0
  %84 = vmatprep.subr.bf16.mxu0 0
  %85 = vmatpush1.bf16.msra.mxu0 0
  %86 = vmatprep.subr.bf16.mxu0 0
  %87 = vmatpush1.bf16.msra.mxu0 0
  %88 = vmatprep.subr.bf16.mxu0 0
  %89 = vmatpush1.bf16.msra.mxu0 0
  %90 = vmatprep.subr.bf16.mxu0 0
  %91 = vmatpush1.bf16.msra.mxu0 0
  %92 = vmatprep.subr.bf16.mxu0 0
  %93 = vmatpush1.bf16.msra.mxu0 0
  %94 = vmatprep.subr.bf16.mxu0 0
  %95 = vmatpush1.bf16.msra.mxu0 0
  %96 = vmatprep.mubr.bf16.mxu0 0
  %97 = vmatmul.mubr.bf16.gmra.mrb[0].mxu0 %v59
  %v98 = vpop.f32.mrb[0].mxu0
  %v99 = vadd.f32 0.0, %v98
  %v100 = vpop.f32.mrb[0].mxu0
  %v101 = vpop.f32.mrb[0].mxu0
  %v102 = vadd.f32 0.0, %v101
  %v103 = vpop.f32.mrb[0].mxu0
  %104 = vmatprep.mubr.bf16.mxu0 0
  %105 = vmatmul.mubr.bf16.gmra.mrb[0].mxu0 %v62
  %v106 = vpop.f32.mrb[0].mxu0
  %v107 = vadd.f32 0.0, %v106
  %v108 = vpop.f32.mrb[0].mxu0
  %v109 = vpop.f32.mrb[0].mxu0
  %v110 = vadd.f32 0.0, %v109
  %v111 = vpop.f32.mrb[0].mxu0
  %112 = vdwg.mxu0
  %v113 = vadd.f32 %v23, %v99
  %v114 = vadd.f32 %v24, %v102
  %v115 = vadd.f32 %v25, %v107
  %v116 = vadd.f32 %v26, %v110
  %117 = vst [vmem:[#allocation2] sm:$0xff] %v113
  %118 = vst [vmem:[#allocation2 + $0x8] sm:$0xff] %v114
  %119 = vst [vmem:[#allocation2 + $0x10] sm:$0xff] %v115
  %120 = vst [vmem:[#allocation2 + $0x18] sm:$0xff] %v116
  // Predicated region
  $region18: #{modified_resnet_forward.33} parent=0 // pred_check
    %p121 = pneg %p15
  $region19: #{modified_resnet_forward.33} parent=0 // pred_check_branch
    %123 = sbr.rel (%p121) target = $region21
  $region20: #{modified_resnet_forward.33} parent=0 // pred_region
    %v124 = vld [vmem:[#allocation2] sm:$0xff]
    %v125 = vld [vmem:[#allocation2 + $0x8] sm:$0xff]
    %v126 = vld [vmem:[#allocation2 + $0x10] sm:$0xff]
    %v127 = vld [vmem:[#allocation2 + $0x18] sm:$0xff]
    %v128 = vld [vmem:[%s2] sm:$0x1]
    %v130 = vlaneseq
    %v131 = vshrl.u32 %v130, 7
    %v132 = vsub.s32 0, %v131
    %v133 = vrot.slane %v128, %v132
    %v135 = vadd.f32 %v124, %v133
    %v136 = vadd.f32 %v125, %v133
    %v137 = vadd.f32 %v126, %v133
    %v138 = vadd.f32 %v127, %v133
    %v139 = vpack.c.bf16 %v136, %v135
    %v140 = vpack.c.bf16 %v138, %v137
    %v143 = vunpack.c.l.b16 %v139
    %v144 = vunpack.c.h.b16 %v139
    %v145 = vunpack.c.l.b16 %v140
    %v146 = vunpack.c.h.b16 %v140
    %v147 = vpack.c.b16 %v143, %v143
    %v148 = vpack.c.b16 %v144, %v144
    %v149 = vpack.c.b16 %v145, %v145
    %v150 = vpack.c.b16 %v146, %v146
    %155 = vst [vmem:[%s3] sm:$0xf] %v147
    %156 = vst [vmem:[%s3 + $0x4] sm:$0xf] %v148
    %157 = vst [vmem:[%s3 + $0x8] sm:$0xf] %v149
    %158 = vst [vmem:[%s3 + $0xc] sm:$0xf] %v150
  $region21: #{modified_resnet_forward.33} parent=0 // pred_fallthru
    _
  // Predicated region
  $region22: #{modified_resnet_forward.33} parent=0 // pred_check
    _
  $region23: #{modified_resnet_forward.33} parent=0 // pred_check_branch
    %160 = sbr.rel (0) target = $region25
  $region24: #{modified_resnet_forward.33} parent=0 // pred_region
    _
  $region25: #{modified_resnet_forward.33} parent=0 // pred_fallthru
    _
  // Predicated region
  $region26: #{modified_resnet_forward.33} parent=0 // pred_check
    _
  $region27: #{modified_resnet_forward.33} parent=0 // pred_check_branch
    %162 = sbr.rel (0) target = $region29
  $region28: #{modified_resnet_forward.33} parent=0 // pred_region
    _
  $region29: #{modified_resnet_forward.33} parent=0 // pred_fallthru
    _

// kernel: modified_resnet_forward.36
$region0: #{modified_resnet_forward.36}
  #allocation0 [shape = 'u32[]', space=smem, size = 0x4, offset = 0x4, fixed_abs, tag = 'smem constant byte address 0x4 - core index']
  #allocation1 [shape = 'u32[144,128]{1,0:T(1,128)}', space=vmem, size = 0x12000, scoped, tag = 'internal scratch']
  #allocation2 [shape = 'f32[32,128]{1,0:T(8,128)}', space=vmem, size = 0x4000, scoped, tag = 'scratch operand']
  %s0 = inlined_call_operand.vmem [shape: bf16[32,288], index: 0, kind: input, shape index: {}]
  %s1 = inlined_call_operand.vmem [shape: bf16[288,128], index: 1, kind: input, shape index: {}]
  %s2 = inlined_call_operand.vmem [shape: f32[1,128], index: 2, kind: input, shape index: {}]
  %s3 = inlined_call_operand.vmem [shape: bf16[32,128], index: 3, kind: output, shape index: {}]
  %s4 = sld [smem:[#allocation0]]
  $region30: #{modified_resnet_forward.36} parent=0
    _
  %s6 = ssub.s32 1, %s4
  %s7 = scalar_select 0, %s6, %s4
  // Predicated region
  $region2: #{modified_resnet_forward.36} parent=0 // pred_check
    _
  $region3: #{modified_resnet_forward.36} parent=0 // pred_check_branch
    %9 = sbr.rel (0) target = $region5
  $region4: #{modified_resnet_forward.36} parent=0 // pred_region
    _
  $region5: #{modified_resnet_forward.36} parent=0 // pred_fallthru
    _
  // Predicated region
  $region6: #{modified_resnet_forward.36} parent=0 // pred_check
    _
  $region7: #{modified_resnet_forward.36} parent=0 // pred_check_branch
    %11 = sbr.rel (0) target = $region9
  $region8: #{modified_resnet_forward.36} parent=0 // pred_region
    _
  $region9: #{modified_resnet_forward.36} parent=0 // pred_fallthru
    _
  // Predicated region
  $region10: #{modified_resnet_forward.36} parent=0 // pred_check
    _
  $region11: #{modified_resnet_forward.36} parent=0 // pred_check_branch
    %13 = sbr.rel (0) target = $region13
  $region12: #{modified_resnet_forward.36} parent=0 // pred_region
    _
  $region13: #{modified_resnet_forward.36} parent=0 // pred_fallthru
    _
  %p15 = scmp.eq.s32.totalorder 0, 0
  // Predicated region
  $region14: #{modified_resnet_forward.36} parent=0 // pred_check
    %p16 = pneg %p15
  $region15: #{modified_resnet_forward.36} parent=0 // pred_check_branch
    %18 = sbr.rel (%p16) target = $region17
  $region16: #{modified_resnet_forward.36} parent=0 // pred_region
    %19 = vst [vmem:[#allocation2] sm:$0xff] 0.0
    %20 = vst [vmem:[#allocation2 + $0x8] sm:$0xff] 0.0
    %21 = vst [vmem:[#allocation2 + $0x10] sm:$0xff] 0.0
    %22 = vst [vmem:[#allocation2 + $0x18] sm:$0xff] 0.0
  $region17: #{modified_resnet_forward.36} parent=0 // pred_fallthru
    _
  %v23 = vld [vmem:[#allocation2] sm:$0xff]
  %v24 = vld [vmem:[#allocation2 + $0x8] sm:$0xff]
  %v25 = vld [vmem:[#allocation2 + $0x10] sm:$0xff]
  %v26 = vld [vmem:[#allocation2 + $0x18] sm:$0xff]
  %v27 = vld [vmem:[%s0] sm:$0xff]
  %v28 = vld [vmem:[%s0 + $0x8] sm:$0xf]
  %v29 = vld [vmem:[%s0 + $0xc] sm:$0xff]
  %v30 = vld [vmem:[%s0 + $0x14] sm:$0xf]
  %v31 = vld [vmem:[%s0 + $0x18] sm:$0xff]
  %v32 = vld [vmem:[%s0 + $0x20] sm:$0xf]
  %v33 = vld [vmem:[%s0 + $0x24] sm:$0xff]
  %v34 = vld [vmem:[%s0 + $0x2c] sm:$0xf]
  %v35 = vld [vmem:[%s1] sm:$0xf]
  %v36 = vld [vmem:[%s1 + $0x4] sm:$0xf]
  %v37 = vld [vmem:[%s1 + $0x8] sm:$0xf]
  %v38 = vld [vmem:[%s1 + $0xc] sm:$0xf]
  %v39 = vld [vmem:[%s1 + $0x10] sm:$0xf]
  %v40 = vld [vmem:[%s1 + $0x14] sm:$0xf]
  %v41 = vld [vmem:[%s1 + $0x18] sm:$0xf]
  %v42 = vld [vmem:[%s1 + $0x1c] sm:$0xf]
  %v43 = vld [vmem:[%s1 + $0x20] sm:$0xf]
  %v44 = vld [vmem:[%s1 + $0x24] sm:$0xf]
  %v45 = vld [vmem:[%s1 + $0x28] sm:$0xf]
  %v46 = vld [vmem:[%s1 + $0x2c] sm:$0xf]
  %v47 = vld [vmem:[%s1 + $0x30] sm:$0xf]
  %v48 = vld [vmem:[%s1 + $0x34] sm:$0xf]
  %v49 = vld [vmem:[%s1 + $0x38] sm:$0xf]
  %v50 = vld [vmem:[%s1 + $0x3c] sm:$0xf]
  %v51 = vld [vmem:[%s1 + $0x40] sm:$0xf]
  %v52 = vld [vmem:[%s1 + $0x44] sm:$0xf]
  %v53 = vld [vmem:[%s1 + $0x48] sm:$0xf]
  %v54 = vld [vmem:[%s1 + $0x4c] sm:$0xf]
  %v55 = vld [vmem:[%s1 + $0x50] sm:$0xf]
  %v56 = vld [vmem:[%s1 + $0x54] sm:$0xf]
  %v57 = vld [vmem:[%s1 + $0x58] sm:$0xf]
  %v58 = vld [vmem:[%s1 + $0x5c] sm:$0xf]
  %v59 = vld [vmem:[%s1 + $0x60] sm:$0xf]
  %v60 = vld [vmem:[%s1 + $0x64] sm:$0xf]
  %v61 = vld [vmem:[%s1 + $0x68] sm:$0xf]
  %v62 = vld [vmem:[%s1 + $0x6c] sm:$0xf]
  %v63 = vld [vmem:[%s1 + $0x70] sm:$0xf]
  %v64 = vld [vmem:[%s1 + $0x74] sm:$0xf]
  %v65 = vld [vmem:[%s1 + $0x78] sm:$0xf]
  %v66 = vld [vmem:[%s1 + $0x7c] sm:$0xf]
  %v67 = vld [vmem:[%s1 + $0x80] sm:$0xf]
  %v68 = vld [vmem:[%s1 + $0x84] sm:$0xf]
  %v69 = vld [vmem:[%s1 + $0x88] sm:$0xf]
  %v70 = vld [vmem:[%s1 + $0x8c] sm:$0xf]
  %v79 = vunpack.c.l.b16 %v27
  %v80 = vunpack.c.h.b16 %v27
  %v81 = vunpack.c.l.b16 %v28
  %v82 = vunpack.c.l.b16 %v29
  %v83 = vunpack.c.h.b16 %v29
  %v84 = vunpack.c.l.b16 %v30
  %v85 = vunpack.c.l.b16 %v31
  %v86 = vunpack.c.h.b16 %v31
  %v87 = vunpack.c.l.b16 %v32
  %v88 = vunpack.c.l.b16 %v33
  %v89 = vunpack.c.h.b16 %v33
  %v90 = vunpack.c.l.b16 %v34
  %v91 = vpack.c.b16 %v82, %v79
  %v92 = vpack.c.b16 %v83, %v80
  %v93 = vpack.c.b16 %v84, %v81
  %v94 = vpack.c.b16 %v88, %v85
  %v95 = vpack.c.b16 %v89, %v86
  %v96 = vpack.c.b16 %v90, %v87
  %v137 = vunpack.c.l.b16 %v35
  %v138 = vunpack.c.l.b16 %v36
  %v139 = vunpack.c.l.b16 %v37
  %v140 = vunpack.c.l.b16 %v38
  %v141 = vunpack.c.l.b16 %v39
  %v142 = vunpack.c.l.b16 %v40
  %v143 = vunpack.c.l.b16 %v41
  %v144 = vunpack.c.l.b16 %v42
  %v145 = vunpack.c.l.b16 %v43
  %v146 = vunpack.c.l.b16 %v44
  %v147 = vunpack.c.l.b16 %v45
  %v148 = vunpack.c.l.b16 %v46
  %v149 = vunpack.c.l.b16 %v47
  %v150 = vunpack.c.l.b16 %v48
  %v151 = vunpack.c.l.b16 %v49
  %v152 = vunpack.c.l.b16 %v50
  %v153 = vunpack.c.l.b16 %v51
  %v154 = vunpack.c.l.b16 %v52
  %v155 = vunpack.c.l.b16 %v53
  %v156 = vunpack.c.l.b16 %v54
  %v157 = vunpack.c.l.b16 %v55
  %v158 = vunpack.c.l.b16 %v56
  %v159 = vunpack.c.l.b16 %v57
  %v160 = vunpack.c.l.b16 %v58
  %v161 = vunpack.c.l.b16 %v59
  %v162 = vunpack.c.l.b16 %v60
  %v163 = vunpack.c.l.b16 %v61
  %v164 = vunpack.c.l.b16 %v62
  %v165 = vunpack.c.l.b16 %v63
  %v166 = vunpack.c.l.b16 %v64
  %v167 = vunpack.c.l.b16 %v65
  %v168 = vunpack.c.l.b16 %v66
  %v169 = vunpack.c.l.b16 %v67
  %v170 = vunpack.c.l.b16 %v68
  %v171 = vunpack.c.l.b16 %v69
  %v172 = vunpack.c.l.b16 %v70
  %v173 = vpack.c.b16 %v138, %v137
  %v174 = vpack.c.b16 %v140, %v139
  %v175 = vpack.c.b16 %v142, %v141
  %v176 = vpack.c.b16 %v144, %v143
  %v177 = vpack.c.b16 %v146, %v145
  %v178 = vpack.c.b16 %v148, %v147
  %v179 = vpack.c.b16 %v150, %v149
  %v180 = vpack.c.b16 %v152, %v151
  %v181 = vpack.c.b16 %v154, %v153
  %v182 = vpack.c.b16 %v156, %v155
  %v183 = vpack.c.b16 %v158, %v157
  %v184 = vpack.c.b16 %v160, %v159
  %v185 = vpack.c.b16 %v162, %v161
  %v186 = vpack.c.b16 %v164, %v163
  %v187 = vpack.c.b16 %v166, %v165
  %v188 = vpack.c.b16 %v168, %v167
  %v189 = vpack.c.b16 %v170, %v169
  %v190 = vpack.c.b16 %v172, %v171
  %vm209 = vcmask 261120
  %v211 = vsel %vm209, %v93, 0
  %v214 = vsel %vm209, %v96, 0
  %216 = vmatprep.subr.bf16.mxu0 0
  %217 = vmatpush1.bf16.msra.mxu0 %v173
  %218 = vmatprep.subr.bf16.mxu0 0
  %219 = vmatpush1.bf16.msra.mxu0 %v174
  %220 = vmatprep.subr.bf16.mxu0 0
  %221 = vmatpush1.bf16.msra.mxu0 %v175
  %222 = vmatprep.subr.bf16.mxu0 0
  %223 = vmatpush1.bf16.msra.mxu0 %v176
  %224 = vmatprep.subr.bf16.mxu0 0
  %225 = vmatpush1.bf16.msra.mxu0 %v177
  %226 = vmatprep.subr.bf16.mxu0 0
  %227 = vmatpush1.bf16.msra.mxu0 %v178
  %228 = vmatprep.subr.bf16.mxu0 0
  %229 = vmatpush1.bf16.msra.mxu0 %v179
  %230 = vmatprep.subr.bf16.mxu0 0
  %231 = vmatpush1.bf16.msra.mxu0 %v180
  %232 = vmatprep.subr.bf16.mxu0 0
  %233 = vmatpush1.bf16.msra.mxu0 %v181
  %234 = vmatprep.subr.bf16.mxu0 0
  %235 = vmatpush1.bf16.msra.mxu0 %v182
  %236 = vmatprep.subr.bf16.mxu0 0
  %237 = vmatpush1.bf16.msra.mxu0 %v183
  %238 = vmatprep.subr.bf16.mxu0 0
  %239 = vmatpush1.bf16.msra.mxu0 %v184
  %240 = vmatprep.subr.bf16.mxu0 0
  %241 = vmatpush1.bf16.msra.mxu0 %v185
  %242 = vmatprep.subr.bf16.mxu0 0
  %243 = vmatpush1.bf16.msra.mxu0 %v186
  %244 = vmatprep.subr.bf16.mxu0 0
  %245 = vmatpush1.bf16.msra.mxu0 %v187
  %246 = vmatprep.subr.bf16.mxu0 0
  %247 = vmatpush1.bf16.msra.mxu0 %v188
  %248 = vmatprep.mubr.bf16.mxu0 %v92
  %249 = vmatmul.mubr.bf16.gmra.mrb[0].mxu0 %v91
  %v250 = vpop.f32.mrb[0].mxu0
  %v251 = vadd.f32 0.0, %v250
  %v252 = vpop.f32.mrb[0].mxu0
  %v253 = vpop.f32.mrb[0].mxu0
  %v254 = vadd.f32 0.0, %v253
  %v255 = vpop.f32.mrb[0].mxu0
  %256 = vmatprep.mubr.bf16.mxu0 %v95
  %257 = vmatmul.mubr.bf16.gmra.mrb[0].mxu0 %v94
  %v258 = vpop.f32.mrb[0].mxu0
  %v259 = vadd.f32 0.0, %v258
  %v260 = vpop.f32.mrb[0].mxu0
  %v261 = vpop.f32.mrb[0].mxu0
  %v262 = vadd.f32 0.0, %v261
  %v263 = vpop.f32.mrb[0].mxu0
  %264 = vdwg.mxu0
  %265 = vmatprep.subr.bf16.mxu0 0
  %266 = vmatpush1.bf16.msra.mxu0 %v189
  %267 = vmatprep.subr.bf16.mxu0 0
  %268 = vmatpush1.bf16.msra.mxu0 %v190
  %269 = vmatprep.subr.bf16.mxu0 0
  %270 = vmatpush1.bf16.msra.mxu0 0
  %271 = vmatprep.subr.bf16.mxu0 0
  %272 = vmatpush1.bf16.msra.mxu0 0
  %273 = vmatprep.subr.bf16.mxu0 0
  %274 = vmatpush1.bf16.msra.mxu0 0
  %275 = vmatprep.subr.bf16.mxu0 0
  %276 = vmatpush1.bf16.msra.mxu0 0
  %277 = vmatprep.subr.bf16.mxu0 0
  %278 = vmatpush1.bf16.msra.mxu0 0
  %279 = vmatprep.subr.bf16.mxu0 0
  %280 = vmatpush1.bf16.msra.mxu0 0
  %281 = vmatprep.subr.bf16.mxu0 0
  %282 = vmatpush1.bf16.msra.mxu0 0
  %283 = vmatprep.subr.bf16.mxu0 0
  %284 = vmatpush1.bf16.msra.mxu0 0
  %285 = vmatprep.subr.bf16.mxu0 0
  %286 = vmatpush1.bf16.msra.mxu0 0
  %287 = vmatprep.subr.bf16.mxu0 0
  %288 = vmatpush1.bf16.msra.mxu0 0
  %289 = vmatprep.subr.bf16.mxu0 0
  %290 = vmatpush1.bf16.msra.mxu0 0
  %291 = vmatprep.subr.bf16.mxu0 0
  %292 = vmatpush1.bf16.msra.mxu0 0
  %293 = vmatprep.subr.bf16.mxu0 0
  %294 = vmatpush1.bf16.msra.mxu0 0
  %295 = vmatprep.subr.bf16.mxu0 0
  %296 = vmatpush1.bf16.msra.mxu0 0
  %297 = vmatprep.mubr.bf16.mxu0 0
  %298 = vmatmul.mubr.bf16.gmra.mrb[0].mxu0 %v211
  %v299 = vpop.f32.mrb[0].mxu0
  %v300 = vadd.f32 %v251, %v299
  %v301 = vpop.f32.mrb[0].mxu0
  %v302 = vpop.f32.mrb[0].mxu0
  %v303 = vadd.f32 %v254, %v302
  %v304 = vpop.f32.mrb[0].mxu0
  %305 = vmatprep.mubr.bf16.mxu0 0
  %306 = vmatmul.mubr.bf16.gmra.mrb[0].mxu0 %v214
  %v307 = vpop.f32.mrb[0].mxu0
  %v308 = vadd.f32 %v259, %v307
  %v309 = vpop.f32.mrb[0].mxu0
  %v310 = vpop.f32.mrb[0].mxu0
  %v311 = vadd.f32 %v262, %v310
  %v312 = vpop.f32.mrb[0].mxu0
  %313 = vdwg.mxu0
  %v314 = vadd.f32 %v23, %v300
  %v315 = vadd.f32 %v24, %v303
  %v316 = vadd.f32 %v25, %v308
  %v317 = vadd.f32 %v26, %v311
  %318 = vst [vmem:[#allocation2] sm:$0xff] %v314
  %319 = vst [vmem:[#allocation2 + $0x8] sm:$0xff] %v315
  %320 = vst [vmem:[#allocation2 + $0x10] sm:$0xff] %v316
  %321 = vst [vmem:[#allocation2 + $0x18] sm:$0xff] %v317
  // Predicated region
  $region18: #{modified_resnet_forward.36} parent=0 // pred_check
    %p322 = pneg %p15
  $region19: #{modified_resnet_forward.36} parent=0 // pred_check_branch
    %324 = sbr.rel (%p322) target = $region21
  $region20: #{modified_resnet_forward.36} parent=0 // pred_region
    %v325 = vld [vmem:[#allocation2] sm:$0xff]
    %v326 = vld [vmem:[#allocation2 + $0x8] sm:$0xff]
    %v327 = vld [vmem:[#allocation2 + $0x10] sm:$0xff]
    %v328 = vld [vmem:[#allocation2 + $0x18] sm:$0xff]
    %v329 = vld [vmem:[%s2] sm:$0x1]
    %v331 = vlaneseq
    %v332 = vshrl.u32 %v331, 7
    %v333 = vsub.s32 0, %v332
    %v334 = vrot.slane %v329, %v333
    %v336 = vadd.f32 %v325, %v334
    %v337 = vadd.f32 %v326, %v334
    %v338 = vadd.f32 %v327, %v334
    %v339 = vadd.f32 %v328, %v334
    %v340 = vmax.f32 %v336, 0.0
    %v341 = vmax.f32 %v337, 0.0
    %v342 = vmax.f32 %v338, 0.0
    %v343 = vmax.f32 %v339, 0.0
    %v344 = vpack.c.bf16 %v341, %v340
    %v345 = vpack.c.bf16 %v343, %v342
    %v348 = vunpack.c.l.b16 %v344
    %v349 = vunpack.c.h.b16 %v344
    %v350 = vunpack.c.l.b16 %v345
    %v351 = vunpack.c.h.b16 %v345
    %v352 = vpack.c.b16 %v348, %v348
    %v353 = vpack.c.b16 %v349, %v349
    %v354 = vpack.c.b16 %v350, %v350
    %v355 = vpack.c.b16 %v351, %v351
    %360 = vst [vmem:[%s3] sm:$0xf] %v352
    %361 = vst [vmem:[%s3 + $0x4] sm:$0xf] %v353
    %362 = vst [vmem:[%s3 + $0x8] sm:$0xf] %v354
    %363 = vst [vmem:[%s3 + $0xc] sm:$0xf] %v355
  $region21: #{modified_resnet_forward.36} parent=0 // pred_fallthru
    _
  // Predicated region
  $region22: #{modified_resnet_forward.36} parent=0 // pred_check
    _
  $region23: #{modified_resnet_forward.36} parent=0 // pred_check_branch
    %365 = sbr.rel (0) target = $region25
  $region24: #{modified_resnet_forward.36} parent=0 // pred_region
    _
  $region25: #{modified_resnet_forward.36} parent=0 // pred_fallthru
    _
  // Predicated region
  $region26: #{modified_resnet_forward.36} parent=0 // pred_check
    _
  $region27: #{modified_resnet_forward.36} parent=0 // pred_check_branch
    %367 = sbr.rel (0) target = $region29
  $region28: #{modified_resnet_forward.36} parent=0 // pred_region
    _
  $region29: #{modified_resnet_forward.36} parent=0 // pred_fallthru
    _

// kernel: modified_resnet_forward.38
$region0: #{modified_resnet_forward.38}
  #allocation0 [shape = 'u32[]', space=smem, size = 0x4, offset = 0x4, fixed_abs, tag = 'smem constant byte address 0x4 - core index']
  #allocation1 [shape = 'u32[144,128]{1,0:T(1,128)}', space=vmem, size = 0x12000, scoped, tag = 'internal scratch']
  #allocation2 [shape = 'f32[8,128]{1,0:T(8,128)}', space=vmem, size = 0x1000, scoped, tag = 'scratch operand']
  %s0 = inlined_call_operand.vmem [shape: bf16[8,32], index: 0, kind: input, shape index: {}]
  %s1 = inlined_call_operand.vmem [shape: bf16[32,128], index: 1, kind: input, shape index: {}]
  %s2 = inlined_call_operand.vmem [shape: f32[1,128], index: 2, kind: input, shape index: {}]
  %s3 = inlined_call_operand.vmem [shape: bf16[8,128], index: 3, kind: input, shape index: {}]
  %s4 = inlined_call_operand.vmem [shape: bf16[8,128], index: 4, kind: output, shape index: {}]
  %s5 = sld [smem:[#allocation0]]
  $region34: #{modified_resnet_forward.38} parent=0
    _
  %s7 = ssub.s32 1, %s5
  %s8 = scalar_select 0, %s7, %s5
  // Predicated region
  $region2: #{modified_resnet_forward.38} parent=0 // pred_check
    _
  $region3: #{modified_resnet_forward.38} parent=0 // pred_check_branch
    %10 = sbr.rel (0) target = $region5
  $region4: #{modified_resnet_forward.38} parent=0 // pred_region
    _
  $region5: #{modified_resnet_forward.38} parent=0 // pred_fallthru
    _
  // Predicated region
  $region6: #{modified_resnet_forward.38} parent=0 // pred_check
    _
  $region7: #{modified_resnet_forward.38} parent=0 // pred_check_branch
    %12 = sbr.rel (0) target = $region9
  $region8: #{modified_resnet_forward.38} parent=0 // pred_region
    _
  $region9: #{modified_resnet_forward.38} parent=0 // pred_fallthru
    _
  // Predicated region
  $region10: #{modified_resnet_forward.38} parent=0 // pred_check
    _
  $region11: #{modified_resnet_forward.38} parent=0 // pred_check_branch
    %14 = sbr.rel (0) target = $region13
  $region12: #{modified_resnet_forward.38} parent=0 // pred_region
    _
  $region13: #{modified_resnet_forward.38} parent=0 // pred_fallthru
    _
  // Predicated region
  $region14: #{modified_resnet_forward.38} parent=0 // pred_check
    _
  $region15: #{modified_resnet_forward.38} parent=0 // pred_check_branch
    %16 = sbr.rel (0) target = $region17
  $region16: #{modified_resnet_forward.38} parent=0 // pred_region
    _
  $region17: #{modified_resnet_forward.38} parent=0 // pred_fallthru
    _
  %p18 = scmp.eq.s32.totalorder 0, 0
  // Predicated region
  $region18: #{modified_resnet_forward.38} parent=0 // pred_check
    %p19 = pneg %p18
  $region19: #{modified_resnet_forward.38} parent=0 // pred_check_branch
    %21 = sbr.rel (%p19) target = $region21
  $region20: #{modified_resnet_forward.38} parent=0 // pred_region
    %22 = vst [vmem:[#allocation2] sm:$0xff] 0.0
  $region21: #{modified_resnet_forward.38} parent=0 // pred_fallthru
    _
  %v23 = vld [vmem:[#allocation2] sm:$0xff]
  %v24 = vld [vmem:[%s0] sm:$0xf]
  %v25 = vld [vmem:[%s1] sm:$0xf]
  %v26 = vld [vmem:[%s1 + $0x4] sm:$0xf]
  %v27 = vld [vmem:[%s1 + $0x8] sm:$0xf]
  %v28 = vld [vmem:[%s1 + $0xc] sm:$0xf]
  %v33 = vunpack.c.l.b16 %v25
  %v34 = vunpack.c.l.b16 %v26
  %v35 = vunpack.c.l.b16 %v27
  %v36 = vunpack.c.l.b16 %v28
  %v37 = vpack.c.b16 %v34, %v33
  %v38 = vpack.c.b16 %v36, %v35
  %vm41 = vcmask 261120
  %v43 = vsel %vm41, %v24, 0
  %45 = vmatprep.subr.bf16.mxu0 0
  %46 = vmatpush1.bf16.msra.mxu0 %v37
  %47 = vmatprep.subr.bf16.mxu0 0
  %48 = vmatpush1.bf16.msra.mxu0 %v38
  %49 = vmatprep.subr.bf16.mxu0 0
  %50 = vmatpush1.bf16.msra.mxu0 0
  %51 = vmatprep.subr.bf16.mxu0 0
  %52 = vmatpush1.bf16.msra.mxu0 0
  %53 = vmatprep.subr.bf16.mxu0 0
  %54 = vmatpush1.bf16.msra.mxu0 0
  %55 = vmatprep.subr.bf16.mxu0 0
  %56 = vmatpush1.bf16.msra.mxu0 0
  %57 = vmatprep.subr.bf16.mxu0 0
  %58 = vmatpush1.bf16.msra.mxu0 0
  %59 = vmatprep.subr.bf16.mxu0 0
  %60 = vmatpush1.bf16.msra.mxu0 0
  %61 = vmatprep.subr.bf16.mxu0 0
  %62 = vmatpush1.bf16.msra.mxu0 0
  %63 = vmatprep.subr.bf16.mxu0 0
  %64 = vmatpush1.bf16.msra.mxu0 0
  %65 = vmatprep.subr.bf16.mxu0 0
  %66 = vmatpush1.bf16.msra.mxu0 0
  %67 = vmatprep.subr.bf16.mxu0 0
  %68 = vmatpush1.bf16.msra.mxu0 0
  %69 = vmatprep.subr.bf16.mxu0 0
  %70 = vmatpush1.bf16.msra.mxu0 0
  %71 = vmatprep.subr.bf16.mxu0 0
  %72 = vmatpush1.bf16.msra.mxu0 0
  %73 = vmatprep.subr.bf16.mxu0 0
  %74 = vmatpush1.bf16.msra.mxu0 0
  %75 = vmatprep.subr.bf16.mxu0 0
  %76 = vmatpush1.bf16.msra.mxu0 0
  %77 = vmatprep.mubr.bf16.mxu0 0
  %78 = vmatmul.mubr.bf16.gmra.mrb[0].mxu0 %v43
  %v79 = vpop.f32.mrb[0].mxu0
  %v80 = vadd.f32 0.0, %v79
  %v81 = vpop.f32.mrb[0].mxu0
  %v82 = vpop.f32.mrb[0].mxu0
  %v83 = vpop.f32.mrb[0].mxu0
  %84 = vdwg.mxu0
  %v85 = vadd.f32 %v23, %v80
  %86 = vst [vmem:[#allocation2] sm:$0xff] %v85
  // Predicated region
  $region22: #{modified_resnet_forward.38} parent=0 // pred_check
    %p87 = pneg %p18
  $region23: #{modified_resnet_forward.38} parent=0 // pred_check_branch
    %89 = sbr.rel (%p87) target = $region25
  $region24: #{modified_resnet_forward.38} parent=0 // pred_region
    %v90 = vld [vmem:[#allocation2] sm:$0xff]
    %v91 = vld [vmem:[%s2] sm:$0x1]
    %v93 = vlaneseq
    %v94 = vshrl.u32 %v93, 7
    %v95 = vsub.s32 0, %v94
    %v96 = vrot.slane %v91, %v95
    %v98 = vadd.f32 %v90, %v96
    %v99 = vld [vmem:[%s3] sm:$0xf]
    %v100 = vunpack.c.l.bf16 %v99
    %v101 = vadd.f32 %v98, %v100
    %v102 = vmax.f32 %v101, 0.0
    %v103 = vpack.c.bf16 %v102, %v102
    %104 = vst [vmem:[%s4] sm:$0xf] %v103
  $region25: #{modified_resnet_forward.38} parent=0 // pred_fallthru
    _
  // Predicated region
  $region26: #{modified_resnet_forward.38} parent=0 // pred_check
    _
  $region27: #{modified_resnet_forward.38} parent=0 // pred_check_branch
    %106 = sbr.rel (0) target = $region29
  $region28: #{modified_resnet_forward.38} parent=0 // pred_region
    _
  $region29: #{modified_resnet_forward.38} parent=0 // pred_fallthru
    _
  // Predicated region
  $region30: #{modified_resnet_forward.38} parent=0 // pred_check
    _
  $region31: #{modified_resnet_forward.38} parent=0 // pred_check_branch
    %108 = sbr.rel (0) target = $region33
  $region32: #{modified_resnet_forward.38} parent=0 // pred_region
    _
  $region33: #{modified_resnet_forward.38} parent=0 // pred_fallthru
    _

// kernel: modified_resnet_forward.37
$region0: #{modified_resnet_forward.37}
  #allocation0 [shape = 'u32[]', space=smem, size = 0x4, offset = 0x4, fixed_abs, tag = 'smem constant byte address 0x4 - core index']
  #allocation1 [shape = 'u32[144,128]{1,0:T(1,128)}', space=vmem, size = 0x12000, scoped, tag = 'internal scratch']
  #allocation2 [shape = 'f32[8,128]{1,0:T(8,128)}', space=vmem, size = 0x1000, scoped, tag = 'scratch operand']
  %s0 = inlined_call_operand.vmem [shape: bf16[8,64], index: 0, kind: input, shape index: {}]
  %s1 = inlined_call_operand.vmem [shape: bf16[64,128], index: 1, kind: input, shape index: {}]
  %s2 = inlined_call_operand.vmem [shape: f32[1,128], index: 2, kind: input, shape index: {}]
  %s3 = inlined_call_operand.vmem [shape: bf16[8,128], index: 3, kind: output, shape index: {}]
  %s4 = sld [smem:[#allocation0]]
  $region30: #{modified_resnet_forward.37} parent=0
    _
  %s6 = ssub.s32 1, %s4
  %s7 = scalar_select 0, %s6, %s4
  // Predicated region
  $region2: #{modified_resnet_forward.37} parent=0 // pred_check
    _
  $region3: #{modified_resnet_forward.37} parent=0 // pred_check_branch
    %9 = sbr.rel (0) target = $region5
  $region4: #{modified_resnet_forward.37} parent=0 // pred_region
    _
  $region5: #{modified_resnet_forward.37} parent=0 // pred_fallthru
    _
  // Predicated region
  $region6: #{modified_resnet_forward.37} parent=0 // pred_check
    _
  $region7: #{modified_resnet_forward.37} parent=0 // pred_check_branch
    %11 = sbr.rel (0) target = $region9
  $region8: #{modified_resnet_forward.37} parent=0 // pred_region
    _
  $region9: #{modified_resnet_forward.37} parent=0 // pred_fallthru
    _
  // Predicated region
  $region10: #{modified_resnet_forward.37} parent=0 // pred_check
    _
  $region11: #{modified_resnet_forward.37} parent=0 // pred_check_branch
    %13 = sbr.rel (0) target = $region13
  $region12: #{modified_resnet_forward.37} parent=0 // pred_region
    _
  $region13: #{modified_resnet_forward.37} parent=0 // pred_fallthru
    _
  %p15 = scmp.eq.s32.totalorder 0, 0
  // Predicated region
  $region14: #{modified_resnet_forward.37} parent=0 // pred_check
    %p16 = pneg %p15
  $region15: #{modified_resnet_forward.37} parent=0 // pred_check_branch
    %18 = sbr.rel (%p16) target = $region17
  $region16: #{modified_resnet_forward.37} parent=0 // pred_region
    %19 = vst [vmem:[#allocation2] sm:$0xff] 0.0
  $region17: #{modified_resnet_forward.37} parent=0 // pred_fallthru
    _
  %v20 = vld [vmem:[#allocation2] sm:$0xff]
  %v21 = vld [vmem:[%s0] sm:$0xf]
  %v22 = vld [vmem:[%s1] sm:$0xf]
  %v23 = vld [vmem:[%s1 + $0x4] sm:$0xf]
  %v24 = vld [vmem:[%s1 + $0x8] sm:$0xf]
  %v25 = vld [vmem:[%s1 + $0xc] sm:$0xf]
  %v26 = vld [vmem:[%s1 + $0x10] sm:$0xf]
  %v27 = vld [vmem:[%s1 + $0x14] sm:$0xf]
  %v28 = vld [vmem:[%s1 + $0x18] sm:$0xf]
  %v29 = vld [vmem:[%s1 + $0x1c] sm:$0xf]
  %v38 = vunpack.c.l.b16 %v22
  %v39 = vunpack.c.l.b16 %v23
  %v40 = vunpack.c.l.b16 %v24
  %v41 = vunpack.c.l.b16 %v25
  %v42 = vunpack.c.l.b16 %v26
  %v43 = vunpack.c.l.b16 %v27
  %v44 = vunpack.c.l.b16 %v28
  %v45 = vunpack.c.l.b16 %v29
  %v46 = vpack.c.b16 %v39, %v38
  %v47 = vpack.c.b16 %v41, %v40
  %v48 = vpack.c.b16 %v43, %v42
  %v49 = vpack.c.b16 %v45, %v44
  %vm54 = vcmask 523264
  %v56 = vsel %vm54, %v21, 0
  %58 = vmatprep.subr.bf16.mxu0 0
  %59 = vmatpush1.bf16.msra.mxu0 %v46
  %60 = vmatprep.subr.bf16.mxu0 0
  %61 = vmatpush1.bf16.msra.mxu0 %v47
  %62 = vmatprep.subr.bf16.mxu0 0
  %63 = vmatpush1.bf16.msra.mxu0 %v48
  %64 = vmatprep.subr.bf16.mxu0 0
  %65 = vmatpush1.bf16.msra.mxu0 %v49
  %66 = vmatprep.subr.bf16.mxu0 0
  %67 = vmatpush1.bf16.msra.mxu0 0
  %68 = vmatprep.subr.bf16.mxu0 0
  %69 = vmatpush1.bf16.msra.mxu0 0
  %70 = vmatprep.subr.bf16.mxu0 0
  %71 = vmatpush1.bf16.msra.mxu0 0
  %72 = vmatprep.subr.bf16.mxu0 0
  %73 = vmatpush1.bf16.msra.mxu0 0
  %74 = vmatprep.subr.bf16.mxu0 0
  %75 = vmatpush1.bf16.msra.mxu0 0
  %76 = vmatprep.subr.bf16.mxu0 0
  %77 = vmatpush1.bf16.msra.mxu0 0
  %78 = vmatprep.subr.bf16.mxu0 0
  %79 = vmatpush1.bf16.msra.mxu0 0
  %80 = vmatprep.subr.bf16.mxu0 0
  %81 = vmatpush1.bf16.msra.mxu0 0
  %82 = vmatprep.subr.bf16.mxu0 0
  %83 = vmatpush1.bf16.msra.mxu0 0
  %84 = vmatprep.subr.bf16.mxu0 0
  %85 = vmatpush1.bf16.msra.mxu0 0
  %86 = vmatprep.subr.bf16.mxu0 0
  %87 = vmatpush1.bf16.msra.mxu0 0
  %88 = vmatprep.subr.bf16.mxu0 0
  %89 = vmatpush1.bf16.msra.mxu0 0
  %90 = vmatprep.mubr.bf16.mxu0 0
  %91 = vmatmul.mubr.bf16.gmra.mrb[0].mxu0 %v56
  %v92 = vpop.f32.mrb[0].mxu0
  %v93 = vadd.f32 0.0, %v92
  %v94 = vpop.f32.mrb[0].mxu0
  %v95 = vpop.f32.mrb[0].mxu0
  %v96 = vpop.f32.mrb[0].mxu0
  %97 = vdwg.mxu0
  %v98 = vadd.f32 %v20, %v93
  %99 = vst [vmem:[#allocation2] sm:$0xff] %v98
  // Predicated region
  $region18: #{modified_resnet_forward.37} parent=0 // pred_check
    %p100 = pneg %p15
  $region19: #{modified_resnet_forward.37} parent=0 // pred_check_branch
    %102 = sbr.rel (%p100) target = $region21
  $region20: #{modified_resnet_forward.37} parent=0 // pred_region
    %v103 = vld [vmem:[#allocation2] sm:$0xff]
    %v104 = vld [vmem:[%s2] sm:$0x1]
    %v106 = vlaneseq
    %v107 = vshrl.u32 %v106, 7
    %v108 = vsub.s32 0, %v107
    %v109 = vrot.slane %v104, %v108
    %v111 = vadd.f32 %v103, %v109
    %v112 = vpack.c.bf16 %v111, %v111
    %113 = vst [vmem:[%s3] sm:$0xf] %v112
  $region21: #{modified_resnet_forward.37} parent=0 // pred_fallthru
    _
  // Predicated region
  $region22: #{modified_resnet_forward.37} parent=0 // pred_check
    _
  $region23: #{modified_resnet_forward.37} parent=0 // pred_check_branch
    %115 = sbr.rel (0) target = $region25
  $region24: #{modified_resnet_forward.37} parent=0 // pred_region
    _
  $region25: #{modified_resnet_forward.37} parent=0 // pred_fallthru
    _
  // Predicated region
  $region26: #{modified_resnet_forward.37} parent=0 // pred_check
    _
  $region27: #{modified_resnet_forward.37} parent=0 // pred_check_branch
    %117 = sbr.rel (0) target = $region29
  $region28: #{modified_resnet_forward.37} parent=0 // pred_region
    _
  $region29: #{modified_resnet_forward.37} parent=0 // pred_fallthru
    _

// kernel: modified_resnet_forward.41
$region0: #{modified_resnet_forward.41}
  #allocation0 [shape = 'u32[]', space=smem, size = 0x4, offset = 0x4, fixed_abs, tag = 'smem constant byte address 0x4 - core index']
  #allocation1 [shape = 'u32[144,128]{1,0:T(1,128)}', space=vmem, size = 0x12000, scoped, tag = 'internal scratch']
  #allocation2 [shape = 'f32[8,256]{1,0:T(8,128)}', space=vmem, size = 0x2000, scoped, tag = 'scratch operand']
  %s0 = inlined_call_operand.vmem [shape: bf16[8,128], index: 0, kind: input, shape index: {}]
  %s1 = inlined_call_operand.vmem [shape: bf16[128,256], index: 1, kind: input, shape index: {}]
  %s2 = inlined_call_operand.vmem [shape: f32[1,256], index: 2, kind: input, shape index: {}]
  %s3 = inlined_call_operand.vmem [shape: bf16[8,256], index: 3, kind: output, shape index: {}]
  %s4 = sld [smem:[#allocation0]]
  $region30: #{modified_resnet_forward.41} parent=0
    _
  %s6 = ssub.s32 1, %s4
  %s7 = scalar_select 0, %s6, %s4
  // Predicated region
  $region2: #{modified_resnet_forward.41} parent=0 // pred_check
    _
  $region3: #{modified_resnet_forward.41} parent=0 // pred_check_branch
    %9 = sbr.rel (0) target = $region5
  $region4: #{modified_resnet_forward.41} parent=0 // pred_region
    _
  $region5: #{modified_resnet_forward.41} parent=0 // pred_fallthru
    _
  // Predicated region
  $region6: #{modified_resnet_forward.41} parent=0 // pred_check
    _
  $region7: #{modified_resnet_forward.41} parent=0 // pred_check_branch
    %11 = sbr.rel (0) target = $region9
  $region8: #{modified_resnet_forward.41} parent=0 // pred_region
    _
  $region9: #{modified_resnet_forward.41} parent=0 // pred_fallthru
    _
  // Predicated region
  $region10: #{modified_resnet_forward.41} parent=0 // pred_check
    _
  $region11: #{modified_resnet_forward.41} parent=0 // pred_check_branch
    %13 = sbr.rel (0) target = $region13
  $region12: #{modified_resnet_forward.41} parent=0 // pred_region
    _
  $region13: #{modified_resnet_forward.41} parent=0 // pred_fallthru
    _
  %p15 = scmp.eq.s32.totalorder 0, 0
  // Predicated region
  $region14: #{modified_resnet_forward.41} parent=0 // pred_check
    %p16 = pneg %p15
  $region15: #{modified_resnet_forward.41} parent=0 // pred_check_branch
    %18 = sbr.rel (%p16) target = $region17
  $region16: #{modified_resnet_forward.41} parent=0 // pred_region
    %19 = vst [vmem:[#allocation2] sm:$0xff] 0.0
    %20 = vst [vmem:[#allocation2 + $0x8] sm:$0xff] 0.0
  $region17: #{modified_resnet_forward.41} parent=0 // pred_fallthru
    _
  %v21 = vld [vmem:[#allocation2] sm:$0xff]
  %v22 = vld [vmem:[#allocation2 + $0x8] sm:$0xff]
  %v23 = vld [vmem:[%s0] sm:$0xf]
  %v24 = vld [vmem:[%s1] sm:$0xff]
  %v25 = vld [vmem:[%s1 + $0x8] sm:$0xff]
  %v26 = vld [vmem:[%s1 + $0x10] sm:$0xff]
  %v27 = vld [vmem:[%s1 + $0x18] sm:$0xff]
  %v28 = vld [vmem:[%s1 + $0x20] sm:$0xff]
  %v29 = vld [vmem:[%s1 + $0x28] sm:$0xff]
  %v30 = vld [vmem:[%s1 + $0x30] sm:$0xff]
  %v31 = vld [vmem:[%s1 + $0x38] sm:$0xff]
  %v32 = vld [vmem:[%s1 + $0x40] sm:$0xff]
  %v33 = vld [vmem:[%s1 + $0x48] sm:$0xff]
  %v34 = vld [vmem:[%s1 + $0x50] sm:$0xff]
  %v35 = vld [vmem:[%s1 + $0x58] sm:$0xff]
  %v36 = vld [vmem:[%s1 + $0x60] sm:$0xff]
  %v37 = vld [vmem:[%s1 + $0x68] sm:$0xff]
  %v38 = vld [vmem:[%s1 + $0x70] sm:$0xff]
  %v39 = vld [vmem:[%s1 + $0x78] sm:$0xff]
  %v56 = vunpack.c.l.b16 %v24
  %v57 = vunpack.c.h.b16 %v24
  %v58 = vunpack.c.l.b16 %v25
  %v59 = vunpack.c.h.b16 %v25
  %v60 = vunpack.c.l.b16 %v26
  %v61 = vunpack.c.h.b16 %v26
  %v62 = vunpack.c.l.b16 %v27
  %v63 = vunpack.c.h.b16 %v27
  %v64 = vunpack.c.l.b16 %v28
  %v65 = vunpack.c.h.b16 %v28
  %v66 = vunpack.c.l.b16 %v29
  %v67 = vunpack.c.h.b16 %v29
  %v68 = vunpack.c.l.b16 %v30
  %v69 = vunpack.c.h.b16 %v30
  %v70 = vunpack.c.l.b16 %v31
  %v71 = vunpack.c.h.b16 %v31
  %v72 = vunpack.c.l.b16 %v32
  %v73 = vunpack.c.h.b16 %v32
  %v74 = vunpack.c.l.b16 %v33
  %v75 = vunpack.c.h.b16 %v33
  %v76 = vunpack.c.l.b16 %v34
  %v77 = vunpack.c.h.b16 %v34
  %v78 = vunpack.c.l.b16 %v35
  %v79 = vunpack.c.h.b16 %v35
  %v80 = vunpack.c.l.b16 %v36
  %v81 = vunpack.c.h.b16 %v36
  %v82 = vunpack.c.l.b16 %v37
  %v83 = vunpack.c.h.b16 %v37
  %v84 = vunpack.c.l.b16 %v38
  %v85 = vunpack.c.h.b16 %v38
  %v86 = vunpack.c.l.b16 %v39
  %v87 = vunpack.c.h.b16 %v39
  %v88 = vpack.c.b16 %v58, %v56
  %v89 = vpack.c.b16 %v59, %v57
  %v90 = vpack.c.b16 %v62, %v60
  %v91 = vpack.c.b16 %v63, %v61
  %v92 = vpack.c.b16 %v66, %v64
  %v93 = vpack.c.b16 %v67, %v65
  %v94 = vpack.c.b16 %v70, %v68
  %v95 = vpack.c.b16 %v71, %v69
  %v96 = vpack.c.b16 %v74, %v72
  %v97 = vpack.c.b16 %v75, %v73
  %v98 = vpack.c.b16 %v78, %v76
  %v99 = vpack.c.b16 %v79, %v77
  %v100 = vpack.c.b16 %v82, %v80
  %v101 = vpack.c.b16 %v83, %v81
  %v102 = vpack.c.b16 %v86, %v84
  %v103 = vpack.c.b16 %v87, %v85
  %120 = vmatprep.subr.bf16.mxu0 %v89
  %121 = vmatpush1.bf16.msra.mxu0 %v88
  %122 = vmatprep.subr.bf16.mxu0 %v91
  %123 = vmatpush1.bf16.msra.mxu0 %v90
  %124 = vmatprep.subr.bf16.mxu0 %v93
  %125 = vmatpush1.bf16.msra.mxu0 %v92
  %126 = vmatprep.subr.bf16.mxu0 %v95
  %127 = vmatpush1.bf16.msra.mxu0 %v94
  %128 = vmatprep.subr.bf16.mxu0 %v97
  %129 = vmatpush1.bf16.msra.mxu0 %v96
  %130 = vmatprep.subr.bf16.mxu0 %v99
  %131 = vmatpush1.bf16.msra.mxu0 %v98
  %132 = vmatprep.subr.bf16.mxu0 %v101
  %133 = vmatpush1.bf16.msra.mxu0 %v100
  %134 = vmatprep.subr.bf16.mxu0 %v103
  %135 = vmatpush1.bf16.msra.mxu0 %v102
  %136 = vmatprep.subr.bf16.mxu0 0
  %137 = vmatpush1.bf16.msra.mxu0 0
  %138 = vmatprep.subr.bf16.mxu0 0
  %139 = vmatpush1.bf16.msra.mxu0 0
  %140 = vmatprep.subr.bf16.mxu0 0
  %141 = vmatpush1.bf16.msra.mxu0 0
  %142 = vmatprep.subr.bf16.mxu0 0
  %143 = vmatpush1.bf16.msra.mxu0 0
  %144 = vmatprep.subr.bf16.mxu0 0
  %145 = vmatpush1.bf16.msra.mxu0 0
  %146 = vmatprep.subr.bf16.mxu0 0
  %147 = vmatpush1.bf16.msra.mxu0 0
  %148 = vmatprep.subr.bf16.mxu0 0
  %149 = vmatpush1.bf16.msra.mxu0 0
  %150 = vmatprep.subr.bf16.mxu0 0
  %151 = vmatpush1.bf16.msra.mxu0 0
  %152 = vmatprep.mubr.bf16.mxu0 0
  %153 = vmatmul.mubr.bf16.gmra.mrb[0].mxu0 %v23
  %v154 = vpop.f32.mrb[0].mxu0
  %v155 = vadd.f32 0.0, %v154
  %v156 = vpop.f32.mrb[0].mxu0
  %v157 = vadd.f32 0.0, %v156
  %v158 = vpop.f32.mrb[0].mxu0
  %v159 = vpop.f32.mrb[0].mxu0
  %160 = vdwg.mxu0
  %v161 = vadd.f32 %v21, %v155
  %v162 = vadd.f32 %v22, %v157
  %163 = vst [vmem:[#allocation2] sm:$0xff] %v161
  %164 = vst [vmem:[#allocation2 + $0x8] sm:$0xff] %v162
  // Predicated region
  $region18: #{modified_resnet_forward.41} parent=0 // pred_check
    %p165 = pneg %p15
  $region19: #{modified_resnet_forward.41} parent=0 // pred_check_branch
    %167 = sbr.rel (%p165) target = $region21
  $region20: #{modified_resnet_forward.41} parent=0 // pred_region
    %v168 = vld [vmem:[#allocation2] sm:$0xff]
    %v169 = vld [vmem:[#allocation2 + $0x8] sm:$0xff]
    %v170 = vld [vmem:[%s2] sm:$0x3]
    %v172 = vlaneseq
    %v173 = vshrl.u32 %v172, 7
    %v174 = vsub.s32 0, %v173
    %v175 = vrot.slane %v170, %v174
    %v176 = vlaneseq
    %v177 = vshrl.u32 %v176, 7
    %v178 = vsub.s32 1, %v177
    %v179 = vrot.slane %v170, %v178
    %v182 = vadd.f32 %v168, %v175
    %v183 = vadd.f32 %v169, %v179
    %v184 = vpack.c.bf16 %v182, %v182
    %v185 = vpack.c.bf16 %v183, %v183
    %v188 = vunpack.c.l.b16 %v184
    %v189 = vunpack.c.l.b16 %v185
    %v190 = vpack.c.b16 %v189, %v188
    %192 = vst [vmem:[%s3] sm:$0xff] %v190
  $region21: #{modified_resnet_forward.41} parent=0 // pred_fallthru
    _
  // Predicated region
  $region22: #{modified_resnet_forward.41} parent=0 // pred_check
    _
  $region23: #{modified_resnet_forward.41} parent=0 // pred_check_branch
    %194 = sbr.rel (0) target = $region25
  $region24: #{modified_resnet_forward.41} parent=0 // pred_region
    _
  $region25: #{modified_resnet_forward.41} parent=0 // pred_fallthru
    _
  // Predicated region
  $region26: #{modified_resnet_forward.41} parent=0 // pred_check
    _
  $region27: #{modified_resnet_forward.41} parent=0 // pred_check_branch
    %196 = sbr.rel (0) target = $region29
  $region28: #{modified_resnet_forward.41} parent=0 // pred_region
    _
  $region29: #{modified_resnet_forward.41} parent=0 // pred_fallthru
    _

// kernel: modified_resnet_forward.39
$region0: #{modified_resnet_forward.39}
  #allocation0 [shape = 'u32[]', space=smem, size = 0x4, offset = 0x4, fixed_abs, tag = 'smem constant byte address 0x4 - core index']
  #allocation1 [shape = 'u32[144,128]{1,0:T(1,128)}', space=vmem, size = 0x12000, scoped, tag = 'internal scratch']
  #allocation2 [shape = 'f32[8,128]{1,0:T(8,128)}', space=vmem, size = 0x1000, scoped, tag = 'scratch operand']
  %s0 = inlined_call_operand.vmem [shape: bf16[8,128], index: 0, kind: input, shape index: {}]
  %s1 = inlined_call_operand.vmem [shape: bf16[128,128], index: 1, kind: input, shape index: {}]
  %s2 = inlined_call_operand.vmem [shape: f32[1,128], index: 2, kind: input, shape index: {}]
  %s3 = inlined_call_operand.vmem [shape: bf16[8,128], index: 3, kind: output, shape index: {}]
  %s4 = sld [smem:[#allocation0]]
  $region30: #{modified_resnet_forward.39} parent=0
    _
  %s6 = ssub.s32 1, %s4
  %s7 = scalar_select 0, %s6, %s4
  // Predicated region
  $region2: #{modified_resnet_forward.39} parent=0 // pred_check
    _
  $region3: #{modified_resnet_forward.39} parent=0 // pred_check_branch
    %9 = sbr.rel (0) target = $region5
  $region4: #{modified_resnet_forward.39} parent=0 // pred_region
    _
  $region5: #{modified_resnet_forward.39} parent=0 // pred_fallthru
    _
  // Predicated region
  $region6: #{modified_resnet_forward.39} parent=0 // pred_check
    _
  $region7: #{modified_resnet_forward.39} parent=0 // pred_check_branch
    %11 = sbr.rel (0) target = $region9
  $region8: #{modified_resnet_forward.39} parent=0 // pred_region
    _
  $region9: #{modified_resnet_forward.39} parent=0 // pred_fallthru
    _
  // Predicated region
  $region10: #{modified_resnet_forward.39} parent=0 // pred_check
    _
  $region11: #{modified_resnet_forward.39} parent=0 // pred_check_branch
    %13 = sbr.rel (0) target = $region13
  $region12: #{modified_resnet_forward.39} parent=0 // pred_region
    _
  $region13: #{modified_resnet_forward.39} parent=0 // pred_fallthru
    _
  %p15 = scmp.eq.s32.totalorder 0, 0
  // Predicated region
  $region14: #{modified_resnet_forward.39} parent=0 // pred_check
    %p16 = pneg %p15
  $region15: #{modified_resnet_forward.39} parent=0 // pred_check_branch
    %18 = sbr.rel (%p16) target = $region17
  $region16: #{modified_resnet_forward.39} parent=0 // pred_region
    %19 = vst [vmem:[#allocation2] sm:$0xff] 0.0
  $region17: #{modified_resnet_forward.39} parent=0 // pred_fallthru
    _
  %v20 = vld [vmem:[#allocation2] sm:$0xff]
  %v21 = vld [vmem:[%s0] sm:$0xf]
  %v22 = vld [vmem:[%s1] sm:$0xf]
  %v23 = vld [vmem:[%s1 + $0x4] sm:$0xf]
  %v24 = vld [vmem:[%s1 + $0x8] sm:$0xf]
  %v25 = vld [vmem:[%s1 + $0xc] sm:$0xf]
  %v26 = vld [vmem:[%s1 + $0x10] sm:$0xf]
  %v27 = vld [vmem:[%s1 + $0x14] sm:$0xf]
  %v28 = vld [vmem:[%s1 + $0x18] sm:$0xf]
  %v29 = vld [vmem:[%s1 + $0x1c] sm:$0xf]
  %v30 = vld [vmem:[%s1 + $0x20] sm:$0xf]
  %v31 = vld [vmem:[%s1 + $0x24] sm:$0xf]
  %v32 = vld [vmem:[%s1 + $0x28] sm:$0xf]
  %v33 = vld [vmem:[%s1 + $0x2c] sm:$0xf]
  %v34 = vld [vmem:[%s1 + $0x30] sm:$0xf]
  %v35 = vld [vmem:[%s1 + $0x34] sm:$0xf]
  %v36 = vld [vmem:[%s1 + $0x38] sm:$0xf]
  %v37 = vld [vmem:[%s1 + $0x3c] sm:$0xf]
  %v54 = vunpack.c.l.b16 %v22
  %v55 = vunpack.c.l.b16 %v23
  %v56 = vunpack.c.l.b16 %v24
  %v57 = vunpack.c.l.b16 %v25
  %v58 = vunpack.c.l.b16 %v26
  %v59 = vunpack.c.l.b16 %v27
  %v60 = vunpack.c.l.b16 %v28
  %v61 = vunpack.c.l.b16 %v29
  %v62 = vunpack.c.l.b16 %v30
  %v63 = vunpack.c.l.b16 %v31
  %v64 = vunpack.c.l.b16 %v32
  %v65 = vunpack.c.l.b16 %v33
  %v66 = vunpack.c.l.b16 %v34
  %v67 = vunpack.c.l.b16 %v35
  %v68 = vunpack.c.l.b16 %v36
  %v69 = vunpack.c.l.b16 %v37
  %v70 = vpack.c.b16 %v55, %v54
  %v71 = vpack.c.b16 %v57, %v56
  %v72 = vpack.c.b16 %v59, %v58
  %v73 = vpack.c.b16 %v61, %v60
  %v74 = vpack.c.b16 %v63, %v62
  %v75 = vpack.c.b16 %v65, %v64
  %v76 = vpack.c.b16 %v67, %v66
  %v77 = vpack.c.b16 %v69, %v68
  %86 = vmatprep.subr.bf16.mxu0 0
  %87 = vmatpush1.bf16.msra.mxu0 %v70
  %88 = vmatprep.subr.bf16.mxu0 0
  %89 = vmatpush1.bf16.msra.mxu0 %v71
  %90 = vmatprep.subr.bf16.mxu0 0
  %91 = vmatpush1.bf16.msra.mxu0 %v72
  %92 = vmatprep.subr.bf16.mxu0 0
  %93 = vmatpush1.bf16.msra.mxu0 %v73
  %94 = vmatprep.subr.bf16.mxu0 0
  %95 = vmatpush1.bf16.msra.mxu0 %v74
  %96 = vmatprep.subr.bf16.mxu0 0
  %97 = vmatpush1.bf16.msra.mxu0 %v75
  %98 = vmatprep.subr.bf16.mxu0 0
  %99 = vmatpush1.bf16.msra.mxu0 %v76
  %100 = vmatprep.subr.bf16.mxu0 0
  %101 = vmatpush1.bf16.msra.mxu0 %v77
  %102 = vmatprep.subr.bf16.mxu0 0
  %103 = vmatpush1.bf16.msra.mxu0 0
  %104 = vmatprep.subr.bf16.mxu0 0
  %105 = vmatpush1.bf16.msra.mxu0 0
  %106 = vmatprep.subr.bf16.mxu0 0
  %107 = vmatpush1.bf16.msra.mxu0 0
  %108 = vmatprep.subr.bf16.mxu0 0
  %109 = vmatpush1.bf16.msra.mxu0 0
  %110 = vmatprep.subr.bf16.mxu0 0
  %111 = vmatpush1.bf16.msra.mxu0 0
  %112 = vmatprep.subr.bf16.mxu0 0
  %113 = vmatpush1.bf16.msra.mxu0 0
  %114 = vmatprep.subr.bf16.mxu0 0
  %115 = vmatpush1.bf16.msra.mxu0 0
  %116 = vmatprep.subr.bf16.mxu0 0
  %117 = vmatpush1.bf16.msra.mxu0 0
  %118 = vmatprep.mubr.bf16.mxu0 0
  %119 = vmatmul.mubr.bf16.gmra.mrb[0].mxu0 %v21
  %v120 = vpop.f32.mrb[0].mxu0
  %v121 = vadd.f32 0.0, %v120
  %v122 = vpop.f32.mrb[0].mxu0
  %v123 = vpop.f32.mrb[0].mxu0
  %v124 = vpop.f32.mrb[0].mxu0
  %125 = vdwg.mxu0
  %v126 = vadd.f32 %v20, %v121
  %127 = vst [vmem:[#allocation2] sm:$0xff] %v126
  // Predicated region
  $region18: #{modified_resnet_forward.39} parent=0 // pred_check
    %p128 = pneg %p15
  $region19: #{modified_resnet_forward.39} parent=0 // pred_check_branch
    %130 = sbr.rel (%p128) target = $region21
  $region20: #{modified_resnet_forward.39} parent=0 // pred_region
    %v131 = vld [vmem:[#allocation2] sm:$0xff]
    %v132 = vld [vmem:[%s2] sm:$0x1]
    %v134 = vlaneseq
    %v135 = vshrl.u32 %v134, 7
    %v136 = vsub.s32 0, %v135
    %v137 = vrot.slane %v132, %v136
    %v139 = vadd.f32 %v131, %v137
    %v140 = vmax.f32 %v139, 0.0
    %v141 = vpack.c.bf16 %v140, %v140
    %142 = vst [vmem:[%s3] sm:$0xf] %v141
  $region21: #{modified_resnet_forward.39} parent=0 // pred_fallthru
    _
  // Predicated region
  $region22: #{modified_resnet_forward.39} parent=0 // pred_check
    _
  $region23: #{modified_resnet_forward.39} parent=0 // pred_check_branch
    %144 = sbr.rel (0) target = $region25
  $region24: #{modified_resnet_forward.39} parent=0 // pred_region
    _
  $region25: #{modified_resnet_forward.39} parent=0 // pred_fallthru
    _
  // Predicated region
  $region26: #{modified_resnet_forward.39} parent=0 // pred_check
    _
  $region27: #{modified_resnet_forward.39} parent=0 // pred_check_branch
    %146 = sbr.rel (0) target = $region29
  $region28: #{modified_resnet_forward.39} parent=0 // pred_region
    _
  $region29: #{modified_resnet_forward.39} parent=0 // pred_fallthru
    _

// kernel: modified_resnet_forward.40
$region0: #{modified_resnet_forward.40}
  #allocation0 [shape = 'u32[]', space=smem, size = 0x4, offset = 0x4, fixed_abs, tag = 'smem constant byte address 0x4 - core index']
  #allocation1 [shape = 'u32[144,128]{1,0:T(1,128)}', space=vmem, size = 0x12000, scoped, tag = 'internal scratch']
  #allocation2 [shape = 'f32[8,128]{1,0:T(8,128)}', space=vmem, size = 0x1000, scoped, tag = 'scratch operand']
  %s0 = inlined_call_operand.vmem [shape: bf16[8,576], index: 0, kind: input, shape index: {}]
  %s1 = inlined_call_operand.vmem [shape: bf16[576,128], index: 1, kind: input, shape index: {}]
  %s2 = inlined_call_operand.vmem [shape: f32[1,128], index: 2, kind: input, shape index: {}]
  %s3 = inlined_call_operand.vmem [shape: bf16[8,128], index: 3, kind: output, shape index: {}]
  %s4 = sld [smem:[#allocation0]]
  $region30: #{modified_resnet_forward.40} parent=0
    _
  %s6 = ssub.s32 1, %s4
  %s7 = scalar_select 0, %s6, %s4
  // Predicated region
  $region2: #{modified_resnet_forward.40} parent=0 // pred_check
    _
  $region3: #{modified_resnet_forward.40} parent=0 // pred_check_branch
    %9 = sbr.rel (0) target = $region5
  $region4: #{modified_resnet_forward.40} parent=0 // pred_region
    _
  $region5: #{modified_resnet_forward.40} parent=0 // pred_fallthru
    _
  // Predicated region
  $region6: #{modified_resnet_forward.40} parent=0 // pred_check
    _
  $region7: #{modified_resnet_forward.40} parent=0 // pred_check_branch
    %11 = sbr.rel (0) target = $region9
  $region8: #{modified_resnet_forward.40} parent=0 // pred_region
    _
  $region9: #{modified_resnet_forward.40} parent=0 // pred_fallthru
    _
  // Predicated region
  $region10: #{modified_resnet_forward.40} parent=0 // pred_check
    _
  $region11: #{modified_resnet_forward.40} parent=0 // pred_check_branch
    %13 = sbr.rel (0) target = $region13
  $region12: #{modified_resnet_forward.40} parent=0 // pred_region
    _
  $region13: #{modified_resnet_forward.40} parent=0 // pred_fallthru
    _
  %p15 = scmp.eq.s32.totalorder 0, 0
  // Predicated region
  $region14: #{modified_resnet_forward.40} parent=0 // pred_check
    %p16 = pneg %p15
  $region15: #{modified_resnet_forward.40} parent=0 // pred_check_branch
    %18 = sbr.rel (%p16) target = $region17
  $region16: #{modified_resnet_forward.40} parent=0 // pred_region
    %19 = vst [vmem:[#allocation2] sm:$0xff] 0.0
  $region17: #{modified_resnet_forward.40} parent=0 // pred_fallthru
    _
  %v20 = vld [vmem:[#allocation2] sm:$0xff]
  %v21 = vld [vmem:[%s0] sm:$0xff]
  %v22 = vld [vmem:[%s0 + $0x8] sm:$0xff]
  %v23 = vld [vmem:[%s0 + $0x10] sm:$0xf]
  %v24 = vld [vmem:[%s1] sm:$0xf]
  %v25 = vld [vmem:[%s1 + $0x4] sm:$0xf]
  %v26 = vld [vmem:[%s1 + $0x8] sm:$0xf]
  %v27 = vld [vmem:[%s1 + $0xc] sm:$0xf]
  %v28 = vld [vmem:[%s1 + $0x10] sm:$0xf]
  %v29 = vld [vmem:[%s1 + $0x14] sm:$0xf]
  %v30 = vld [vmem:[%s1 + $0x18] sm:$0xf]
  %v31 = vld [vmem:[%s1 + $0x1c] sm:$0xf]
  %v32 = vld [vmem:[%s1 + $0x20] sm:$0xf]
  %v33 = vld [vmem:[%s1 + $0x24] sm:$0xf]
  %v34 = vld [vmem:[%s1 + $0x28] sm:$0xf]
  %v35 = vld [vmem:[%s1 + $0x2c] sm:$0xf]
  %v36 = vld [vmem:[%s1 + $0x30] sm:$0xf]
  %v37 = vld [vmem:[%s1 + $0x34] sm:$0xf]
  %v38 = vld [vmem:[%s1 + $0x38] sm:$0xf]
  %v39 = vld [vmem:[%s1 + $0x3c] sm:$0xf]
  %v40 = vld [vmem:[%s1 + $0x40] sm:$0xf]
  %v41 = vld [vmem:[%s1 + $0x44] sm:$0xf]
  %v42 = vld [vmem:[%s1 + $0x48] sm:$0xf]
  %v43 = vld [vmem:[%s1 + $0x4c] sm:$0xf]
  %v44 = vld [vmem:[%s1 + $0x50] sm:$0xf]
  %v45 = vld [vmem:[%s1 + $0x54] sm:$0xf]
  %v46 = vld [vmem:[%s1 + $0x58] sm:$0xf]
  %v47 = vld [vmem:[%s1 + $0x5c] sm:$0xf]
  %v48 = vld [vmem:[%s1 + $0x60] sm:$0xf]
  %v49 = vld [vmem:[%s1 + $0x64] sm:$0xf]
  %v50 = vld [vmem:[%s1 + $0x68] sm:$0xf]
  %v51 = vld [vmem:[%s1 + $0x6c] sm:$0xf]
  %v52 = vld [vmem:[%s1 + $0x70] sm:$0xf]
  %v53 = vld [vmem:[%s1 + $0x74] sm:$0xf]
  %v54 = vld [vmem:[%s1 + $0x78] sm:$0xf]
  %v55 = vld [vmem:[%s1 + $0x7c] sm:$0xf]
  %v56 = vld [vmem:[%s1 + $0x80] sm:$0xf]
  %v57 = vld [vmem:[%s1 + $0x84] sm:$0xf]
  %v58 = vld [vmem:[%s1 + $0x88] sm:$0xf]
  %v59 = vld [vmem:[%s1 + $0x8c] sm:$0xf]
  %v60 = vld [vmem:[%s1 + $0x90] sm:$0xf]
  %v61 = vld [vmem:[%s1 + $0x94] sm:$0xf]
  %v62 = vld [vmem:[%s1 + $0x98] sm:$0xf]
  %v63 = vld [vmem:[%s1 + $0x9c] sm:$0xf]
  %v64 = vld [vmem:[%s1 + $0xa0] sm:$0xf]
  %v65 = vld [vmem:[%s1 + $0xa4] sm:$0xf]
  %v66 = vld [vmem:[%s1 + $0xa8] sm:$0xf]
  %v67 = vld [vmem:[%s1 + $0xac] sm:$0xf]
  %v68 = vld [vmem:[%s1 + $0xb0] sm:$0xf]
  %v69 = vld [vmem:[%s1 + $0xb4] sm:$0xf]
  %v70 = vld [vmem:[%s1 + $0xb8] sm:$0xf]
  %v71 = vld [vmem:[%s1 + $0xbc] sm:$0xf]
  %v72 = vld [vmem:[%s1 + $0xc0] sm:$0xf]
  %v73 = vld [vmem:[%s1 + $0xc4] sm:$0xf]
  %v74 = vld [vmem:[%s1 + $0xc8] sm:$0xf]
  %v75 = vld [vmem:[%s1 + $0xcc] sm:$0xf]
  %v76 = vld [vmem:[%s1 + $0xd0] sm:$0xf]
  %v77 = vld [vmem:[%s1 + $0xd4] sm:$0xf]
  %v78 = vld [vmem:[%s1 + $0xd8] sm:$0xf]
  %v79 = vld [vmem:[%s1 + $0xdc] sm:$0xf]
  %v80 = vld [vmem:[%s1 + $0xe0] sm:$0xf]
  %v81 = vld [vmem:[%s1 + $0xe4] sm:$0xf]
  %v82 = vld [vmem:[%s1 + $0xe8] sm:$0xf]
  %v83 = vld [vmem:[%s1 + $0xec] sm:$0xf]
  %v84 = vld [vmem:[%s1 + $0xf0] sm:$0xf]
  %v85 = vld [vmem:[%s1 + $0xf4] sm:$0xf]
  %v86 = vld [vmem:[%s1 + $0xf8] sm:$0xf]
  %v87 = vld [vmem:[%s1 + $0xfc] sm:$0xf]
  %v88 = vld [vmem:[%s1 + $0x100] sm:$0xf]
  %v89 = vld [vmem:[%s1 + $0x104] sm:$0xf]
  %v90 = vld [vmem:[%s1 + $0x108] sm:$0xf]
  %v91 = vld [vmem:[%s1 + $0x10c] sm:$0xf]
  %v92 = vld [vmem:[%s1 + $0x110] sm:$0xf]
  %v93 = vld [vmem:[%s1 + $0x114] sm:$0xf]
  %v94 = vld [vmem:[%s1 + $0x118] sm:$0xf]
  %v95 = vld [vmem:[%s1 + $0x11c] sm:$0xf]
  %v99 = vunpack.c.l.b16 %v21
  %v100 = vunpack.c.h.b16 %v21
  %v101 = vunpack.c.l.b16 %v22
  %v102 = vunpack.c.h.b16 %v22
  %v103 = vunpack.c.l.b16 %v23
  %v104 = vpack.c.b16 %v99, %v99
  %v105 = vpack.c.b16 %v100, %v100
  %v106 = vpack.c.b16 %v101, %v101
  %v107 = vpack.c.b16 %v102, %v102
  %v108 = vpack.c.b16 %v103, %v103
  %v185 = vunpack.c.l.b16 %v24
  %v186 = vunpack.c.l.b16 %v25
  %v187 = vunpack.c.l.b16 %v26
  %v188 = vunpack.c.l.b16 %v27
  %v189 = vunpack.c.l.b16 %v28
  %v190 = vunpack.c.l.b16 %v29
  %v191 = vunpack.c.l.b16 %v30
  %v192 = vunpack.c.l.b16 %v31
  %v193 = vunpack.c.l.b16 %v32
  %v194 = vunpack.c.l.b16 %v33
  %v195 = vunpack.c.l.b16 %v34
  %v196 = vunpack.c.l.b16 %v35
  %v197 = vunpack.c.l.b16 %v36
  %v198 = vunpack.c.l.b16 %v37
  %v199 = vunpack.c.l.b16 %v38
  %v200 = vunpack.c.l.b16 %v39
  %v201 = vunpack.c.l.b16 %v40
  %v202 = vunpack.c.l.b16 %v41
  %v203 = vunpack.c.l.b16 %v42
  %v204 = vunpack.c.l.b16 %v43
  %v205 = vunpack.c.l.b16 %v44
  %v206 = vunpack.c.l.b16 %v45
  %v207 = vunpack.c.l.b16 %v46
  %v208 = vunpack.c.l.b16 %v47
  %v209 = vunpack.c.l.b16 %v48
  %v210 = vunpack.c.l.b16 %v49
  %v211 = vunpack.c.l.b16 %v50
  %v212 = vunpack.c.l.b16 %v51
  %v213 = vunpack.c.l.b16 %v52
  %v214 = vunpack.c.l.b16 %v53
  %v215 = vunpack.c.l.b16 %v54
  %v216 = vunpack.c.l.b16 %v55
  %v217 = vunpack.c.l.b16 %v56
  %v218 = vunpack.c.l.b16 %v57
  %v219 = vunpack.c.l.b16 %v58
  %v220 = vunpack.c.l.b16 %v59
  %v221 = vunpack.c.l.b16 %v60
  %v222 = vunpack.c.l.b16 %v61
  %v223 = vunpack.c.l.b16 %v62
  %v224 = vunpack.c.l.b16 %v63
  %v225 = vunpack.c.l.b16 %v64
  %v226 = vunpack.c.l.b16 %v65
  %v227 = vunpack.c.l.b16 %v66
  %v228 = vunpack.c.l.b16 %v67
  %v229 = vunpack.c.l.b16 %v68
  %v230 = vunpack.c.l.b16 %v69
  %v231 = vunpack.c.l.b16 %v70
  %v232 = vunpack.c.l.b16 %v71
  %v233 = vunpack.c.l.b16 %v72
  %v234 = vunpack.c.l.b16 %v73
  %v235 = vunpack.c.l.b16 %v74
  %v236 = vunpack.c.l.b16 %v75
  %v237 = vunpack.c.l.b16 %v76
  %v238 = vunpack.c.l.b16 %v77
  %v239 = vunpack.c.l.b16 %v78
  %v240 = vunpack.c.l.b16 %v79
  %v241 = vunpack.c.l.b16 %v80
  %v242 = vunpack.c.l.b16 %v81
  %v243 = vunpack.c.l.b16 %v82
  %v244 = vunpack.c.l.b16 %v83
  %v245 = vunpack.c.l.b16 %v84
  %v246 = vunpack.c.l.b16 %v85
  %v247 = vunpack.c.l.b16 %v86
  %v248 = vunpack.c.l.b16 %v87
  %v249 = vunpack.c.l.b16 %v88
  %v250 = vunpack.c.l.b16 %v89
  %v251 = vunpack.c.l.b16 %v90
  %v252 = vunpack.c.l.b16 %v91
  %v253 = vunpack.c.l.b16 %v92
  %v254 = vunpack.c.l.b16 %v93
  %v255 = vunpack.c.l.b16 %v94
  %v256 = vunpack.c.l.b16 %v95
  %v257 = vpack.c.b16 %v186, %v185
  %v258 = vpack.c.b16 %v188, %v187
  %v259 = vpack.c.b16 %v190, %v189
  %v260 = vpack.c.b16 %v192, %v191
  %v261 = vpack.c.b16 %v194, %v193
  %v262 = vpack.c.b16 %v196, %v195
  %v263 = vpack.c.b16 %v198, %v197
  %v264 = vpack.c.b16 %v200, %v199
  %v265 = vpack.c.b16 %v202, %v201
  %v266 = vpack.c.b16 %v204, %v203
  %v267 = vpack.c.b16 %v206, %v205
  %v268 = vpack.c.b16 %v208, %v207
  %v269 = vpack.c.b16 %v210, %v209
  %v270 = vpack.c.b16 %v212, %v211
  %v271 = vpack.c.b16 %v214, %v213
  %v272 = vpack.c.b16 %v216, %v215
  %v273 = vpack.c.b16 %v218, %v217
  %v274 = vpack.c.b16 %v220, %v219
  %v275 = vpack.c.b16 %v222, %v221
  %v276 = vpack.c.b16 %v224, %v223
  %v277 = vpack.c.b16 %v226, %v225
  %v278 = vpack.c.b16 %v228, %v227
  %v279 = vpack.c.b16 %v230, %v229
  %v280 = vpack.c.b16 %v232, %v231
  %v281 = vpack.c.b16 %v234, %v233
  %v282 = vpack.c.b16 %v236, %v235
  %v283 = vpack.c.b16 %v238, %v237
  %v284 = vpack.c.b16 %v240, %v239
  %v285 = vpack.c.b16 %v242, %v241
  %v286 = vpack.c.b16 %v244, %v243
  %v287 = vpack.c.b16 %v246, %v245
  %v288 = vpack.c.b16 %v248, %v247
  %v289 = vpack.c.b16 %v250, %v249
  %v290 = vpack.c.b16 %v252, %v251
  %v291 = vpack.c.b16 %v254, %v253
  %v292 = vpack.c.b16 %v256, %v255
  %vm329 = vcmask 523264
  %v331 = vsel %vm329, %v108, 0
  %333 = vmatprep.subr.bf16.mxu0 0
  %334 = vmatpush1.bf16.msra.mxu0 %v257
  %335 = vmatprep.subr.bf16.mxu0 0
  %336 = vmatpush1.bf16.msra.mxu0 %v258
  %337 = vmatprep.subr.bf16.mxu0 0
  %338 = vmatpush1.bf16.msra.mxu0 %v259
  %339 = vmatprep.subr.bf16.mxu0 0
  %340 = vmatpush1.bf16.msra.mxu0 %v260
  %341 = vmatprep.subr.bf16.mxu0 0
  %342 = vmatpush1.bf16.msra.mxu0 %v261
  %343 = vmatprep.subr.bf16.mxu0 0
  %344 = vmatpush1.bf16.msra.mxu0 %v262
  %345 = vmatprep.subr.bf16.mxu0 0
  %346 = vmatpush1.bf16.msra.mxu0 %v263
  %347 = vmatprep.subr.bf16.mxu0 0
  %348 = vmatpush1.bf16.msra.mxu0 %v264
  %349 = vmatprep.subr.bf16.mxu0 0
  %350 = vmatpush1.bf16.msra.mxu0 %v265
  %351 = vmatprep.subr.bf16.mxu0 0
  %352 = vmatpush1.bf16.msra.mxu0 %v266
  %353 = vmatprep.subr.bf16.mxu0 0
  %354 = vmatpush1.bf16.msra.mxu0 %v267
  %355 = vmatprep.subr.bf16.mxu0 0
  %356 = vmatpush1.bf16.msra.mxu0 %v268
  %357 = vmatprep.subr.bf16.mxu0 0
  %358 = vmatpush1.bf16.msra.mxu0 %v269
  %359 = vmatprep.subr.bf16.mxu0 0
  %360 = vmatpush1.bf16.msra.mxu0 %v270
  %361 = vmatprep.subr.bf16.mxu0 0
  %362 = vmatpush1.bf16.msra.mxu0 %v271
  %363 = vmatprep.subr.bf16.mxu0 0
  %364 = vmatpush1.bf16.msra.mxu0 %v272
  %365 = vmatprep.mubr.bf16.mxu0 %v105
  %366 = vmatmul.mubr.bf16.gmra.mrb[0].mxu0 %v104
  %v367 = vpop.f32.mrb[0].mxu0
  %v368 = vadd.f32 0.0, %v367
  %v369 = vpop.f32.mrb[0].mxu0
  %v370 = vpop.f32.mrb[0].mxu0
  %v371 = vpop.f32.mrb[0].mxu0
  %372 = vdwg.mxu0
  %373 = vmatprep.subr.bf16.mxu0 0
  %374 = vmatpush1.bf16.msra.mxu0 %v273
  %375 = vmatprep.subr.bf16.mxu0 0
  %376 = vmatpush1.bf16.msra.mxu0 %v274
  %377 = vmatprep.subr.bf16.mxu0 0
  %378 = vmatpush1.bf16.msra.mxu0 %v275
  %379 = vmatprep.subr.bf16.mxu0 0
  %380 = vmatpush1.bf16.msra.mxu0 %v276
  %381 = vmatprep.subr.bf16.mxu0 0
  %382 = vmatpush1.bf16.msra.mxu0 %v277
  %383 = vmatprep.subr.bf16.mxu0 0
  %384 = vmatpush1.bf16.msra.mxu0 %v278
  %385 = vmatprep.subr.bf16.mxu0 0
  %386 = vmatpush1.bf16.msra.mxu0 %v279
  %387 = vmatprep.subr.bf16.mxu0 0
  %388 = vmatpush1.bf16.msra.mxu0 %v280
  %389 = vmatprep.subr.bf16.mxu0 0
  %390 = vmatpush1.bf16.msra.mxu0 %v281
  %391 = vmatprep.subr.bf16.mxu0 0
  %392 = vmatpush1.bf16.msra.mxu0 %v282
  %393 = vmatprep.subr.bf16.mxu0 0
  %394 = vmatpush1.bf16.msra.mxu0 %v283
  %395 = vmatprep.subr.bf16.mxu0 0
  %396 = vmatpush1.bf16.msra.mxu0 %v284
  %397 = vmatprep.subr.bf16.mxu0 0
  %398 = vmatpush1.bf16.msra.mxu0 %v285
  %399 = vmatprep.subr.bf16.mxu0 0
  %400 = vmatpush1.bf16.msra.mxu0 %v286
  %401 = vmatprep.subr.bf16.mxu0 0
  %402 = vmatpush1.bf16.msra.mxu0 %v287
  %403 = vmatprep.subr.bf16.mxu0 0
  %404 = vmatpush1.bf16.msra.mxu0 %v288
  %405 = vmatprep.mubr.bf16.mxu0 %v107
  %406 = vmatmul.mubr.bf16.gmra.mrb[0].mxu0 %v106
  %v407 = vpop.f32.mrb[0].mxu0
  %v408 = vadd.f32 %v368, %v407
  %v409 = vpop.f32.mrb[0].mxu0
  %v410 = vpop.f32.mrb[0].mxu0
  %v411 = vpop.f32.mrb[0].mxu0
  %412 = vdwg.mxu0
  %413 = vmatprep.subr.bf16.mxu0 0
  %414 = vmatpush1.bf16.msra.mxu0 %v289
  %415 = vmatprep.subr.bf16.mxu0 0
  %416 = vmatpush1.bf16.msra.mxu0 %v290
  %417 = vmatprep.subr.bf16.mxu0 0
  %418 = vmatpush1.bf16.msra.mxu0 %v291
  %419 = vmatprep.subr.bf16.mxu0 0
  %420 = vmatpush1.bf16.msra.mxu0 %v292
  %421 = vmatprep.subr.bf16.mxu0 0
  %422 = vmatpush1.bf16.msra.mxu0 0
  %423 = vmatprep.subr.bf16.mxu0 0
  %424 = vmatpush1.bf16.msra.mxu0 0
  %425 = vmatprep.subr.bf16.mxu0 0
  %426 = vmatpush1.bf16.msra.mxu0 0
  %427 = vmatprep.subr.bf16.mxu0 0
  %428 = vmatpush1.bf16.msra.mxu0 0
  %429 = vmatprep.subr.bf16.mxu0 0
  %430 = vmatpush1.bf16.msra.mxu0 0
  %431 = vmatprep.subr.bf16.mxu0 0
  %432 = vmatpush1.bf16.msra.mxu0 0
  %433 = vmatprep.subr.bf16.mxu0 0
  %434 = vmatpush1.bf16.msra.mxu0 0
  %435 = vmatprep.subr.bf16.mxu0 0
  %436 = vmatpush1.bf16.msra.mxu0 0
  %437 = vmatprep.subr.bf16.mxu0 0
  %438 = vmatpush1.bf16.msra.mxu0 0
  %439 = vmatprep.subr.bf16.mxu0 0
  %440 = vmatpush1.bf16.msra.mxu0 0
  %441 = vmatprep.subr.bf16.mxu0 0
  %442 = vmatpush1.bf16.msra.mxu0 0
  %443 = vmatprep.subr.bf16.mxu0 0
  %444 = vmatpush1.bf16.msra.mxu0 0
  %445 = vmatprep.mubr.bf16.mxu0 0
  %446 = vmatmul.mubr.bf16.gmra.mrb[0].mxu0 %v331
  %v447 = vpop.f32.mrb[0].mxu0
  %v448 = vadd.f32 %v408, %v447
  %v449 = vpop.f32.mrb[0].mxu0
  %v450 = vpop.f32.mrb[0].mxu0
  %v451 = vpop.f32.mrb[0].mxu0
  %452 = vdwg.mxu0
  %v453 = vadd.f32 %v20, %v448
  %454 = vst [vmem:[#allocation2] sm:$0xff] %v453
  // Predicated region
  $region18: #{modified_resnet_forward.40} parent=0 // pred_check
    %p455 = pneg %p15
  $region19: #{modified_resnet_forward.40} parent=0 // pred_check_branch
    %457 = sbr.rel (%p455) target = $region21
  $region20: #{modified_resnet_forward.40} parent=0 // pred_region
    %v458 = vld [vmem:[#allocation2] sm:$0xff]
    %v459 = vld [vmem:[%s2] sm:$0x1]
    %v461 = vlaneseq
    %v462 = vshrl.u32 %v461, 7
    %v463 = vsub.s32 0, %v462
    %v464 = vrot.slane %v459, %v463
    %v466 = vadd.f32 %v458, %v464
    %v467 = vmax.f32 %v466, 0.0
    %v468 = vpack.c.bf16 %v467, %v467
    %469 = vst [vmem:[%s3] sm:$0xf] %v468
  $region21: #{modified_resnet_forward.40} parent=0 // pred_fallthru
    _
  // Predicated region
  $region22: #{modified_resnet_forward.40} parent=0 // pred_check
    _
  $region23: #{modified_resnet_forward.40} parent=0 // pred_check_branch
    %471 = sbr.rel (0) target = $region25
  $region24: #{modified_resnet_forward.40} parent=0 // pred_region
    _
  $region25: #{modified_resnet_forward.40} parent=0 // pred_fallthru
    _
  // Predicated region
  $region26: #{modified_resnet_forward.40} parent=0 // pred_check
    _
  $region27: #{modified_resnet_forward.40} parent=0 // pred_check_branch
    %473 = sbr.rel (0) target = $region29
  $region28: #{modified_resnet_forward.40} parent=0 // pred_region
    _
  $region29: #{modified_resnet_forward.40} parent=0 // pred_fallthru
    _

// kernel: modified_resnet_forward.42
$region0: #{modified_resnet_forward.42}
  #allocation0 [shape = 'u32[]', space=smem, size = 0x4, offset = 0x4, fixed_abs, tag = 'smem constant byte address 0x4 - core index']
  #allocation1 [shape = 'u32[144,128]{1,0:T(1,128)}', space=vmem, size = 0x12000, scoped, tag = 'internal scratch']
  #allocation2 [shape = 'f32[8,256]{1,0:T(8,128)}', space=vmem, size = 0x2000, scoped, tag = 'scratch operand']
  %s0 = inlined_call_operand.vmem [shape: bf16[8,64], index: 0, kind: input, shape index: {}]
  %s1 = inlined_call_operand.vmem [shape: bf16[64,256], index: 1, kind: input, shape index: {}]
  %s2 = inlined_call_operand.vmem [shape: f32[1,256], index: 2, kind: input, shape index: {}]
  %s3 = inlined_call_operand.vmem [shape: bf16[8,256], index: 3, kind: input, shape index: {}]
  %s4 = inlined_call_operand.vmem [shape: bf16[8,256], index: 4, kind: output, shape index: {}]
  %s5 = sld [smem:[#allocation0]]
  $region34: #{modified_resnet_forward.42} parent=0
    _
  %s7 = ssub.s32 1, %s5
  %s8 = scalar_select 0, %s7, %s5
  // Predicated region
  $region2: #{modified_resnet_forward.42} parent=0 // pred_check
    _
  $region3: #{modified_resnet_forward.42} parent=0 // pred_check_branch
    %10 = sbr.rel (0) target = $region5
  $region4: #{modified_resnet_forward.42} parent=0 // pred_region
    _
  $region5: #{modified_resnet_forward.42} parent=0 // pred_fallthru
    _
  // Predicated region
  $region6: #{modified_resnet_forward.42} parent=0 // pred_check
    _
  $region7: #{modified_resnet_forward.42} parent=0 // pred_check_branch
    %12 = sbr.rel (0) target = $region9
  $region8: #{modified_resnet_forward.42} parent=0 // pred_region
    _
  $region9: #{modified_resnet_forward.42} parent=0 // pred_fallthru
    _
  // Predicated region
  $region10: #{modified_resnet_forward.42} parent=0 // pred_check
    _
  $region11: #{modified_resnet_forward.42} parent=0 // pred_check_branch
    %14 = sbr.rel (0) target = $region13
  $region12: #{modified_resnet_forward.42} parent=0 // pred_region
    _
  $region13: #{modified_resnet_forward.42} parent=0 // pred_fallthru
    _
  // Predicated region
  $region14: #{modified_resnet_forward.42} parent=0 // pred_check
    _
  $region15: #{modified_resnet_forward.42} parent=0 // pred_check_branch
    %16 = sbr.rel (0) target = $region17
  $region16: #{modified_resnet_forward.42} parent=0 // pred_region
    _
  $region17: #{modified_resnet_forward.42} parent=0 // pred_fallthru
    _
  %p18 = scmp.eq.s32.totalorder 0, 0
  // Predicated region
  $region18: #{modified_resnet_forward.42} parent=0 // pred_check
    %p19 = pneg %p18
  $region19: #{modified_resnet_forward.42} parent=0 // pred_check_branch
    %21 = sbr.rel (%p19) target = $region21
  $region20: #{modified_resnet_forward.42} parent=0 // pred_region
    %22 = vst [vmem:[#allocation2] sm:$0xff] 0.0
    %23 = vst [vmem:[#allocation2 + $0x8] sm:$0xff] 0.0
  $region21: #{modified_resnet_forward.42} parent=0 // pred_fallthru
    _
  %v24 = vld [vmem:[#allocation2] sm:$0xff]
  %v25 = vld [vmem:[#allocation2 + $0x8] sm:$0xff]
  %v26 = vld [vmem:[%s0] sm:$0xf]
  %v27 = vld [vmem:[%s1] sm:$0xff]
  %v28 = vld [vmem:[%s1 + $0x8] sm:$0xff]
  %v29 = vld [vmem:[%s1 + $0x10] sm:$0xff]
  %v30 = vld [vmem:[%s1 + $0x18] sm:$0xff]
  %v31 = vld [vmem:[%s1 + $0x20] sm:$0xff]
  %v32 = vld [vmem:[%s1 + $0x28] sm:$0xff]
  %v33 = vld [vmem:[%s1 + $0x30] sm:$0xff]
  %v34 = vld [vmem:[%s1 + $0x38] sm:$0xff]
  %v43 = vunpack.c.l.b16 %v27
  %v44 = vunpack.c.h.b16 %v27
  %v45 = vunpack.c.l.b16 %v28
  %v46 = vunpack.c.h.b16 %v28
  %v47 = vunpack.c.l.b16 %v29
  %v48 = vunpack.c.h.b16 %v29
  %v49 = vunpack.c.l.b16 %v30
  %v50 = vunpack.c.h.b16 %v30
  %v51 = vunpack.c.l.b16 %v31
  %v52 = vunpack.c.h.b16 %v31
  %v53 = vunpack.c.l.b16 %v32
  %v54 = vunpack.c.h.b16 %v32
  %v55 = vunpack.c.l.b16 %v33
  %v56 = vunpack.c.h.b16 %v33
  %v57 = vunpack.c.l.b16 %v34
  %v58 = vunpack.c.h.b16 %v34
  %v59 = vpack.c.b16 %v45, %v43
  %v60 = vpack.c.b16 %v46, %v44
  %v61 = vpack.c.b16 %v49, %v47
  %v62 = vpack.c.b16 %v50, %v48
  %v63 = vpack.c.b16 %v53, %v51
  %v64 = vpack.c.b16 %v54, %v52
  %v65 = vpack.c.b16 %v57, %v55
  %v66 = vpack.c.b16 %v58, %v56
  %vm75 = vcmask 523264
  %v77 = vsel %vm75, %v26, 0
  %79 = vmatprep.subr.bf16.mxu0 %v60
  %80 = vmatpush1.bf16.msra.mxu0 %v59
  %81 = vmatprep.subr.bf16.mxu0 %v62
  %82 = vmatpush1.bf16.msra.mxu0 %v61
  %83 = vmatprep.subr.bf16.mxu0 %v64
  %84 = vmatpush1.bf16.msra.mxu0 %v63
  %85 = vmatprep.subr.bf16.mxu0 %v66
  %86 = vmatpush1.bf16.msra.mxu0 %v65
  %87 = vmatprep.subr.bf16.mxu0 0
  %88 = vmatpush1.bf16.msra.mxu0 0
  %89 = vmatprep.subr.bf16.mxu0 0
  %90 = vmatpush1.bf16.msra.mxu0 0
  %91 = vmatprep.subr.bf16.mxu0 0
  %92 = vmatpush1.bf16.msra.mxu0 0
  %93 = vmatprep.subr.bf16.mxu0 0
  %94 = vmatpush1.bf16.msra.mxu0 0
  %95 = vmatprep.subr.bf16.mxu0 0
  %96 = vmatpush1.bf16.msra.mxu0 0
  %97 = vmatprep.subr.bf16.mxu0 0
  %98 = vmatpush1.bf16.msra.mxu0 0
  %99 = vmatprep.subr.bf16.mxu0 0
  %100 = vmatpush1.bf16.msra.mxu0 0
  %101 = vmatprep.subr.bf16.mxu0 0
  %102 = vmatpush1.bf16.msra.mxu0 0
  %103 = vmatprep.subr.bf16.mxu0 0
  %104 = vmatpush1.bf16.msra.mxu0 0
  %105 = vmatprep.subr.bf16.mxu0 0
  %106 = vmatpush1.bf16.msra.mxu0 0
  %107 = vmatprep.subr.bf16.mxu0 0
  %108 = vmatpush1.bf16.msra.mxu0 0
  %109 = vmatprep.subr.bf16.mxu0 0
  %110 = vmatpush1.bf16.msra.mxu0 0
  %111 = vmatprep.mubr.bf16.mxu0 0
  %112 = vmatmul.mubr.bf16.gmra.mrb[0].mxu0 %v77
  %v113 = vpop.f32.mrb[0].mxu0
  %v114 = vadd.f32 0.0, %v113
  %v115 = vpop.f32.mrb[0].mxu0
  %v116 = vadd.f32 0.0, %v115
  %v117 = vpop.f32.mrb[0].mxu0
  %v118 = vpop.f32.mrb[0].mxu0
  %119 = vdwg.mxu0
  %v120 = vadd.f32 %v24, %v114
  %v121 = vadd.f32 %v25, %v116
  %122 = vst [vmem:[#allocation2] sm:$0xff] %v120
  %123 = vst [vmem:[#allocation2 + $0x8] sm:$0xff] %v121
  // Predicated region
  $region22: #{modified_resnet_forward.42} parent=0 // pred_check
    %p124 = pneg %p18
  $region23: #{modified_resnet_forward.42} parent=0 // pred_check_branch
    %126 = sbr.rel (%p124) target = $region25
  $region24: #{modified_resnet_forward.42} parent=0 // pred_region
    %v127 = vld [vmem:[#allocation2] sm:$0xff]
    %v128 = vld [vmem:[#allocation2 + $0x8] sm:$0xff]
    %v129 = vld [vmem:[%s2] sm:$0x3]
    %v131 = vlaneseq
    %v132 = vshrl.u32 %v131, 7
    %v133 = vsub.s32 0, %v132
    %v134 = vrot.slane %v129, %v133
    %v135 = vlaneseq
    %v136 = vshrl.u32 %v135, 7
    %v137 = vsub.s32 1, %v136
    %v138 = vrot.slane %v129, %v137
    %v141 = vadd.f32 %v127, %v134
    %v142 = vadd.f32 %v128, %v138
    %v143 = vld [vmem:[%s3] sm:$0xff]
    %v144 = vunpack.c.l.bf16 %v143
    %v145 = vunpack.c.h.bf16 %v143
    %v146 = vadd.f32 %v141, %v144
    %v147 = vadd.f32 %v142, %v145
    %v148 = vmax.f32 %v146, 0.0
    %v149 = vmax.f32 %v147, 0.0
    %v150 = vpack.c.bf16 %v148, %v148
    %v151 = vpack.c.bf16 %v149, %v149
    %v154 = vunpack.c.l.b16 %v150
    %v155 = vunpack.c.l.b16 %v151
    %v156 = vpack.c.b16 %v155, %v154
    %158 = vst [vmem:[%s4] sm:$0xff] %v156
  $region25: #{modified_resnet_forward.42} parent=0 // pred_fallthru
    _
  // Predicated region
  $region26: #{modified_resnet_forward.42} parent=0 // pred_check
    _
  $region27: #{modified_resnet_forward.42} parent=0 // pred_check_branch
    %160 = sbr.rel (0) target = $region29
  $region28: #{modified_resnet_forward.42} parent=0 // pred_region
    _
  $region29: #{modified_resnet_forward.42} parent=0 // pred_fallthru
    _
  // Predicated region
  $region30: #{modified_resnet_forward.42} parent=0 // pred_check
    _
  $region31: #{modified_resnet_forward.42} parent=0 // pred_check_branch
    %162 = sbr.rel (0) target = $region33
  $region32: #{modified_resnet_forward.42} parent=0 // pred_region
    _
  $region33: #{modified_resnet_forward.42} parent=0 // pred_fallthru
    _

// kernel: modified_resnet_forward.44
$region0: #{modified_resnet_forward.44}
  #allocation0 [shape = 'u32[]', space=smem, size = 0x4, offset = 0x4, fixed_abs, tag = 'smem constant byte address 0x4 - core index']
  #allocation1 [shape = 'u32[144,128]{1,0:T(1,128)}', space=vmem, size = 0x12000, scoped, tag = 'internal scratch']
  #allocation2 [shape = 'f32[8,256]{1,0:T(8,128)}', space=vmem, size = 0x2000, scoped, tag = 'scratch operand']
  %s0 = inlined_call_operand.vmem [shape: bf16[8,256], index: 0, kind: input, shape index: {}]
  %s1 = inlined_call_operand.vmem [shape: bf16[256,256], index: 1, kind: input, shape index: {}]
  %s2 = inlined_call_operand.vmem [shape: f32[1,256], index: 2, kind: input, shape index: {}]
  %s3 = inlined_call_operand.vmem [shape: bf16[8,256], index: 3, kind: output, shape index: {}]
  %s4 = sld [smem:[#allocation0]]
  $region30: #{modified_resnet_forward.44} parent=0
    _
  %s6 = ssub.s32 1, %s4
  %s7 = scalar_select 0, %s6, %s4
  // Predicated region
  $region2: #{modified_resnet_forward.44} parent=0 // pred_check
    _
  $region3: #{modified_resnet_forward.44} parent=0 // pred_check_branch
    %9 = sbr.rel (0) target = $region5
  $region4: #{modified_resnet_forward.44} parent=0 // pred_region
    _
  $region5: #{modified_resnet_forward.44} parent=0 // pred_fallthru
    _
  // Predicated region
  $region6: #{modified_resnet_forward.44} parent=0 // pred_check
    _
  $region7: #{modified_resnet_forward.44} parent=0 // pred_check_branch
    %11 = sbr.rel (0) target = $region9
  $region8: #{modified_resnet_forward.44} parent=0 // pred_region
    _
  $region9: #{modified_resnet_forward.44} parent=0 // pred_fallthru
    _
  // Predicated region
  $region10: #{modified_resnet_forward.44} parent=0 // pred_check
    _
  $region11: #{modified_resnet_forward.44} parent=0 // pred_check_branch
    %13 = sbr.rel (0) target = $region13
  $region12: #{modified_resnet_forward.44} parent=0 // pred_region
    _
  $region13: #{modified_resnet_forward.44} parent=0 // pred_fallthru
    _
  %p14 = scmp.eq.s32.totalorder 0, 0
  // Predicated region
  $region14: #{modified_resnet_forward.44} parent=0 // pred_check
    %p15 = pneg %p14
  $region15: #{modified_resnet_forward.44} parent=0 // pred_check_branch
    %17 = sbr.rel (%p15) target = $region17
  $region16: #{modified_resnet_forward.44} parent=0 // pred_region
    %18 = vst [vmem:[#allocation2] sm:$0xff] 0.0
    %19 = vst [vmem:[#allocation2 + $0x8] sm:$0xff] 0.0
  $region17: #{modified_resnet_forward.44} parent=0 // pred_fallthru
    _
  %v20 = vld [vmem:[#allocation2] sm:$0xff]
  %v21 = vld [vmem:[#allocation2 + $0x8] sm:$0xff]
  %v22 = vld [vmem:[%s0] sm:$0xff]
  %v23 = vld [vmem:[%s1] sm:$0xff]
  %v24 = vld [vmem:[%s1 + $0x8] sm:$0xff]
  %v25 = vld [vmem:[%s1 + $0x10] sm:$0xff]
  %v26 = vld [vmem:[%s1 + $0x18] sm:$0xff]
  %v27 = vld [vmem:[%s1 + $0x20] sm:$0xff]
  %v28 = vld [vmem:[%s1 + $0x28] sm:$0xff]
  %v29 = vld [vmem:[%s1 + $0x30] sm:$0xff]
  %v30 = vld [vmem:[%s1 + $0x38] sm:$0xff]
  %v31 = vld [vmem:[%s1 + $0x40] sm:$0xff]
  %v32 = vld [vmem:[%s1 + $0x48] sm:$0xff]
  %v33 = vld [vmem:[%s1 + $0x50] sm:$0xff]
  %v34 = vld [vmem:[%s1 + $0x58] sm:$0xff]
  %v35 = vld [vmem:[%s1 + $0x60] sm:$0xff]
  %v36 = vld [vmem:[%s1 + $0x68] sm:$0xff]
  %v37 = vld [vmem:[%s1 + $0x70] sm:$0xff]
  %v38 = vld [vmem:[%s1 + $0x78] sm:$0xff]
  %v39 = vld [vmem:[%s1 + $0x80] sm:$0xff]
  %v40 = vld [vmem:[%s1 + $0x88] sm:$0xff]
  %v41 = vld [vmem:[%s1 + $0x90] sm:$0xff]
  %v42 = vld [vmem:[%s1 + $0x98] sm:$0xff]
  %v43 = vld [vmem:[%s1 + $0xa0] sm:$0xff]
  %v44 = vld [vmem:[%s1 + $0xa8] sm:$0xff]
  %v45 = vld [vmem:[%s1 + $0xb0] sm:$0xff]
  %v46 = vld [vmem:[%s1 + $0xb8] sm:$0xff]
  %v47 = vld [vmem:[%s1 + $0xc0] sm:$0xff]
  %v48 = vld [vmem:[%s1 + $0xc8] sm:$0xff]
  %v49 = vld [vmem:[%s1 + $0xd0] sm:$0xff]
  %v50 = vld [vmem:[%s1 + $0xd8] sm:$0xff]
  %v51 = vld [vmem:[%s1 + $0xe0] sm:$0xff]
  %v52 = vld [vmem:[%s1 + $0xe8] sm:$0xff]
  %v53 = vld [vmem:[%s1 + $0xf0] sm:$0xff]
  %v54 = vld [vmem:[%s1 + $0xf8] sm:$0xff]
  %v56 = vunpack.c.l.b16 %v22
  %v57 = vunpack.c.h.b16 %v22
  %v58 = vpack.c.b16 %v56, %v56
  %v59 = vpack.c.b16 %v57, %v57
  %v94 = vunpack.c.l.b16 %v23
  %v95 = vunpack.c.h.b16 %v23
  %v96 = vunpack.c.l.b16 %v24
  %v97 = vunpack.c.h.b16 %v24
  %v98 = vunpack.c.l.b16 %v25
  %v99 = vunpack.c.h.b16 %v25
  %v100 = vunpack.c.l.b16 %v26
  %v101 = vunpack.c.h.b16 %v26
  %v102 = vunpack.c.l.b16 %v27
  %v103 = vunpack.c.h.b16 %v27
  %v104 = vunpack.c.l.b16 %v28
  %v105 = vunpack.c.h.b16 %v28
  %v106 = vunpack.c.l.b16 %v29
  %v107 = vunpack.c.h.b16 %v29
  %v108 = vunpack.c.l.b16 %v30
  %v109 = vunpack.c.h.b16 %v30
  %v110 = vunpack.c.l.b16 %v31
  %v111 = vunpack.c.h.b16 %v31
  %v112 = vunpack.c.l.b16 %v32
  %v113 = vunpack.c.h.b16 %v32
  %v114 = vunpack.c.l.b16 %v33
  %v115 = vunpack.c.h.b16 %v33
  %v116 = vunpack.c.l.b16 %v34
  %v117 = vunpack.c.h.b16 %v34
  %v118 = vunpack.c.l.b16 %v35
  %v119 = vunpack.c.h.b16 %v35
  %v120 = vunpack.c.l.b16 %v36
  %v121 = vunpack.c.h.b16 %v36
  %v122 = vunpack.c.l.b16 %v37
  %v123 = vunpack.c.h.b16 %v37
  %v124 = vunpack.c.l.b16 %v38
  %v125 = vunpack.c.h.b16 %v38
  %v126 = vunpack.c.l.b16 %v39
  %v127 = vunpack.c.h.b16 %v39
  %v128 = vunpack.c.l.b16 %v40
  %v129 = vunpack.c.h.b16 %v40
  %v130 = vunpack.c.l.b16 %v41
  %v131 = vunpack.c.h.b16 %v41
  %v132 = vunpack.c.l.b16 %v42
  %v133 = vunpack.c.h.b16 %v42
  %v134 = vunpack.c.l.b16 %v43
  %v135 = vunpack.c.h.b16 %v43
  %v136 = vunpack.c.l.b16 %v44
  %v137 = vunpack.c.h.b16 %v44
  %v138 = vunpack.c.l.b16 %v45
  %v139 = vunpack.c.h.b16 %v45
  %v140 = vunpack.c.l.b16 %v46
  %v141 = vunpack.c.h.b16 %v46
  %v142 = vunpack.c.l.b16 %v47
  %v143 = vunpack.c.h.b16 %v47
  %v144 = vunpack.c.l.b16 %v48
  %v145 = vunpack.c.h.b16 %v48
  %v146 = vunpack.c.l.b16 %v49
  %v147 = vunpack.c.h.b16 %v49
  %v148 = vunpack.c.l.b16 %v50
  %v149 = vunpack.c.h.b16 %v50
  %v150 = vunpack.c.l.b16 %v51
  %v151 = vunpack.c.h.b16 %v51
  %v152 = vunpack.c.l.b16 %v52
  %v153 = vunpack.c.h.b16 %v52
  %v154 = vunpack.c.l.b16 %v53
  %v155 = vunpack.c.h.b16 %v53
  %v156 = vunpack.c.l.b16 %v54
  %v157 = vunpack.c.h.b16 %v54
  %v158 = vpack.c.b16 %v96, %v94
  %v159 = vpack.c.b16 %v97, %v95
  %v160 = vpack.c.b16 %v100, %v98
  %v161 = vpack.c.b16 %v101, %v99
  %v162 = vpack.c.b16 %v104, %v102
  %v163 = vpack.c.b16 %v105, %v103
  %v164 = vpack.c.b16 %v108, %v106
  %v165 = vpack.c.b16 %v109, %v107
  %v166 = vpack.c.b16 %v112, %v110
  %v167 = vpack.c.b16 %v113, %v111
  %v168 = vpack.c.b16 %v116, %v114
  %v169 = vpack.c.b16 %v117, %v115
  %v170 = vpack.c.b16 %v120, %v118
  %v171 = vpack.c.b16 %v121, %v119
  %v172 = vpack.c.b16 %v124, %v122
  %v173 = vpack.c.b16 %v125, %v123
  %v174 = vpack.c.b16 %v128, %v126
  %v175 = vpack.c.b16 %v129, %v127
  %v176 = vpack.c.b16 %v132, %v130
  %v177 = vpack.c.b16 %v133, %v131
  %v178 = vpack.c.b16 %v136, %v134
  %v179 = vpack.c.b16 %v137, %v135
  %v180 = vpack.c.b16 %v140, %v138
  %v181 = vpack.c.b16 %v141, %v139
  %v182 = vpack.c.b16 %v144, %v142
  %v183 = vpack.c.b16 %v145, %v143
  %v184 = vpack.c.b16 %v148, %v146
  %v185 = vpack.c.b16 %v149, %v147
  %v186 = vpack.c.b16 %v152, %v150
  %v187 = vpack.c.b16 %v153, %v151
  %v188 = vpack.c.b16 %v156, %v154
  %v189 = vpack.c.b16 %v157, %v155
  %222 = vmatprep.subr.bf16.mxu0 %v159
  %223 = vmatpush1.bf16.msra.mxu0 %v158
  %224 = vmatprep.subr.bf16.mxu0 %v161
  %225 = vmatpush1.bf16.msra.mxu0 %v160
  %226 = vmatprep.subr.bf16.mxu0 %v163
  %227 = vmatpush1.bf16.msra.mxu0 %v162
  %228 = vmatprep.subr.bf16.mxu0 %v165
  %229 = vmatpush1.bf16.msra.mxu0 %v164
  %230 = vmatprep.subr.bf16.mxu0 %v167
  %231 = vmatpush1.bf16.msra.mxu0 %v166
  %232 = vmatprep.subr.bf16.mxu0 %v169
  %233 = vmatpush1.bf16.msra.mxu0 %v168
  %234 = vmatprep.subr.bf16.mxu0 %v171
  %235 = vmatpush1.bf16.msra.mxu0 %v170
  %236 = vmatprep.subr.bf16.mxu0 %v173
  %237 = vmatpush1.bf16.msra.mxu0 %v172
  %238 = vmatprep.subr.bf16.mxu0 %v175
  %239 = vmatpush1.bf16.msra.mxu0 %v174
  %240 = vmatprep.subr.bf16.mxu0 %v177
  %241 = vmatpush1.bf16.msra.mxu0 %v176
  %242 = vmatprep.subr.bf16.mxu0 %v179
  %243 = vmatpush1.bf16.msra.mxu0 %v178
  %244 = vmatprep.subr.bf16.mxu0 %v181
  %245 = vmatpush1.bf16.msra.mxu0 %v180
  %246 = vmatprep.subr.bf16.mxu0 %v183
  %247 = vmatpush1.bf16.msra.mxu0 %v182
  %248 = vmatprep.subr.bf16.mxu0 %v185
  %249 = vmatpush1.bf16.msra.mxu0 %v184
  %250 = vmatprep.subr.bf16.mxu0 %v187
  %251 = vmatpush1.bf16.msra.mxu0 %v186
  %252 = vmatprep.subr.bf16.mxu0 %v189
  %253 = vmatpush1.bf16.msra.mxu0 %v188
  %254 = vmatprep.mubr.bf16.mxu0 %v59
  %255 = vmatmul.mubr.bf16.gmra.mrb[0].mxu0 %v58
  %v256 = vpop.f32.mrb[0].mxu0
  %v257 = vadd.f32 0.0, %v256
  %v258 = vpop.f32.mrb[0].mxu0
  %v259 = vadd.f32 0.0, %v258
  %v260 = vpop.f32.mrb[0].mxu0
  %v261 = vpop.f32.mrb[0].mxu0
  %262 = vdwg.mxu0
  %v263 = vadd.f32 %v20, %v257
  %v264 = vadd.f32 %v21, %v259
  %265 = vst [vmem:[#allocation2] sm:$0xff] %v263
  %266 = vst [vmem:[#allocation2 + $0x8] sm:$0xff] %v264
  // Predicated region
  $region18: #{modified_resnet_forward.44} parent=0 // pred_check
    %p267 = pneg %p14
  $region19: #{modified_resnet_forward.44} parent=0 // pred_check_branch
    %269 = sbr.rel (%p267) target = $region21
  $region20: #{modified_resnet_forward.44} parent=0 // pred_region
    %v270 = vld [vmem:[#allocation2] sm:$0xff]
    %v271 = vld [vmem:[#allocation2 + $0x8] sm:$0xff]
    %v272 = vld [vmem:[%s2] sm:$0x3]
    %v274 = vlaneseq
    %v275 = vshrl.u32 %v274, 7
    %v276 = vsub.s32 0, %v275
    %v277 = vrot.slane %v272, %v276
    %v278 = vlaneseq
    %v279 = vshrl.u32 %v278, 7
    %v280 = vsub.s32 1, %v279
    %v281 = vrot.slane %v272, %v280
    %v284 = vadd.f32 %v270, %v277
    %v285 = vadd.f32 %v271, %v281
    %v286 = vpack.c.bf16 %v284, %v284
    %v287 = vpack.c.bf16 %v285, %v285
    %v290 = vunpack.c.l.b16 %v286
    %v291 = vunpack.c.l.b16 %v287
    %v292 = vpack.c.b16 %v291, %v290
    %294 = vst [vmem:[%s3] sm:$0xff] %v292
  $region21: #{modified_resnet_forward.44} parent=0 // pred_fallthru
    _
  // Predicated region
  $region22: #{modified_resnet_forward.44} parent=0 // pred_check
    _
  $region23: #{modified_resnet_forward.44} parent=0 // pred_check_branch
    %296 = sbr.rel (0) target = $region25
  $region24: #{modified_resnet_forward.44} parent=0 // pred_region
    _
  $region25: #{modified_resnet_forward.44} parent=0 // pred_fallthru
    _
  // Predicated region
  $region26: #{modified_resnet_forward.44} parent=0 // pred_check
    _
  $region27: #{modified_resnet_forward.44} parent=0 // pred_check_branch
    %298 = sbr.rel (0) target = $region29
  $region28: #{modified_resnet_forward.44} parent=0 // pred_region
    _
  $region29: #{modified_resnet_forward.44} parent=0 // pred_fallthru
    _

// kernel: modified_resnet_forward.46
$region0: #{modified_resnet_forward.46}
  #allocation0 [shape = 'u32[]', space=smem, size = 0x4, offset = 0x4, fixed_abs, tag = 'smem constant byte address 0x4 - core index']
  #allocation1 [shape = 'u32[144,128]{1,0:T(1,128)}', space=vmem, size = 0x12000, scoped, tag = 'internal scratch']
  %s0 = inlined_call_operand.vmem [shape: bf16[8,1,64], index: 0, kind: input, shape index: {}]
  %s1 = inlined_call_operand.vmem [shape: bf16[8,2,64], index: 1, kind: input, shape index: {}]
  %s2 = inlined_call_operand.vmem [shape: bf16[8,2,64], index: 2, kind: input, shape index: {}]
  %s3 = inlined_call_operand.vmem [shape: bf16[8,1,64], index: 3, kind: output, shape index: {}]
  %s4 = sld [smem:[#allocation0]]
  $region22: #{modified_resnet_forward.46} parent=0
    _
  %s6 = ssub.s32 1, %s4
  %s7 = scalar_select 0, %s6, %s4
  // Predicated region
  $region2: #{modified_resnet_forward.46} parent=0 // pred_check
    _
  $region3: #{modified_resnet_forward.46} parent=0 // pred_check_branch
    %9 = sbr.rel (0) target = $region5
  $region4: #{modified_resnet_forward.46} parent=0 // pred_region
    _
  $region5: #{modified_resnet_forward.46} parent=0 // pred_fallthru
    _
  // Predicated region
  $region6: #{modified_resnet_forward.46} parent=0 // pred_check
    _
  $region7: #{modified_resnet_forward.46} parent=0 // pred_check_branch
    %11 = sbr.rel (0) target = $region9
  $region8: #{modified_resnet_forward.46} parent=0 // pred_region
    _
  $region9: #{modified_resnet_forward.46} parent=0 // pred_fallthru
    _
  // Predicated region
  $region10: #{modified_resnet_forward.46} parent=0 // pred_check
    _
  $region11: #{modified_resnet_forward.46} parent=0 // pred_check_branch
    %13 = sbr.rel (0) target = $region13
  $region12: #{modified_resnet_forward.46} parent=0 // pred_region
    _
  $region13: #{modified_resnet_forward.46} parent=0 // pred_fallthru
    _
  %v14 = vld [vmem:[%s0] sm:$0x1]
  %v15 = vld [vmem:[%s0 + $0x1] sm:$0x1]
  %v16 = vld [vmem:[%s0 + $0x2] sm:$0x1]
  %v17 = vld [vmem:[%s0 + $0x3] sm:$0x1]
  %v18 = vld [vmem:[%s0 + $0x4] sm:$0x1]
  %v19 = vld [vmem:[%s0 + $0x5] sm:$0x1]
  %v20 = vld [vmem:[%s0 + $0x6] sm:$0x1]
  %v21 = vld [vmem:[%s0 + $0x7] sm:$0x1]
  %v22 = vunpack.c.l.bf16 %v14
  %v23 = vunpack.c.l.bf16 %v15
  %v24 = vunpack.c.l.bf16 %v16
  %v25 = vunpack.c.l.bf16 %v17
  %v26 = vunpack.c.l.bf16 %v18
  %v27 = vunpack.c.l.bf16 %v19
  %v28 = vunpack.c.l.bf16 %v20
  %v29 = vunpack.c.l.bf16 %v21
  %v30 = vld [vmem:[%s1] sm:$0x1]
  %v31 = vld [vmem:[%s1 + $0x1] sm:$0x1]
  %v32 = vld [vmem:[%s1 + $0x2] sm:$0x1]
  %v33 = vld [vmem:[%s1 + $0x3] sm:$0x1]
  %v34 = vld [vmem:[%s1 + $0x4] sm:$0x1]
  %v35 = vld [vmem:[%s1 + $0x5] sm:$0x1]
  %v36 = vld [vmem:[%s1 + $0x6] sm:$0x1]
  %v37 = vld [vmem:[%s1 + $0x7] sm:$0x1]
  %v38 = vunpack.c.l.bf16 %v30
  %v39 = vunpack.c.l.bf16 %v31
  %v40 = vunpack.c.l.bf16 %v32
  %v41 = vunpack.c.l.bf16 %v33
  %v42 = vunpack.c.l.bf16 %v34
  %v43 = vunpack.c.l.bf16 %v35
  %v44 = vunpack.c.l.bf16 %v36
  %v45 = vunpack.c.l.bf16 %v37
  %v46 = vld [vmem:[%s2] sm:$0x1]
  %v47 = vld [vmem:[%s2 + $0x1] sm:$0x1]
  %v48 = vld [vmem:[%s2 + $0x2] sm:$0x1]
  %v49 = vld [vmem:[%s2 + $0x3] sm:$0x1]
  %v50 = vld [vmem:[%s2 + $0x4] sm:$0x1]
  %v51 = vld [vmem:[%s2 + $0x5] sm:$0x1]
  %v52 = vld [vmem:[%s2 + $0x6] sm:$0x1]
  %v53 = vld [vmem:[%s2 + $0x7] sm:$0x1]
  %v54 = vunpack.c.l.bf16 %v46
  %v55 = vunpack.c.l.bf16 %v47
  %v56 = vunpack.c.l.bf16 %v48
  %v57 = vunpack.c.l.bf16 %v49
  %v58 = vunpack.c.l.bf16 %v50
  %v59 = vunpack.c.l.bf16 %v51
  %v60 = vunpack.c.l.bf16 %v52
  %v61 = vunpack.c.l.bf16 %v53
  %v62 = vlaneseq
  %v63 = vshrl.u32 %v62, 7
  %v64 = vsub.s32 0, %v63
  %v65 = vrot.slane %v22, %v64
  %v66 = vlaneseq
  %v67 = vshrl.u32 %v66, 7
  %v68 = vsub.s32 0, %v67
  %v69 = vrot.slane %v23, %v68
  %v70 = vlaneseq
  %v71 = vshrl.u32 %v70, 7
  %v72 = vsub.s32 0, %v71
  %v73 = vrot.slane %v24, %v72
  %v74 = vlaneseq
  %v75 = vshrl.u32 %v74, 7
  %v76 = vsub.s32 0, %v75
  %v77 = vrot.slane %v25, %v76
  %v78 = vlaneseq
  %v79 = vshrl.u32 %v78, 7
  %v80 = vsub.s32 0, %v79
  %v81 = vrot.slane %v26, %v80
  %v82 = vlaneseq
  %v83 = vshrl.u32 %v82, 7
  %v84 = vsub.s32 0, %v83
  %v85 = vrot.slane %v27, %v84
  %v86 = vlaneseq
  %v87 = vshrl.u32 %v86, 7
  %v88 = vsub.s32 0, %v87
  %v89 = vrot.slane %v28, %v88
  %v90 = vlaneseq
  %v91 = vshrl.u32 %v90, 7
  %v92 = vsub.s32 0, %v91
  %v93 = vrot.slane %v29, %v92
  %v94 = vmul.f32 %v65, %v38
  %v95 = vmul.f32 %v69, %v39
  %v96 = vmul.f32 %v73, %v40
  %v97 = vmul.f32 %v77, %v41
  %v98 = vmul.f32 %v81, %v42
  %v99 = vmul.f32 %v85, %v43
  %v100 = vmul.f32 %v89, %v44
  %v101 = vmul.f32 %v93, %v45
  %vm102 = vcmask 517120
  %v103 = vsel %vm102, %v94, 0.0
  %104 = vadd.xlane.f32.xlu0 %v103
  %v105 = vpop.xlane.xlu0 %104
  %v106 = vsel %vm102, %v95, 0.0
  %107 = vadd.xlane.f32.xlu0 %v106
  %v108 = vpop.xlane.xlu0 %107
  %v109 = vsel %vm102, %v96, 0.0
  %110 = vadd.xlane.f32.xlu0 %v109
  %v111 = vpop.xlane.xlu0 %110
  %v112 = vsel %vm102, %v97, 0.0
  %113 = vadd.xlane.f32.xlu0 %v112
  %v114 = vpop.xlane.xlu0 %113
  %v115 = vsel %vm102, %v98, 0.0
  %116 = vadd.xlane.f32.xlu0 %v115
  %v117 = vpop.xlane.xlu0 %116
  %v118 = vsel %vm102, %v99, 0.0
  %119 = vadd.xlane.f32.xlu0 %v118
  %v120 = vpop.xlane.xlu0 %119
  %v121 = vsel %vm102, %v100, 0.0
  %122 = vadd.xlane.f32.xlu0 %v121
  %v123 = vpop.xlane.xlu0 %122
  %v124 = vsel %vm102, %v101, 0.0
  %125 = vadd.xlane.f32.xlu0 %v124
  %v126 = vpop.xlane.xlu0 %125
  %v135 = vlaneseq
  %v136 = vand.u32 %v135, 127
  %v137 = vlaneseq
  %v138 = vshrl.u32 %v137, 7
  %v139 = vsub.s32 %v136, %v138
  %v140 = vrot.slane %v105, %v139
  %v141 = vlaneseq
  %v142 = vshrl.u32 %v141, 7
  %v143 = vsub.s32 %v136, %v142
  %v144 = vrot.slane %v108, %v143
  %v145 = vlaneseq
  %v146 = vshrl.u32 %v145, 7
  %v147 = vsub.s32 %v136, %v146
  %v148 = vrot.slane %v111, %v147
  %v149 = vlaneseq
  %v150 = vshrl.u32 %v149, 7
  %v151 = vsub.s32 %v136, %v150
  %v152 = vrot.slane %v114, %v151
  %v153 = vlaneseq
  %v154 = vshrl.u32 %v153, 7
  %v155 = vsub.s32 %v136, %v154
  %v156 = vrot.slane %v117, %v155
  %v157 = vlaneseq
  %v158 = vshrl.u32 %v157, 7
  %v159 = vsub.s32 %v136, %v158
  %v160 = vrot.slane %v120, %v159
  %v161 = vlaneseq
  %v162 = vshrl.u32 %v161, 7
  %v163 = vsub.s32 %v136, %v162
  %v164 = vrot.slane %v123, %v163
  %v165 = vlaneseq
  %v166 = vshrl.u32 %v165, 7
  %v167 = vsub.s32 %v136, %v166
  %v168 = vrot.slane %v126, %v167
  %vm169 = vcmask 1041409
  %v170 = vsel %vm169, %v144, %v140
  %vm171 = vcmask 1042434
  %v172 = vsel %vm171, %v148, %v170
  %vm173 = vcmask 1043459
  %v174 = vsel %vm173, %v152, %v172
  %vm175 = vcmask 1044484
  %v176 = vsel %vm175, %v156, %v174
  %vm177 = vcmask 1045509
  %v178 = vsel %vm177, %v160, %v176
  %vm179 = vcmask 1046534
  %v180 = vsel %vm179, %v164, %v178
  %vm181 = vcmask 1047559
  %v182 = vsel %vm181, %v168, %v180
  %vm184 = vcmask 15360
  %v185 = vsel %vm184, %v182, -inf
  %186 = vmax.xlane.f32.xlu0 %v185
  %v187 = vpop.xlane.xlu0 %186
  %v189 = vlaneseq
  %v190 = vshrl.u32 %v189, 7
  %v191 = vsub.s32 0, %v190
  %v192 = vrot.slane %v187, %v191
  %v193 = vlaneseq
  %v194 = vshrl.u32 %v193, 7
  %v195 = vsub.s32 1, %v194
  %v196 = vrot.slane %v187, %v195
  %v197 = vlaneseq
  %v198 = vshrl.u32 %v197, 7
  %v199 = vsub.s32 2, %v198
  %v200 = vrot.slane %v187, %v199
  %v201 = vlaneseq
  %v202 = vshrl.u32 %v201, 7
  %v203 = vsub.s32 3, %v202
  %v204 = vrot.slane %v187, %v203
  %v205 = vlaneseq
  %v206 = vshrl.u32 %v205, 7
  %v207 = vsub.s32 4, %v206
  %v208 = vrot.slane %v187, %v207
  %v209 = vlaneseq
  %v210 = vshrl.u32 %v209, 7
  %v211 = vsub.s32 5, %v210
  %v212 = vrot.slane %v187, %v211
  %v213 = vlaneseq
  %v214 = vshrl.u32 %v213, 7
  %v215 = vsub.s32 6, %v214
  %v216 = vrot.slane %v187, %v215
  %v217 = vlaneseq
  %v218 = vshrl.u32 %v217, 7
  %v219 = vsub.s32 7, %v218
  %v220 = vrot.slane %v187, %v219
  %v229 = vsub.f32 %v105, %v192
  %v230 = vsub.f32 %v108, %v196
  %v231 = vsub.f32 %v111, %v200
  %v232 = vsub.f32 %v114, %v204
  %v233 = vsub.f32 %v117, %v208
  %v234 = vsub.f32 %v120, %v212
  %v235 = vsub.f32 %v123, %v216
  %v236 = vsub.f32 %v126, %v220
  %v237 = vmul.f32 %v229, 1.442695
  %v238 = vpow.pop %v237
  %v239 = vmul.f32 %v230, 1.442695
  %v240 = vpow.pop %v239
  %v241 = vmul.f32 %v231, 1.442695
  %v242 = vpow.pop %v241
  %v243 = vmul.f32 %v232, 1.442695
  %v244 = vpow.pop %v243
  %v245 = vmul.f32 %v233, 1.442695
  %v246 = vpow.pop %v245
  %v247 = vmul.f32 %v234, 1.442695
  %v248 = vpow.pop %v247
  %v249 = vmul.f32 %v235, 1.442695
  %v250 = vpow.pop %v249
  %v251 = vmul.f32 %v236, 1.442695
  %v252 = vpow.pop %v251
  %261 = vset.pattern.permute.xlu0 0
  %262 = vperm.xlu0 %261, %v238
  %v263 = vpop.permute.xlu0 %262
  %264 = vset.pattern.permute.xlu0 0
  %265 = vperm.xlu0 %264, %v240
  %v266 = vpop.permute.xlu0 %265
  %267 = vset.pattern.permute.xlu0 0
  %268 = vperm.xlu0 %267, %v242
  %v269 = vpop.permute.xlu0 %268
  %270 = vset.pattern.permute.xlu0 0
  %271 = vperm.xlu0 %270, %v244
  %v272 = vpop.permute.xlu0 %271
  %273 = vset.pattern.permute.xlu0 0
  %274 = vperm.xlu0 %273, %v246
  %v275 = vpop.permute.xlu0 %274
  %276 = vset.pattern.permute.xlu0 0
  %277 = vperm.xlu0 %276, %v248
  %v278 = vpop.permute.xlu0 %277
  %279 = vset.pattern.permute.xlu0 0
  %280 = vperm.xlu0 %279, %v250
  %v281 = vpop.permute.xlu0 %280
  %282 = vset.pattern.permute.xlu0 0
  %283 = vperm.xlu0 %282, %v252
  %v284 = vpop.permute.xlu0 %283
  %v285 = vlaneseq
  %v286 = vshrl.u32 %v285, 7
  %v287 = vsub.s32 %v136, %v286
  %v288 = vrot.slane %v263, %v287
  %v289 = vlaneseq
  %v290 = vshrl.u32 %v289, 7
  %v291 = vsub.s32 %v136, %v290
  %v292 = vrot.slane %v266, %v291
  %v293 = vlaneseq
  %v294 = vshrl.u32 %v293, 7
  %v295 = vsub.s32 %v136, %v294
  %v296 = vrot.slane %v269, %v295
  %v297 = vlaneseq
  %v298 = vshrl.u32 %v297, 7
  %v299 = vsub.s32 %v136, %v298
  %v300 = vrot.slane %v272, %v299
  %v301 = vlaneseq
  %v302 = vshrl.u32 %v301, 7
  %v303 = vsub.s32 %v136, %v302
  %v304 = vrot.slane %v275, %v303
  %v305 = vlaneseq
  %v306 = vshrl.u32 %v305, 7
  %v307 = vsub.s32 %v136, %v306
  %v308 = vrot.slane %v278, %v307
  %v309 = vlaneseq
  %v310 = vshrl.u32 %v309, 7
  %v311 = vsub.s32 %v136, %v310
  %v312 = vrot.slane %v281, %v311
  %v313 = vlaneseq
  %v314 = vshrl.u32 %v313, 7
  %v315 = vsub.s32 %v136, %v314
  %v316 = vrot.slane %v284, %v315
  %v317 = vsel %vm169, %v292, %v288
  %v318 = vsel %vm171, %v296, %v317
  %v319 = vsel %vm173, %v300, %v318
  %v320 = vsel %vm175, %v304, %v319
  %v321 = vsel %vm177, %v308, %v320
  %v322 = vsel %vm179, %v312, %v321
  %v323 = vsel %vm181, %v316, %v322
  %v325 = vsel %vm184, %v323, 0.0
  %326 = vadd.xlane.f32.xlu0 %v325
  %v327 = vpop.xlane.xlu0 %326
  %v328 = vrcp.pop %v327
  %v330 = vlaneseq
  %v331 = vshrl.u32 %v330, 7
  %v332 = vsub.s32 0, %v331
  %v333 = vrot.slane %v328, %v332
  %v334 = vlaneseq
  %v335 = vshrl.u32 %v334, 7
  %v336 = vsub.s32 1, %v335
  %v337 = vrot.slane %v328, %v336
  %v338 = vlaneseq
  %v339 = vshrl.u32 %v338, 7
  %v340 = vsub.s32 2, %v339
  %v341 = vrot.slane %v328, %v340
  %v342 = vlaneseq
  %v343 = vshrl.u32 %v342, 7
  %v344 = vsub.s32 3, %v343
  %v345 = vrot.slane %v328, %v344
  %v346 = vlaneseq
  %v347 = vshrl.u32 %v346, 7
  %v348 = vsub.s32 4, %v347
  %v349 = vrot.slane %v328, %v348
  %v350 = vlaneseq
  %v351 = vshrl.u32 %v350, 7
  %v352 = vsub.s32 5, %v351
  %v353 = vrot.slane %v328, %v352
  %v354 = vlaneseq
  %v355 = vshrl.u32 %v354, 7
  %v356 = vsub.s32 6, %v355
  %v357 = vrot.slane %v328, %v356
  %v358 = vlaneseq
  %v359 = vshrl.u32 %v358, 7
  %v360 = vsub.s32 7, %v359
  %v361 = vrot.slane %v328, %v360
  %v370 = vmul.f32 %v238, %v333
  %v371 = vmul.f32 %v240, %v337
  %v372 = vmul.f32 %v242, %v341
  %v373 = vmul.f32 %v244, %v345
  %v374 = vmul.f32 %v246, %v349
  %v375 = vmul.f32 %v248, %v353
  %v376 = vmul.f32 %v250, %v357
  %v377 = vmul.f32 %v252, %v361
  %379 = vset.pattern.permute.xlu0 0
  %380 = vperm.xlu0 %379, %v370
  %v381 = vpop.permute.xlu0 %380
  %384 = vset.pattern.permute.xlu0 0
  %385 = vperm.xlu0 %384, %v371
  %v386 = vpop.permute.xlu0 %385
  %389 = vset.pattern.permute.xlu0 0
  %390 = vperm.xlu0 %389, %v372
  %v391 = vpop.permute.xlu0 %390
  %394 = vset.pattern.permute.xlu0 0
  %395 = vperm.xlu0 %394, %v373
  %v396 = vpop.permute.xlu0 %395
  %399 = vset.pattern.permute.xlu0 0
  %400 = vperm.xlu0 %399, %v374
  %v401 = vpop.permute.xlu0 %400
  %404 = vset.pattern.permute.xlu0 0
  %405 = vperm.xlu0 %404, %v375
  %v406 = vpop.permute.xlu0 %405
  %409 = vset.pattern.permute.xlu0 0
  %410 = vperm.xlu0 %409, %v376
  %v411 = vpop.permute.xlu0 %410
  %414 = vset.pattern.permute.xlu0 0
  %415 = vperm.xlu0 %414, %v377
  %v416 = vpop.permute.xlu0 %415
  %v418 = vmul.f32 %v381, %v54
  %v419 = vmul.f32 %v386, %v55
  %v420 = vmul.f32 %v391, %v56
  %v421 = vmul.f32 %v396, %v57
  %v422 = vmul.f32 %v401, %v58
  %v423 = vmul.f32 %v406, %v59
  %v424 = vmul.f32 %v411, %v60
  %v425 = vmul.f32 %v416, %v61
  %v426 = vsel %vm102, %v418, 0.0
  %v427 = vrot.slane %v426, 4
  %v428 = vadd.f32 %v426, %v427
  %v429 = vrot.slane %v428, 2
  %v430 = vadd.f32 %v428, %v429
  %v431 = vrot.slane %v430, 1
  %v432 = vadd.f32 %v430, %v431
  %v433 = vsel %vm102, %v419, 0.0
  %v434 = vrot.slane %v433, 4
  %v435 = vadd.f32 %v433, %v434
  %v436 = vrot.slane %v435, 2
  %v437 = vadd.f32 %v435, %v436
  %v438 = vrot.slane %v437, 1
  %v439 = vadd.f32 %v437, %v438
  %v440 = vsel %vm102, %v420, 0.0
  %v441 = vrot.slane %v440, 4
  %v442 = vadd.f32 %v440, %v441
  %v443 = vrot.slane %v442, 2
  %v444 = vadd.f32 %v442, %v443
  %v445 = vrot.slane %v444, 1
  %v446 = vadd.f32 %v444, %v445
  %v447 = vsel %vm102, %v421, 0.0
  %v448 = vrot.slane %v447, 4
  %v449 = vadd.f32 %v447, %v448
  %v450 = vrot.slane %v449, 2
  %v451 = vadd.f32 %v449, %v450
  %v452 = vrot.slane %v451, 1
  %v453 = vadd.f32 %v451, %v452
  %v454 = vsel %vm102, %v422, 0.0
  %v455 = vrot.slane %v454, 4
  %v456 = vadd.f32 %v454, %v455
  %v457 = vrot.slane %v456, 2
  %v458 = vadd.f32 %v456, %v457
  %v459 = vrot.slane %v458, 1
  %v460 = vadd.f32 %v458, %v459
  %v461 = vsel %vm102, %v423, 0.0
  %v462 = vrot.slane %v461, 4
  %v463 = vadd.f32 %v461, %v462
  %v464 = vrot.slane %v463, 2
  %v465 = vadd.f32 %v463, %v464
  %v466 = vrot.slane %v465, 1
  %v467 = vadd.f32 %v465, %v466
  %v468 = vsel %vm102, %v424, 0.0
  %v469 = vrot.slane %v468, 4
  %v470 = vadd.f32 %v468, %v469
  %v471 = vrot.slane %v470, 2
  %v472 = vadd.f32 %v470, %v471
  %v473 = vrot.slane %v472, 1
  %v474 = vadd.f32 %v472, %v473
  %v475 = vsel %vm102, %v425, 0.0
  %v476 = vrot.slane %v475, 4
  %v477 = vadd.f32 %v475, %v476
  %v478 = vrot.slane %v477, 2
  %v479 = vadd.f32 %v477, %v478
  %v480 = vrot.slane %v479, 1
  %v481 = vadd.f32 %v479, %v480
  %v482 = vpack.c.bf16 %v432, %v432
  %v483 = vpack.c.bf16 %v439, %v439
  %v484 = vpack.c.bf16 %v446, %v446
  %v485 = vpack.c.bf16 %v453, %v453
  %v486 = vpack.c.bf16 %v460, %v460
  %v487 = vpack.c.bf16 %v467, %v467
  %v488 = vpack.c.bf16 %v474, %v474
  %v489 = vpack.c.bf16 %v481, %v481
  %vm490 = vcmask 516096
  %vm491 = vsmask.f32 256
  %vm492 = vmand %vm490, %vm491
  %v493 = vld [vmem:[%s3] sm:$0x1]
  %v494 = vsel %vm492, %v482, %v493
  %495 = vst [vmem:[%s3] sm:$0x1] %v494
  %v496 = vld [vmem:[%s3 + $0x1] sm:$0x1]
  %v497 = vsel %vm492, %v483, %v496
  %498 = vst [vmem:[%s3 + $0x1] sm:$0x1] %v497
  %v499 = vld [vmem:[%s3 + $0x2] sm:$0x1]
  %v500 = vsel %vm492, %v484, %v499
  %501 = vst [vmem:[%s3 + $0x2] sm:$0x1] %v500
  %v502 = vld [vmem:[%s3 + $0x3] sm:$0x1]
  %v503 = vsel %vm492, %v485, %v502
  %504 = vst [vmem:[%s3 + $0x3] sm:$0x1] %v503
  %v505 = vld [vmem:[%s3 + $0x4] sm:$0x1]
  %v506 = vsel %vm492, %v486, %v505
  %507 = vst [vmem:[%s3 + $0x4] sm:$0x1] %v506
  %v508 = vld [vmem:[%s3 + $0x5] sm:$0x1]
  %v509 = vsel %vm492, %v487, %v508
  %510 = vst [vmem:[%s3 + $0x5] sm:$0x1] %v509
  %v511 = vld [vmem:[%s3 + $0x6] sm:$0x1]
  %v512 = vsel %vm492, %v488, %v511
  %513 = vst [vmem:[%s3 + $0x6] sm:$0x1] %v512
  %v514 = vld [vmem:[%s3 + $0x7] sm:$0x1]
  %v515 = vsel %vm492, %v489, %v514
  %516 = vst [vmem:[%s3 + $0x7] sm:$0x1] %v515
  // Predicated region
  $region14: #{modified_resnet_forward.46} parent=0 // pred_check
    _
  $region15: #{modified_resnet_forward.46} parent=0 // pred_check_branch
    %518 = sbr.rel (0) target = $region17
  $region16: #{modified_resnet_forward.46} parent=0 // pred_region
    _
  $region17: #{modified_resnet_forward.46} parent=0 // pred_fallthru
    _
  // Predicated region
  $region18: #{modified_resnet_forward.46} parent=0 // pred_check
    _
  $region19: #{modified_resnet_forward.46} parent=0 // pred_check_branch
    %520 = sbr.rel (0) target = $region21
  $region20: #{modified_resnet_forward.46} parent=0 // pred_region
    _
  $region21: #{modified_resnet_forward.46} parent=0 // pred_fallthru
    _

// kernel: modified_resnet_forward.47
$region0: #{modified_resnet_forward.47}
  #allocation0 [shape = 'u32[]', space=smem, size = 0x4, offset = 0x4, fixed_abs, tag = 'smem constant byte address 0x4 - core index']
  #allocation1 [shape = 'u32[144,128]{1,0:T(1,128)}', space=vmem, size = 0x12000, scoped, tag = 'internal scratch']
  #allocation2 [shape = 'f32[8,128]{1,0:T(8,128)}', space=vmem, size = 0x1000, scoped, tag = 'scratch operand']
  %s0 = inlined_call_operand.vmem [shape: bf16[8,256], index: 0, kind: input, shape index: {}]
  %s1 = inlined_call_operand.vmem [shape: bf16[256,128], index: 1, kind: input, shape index: {}]
  %s2 = inlined_call_operand.vmem [shape: f32[1,128], index: 2, kind: input, shape index: {}]
  %s3 = inlined_call_operand.vmem [shape: f32[8,128], index: 3, kind: output, shape index: {}]
  %s4 = sld [smem:[#allocation0]]
  $region30: #{modified_resnet_forward.47} parent=0
    _
  %s6 = ssub.s32 1, %s4
  %s7 = scalar_select 0, %s6, %s4
  // Predicated region
  $region2: #{modified_resnet_forward.47} parent=0 // pred_check
    _
  $region3: #{modified_resnet_forward.47} parent=0 // pred_check_branch
    %9 = sbr.rel (0) target = $region5
  $region4: #{modified_resnet_forward.47} parent=0 // pred_region
    _
  $region5: #{modified_resnet_forward.47} parent=0 // pred_fallthru
    _
  // Predicated region
  $region6: #{modified_resnet_forward.47} parent=0 // pred_check
    _
  $region7: #{modified_resnet_forward.47} parent=0 // pred_check_branch
    %11 = sbr.rel (0) target = $region9
  $region8: #{modified_resnet_forward.47} parent=0 // pred_region
    _
  $region9: #{modified_resnet_forward.47} parent=0 // pred_fallthru
    _
  // Predicated region
  $region10: #{modified_resnet_forward.47} parent=0 // pred_check
    _
  $region11: #{modified_resnet_forward.47} parent=0 // pred_check_branch
    %13 = sbr.rel (0) target = $region13
  $region12: #{modified_resnet_forward.47} parent=0 // pred_region
    _
  $region13: #{modified_resnet_forward.47} parent=0 // pred_fallthru
    _
  %p15 = scmp.eq.s32.totalorder 0, 0
  // Predicated region
  $region14: #{modified_resnet_forward.47} parent=0 // pred_check
    %p16 = pneg %p15
  $region15: #{modified_resnet_forward.47} parent=0 // pred_check_branch
    %18 = sbr.rel (%p16) target = $region17
  $region16: #{modified_resnet_forward.47} parent=0 // pred_region
    %19 = vst [vmem:[#allocation2] sm:$0xff] 0.0
  $region17: #{modified_resnet_forward.47} parent=0 // pred_fallthru
    _
  %v20 = vld [vmem:[#allocation2] sm:$0xff]
  %v21 = vld [vmem:[%s0] sm:$0xff]
  %v22 = vld [vmem:[%s1] sm:$0xf]
  %v23 = vld [vmem:[%s1 + $0x4] sm:$0xf]
  %v24 = vld [vmem:[%s1 + $0x8] sm:$0xf]
  %v25 = vld [vmem:[%s1 + $0xc] sm:$0xf]
  %v26 = vld [vmem:[%s1 + $0x10] sm:$0xf]
  %v27 = vld [vmem:[%s1 + $0x14] sm:$0xf]
  %v28 = vld [vmem:[%s1 + $0x18] sm:$0xf]
  %v29 = vld [vmem:[%s1 + $0x1c] sm:$0xf]
  %v30 = vld [vmem:[%s1 + $0x20] sm:$0xf]
  %v31 = vld [vmem:[%s1 + $0x24] sm:$0xf]
  %v32 = vld [vmem:[%s1 + $0x28] sm:$0xf]
  %v33 = vld [vmem:[%s1 + $0x2c] sm:$0xf]
  %v34 = vld [vmem:[%s1 + $0x30] sm:$0xf]
  %v35 = vld [vmem:[%s1 + $0x34] sm:$0xf]
  %v36 = vld [vmem:[%s1 + $0x38] sm:$0xf]
  %v37 = vld [vmem:[%s1 + $0x3c] sm:$0xf]
  %v38 = vld [vmem:[%s1 + $0x40] sm:$0xf]
  %v39 = vld [vmem:[%s1 + $0x44] sm:$0xf]
  %v40 = vld [vmem:[%s1 + $0x48] sm:$0xf]
  %v41 = vld [vmem:[%s1 + $0x4c] sm:$0xf]
  %v42 = vld [vmem:[%s1 + $0x50] sm:$0xf]
  %v43 = vld [vmem:[%s1 + $0x54] sm:$0xf]
  %v44 = vld [vmem:[%s1 + $0x58] sm:$0xf]
  %v45 = vld [vmem:[%s1 + $0x5c] sm:$0xf]
  %v46 = vld [vmem:[%s1 + $0x60] sm:$0xf]
  %v47 = vld [vmem:[%s1 + $0x64] sm:$0xf]
  %v48 = vld [vmem:[%s1 + $0x68] sm:$0xf]
  %v49 = vld [vmem:[%s1 + $0x6c] sm:$0xf]
  %v50 = vld [vmem:[%s1 + $0x70] sm:$0xf]
  %v51 = vld [vmem:[%s1 + $0x74] sm:$0xf]
  %v52 = vld [vmem:[%s1 + $0x78] sm:$0xf]
  %v53 = vld [vmem:[%s1 + $0x7c] sm:$0xf]
  %v55 = vunpack.c.l.b16 %v21
  %v56 = vunpack.c.h.b16 %v21
  %v57 = vpack.c.b16 %v55, %v55
  %v58 = vpack.c.b16 %v56, %v56
  %v93 = vunpack.c.l.b16 %v22
  %v94 = vunpack.c.l.b16 %v23
  %v95 = vunpack.c.l.b16 %v24
  %v96 = vunpack.c.l.b16 %v25
  %v97 = vunpack.c.l.b16 %v26
  %v98 = vunpack.c.l.b16 %v27
  %v99 = vunpack.c.l.b16 %v28
  %v100 = vunpack.c.l.b16 %v29
  %v101 = vunpack.c.l.b16 %v30
  %v102 = vunpack.c.l.b16 %v31
  %v103 = vunpack.c.l.b16 %v32
  %v104 = vunpack.c.l.b16 %v33
  %v105 = vunpack.c.l.b16 %v34
  %v106 = vunpack.c.l.b16 %v35
  %v107 = vunpack.c.l.b16 %v36
  %v108 = vunpack.c.l.b16 %v37
  %v109 = vunpack.c.l.b16 %v38
  %v110 = vunpack.c.l.b16 %v39
  %v111 = vunpack.c.l.b16 %v40
  %v112 = vunpack.c.l.b16 %v41
  %v113 = vunpack.c.l.b16 %v42
  %v114 = vunpack.c.l.b16 %v43
  %v115 = vunpack.c.l.b16 %v44
  %v116 = vunpack.c.l.b16 %v45
  %v117 = vunpack.c.l.b16 %v46
  %v118 = vunpack.c.l.b16 %v47
  %v119 = vunpack.c.l.b16 %v48
  %v120 = vunpack.c.l.b16 %v49
  %v121 = vunpack.c.l.b16 %v50
  %v122 = vunpack.c.l.b16 %v51
  %v123 = vunpack.c.l.b16 %v52
  %v124 = vunpack.c.l.b16 %v53
  %v125 = vpack.c.b16 %v94, %v93
  %v126 = vpack.c.b16 %v96, %v95
  %v127 = vpack.c.b16 %v98, %v97
  %v128 = vpack.c.b16 %v100, %v99
  %v129 = vpack.c.b16 %v102, %v101
  %v130 = vpack.c.b16 %v104, %v103
  %v131 = vpack.c.b16 %v106, %v105
  %v132 = vpack.c.b16 %v108, %v107
  %v133 = vpack.c.b16 %v110, %v109
  %v134 = vpack.c.b16 %v112, %v111
  %v135 = vpack.c.b16 %v114, %v113
  %v136 = vpack.c.b16 %v116, %v115
  %v137 = vpack.c.b16 %v118, %v117
  %v138 = vpack.c.b16 %v120, %v119
  %v139 = vpack.c.b16 %v122, %v121
  %v140 = vpack.c.b16 %v124, %v123
  %157 = vmatprep.subr.bf16.mxu0 0
  %158 = vmatpush1.bf16.msra.mxu0 %v125
  %159 = vmatprep.subr.bf16.mxu0 0
  %160 = vmatpush1.bf16.msra.mxu0 %v126
  %161 = vmatprep.subr.bf16.mxu0 0
  %162 = vmatpush1.bf16.msra.mxu0 %v127
  %163 = vmatprep.subr.bf16.mxu0 0
  %164 = vmatpush1.bf16.msra.mxu0 %v128
  %165 = vmatprep.subr.bf16.mxu0 0
  %166 = vmatpush1.bf16.msra.mxu0 %v129
  %167 = vmatprep.subr.bf16.mxu0 0
  %168 = vmatpush1.bf16.msra.mxu0 %v130
  %169 = vmatprep.subr.bf16.mxu0 0
  %170 = vmatpush1.bf16.msra.mxu0 %v131
  %171 = vmatprep.subr.bf16.mxu0 0
  %172 = vmatpush1.bf16.msra.mxu0 %v132
  %173 = vmatprep.subr.bf16.mxu0 0
  %174 = vmatpush1.bf16.msra.mxu0 %v133
  %175 = vmatprep.subr.bf16.mxu0 0
  %176 = vmatpush1.bf16.msra.mxu0 %v134
  %177 = vmatprep.subr.bf16.mxu0 0
  %178 = vmatpush1.bf16.msra.mxu0 %v135
  %179 = vmatprep.subr.bf16.mxu0 0
  %180 = vmatpush1.bf16.msra.mxu0 %v136
  %181 = vmatprep.subr.bf16.mxu0 0
  %182 = vmatpush1.bf16.msra.mxu0 %v137
  %183 = vmatprep.subr.bf16.mxu0 0
  %184 = vmatpush1.bf16.msra.mxu0 %v138
  %185 = vmatprep.subr.bf16.mxu0 0
  %186 = vmatpush1.bf16.msra.mxu0 %v139
  %187 = vmatprep.subr.bf16.mxu0 0
  %188 = vmatpush1.bf16.msra.mxu0 %v140
  %189 = vmatprep.mubr.bf16.mxu0 %v58
  %190 = vmatmul.mubr.bf16.gmra.mrb[0].mxu0 %v57
  %v191 = vpop.f32.mrb[0].mxu0
  %v192 = vadd.f32 0.0, %v191
  %v193 = vpop.f32.mrb[0].mxu0
  %v194 = vpop.f32.mrb[0].mxu0
  %v195 = vpop.f32.mrb[0].mxu0
  %196 = vdwg.mxu0
  %v197 = vadd.f32 %v20, %v192
  %198 = vst [vmem:[#allocation2] sm:$0xff] %v197
  // Predicated region
  $region18: #{modified_resnet_forward.47} parent=0 // pred_check
    %p199 = pneg %p15
  $region19: #{modified_resnet_forward.47} parent=0 // pred_check_branch
    %201 = sbr.rel (%p199) target = $region21
  $region20: #{modified_resnet_forward.47} parent=0 // pred_region
    %v202 = vld [vmem:[#allocation2] sm:$0xff]
    %v203 = vld [vmem:[%s2] sm:$0x1]
    %v205 = vlaneseq
    %v206 = vshrl.u32 %v205, 7
    %v207 = vsub.s32 0, %v206
    %v208 = vrot.slane %v203, %v207
    %v210 = vadd.f32 %v202, %v208
    %211 = vst [vmem:[%s3] sm:$0xff] %v210
  $region21: #{modified_resnet_forward.47} parent=0 // pred_fallthru
    _
  // Predicated region
  $region22: #{modified_resnet_forward.47} parent=0 // pred_check
    _
  $region23: #{modified_resnet_forward.47} parent=0 // pred_check_branch
    %213 = sbr.rel (0) target = $region25
  $region24: #{modified_resnet_forward.47} parent=0 // pred_region
    _
  $region25: #{modified_resnet_forward.47} parent=0 // pred_fallthru
    _
  // Predicated region
  $region26: #{modified_resnet_forward.47} parent=0 // pred_check
    _
  $region27: #{modified_resnet_forward.47} parent=0 // pred_check_branch
    %215 = sbr.rel (0) target = $region29
  $region28: #{modified_resnet_forward.47} parent=0 // pred_region
    _
  $region29: #{modified_resnet_forward.47} parent=0 // pred_fallthru
    _

</llo_original>
